<compile_context>
chip_gen: v5e
topology: v5e:2x2
jax: 0.10.0
libtpu: 0.0.40
codegen_flags: <defaults>
</compile_context>

<pallas_src>
import math

import jax
import jax.numpy as jnp
from jax import lax
from jax.experimental import pallas as pl
from jax.experimental.pallas import tpu as pltpu

EPS = 1e-5  # PyTorch GroupNorm default eps


# ---------------------------------------------------------------------------
# In-kernel GroupNorm helpers (stats in f32, bf16 fused output)
# ---------------------------------------------------------------------------
def _gn_relu_blocked(x, st, s, gamma, beta, group_bcast, inv_count):
    """Per-sample GroupNorm + ReLU over a row-blocked [rows, C] tile -> bf16.

    x           [rows, C] f32 pre-activation (BLK samples stacked along rows)
    st          [BLK, rows] f32 0/1 sample membership (lane-dense)
    s           [rows, BLK] f32 = st^T (broadcast-back matrix)
    gamma/beta  [1, C] f32 GroupNorm affine
    group_bcast maps per-channel sums [BLK, C] -> per-group sums broadcast back
    inv_count   1 / (points_per_sample * group_size)
    """
    f32 = jnp.float32
    s1 = jnp.dot(st, x, preferred_element_type=f32)                    # [BLK, C]
    mean_s = group_bcast(s1) * inv_count                               # [BLK, C]
    mean_r = jnp.dot(s, mean_s, preferred_element_type=f32)            # [rows, C]
    d = x - mean_r
    s2 = jnp.dot(st, d * d, preferred_element_type=f32)                # [BLK, C]
    var_s = group_bcast(s2) * inv_count
    scale_s = gamma * lax.rsqrt(var_s + EPS)                           # [BLK, C]
    scale_r = jnp.dot(s, scale_s, preferred_element_type=f32)          # [rows, C]
    return jnp.maximum(d * scale_r + beta, 0.0).astype(jnp.bfloat16)


def _gn_relu_rows(x, gamma, beta, group_bcast, inv_gsz):
    """GroupNorm + ReLU with per-row statistics (each row = one sample) -> bf16."""
    mean = group_bcast(x) * inv_gsz
    d = x - mean
    var = group_bcast(d * d) * inv_gsz
    return jnp.maximum(d * (gamma * lax.rsqrt(var + EPS)) + beta,
                       0.0).astype(jnp.bfloat16)


# ---------------------------------------------------------------------------
# Kernel 1: prepool convs + GroupNorm + ReLU + max-pool, BLK samples per step
# ---------------------------------------------------------------------------
def _prepool_kernel(src_ref, ref_ref, st_ref, s_ref,
                    w1_ref, v1_ref, w2_ref, v2_ref, w3_ref, v3_ref,
                    w4_ref, v4_ref, w5_ref, v5_ref,
                    p64_ref, p128_ref, et1024_ref,
                    out_ref, cat_ref):
    f32 = jnp.float32
    st = st_ref[...]                       # [BLK, rows]
    s = s_ref[...]                         # [rows, BLK]
    blk = st.shape[0]
    ns_rows = src_ref.shape[0]             # BLK * Ns
    nr_rows = ref_ref.shape[0]             # BLK * Nr
    rows = ns_rows + nr_rows
    npts = rows // blk
    ns_per, nr_per = ns_rows // blk, nr_rows // blk

    p64 = p64_ref[...]
    gb64 = lambda z: jnp.dot(z, p64, preferred_element_type=f32)
    gb128 = lambda z: jnp.dot(z, p128_ref[...], preferred_element_type=f32)
    et1024 = et1024_ref[...]               # [16, 1024] lane-dense

    def gb1024(z):                         # [BLK, 1024] -> [BLK, 1024]
        gs = lax.dot_general(z, et1024, (((1,), (1,)), ((), ())),
                             preferred_element_type=f32)               # [BLK, 16]
        return jnp.dot(gs, et1024, preferred_element_type=f32)

    # Stage 1 (4->64): constant 0/1 pad channel folded into per-branch bias; the
    # two branch results are written into one VMEM scratch (no concatenate).
    w1, v1 = w1_ref[...], v1_ref[...]
    cat_ref[0:ns_rows, :] = (jnp.dot(src_ref[...], w1,
                                     preferred_element_type=f32) + v1[0:1])
    cat_ref[ns_rows:rows, :] = (jnp.dot(ref_ref[...], w1,
                                        preferred_element_type=f32) + v1[1:2])
    a = _gn_relu_blocked(cat_ref[...], st, s, v1[2:3], v1[3:4],
                         gb64, 1.0 / (npts * 8))

    # Stages 2-5: bf16 MXU operands, f32 accumulation, f32 GroupNorm stats.
    v2 = v2_ref[...]
    a = _gn_relu_blocked(
        jnp.dot(a, w2_ref[...], preferred_element_type=f32) + v2[0:1],
        st, s, v2[1:2], v2[2:3], gb64, 1.0 / (npts * 8))
    v3 = v3_ref[...]
    a = _gn_relu_blocked(
        jnp.dot(a, w3_ref[...], preferred_element_type=f32) + v3[0:1],
        st, s, v3[1:2], v3[2:3], gb64, 1.0 / (npts * 8))
    v4 = v4_ref[...]
    a = _gn_relu_blocked(
        jnp.dot(a, w4_ref[...], preferred_element_type=f32) + v4[0:1],
        st, s, v4[1:2], v4[2:3], gb128, 1.0 / (npts * 16))
    v5 = v5_ref[...]
    a = _gn_relu_blocked(
        jnp.dot(a, w5_ref[...], preferred_element_type=f32) + v5[0:1],
        st, s, v5[1:2], v5[2:3], gb1024, 1.0 / (npts * 64))            # [rows,1024]

    # AdaptiveMaxPool1d(1): per-sample max over that sample's src + ref rows.
    pooled = []
    for b in range(blk):
        seg_s = a[b * ns_per:(b + 1) * ns_per, :].astype(f32)
        seg_r = a[ns_rows + b * nr_per:ns_rows + (b + 1) * nr_per, :].astype(f32)
        pooled.append(jnp.maximum(jnp.max(seg_s, axis=0, keepdims=True),
                                  jnp.max(seg_r, axis=0, keepdims=True)))
    out_ref[...] = jnp.concatenate(pooled, axis=0)[None]               # (1,BLK,1024)


# ---------------------------------------------------------------------------
# Kernel 2: postpool Linear/GN/ReLU stack + fused softplus, once per batch
# ---------------------------------------------------------------------------
def _postpool_kernel(p_ref, w6_ref, v6_ref, w7_ref, v7_ref, w8_ref, b8_ref,
                     et512_ref, p256_ref, out_ref):
    f32, bf16 = jnp.float32, jnp.bfloat16
    et512 = et512_ref[...]

    def gb512(z):                          # [B, 512] -> [B, 512]
        gs = lax.dot_general(z, et512, (((1,), (1,)), ((), ())),
                             preferred_element_type=f32)               # [B, 16]
        return jnp.dot(gs, et512, preferred_element_type=f32)

    gb256 = lambda z: jnp.dot(z, p256_ref[...], preferred_element_type=f32)

    v6, v7 = v6_ref[...], v7_ref[...]
    h = jnp.dot(p_ref[...].astype(bf16), w6_ref[...],
                preferred_element_type=f32) + v6[0:1]                  # [B, 512]
    h = _gn_relu_rows(h, v6[1:2], v6[2:3], gb512, 1.0 / 32.0)
    h = jnp.dot(h, w7_ref[...], preferred_element_type=f32) + v7[0:1]  # [B, 256]
    h = _gn_relu_rows(h, v7[1:2], v7[2:3], gb256, 1.0 / 16.0)
    raw = jnp.dot(h, w8_ref[...], preferred_element_type=f32) + b8_ref[...]
    # Fused, numerically-stable softplus: max(x, 0) + log(1 + exp(-|x|)).
    out_ref[...] = jnp.maximum(raw, 0.0) + jnp.log(1.0 + jnp.exp(-jnp.abs(raw)))


# ---------------------------------------------------------------------------
# Host-side helpers / wrapper
# ---------------------------------------------------------------------------
def _group_bcast_matrix(C, G):
    """P = E @ E^T: 0/1 same-group matrix [C, C] (single-matmul group bcast)."""
    grp = jnp.arange(C, dtype=jnp.int32) // (C // G)
    return (grp[:, None] == grp[None, :]).astype(jnp.float32)


def _group_onehot_t(C, G):
    """Lane-dense one-hot group membership E^T [G, C]."""
    grp = jnp.arange(C, dtype=jnp.int32) // (C // G)
    return (jnp.arange(G, dtype=jnp.int32)[:, None] == grp[None, :]).astype(jnp.float32)


def _sample_segment_matrix(blk, ns, nr):
    """ST [BLK, rows]: 1 where a row belongs to that sample (src rows, then ref)."""
    sample = jnp.concatenate([jnp.repeat(jnp.arange(blk, dtype=jnp.int32), ns),
                              jnp.repeat(jnp.arange(blk, dtype=jnp.int32), nr)])
    return (jnp.arange(blk, dtype=jnp.int32)[:, None] == sample[None, :]
            ).astype(jnp.float32)


def _pick_block(batch, npts, max_rows=1024):
    """Samples stacked per grid step (divides batch, bounded rows for VMEM)."""
    blk = 1
    for cand in (2, 4, 8):
        if batch % cand == 0 and cand * npts <= max_rows:
            blk = cand
    return blk


@jax.jit
def parameter_prediction_net(src, ref_pts, params):
    """src: [B, Ns, 3], ref_pts: [B, Nr, 3] -> (beta [B], alpha [B])."""
    f32, bf16 = jnp.float32, jnp.bfloat16
    B, Ns, _ = src.shape
    _, Nr, _ = ref_pts.shape
    npts = Ns + Nr

    blk = _pick_block(B, npts)
    rows = blk * npts
    nblk = B // blk

    # Fold the constant 0 / 1 pad channel of src / ref into layer-1 biases and
    # pack bias/gamma/beta per layer into a single stacked array.
    w1 = params["w1"].astype(f32)                                  # [4, 64]
    b1 = params["b1"].astype(f32)
    v1 = jnp.concatenate([b1, b1 + w1[3:4], params["g1"], params["t1"]], axis=0)

    pack = lambda li: jnp.concatenate(
        [params[f"b{li}"], params[f"g{li}"], params[f"t{li}"]], axis=0).astype(f32)
    wc = lambda li: params[f"w{li}"].astype(bf16)

    st = _sample_segment_matrix(blk, Ns, Nr)                       # [blk, rows]
    s = jnp.transpose(st)                                          # [rows, blk]
    p64 = _group_bcast_matrix(64, 8)
    p128 = _group_bcast_matrix(128, 8)
    et1024 = _group_onehot_t(1024, 16)

    pre_const = (st, s, w1[:3], v1, wc(2), pack(2), wc(3), pack(3),
                 wc(4), pack(4), wc(5), pack(5), p64, p128, et1024)

    src2d = src.reshape(B * Ns, 3).astype(f32)
    ref2d = ref_pts.reshape(B * Nr, 3).astype(f32)

    in_specs = [pl.BlockSpec((blk * Ns, 3), lambda i: (i, 0)),
                pl.BlockSpec((blk * Nr, 3), lambda i: (i, 0))]
    in_specs += [pl.BlockSpec(t.shape, lambda i: (0, 0)) for t in pre_const]

    pooled = pl.pallas_call(
        _prepool_kernel,
        out_shape=jax.ShapeDtypeStruct((nblk, blk, 1024), f32),
        grid=(nblk,),
        in_specs=in_specs,
        out_specs=pl.BlockSpec((1, blk, 1024), lambda i: (i, 0, 0)),
        scratch_shapes=[pltpu.VMEM((rows, 64), f32)],
        compiler_params=pltpu.CompilerParams(
            dimension_semantics=("parallel",)),
    )(src2d, ref2d, *pre_const)

    pooled = pooled.reshape(B, 1024)                               # [B, 1024]

    # Postpool runs once on the stacked batch; final layer padded to 128 lanes.
    out_dim = params["w8"].shape[1]
    out_pad = ((out_dim + 127) // 128) * 128
    w8p = jnp.zeros((params["w8"].shape[0], out_pad), bf16)
    w8p = w8p.at[:, :out_dim].set(params["w8"].astype(bf16))
    b8p = jnp.zeros((1, out_pad), f32).at[:, :out_dim].set(params["b8"].astype(f32))

    post_const = (wc(6), pack(6), wc(7), pack(7), w8p, b8p,
                  _group_onehot_t(512, 16), _group_bcast_matrix(256, 16))
    post_specs = [pl.BlockSpec((B, 1024), lambda i: (0, 0))]
    post_specs += [pl.BlockSpec(t.shape, lambda i: (0, 0)) for t in post_const]

    act = pl.pallas_call(
        _postpool_kernel,
        out_shape=jax.ShapeDtypeStruct((B, out_pad), f32),
        grid=(1,),
        in_specs=post_specs,
        out_specs=pl.BlockSpec((B, out_pad), lambda i: (0, 0)),
        compiler_params=pltpu.CompilerParams(
            dimension_semantics=("arbitrary",)),
    )(pooled, *post_const)

    # Softplus already applied in-kernel; lane 0 = beta, lane 1 = alpha.
    return act[:, 0], act[:, 1]


def init_params(key, weights_dim=(4, 4)):
    """Deterministic synthetic parameters matching the module's shapes.

    Conv1d weights (out,in,1) / Linear weights (out,in) are stored as [in, out]
    matrices; biases / GroupNorm affine params as [1, C] rows (f32 master copy).
    """
    out_dim = 2 + math.prod(weights_dim)
    dims = [(4, 64), (64, 64), (64, 64), (64, 128), (128, 1024),   # prepool convs
            (1024, 512), (512, 256), (256, out_dim)]               # postpool linears
    params = {}
    for li, (cin, cout) in enumerate(dims, start=1):
        key, kw, kb, kg, kt = jax.random.split(key, 5)
        params[f"w{li}"] = (jax.random.normal(kw, (cin, cout), jnp.float32)
                            / jnp.sqrt(float(cin)))
        params[f"b{li}"] = 0.01 * jax.random.normal(kb, (1, cout), jnp.float32)
        if li < 8:  # every layer except the last Linear is followed by GroupNorm
            params[f"g{li}"] = 1.0 + 0.1 * jax.random.normal(kg, (1, cout), jnp.float32)
            params[f"t{li}"] = 0.1 * jax.random.normal(kt, (1, cout), jnp.float32)
    return params


def reference_forward(src, ref_pts, params):
    """Pure-JAX reference matching the PyTorch forward, mirroring the kernel's
    mixed-precision policy (bf16 matmul operands from layer 2 on, f32 accum,
    f32 GroupNorm with two-pass variance)."""
    f32, bf16 = jnp.float32, jnp.bfloat16
    src_p = jnp.pad(src.astype(f32), ((0, 0), (0, 0), (0, 1)), constant_values=0.0)
    ref_p = jnp.pad(ref_pts.astype(f32), ((0, 0), (0, 0), (0, 1)), constant_values=1.0)
    a = jnp.concatenate([src_p, ref_p], axis=1)                   # [B, N, 4]

    def gn_relu(z, g, t, G):                                      # z: [B, R, C]
        Bz, R, C = z.shape
        zg = z.reshape(Bz, R, G, C // G)
        mean = jnp.mean(zg, axis=(1, 3), keepdims=True)
        var = jnp.mean(jnp.square(zg - mean), axis=(1, 3), keepdims=True)
        zn = ((zg - mean) * lax.rsqrt(var + EPS)).reshape(Bz, R, C)
        return jax.nn.relu(zn * g + t)

    a = gn_relu(jnp.einsum('bnc,cd->bnd', a, params["w1"],
                           preferred_element_type=f32) + params["b1"],
                params["g1"], params["t1"], 8)
    for li, G in [(2, 8), (3, 8), (4, 8), (5, 16)]:
        a = jnp.einsum('bnc,cd->bnd', a.astype(bf16), params[f"w{li}"].astype(bf16),
                       preferred_element_type=f32) + params[f"b{li}"]
        a = gn_relu(a, params[f"g{li}"], params[f"t{li}"], G)
    h = jnp.max(a, axis=1)                                        # [B, 1024]

    def gn_relu_rows(z, g, t, G):                                 # z: [B, C]
        Bz, C = z.shape
        zg = z.reshape(Bz, G, C // G)
        mean = jnp.mean(zg, axis=2, keepdims=True)
        var = jnp.mean(jnp.square(zg - mean), axis=2, keepdims=True)
        zn = ((zg - mean) * lax.rsqrt(var + EPS)).reshape(Bz, C)
        return jax.nn.relu(zn * g + t)

    for li, G in [(6, 16), (7, 16)]:
        h = jnp.dot(h.astype(bf16), params[f"w{li}"].astype(bf16),
                    preferred_element_type=f32) + params[f"b{li}"]
        h = gn_relu_rows(h, params[f"g{li}"], params[f"t{li}"], G)
    raw = jnp.dot(h.astype(bf16), params["w8"].astype(bf16),
                  preferred_element_type=f32) + params["b8"]
    return jax.nn.softplus(raw[:, 0]), jax.nn.softplus(raw[:, 1])


if __name__ == "__main__":
    key = jax.random.PRNGKey(0)
    k_src, k_ref, k_par = jax.random.split(key, 3)

    B, Ns, Nr = 2, 16, 16
    src = jax.random.normal(k_src, (B, Ns, 3), jnp.float32)
    ref_pts = jax.random.normal(k_ref, (B, Nr, 3), jnp.float32)
    params = init_params(k_par, weights_dim=(4, 4))

    beta, alpha = parameter_prediction_net(src, ref_pts, params)
    jax.block_until_ready((beta, alpha))

    beta_ref, alpha_ref = reference_forward(src, ref_pts, params)
    assert beta.shape == (B,) and alpha.shape == (B,)
    assert jnp.allclose(beta, beta_ref, rtol=1e-2, atol=1e-2)
    assert jnp.allclose(alpha, alpha_ref, rtol=1e-2, atol=1e-2)

    print("KERNEL_OK")
</pallas_src>

<mosaic_0001>
module attributes {stable_mosaic.version = 11 : i64} {
  func.func @_prepool_kernel(%arg0: i32, %arg1: memref<32x3xf32, #tpu.memory_space<vmem>>, %arg2: memref<32x3xf32, #tpu.memory_space<vmem>>, %arg3: memref<2x64xf32, #tpu.memory_space<vmem>>, %arg4: memref<64x2xf32, #tpu.memory_space<vmem>>, %arg5: memref<3x64xf32, #tpu.memory_space<vmem>>, %arg6: memref<4x64xf32, #tpu.memory_space<vmem>>, %arg7: memref<64x64xbf16, #tpu.memory_space<vmem>>, %arg8: memref<3x64xf32, #tpu.memory_space<vmem>>, %arg9: memref<64x64xbf16, #tpu.memory_space<vmem>>, %arg10: memref<3x64xf32, #tpu.memory_space<vmem>>, %arg11: memref<64x128xbf16, #tpu.memory_space<vmem>>, %arg12: memref<3x128xf32, #tpu.memory_space<vmem>>, %arg13: memref<128x1024xbf16, #tpu.memory_space<vmem>>, %arg14: memref<3x1024xf32, #tpu.memory_space<vmem>>, %arg15: memref<64x64xf32, #tpu.memory_space<vmem>>, %arg16: memref<128x128xf32, #tpu.memory_space<vmem>>, %arg17: memref<16x1024xf32, #tpu.memory_space<vmem>>, %arg18: memref<1x2x1024xf32, #tpu.memory_space<vmem>>, %arg19: memref<64x64xf32, #tpu.memory_space<vmem>>) attributes {dimension_semantics = [#tpu.dimension_semantics<parallel>], iteration_bounds = array<i64: 1>, scalar_prefetch = 0 : i64, scratch_operands = 1 : i64, tpu.core_type = #tpu.core_type<tc>, window_params = [{transform_indices = @transform_0, window_bounds = array<i64: 32, 3>}, {transform_indices = @transform_1, window_bounds = array<i64: 32, 3>}, {pipeline_mode = #tpu.pipeline_mode<synchronous>, transform_indices = @transform_2, window_bounds = array<i64: 2, 64>}, {pipeline_mode = #tpu.pipeline_mode<synchronous>, transform_indices = @transform_3, window_bounds = array<i64: 64, 2>}, {pipeline_mode = #tpu.pipeline_mode<synchronous>, transform_indices = @transform_4, window_bounds = array<i64: 3, 64>}, {pipeline_mode = #tpu.pipeline_mode<synchronous>, transform_indices = @transform_5, window_bounds = array<i64: 4, 64>}, {pipeline_mode = #tpu.pipeline_mode<synchronous>, transform_indices = @transform_6, window_bounds = array<i64: 64, 64>}, {pipeline_mode = #tpu.pipeline_mode<synchronous>, transform_indices = @transform_7, window_bounds = array<i64: 3, 64>}, {pipeline_mode = #tpu.pipeline_mode<synchronous>, transform_indices = @transform_8, window_bounds = array<i64: 64, 64>}, {pipeline_mode = #tpu.pipeline_mode<synchronous>, transform_indices = @transform_9, window_bounds = array<i64: 3, 64>}, {pipeline_mode = #tpu.pipeline_mode<synchronous>, transform_indices = @transform_10, window_bounds = array<i64: 64, 128>}, {pipeline_mode = #tpu.pipeline_mode<synchronous>, transform_indices = @transform_11, window_bounds = array<i64: 3, 128>}, {pipeline_mode = #tpu.pipeline_mode<synchronous>, transform_indices = @transform_12, window_bounds = array<i64: 128, 1024>}, {pipeline_mode = #tpu.pipeline_mode<synchronous>, transform_indices = @transform_13, window_bounds = array<i64: 3, 1024>}, {pipeline_mode = #tpu.pipeline_mode<synchronous>, transform_indices = @transform_14, window_bounds = array<i64: 64, 64>}, {pipeline_mode = #tpu.pipeline_mode<synchronous>, transform_indices = @transform_15, window_bounds = array<i64: 128, 128>}, {pipeline_mode = #tpu.pipeline_mode<synchronous>, transform_indices = @transform_16, window_bounds = array<i64: 16, 1024>}, {transform_indices = @transform_17, window_bounds = array<i64: 1, 2, 1024>}]} {
    %c0 = arith.constant 0 : index
    %c0_0 = arith.constant 0 : index
    %0 = vector.load %arg3[%c0, %c0_0] : memref<2x64xf32, #tpu.memory_space<vmem>>, vector<2x64xf32>
    %c0_1 = arith.constant 0 : index
    %c0_2 = arith.constant 0 : index
    %1 = vector.load %arg4[%c0_1, %c0_2] : memref<64x2xf32, #tpu.memory_space<vmem>>, vector<64x2xf32>
    %c0_3 = arith.constant 0 : index
    %c0_4 = arith.constant 0 : index
    %2 = vector.load %arg15[%c0_3, %c0_4] : memref<64x64xf32, #tpu.memory_space<vmem>>, vector<64x64xf32>
    %c0_5 = arith.constant 0 : index
    %c0_6 = arith.constant 0 : index
    %3 = vector.load %arg17[%c0_5, %c0_6] : memref<16x1024xf32, #tpu.memory_space<vmem>>, vector<16x1024xf32>
    %c0_7 = arith.constant 0 : index
    %c0_8 = arith.constant 0 : index
    %4 = vector.load %arg5[%c0_7, %c0_8] : memref<3x64xf32, #tpu.memory_space<vmem>>, vector<3x64xf32>
    %c0_9 = arith.constant 0 : index
    %c0_10 = arith.constant 0 : index
    %5 = vector.load %arg6[%c0_9, %c0_10] : memref<4x64xf32, #tpu.memory_space<vmem>>, vector<4x64xf32>
    %c0_11 = arith.constant 0 : index
    %c0_12 = arith.constant 0 : index
    %6 = vector.load %arg1[%c0_11, %c0_12] : memref<32x3xf32, #tpu.memory_space<vmem>>, vector<32x3xf32>
    %cst = arith.constant dense<0.000000e+00> : vector<32x64xf32>
    %7 = tpu.matmul %6, %4, %cst {dimension_numbers = #tpu.dot_dimension_numbers<[1], [0], [0], [1], [0, 0, 1, 1], [], []>} : vector<32x3xf32>, vector<3x64xf32>, vector<32x64xf32> -> vector<32x64xf32>
    %8 = vector.extract_strided_slice %5 {offsets = [0, 0], sizes = [1, 64], strides = [1, 1]} : vector<4x64xf32> to vector<1x64xf32>
    %9 = vector.broadcast %8 : vector<1x64xf32> to vector<32x64xf32>
    %10 = arith.addf %7, %9 : vector<32x64xf32>
    %c0_13 = arith.constant 0 : index
    %c0_14 = arith.constant 0 : index
    %11 = vector.load %arg19[%c0_13, %c0_14] : memref<64x64xf32, #tpu.memory_space<vmem>>, vector<32x64xf32>
    tpu.vector_store %arg19[%c0_13, %c0_14], %10 {strides = array<i32>} : memref<64x64xf32, #tpu.memory_space<vmem>>, vector<32x64xf32>,
    %c0_15 = arith.constant 0 : index
    %c0_16 = arith.constant 0 : index
    %12 = vector.load %arg2[%c0_15, %c0_16] : memref<32x3xf32, #tpu.memory_space<vmem>>, vector<32x3xf32>
    %cst_17 = arith.constant dense<0.000000e+00> : vector<32x64xf32>
    %13 = tpu.matmul %12, %4, %cst_17 {dimension_numbers = #tpu.dot_dimension_numbers<[1], [0], [0], [1], [0, 0, 1, 1], [], []>} : vector<32x3xf32>, vector<3x64xf32>, vector<32x64xf32> -> vector<32x64xf32>
    %14 = vector.extract_strided_slice %5 {offsets = [1, 0], sizes = [1, 64], strides = [1, 1]} : vector<4x64xf32> to vector<1x64xf32>
    %15 = vector.broadcast %14 : vector<1x64xf32> to vector<32x64xf32>
    %16 = arith.addf %13, %15 : vector<32x64xf32>
    %c32 = arith.constant 32 : index
    %c0_18 = arith.constant 0 : index
    %17 = vector.load %arg19[%c32, %c0_18] : memref<64x64xf32, #tpu.memory_space<vmem>>, vector<32x64xf32>
    tpu.vector_store %arg19[%c32, %c0_18], %16 {strides = array<i32>} : memref<64x64xf32, #tpu.memory_space<vmem>>, vector<32x64xf32>,
    %c0_19 = arith.constant 0 : index
    %c0_20 = arith.constant 0 : index
    %18 = vector.load %arg19[%c0_19, %c0_20] : memref<64x64xf32, #tpu.memory_space<vmem>>, vector<64x64xf32>
    %19 = vector.extract_strided_slice %5 {offsets = [2, 0], sizes = [1, 64], strides = [1, 1]} : vector<4x64xf32> to vector<1x64xf32>
    %20 = vector.extract_strided_slice %5 {offsets = [3, 0], sizes = [1, 64], strides = [1, 1]} : vector<4x64xf32> to vector<1x64xf32>
    %cst_21 = arith.constant dense<0.000000e+00> : vector<2x64xf32>
    %21 = tpu.matmul %0, %18, %cst_21 {dimension_numbers = #tpu.dot_dimension_numbers<[1], [0], [0], [1], [0, 0, 1, 1], [], []>} : vector<2x64xf32>, vector<64x64xf32>, vector<2x64xf32> -> vector<2x64xf32>
    %cst_22 = arith.constant dense<0.000000e+00> : vector<2x64xf32>
    %22 = tpu.matmul %21, %2, %cst_22 {dimension_numbers = #tpu.dot_dimension_numbers<[1], [0], [0], [1], [0, 0, 1, 1], [], []>} : vector<2x64xf32>, vector<64x64xf32>, vector<2x64xf32> -> vector<2x64xf32>
    %cst_23 = arith.constant 3.906250e-03 : f32
    %23 = vector.broadcast %cst_23 : f32 to vector<2x64xf32>
    %24 = arith.mulf %22, %23 : vector<2x64xf32>
    %cst_24 = arith.constant dense<0.000000e+00> : vector<64x64xf32>
    %25 = tpu.matmul %1, %24, %cst_24 {dimension_numbers = #tpu.dot_dimension_numbers<[1], [0], [0], [1], [0, 0, 1, 1], [], []>} : vector<64x2xf32>, vector<2x64xf32>, vector<64x64xf32> -> vector<64x64xf32>
    %26 = arith.subf %18, %25 : vector<64x64xf32>
    %27 = arith.mulf %26, %26 : vector<64x64xf32>
    %cst_25 = arith.constant dense<0.000000e+00> : vector<2x64xf32>
    %28 = tpu.matmul %0, %27, %cst_25 {dimension_numbers = #tpu.dot_dimension_numbers<[1], [0], [0], [1], [0, 0, 1, 1], [], []>} : vector<2x64xf32>, vector<64x64xf32>, vector<2x64xf32> -> vector<2x64xf32>
    %cst_26 = arith.constant dense<0.000000e+00> : vector<2x64xf32>
    %29 = tpu.matmul %28, %2, %cst_26 {dimension_numbers = #tpu.dot_dimension_numbers<[1], [0], [0], [1], [0, 0, 1, 1], [], []>} : vector<2x64xf32>, vector<64x64xf32>, vector<2x64xf32> -> vector<2x64xf32>
    %cst_27 = arith.constant 3.906250e-03 : f32
    %30 = vector.broadcast %cst_27 : f32 to vector<2x64xf32>
    %31 = arith.mulf %29, %30 : vector<2x64xf32>
    %cst_28 = arith.constant 9.99999974E-6 : f32
    %32 = vector.broadcast %cst_28 : f32 to vector<2x64xf32>
    %33 = arith.addf %31, %32 : vector<2x64xf32>
    %34 = math.rsqrt %33 : vector<2x64xf32>
    %35 = vector.broadcast %19 : vector<1x64xf32> to vector<2x64xf32>
    %36 = arith.mulf %35, %34 : vector<2x64xf32>
    %cst_29 = arith.constant dense<0.000000e+00> : vector<64x64xf32>
    %37 = tpu.matmul %1, %36, %cst_29 {dimension_numbers = #tpu.dot_dimension_numbers<[1], [0], [0], [1], [0, 0, 1, 1], [], []>} : vector<64x2xf32>, vector<2x64xf32>, vector<64x64xf32> -> vector<64x64xf32>
    %38 = arith.mulf %26, %37 : vector<64x64xf32>
    %39 = vector.broadcast %20 : vector<1x64xf32> to vector<64x64xf32>
    %40 = arith.addf %38, %39 : vector<64x64xf32>
    %cst_30 = arith.constant 0.000000e+00 : f32
    %41 = vector.broadcast %cst_30 : f32 to vector<64x64xf32>
    %42 = arith.maximumf %40, %41 : vector<64x64xf32>
    %43 = arith.truncf %42 : vector<64x64xf32> to vector<64x64xbf16>
    %c0_31 = arith.constant 0 : index
    %c0_32 = arith.constant 0 : index
    %44 = vector.load %arg8[%c0_31, %c0_32] : memref<3x64xf32, #tpu.memory_space<vmem>>, vector<3x64xf32>
    %c0_33 = arith.constant 0 : index
    %c0_34 = arith.constant 0 : index
    %45 = vector.load %arg7[%c0_33, %c0_34] : memref<64x64xbf16, #tpu.memory_space<vmem>>, vector<64x64xbf16>
    %cst_35 = arith.constant dense<0.000000e+00> : vector<64x64xf32>
    %46 = tpu.matmul %43, %45, %cst_35 {dimension_numbers = #tpu.dot_dimension_numbers<[1], [0], [0], [1], [0, 0, 1, 1], [], []>} : vector<64x64xbf16>, vector<64x64xbf16>, vector<64x64xf32> -> vector<64x64xf32>
    %47 = vector.extract_strided_slice %44 {offsets = [0, 0], sizes = [1, 64], strides = [1, 1]} : vector<3x64xf32> to vector<1x64xf32>
    %48 = vector.broadcast %47 : vector<1x64xf32> to vector<64x64xf32>
    %49 = arith.addf %46, %48 : vector<64x64xf32>
    %50 = vector.extract_strided_slice %44 {offsets = [1, 0], sizes = [1, 64], strides = [1, 1]} : vector<3x64xf32> to vector<1x64xf32>
    %51 = vector.extract_strided_slice %44 {offsets = [2, 0], sizes = [1, 64], strides = [1, 1]} : vector<3x64xf32> to vector<1x64xf32>
    %cst_36 = arith.constant dense<0.000000e+00> : vector<2x64xf32>
    %52 = tpu.matmul %0, %49, %cst_36 {dimension_numbers = #tpu.dot_dimension_numbers<[1], [0], [0], [1], [0, 0, 1, 1], [], []>} : vector<2x64xf32>, vector<64x64xf32>, vector<2x64xf32> -> vector<2x64xf32>
    %cst_37 = arith.constant dense<0.000000e+00> : vector<2x64xf32>
    %53 = tpu.matmul %52, %2, %cst_37 {dimension_numbers = #tpu.dot_dimension_numbers<[1], [0], [0], [1], [0, 0, 1, 1], [], []>} : vector<2x64xf32>, vector<64x64xf32>, vector<2x64xf32> -> vector<2x64xf32>
    %cst_38 = arith.constant 3.906250e-03 : f32
    %54 = vector.broadcast %cst_38 : f32 to vector<2x64xf32>
    %55 = arith.mulf %53, %54 : vector<2x64xf32>
    %cst_39 = arith.constant dense<0.000000e+00> : vector<64x64xf32>
    %56 = tpu.matmul %1, %55, %cst_39 {dimension_numbers = #tpu.dot_dimension_numbers<[1], [0], [0], [1], [0, 0, 1, 1], [], []>} : vector<64x2xf32>, vector<2x64xf32>, vector<64x64xf32> -> vector<64x64xf32>
    %57 = arith.subf %49, %56 : vector<64x64xf32>
    %58 = arith.mulf %57, %57 : vector<64x64xf32>
    %cst_40 = arith.constant dense<0.000000e+00> : vector<2x64xf32>
    %59 = tpu.matmul %0, %58, %cst_40 {dimension_numbers = #tpu.dot_dimension_numbers<[1], [0], [0], [1], [0, 0, 1, 1], [], []>} : vector<2x64xf32>, vector<64x64xf32>, vector<2x64xf32> -> vector<2x64xf32>
    %cst_41 = arith.constant dense<0.000000e+00> : vector<2x64xf32>
    %60 = tpu.matmul %59, %2, %cst_41 {dimension_numbers = #tpu.dot_dimension_numbers<[1], [0], [0], [1], [0, 0, 1, 1], [], []>} : vector<2x64xf32>, vector<64x64xf32>, vector<2x64xf32> -> vector<2x64xf32>
    %cst_42 = arith.constant 3.906250e-03 : f32
    %61 = vector.broadcast %cst_42 : f32 to vector<2x64xf32>
    %62 = arith.mulf %60, %61 : vector<2x64xf32>
    %cst_43 = arith.constant 9.99999974E-6 : f32
    %63 = vector.broadcast %cst_43 : f32 to vector<2x64xf32>
    %64 = arith.addf %62, %63 : vector<2x64xf32>
    %65 = math.rsqrt %64 : vector<2x64xf32>
    %66 = vector.broadcast %50 : vector<1x64xf32> to vector<2x64xf32>
    %67 = arith.mulf %66, %65 : vector<2x64xf32>
    %cst_44 = arith.constant dense<0.000000e+00> : vector<64x64xf32>
    %68 = tpu.matmul %1, %67, %cst_44 {dimension_numbers = #tpu.dot_dimension_numbers<[1], [0], [0], [1], [0, 0, 1, 1], [], []>} : vector<64x2xf32>, vector<2x64xf32>, vector<64x64xf32> -> vector<64x64xf32>
    %69 = arith.mulf %57, %68 : vector<64x64xf32>
    %70 = vector.broadcast %51 : vector<1x64xf32> to vector<64x64xf32>
    %71 = arith.addf %69, %70 : vector<64x64xf32>
    %cst_45 = arith.constant 0.000000e+00 : f32
    %72 = vector.broadcast %cst_45 : f32 to vector<64x64xf32>
    %73 = arith.maximumf %71, %72 : vector<64x64xf32>
    %74 = arith.truncf %73 : vector<64x64xf32> to vector<64x64xbf16>
    %c0_46 = arith.constant 0 : index
    %c0_47 = arith.constant 0 : index
    %75 = vector.load %arg10[%c0_46, %c0_47] : memref<3x64xf32, #tpu.memory_space<vmem>>, vector<3x64xf32>
    %c0_48 = arith.constant 0 : index
    %c0_49 = arith.constant 0 : index
    %76 = vector.load %arg9[%c0_48, %c0_49] : memref<64x64xbf16, #tpu.memory_space<vmem>>, vector<64x64xbf16>
    %cst_50 = arith.constant dense<0.000000e+00> : vector<64x64xf32>
    %77 = tpu.matmul %74, %76, %cst_50 {dimension_numbers = #tpu.dot_dimension_numbers<[1], [0], [0], [1], [0, 0, 1, 1], [], []>} : vector<64x64xbf16>, vector<64x64xbf16>, vector<64x64xf32> -> vector<64x64xf32>
    %78 = vector.extract_strided_slice %75 {offsets = [0, 0], sizes = [1, 64], strides = [1, 1]} : vector<3x64xf32> to vector<1x64xf32>
    %79 = vector.broadcast %78 : vector<1x64xf32> to vector<64x64xf32>
    %80 = arith.addf %77, %79 : vector<64x64xf32>
    %81 = vector.extract_strided_slice %75 {offsets = [1, 0], sizes = [1, 64], strides = [1, 1]} : vector<3x64xf32> to vector<1x64xf32>
    %82 = vector.extract_strided_slice %75 {offsets = [2, 0], sizes = [1, 64], strides = [1, 1]} : vector<3x64xf32> to vector<1x64xf32>
    %cst_51 = arith.constant dense<0.000000e+00> : vector<2x64xf32>
    %83 = tpu.matmul %0, %80, %cst_51 {dimension_numbers = #tpu.dot_dimension_numbers<[1], [0], [0], [1], [0, 0, 1, 1], [], []>} : vector<2x64xf32>, vector<64x64xf32>, vector<2x64xf32> -> vector<2x64xf32>
    %cst_52 = arith.constant dense<0.000000e+00> : vector<2x64xf32>
    %84 = tpu.matmul %83, %2, %cst_52 {dimension_numbers = #tpu.dot_dimension_numbers<[1], [0], [0], [1], [0, 0, 1, 1], [], []>} : vector<2x64xf32>, vector<64x64xf32>, vector<2x64xf32> -> vector<2x64xf32>
    %cst_53 = arith.constant 3.906250e-03 : f32
    %85 = vector.broadcast %cst_53 : f32 to vector<2x64xf32>
    %86 = arith.mulf %84, %85 : vector<2x64xf32>
    %cst_54 = arith.constant dense<0.000000e+00> : vector<64x64xf32>
    %87 = tpu.matmul %1, %86, %cst_54 {dimension_numbers = #tpu.dot_dimension_numbers<[1], [0], [0], [1], [0, 0, 1, 1], [], []>} : vector<64x2xf32>, vector<2x64xf32>, vector<64x64xf32> -> vector<64x64xf32>
    %88 = arith.subf %80, %87 : vector<64x64xf32>
    %89 = arith.mulf %88, %88 : vector<64x64xf32>
    %cst_55 = arith.constant dense<0.000000e+00> : vector<2x64xf32>
    %90 = tpu.matmul %0, %89, %cst_55 {dimension_numbers = #tpu.dot_dimension_numbers<[1], [0], [0], [1], [0, 0, 1, 1], [], []>} : vector<2x64xf32>, vector<64x64xf32>, vector<2x64xf32> -> vector<2x64xf32>
    %cst_56 = arith.constant dense<0.000000e+00> : vector<2x64xf32>
    %91 = tpu.matmul %90, %2, %cst_56 {dimension_numbers = #tpu.dot_dimension_numbers<[1], [0], [0], [1], [0, 0, 1, 1], [], []>} : vector<2x64xf32>, vector<64x64xf32>, vector<2x64xf32> -> vector<2x64xf32>
    %cst_57 = arith.constant 3.906250e-03 : f32
    %92 = vector.broadcast %cst_57 : f32 to vector<2x64xf32>
    %93 = arith.mulf %91, %92 : vector<2x64xf32>
    %cst_58 = arith.constant 9.99999974E-6 : f32
    %94 = vector.broadcast %cst_58 : f32 to vector<2x64xf32>
    %95 = arith.addf %93, %94 : vector<2x64xf32>
    %96 = math.rsqrt %95 : vector<2x64xf32>
    %97 = vector.broadcast %81 : vector<1x64xf32> to vector<2x64xf32>
    %98 = arith.mulf %97, %96 : vector<2x64xf32>
    %cst_59 = arith.constant dense<0.000000e+00> : vector<64x64xf32>
    %99 = tpu.matmul %1, %98, %cst_59 {dimension_numbers = #tpu.dot_dimension_numbers<[1], [0], [0], [1], [0, 0, 1, 1], [], []>} : vector<64x2xf32>, vector<2x64xf32>, vector<64x64xf32> -> vector<64x64xf32>
    %100 = arith.mulf %88, %99 : vector<64x64xf32>
    %101 = vector.broadcast %82 : vector<1x64xf32> to vector<64x64xf32>
    %102 = arith.addf %100, %101 : vector<64x64xf32>
    %cst_60 = arith.constant 0.000000e+00 : f32
    %103 = vector.broadcast %cst_60 : f32 to vector<64x64xf32>
    %104 = arith.maximumf %102, %103 : vector<64x64xf32>
    %105 = arith.truncf %104 : vector<64x64xf32> to vector<64x64xbf16>
    %c0_61 = arith.constant 0 : index
    %c0_62 = arith.constant 0 : index
    %106 = vector.load %arg12[%c0_61, %c0_62] : memref<3x128xf32, #tpu.memory_space<vmem>>, vector<3x128xf32>
    %c0_63 = arith.constant 0 : index
    %c0_64 = arith.constant 0 : index
    %107 = vector.load %arg11[%c0_63, %c0_64] : memref<64x128xbf16, #tpu.memory_space<vmem>>, vector<64x128xbf16>
    %cst_65 = arith.constant dense<0.000000e+00> : vector<64x128xf32>
    %108 = tpu.matmul %105, %107, %cst_65 {dimension_numbers = #tpu.dot_dimension_numbers<[1], [0], [0], [1], [0, 0, 1, 1], [], []>} : vector<64x64xbf16>, vector<64x128xbf16>, vector<64x128xf32> -> vector<64x128xf32>
    %109 = vector.extract_strided_slice %106 {offsets = [0, 0], sizes = [1, 128], strides = [1, 1]} : vector<3x128xf32> to vector<1x128xf32>
    %110 = vector.broadcast %109 : vector<1x128xf32> to vector<64x128xf32>
    %111 = arith.addf %108, %110 : vector<64x128xf32>
    %112 = vector.extract_strided_slice %106 {offsets = [1, 0], sizes = [1, 128], strides = [1, 1]} : vector<3x128xf32> to vector<1x128xf32>
    %113 = vector.extract_strided_slice %106 {offsets = [2, 0], sizes = [1, 128], strides = [1, 1]} : vector<3x128xf32> to vector<1x128xf32>
    %cst_66 = arith.constant dense<0.000000e+00> : vector<2x128xf32>
    %114 = tpu.matmul %0, %111, %cst_66 {dimension_numbers = #tpu.dot_dimension_numbers<[1], [0], [0], [1], [0, 0, 1, 1], [], []>} : vector<2x64xf32>, vector<64x128xf32>, vector<2x128xf32> -> vector<2x128xf32>
    %c0_67 = arith.constant 0 : index
    %c0_68 = arith.constant 0 : index
    %115 = vector.load %arg16[%c0_67, %c0_68] : memref<128x128xf32, #tpu.memory_space<vmem>>, vector<128x128xf32>
    %cst_69 = arith.constant dense<0.000000e+00> : vector<2x128xf32>
    %116 = tpu.matmul %114, %115, %cst_69 {dimension_numbers = #tpu.dot_dimension_numbers<[1], [0], [0], [1], [0, 0, 1, 1], [], []>} : vector<2x128xf32>, vector<128x128xf32>, vector<2x128xf32> -> vector<2x128xf32>
    %cst_70 = arith.constant 0.001953125 : f32
    %117 = vector.broadcast %cst_70 : f32 to vector<2x128xf32>
    %118 = arith.mulf %116, %117 : vector<2x128xf32>
    %cst_71 = arith.constant dense<0.000000e+00> : vector<64x128xf32>
    %119 = tpu.matmul %1, %118, %cst_71 {dimension_numbers = #tpu.dot_dimension_numbers<[1], [0], [0], [1], [0, 0, 1, 1], [], []>} : vector<64x2xf32>, vector<2x128xf32>, vector<64x128xf32> -> vector<64x128xf32>
    %120 = arith.subf %111, %119 : vector<64x128xf32>
    %121 = arith.mulf %120, %120 : vector<64x128xf32>
    %cst_72 = arith.constant dense<0.000000e+00> : vector<2x128xf32>
    %122 = tpu.matmul %0, %121, %cst_72 {dimension_numbers = #tpu.dot_dimension_numbers<[1], [0], [0], [1], [0, 0, 1, 1], [], []>} : vector<2x64xf32>, vector<64x128xf32>, vector<2x128xf32> -> vector<2x128xf32>
    %c0_73 = arith.constant 0 : index
    %c0_74 = arith.constant 0 : index
    %123 = vector.load %arg16[%c0_73, %c0_74] : memref<128x128xf32, #tpu.memory_space<vmem>>, vector<128x128xf32>
    %cst_75 = arith.constant dense<0.000000e+00> : vector<2x128xf32>
    %124 = tpu.matmul %122, %123, %cst_75 {dimension_numbers = #tpu.dot_dimension_numbers<[1], [0], [0], [1], [0, 0, 1, 1], [], []>} : vector<2x128xf32>, vector<128x128xf32>, vector<2x128xf32> -> vector<2x128xf32>
    %cst_76 = arith.constant 0.001953125 : f32
    %125 = vector.broadcast %cst_76 : f32 to vector<2x128xf32>
    %126 = arith.mulf %124, %125 : vector<2x128xf32>
    %cst_77 = arith.constant 9.99999974E-6 : f32
    %127 = vector.broadcast %cst_77 : f32 to vector<2x128xf32>
    %128 = arith.addf %126, %127 : vector<2x128xf32>
    %129 = math.rsqrt %128 : vector<2x128xf32>
    %130 = vector.broadcast %112 : vector<1x128xf32> to vector<2x128xf32>
    %131 = arith.mulf %130, %129 : vector<2x128xf32>
    %cst_78 = arith.constant dense<0.000000e+00> : vector<64x128xf32>
    %132 = tpu.matmul %1, %131, %cst_78 {dimension_numbers = #tpu.dot_dimension_numbers<[1], [0], [0], [1], [0, 0, 1, 1], [], []>} : vector<64x2xf32>, vector<2x128xf32>, vector<64x128xf32> -> vector<64x128xf32>
    %133 = arith.mulf %120, %132 : vector<64x128xf32>
    %134 = vector.broadcast %113 : vector<1x128xf32> to vector<64x128xf32>
    %135 = arith.addf %133, %134 : vector<64x128xf32>
    %cst_79 = arith.constant 0.000000e+00 : f32
    %136 = vector.broadcast %cst_79 : f32 to vector<64x128xf32>
    %137 = arith.maximumf %135, %136 : vector<64x128xf32>
    %138 = arith.truncf %137 : vector<64x128xf32> to vector<64x128xbf16>
    %c0_80 = arith.constant 0 : index
    %c0_81 = arith.constant 0 : index
    %139 = vector.load %arg14[%c0_80, %c0_81] : memref<3x1024xf32, #tpu.memory_space<vmem>>, vector<3x1024xf32>
    %c0_82 = arith.constant 0 : index
    %c0_83 = arith.constant 0 : index
    %140 = vector.load %arg13[%c0_82, %c0_83] : memref<128x1024xbf16, #tpu.memory_space<vmem>>, vector<128x1024xbf16>
    %cst_84 = arith.constant dense<0.000000e+00> : vector<64x1024xf32>
    %141 = tpu.matmul %138, %140, %cst_84 {dimension_numbers = #tpu.dot_dimension_numbers<[1], [0], [0], [1], [0, 0, 1, 1], [], []>} : vector<64x128xbf16>, vector<128x1024xbf16>, vector<64x1024xf32> -> vector<64x1024xf32>
    %142 = vector.extract_strided_slice %139 {offsets = [0, 0], sizes = [1, 1024], strides = [1, 1]} : vector<3x1024xf32> to vector<1x1024xf32>
    %143 = vector.broadcast %142 : vector<1x1024xf32> to vector<64x1024xf32>
    %144 = arith.addf %141, %143 : vector<64x1024xf32>
    %145 = vector.extract_strided_slice %139 {offsets = [1, 0], sizes = [1, 1024], strides = [1, 1]} : vector<3x1024xf32> to vector<1x1024xf32>
    %146 = vector.extract_strided_slice %139 {offsets = [2, 0], sizes = [1, 1024], strides = [1, 1]} : vector<3x1024xf32> to vector<1x1024xf32>
    %cst_85 = arith.constant dense<0.000000e+00> : vector<2x1024xf32>
    %147 = tpu.matmul %0, %144, %cst_85 {dimension_numbers = #tpu.dot_dimension_numbers<[1], [0], [0], [1], [0, 0, 1, 1], [], []>} : vector<2x64xf32>, vector<64x1024xf32>, vector<2x1024xf32> -> vector<2x1024xf32>
    %cst_86 = arith.constant dense<0.000000e+00> : vector<2x16xf32>
    %148 = tpu.matmul %147, %3, %cst_86 {dimension_numbers = #tpu.dot_dimension_numbers<[1], [1], [0], [0], [0, 0, 1, 0], [], []>} : vector<2x1024xf32>, vector<16x1024xf32>, vector<2x16xf32> -> vector<2x16xf32>
    %cst_87 = arith.constant dense<0.000000e+00> : vector<2x1024xf32>
    %149 = tpu.matmul %148, %3, %cst_87 {dimension_numbers = #tpu.dot_dimension_numbers<[1], [0], [0], [1], [0, 0, 1, 1], [], []>} : vector<2x16xf32>, vector<16x1024xf32>, vector<2x1024xf32> -> vector<2x1024xf32>
    %cst_88 = arith.constant 4.8828125E-4 : f32
    %150 = vector.broadcast %cst_88 : f32 to vector<2x1024xf32>
    %151 = arith.mulf %149, %150 : vector<2x1024xf32>
    %cst_89 = arith.constant dense<0.000000e+00> : vector<64x1024xf32>
    %152 = tpu.matmul %1, %151, %cst_89 {dimension_numbers = #tpu.dot_dimension_numbers<[1], [0], [0], [1], [0, 0, 1, 1], [], []>} : vector<64x2xf32>, vector<2x1024xf32>, vector<64x1024xf32> -> vector<64x1024xf32>
    %153 = arith.subf %144, %152 : vector<64x1024xf32>
    %154 = arith.mulf %153, %153 : vector<64x1024xf32>
    %cst_90 = arith.constant dense<0.000000e+00> : vector<2x1024xf32>
    %155 = tpu.matmul %0, %154, %cst_90 {dimension_numbers = #tpu.dot_dimension_numbers<[1], [0], [0], [1], [0, 0, 1, 1], [], []>} : vector<2x64xf32>, vector<64x1024xf32>, vector<2x1024xf32> -> vector<2x1024xf32>
    %cst_91 = arith.constant dense<0.000000e+00> : vector<2x16xf32>
    %156 = tpu.matmul %155, %3, %cst_91 {dimension_numbers = #tpu.dot_dimension_numbers<[1], [1], [0], [0], [0, 0, 1, 0], [], []>} : vector<2x1024xf32>, vector<16x1024xf32>, vector<2x16xf32> -> vector<2x16xf32>
    %cst_92 = arith.constant dense<0.000000e+00> : vector<2x1024xf32>
    %157 = tpu.matmul %156, %3, %cst_92 {dimension_numbers = #tpu.dot_dimension_numbers<[1], [0], [0], [1], [0, 0, 1, 1], [], []>} : vector<2x16xf32>, vector<16x1024xf32>, vector<2x1024xf32> -> vector<2x1024xf32>
    %cst_93 = arith.constant 4.8828125E-4 : f32
    %158 = vector.broadcast %cst_93 : f32 to vector<2x1024xf32>
    %159 = arith.mulf %157, %158 : vector<2x1024xf32>
    %cst_94 = arith.constant 9.99999974E-6 : f32
    %160 = vector.broadcast %cst_94 : f32 to vector<2x1024xf32>
    %161 = arith.addf %159, %160 : vector<2x1024xf32>
    %162 = math.rsqrt %161 : vector<2x1024xf32>
    %163 = vector.broadcast %145 : vector<1x1024xf32> to vector<2x1024xf32>
    %164 = arith.mulf %163, %162 : vector<2x1024xf32>
    %cst_95 = arith.constant dense<0.000000e+00> : vector<64x1024xf32>
    %165 = tpu.matmul %1, %164, %cst_95 {dimension_numbers = #tpu.dot_dimension_numbers<[1], [0], [0], [1], [0, 0, 1, 1], [], []>} : vector<64x2xf32>, vector<2x1024xf32>, vector<64x1024xf32> -> vector<64x1024xf32>
    %166 = arith.mulf %153, %165 : vector<64x1024xf32>
    %167 = vector.broadcast %146 : vector<1x1024xf32> to vector<64x1024xf32>
    %168 = arith.addf %166, %167 : vector<64x1024xf32>
    %cst_96 = arith.constant 0.000000e+00 : f32
    %169 = vector.broadcast %cst_96 : f32 to vector<64x1024xf32>
    %170 = arith.maximumf %168, %169 : vector<64x1024xf32>
    %171 = arith.truncf %170 : vector<64x1024xf32> to vector<64x1024xbf16>
    %172 = vector.extract_strided_slice %171 {offsets = [0, 0], sizes = [16, 1024], strides = [1, 1]} : vector<64x1024xbf16> to vector<16x1024xbf16>
    %173 = arith.extf %172 : vector<16x1024xbf16> to vector<16x1024xf32>
    %174 = vector.extract_strided_slice %171 {offsets = [32, 0], sizes = [16, 1024], strides = [1, 1]} : vector<64x1024xbf16> to vector<16x1024xbf16>
    %175 = arith.extf %174 : vector<16x1024xbf16> to vector<16x1024xf32>
    %cst_97 = arith.constant dense<0xFF800000> : vector<1024xf32>
    %176 = vector.multi_reduction <maximumf>, %173, %cst_97 [0] : vector<16x1024xf32> to vector<1024xf32>
    %177 = vector.shape_cast %176 : vector<1024xf32> to vector<1x1024xf32>
    %cst_98 = arith.constant dense<0xFF800000> : vector<1024xf32>
    %178 = vector.multi_reduction <maximumf>, %175, %cst_98 [0] : vector<16x1024xf32> to vector<1024xf32>
    %179 = vector.shape_cast %178 : vector<1024xf32> to vector<1x1024xf32>
    %180 = arith.maximumf %177, %179 : vector<1x1024xf32>
    %181 = vector.extract_strided_slice %171 {offsets = [16, 0], sizes = [16, 1024], strides = [1, 1]} : vector<64x1024xbf16> to vector<16x1024xbf16>
    %182 = arith.extf %181 : vector<16x1024xbf16> to vector<16x1024xf32>
    %183 = vector.extract_strided_slice %171 {offsets = [48, 0], sizes = [16, 1024], strides = [1, 1]} : vector<64x1024xbf16> to vector<16x1024xbf16>
    %184 = arith.extf %183 : vector<16x1024xbf16> to vector<16x1024xf32>
    %cst_99 = arith.constant dense<0xFF800000> : vector<1024xf32>
    %185 = vector.multi_reduction <maximumf>, %182, %cst_99 [0] : vector<16x1024xf32> to vector<1024xf32>
    %186 = vector.shape_cast %185 : vector<1024xf32> to vector<1x1024xf32>
    %cst_100 = arith.constant dense<0xFF800000> : vector<1024xf32>
    %187 = vector.multi_reduction <maximumf>, %184, %cst_100 [0] : vector<16x1024xf32> to vector<1024xf32>
    %188 = vector.shape_cast %187 : vector<1024xf32> to vector<1x1024xf32>
    %189 = arith.maximumf %186, %188 : vector<1x1024xf32>
    %190 = tpu.concatenate %180, %189 in 0 : vector<1x1024xf32>, vector<1x1024xf32> -> vector<2x1024xf32>
    %191 = vector.shape_cast %190 : vector<2x1024xf32> to vector<1x2x1024xf32>
    %c0_101 = arith.constant 0 : index
    %c0_102 = arith.constant 0 : index
    %c0_103 = arith.constant 0 : index
    %192 = vector.load %arg18[%c0_101, %c0_102, %c0_103] : memref<1x2x1024xf32, #tpu.memory_space<vmem>>, vector<1x2x1024xf32>
    tpu.vector_store %arg18[%c0_101, %c0_102, %c0_103], %191 {strides = array<i32>} : memref<1x2x1024xf32, #tpu.memory_space<vmem>>, vector<1x2x1024xf32>,
    return
  }
  func.func @transform_0(%arg0: i32) -> (i32, i32) {
    %c0_i32 = arith.constant 0 : i32
    %c0_i32_0 = arith.constant 0 : i32
    return %arg0, %c0_i32 : i32, i32
  }
  func.func @transform_1(%arg0: i32) -> (i32, i32) {
    %c0_i32 = arith.constant 0 : i32
    %c0_i32_0 = arith.constant 0 : i32
    return %arg0, %c0_i32 : i32, i32
  }
  func.func @transform_2(%arg0: i32) -> (i32, i32) {
    %c0_i32 = arith.constant 0 : i32
    %c0_i32_0 = arith.constant 0 : i32
    %c0_i32_1 = arith.constant 0 : i32
    return %c0_i32, %c0_i32_0 : i32, i32
  }
  func.func @transform_3(%arg0: i32) -> (i32, i32) {
    %c0_i32 = arith.constant 0 : i32
    %c0_i32_0 = arith.constant 0 : i32
    %c0_i32_1 = arith.constant 0 : i32
    return %c0_i32, %c0_i32_0 : i32, i32
  }
  func.func @transform_4(%arg0: i32) -> (i32, i32) {
    %c0_i32 = arith.constant 0 : i32
    %c0_i32_0 = arith.constant 0 : i32
    %c0_i32_1 = arith.constant 0 : i32
    return %c0_i32, %c0_i32_0 : i32, i32
  }
  func.func @transform_5(%arg0: i32) -> (i32, i32) {
    %c0_i32 = arith.constant 0 : i32
    %c0_i32_0 = arith.constant 0 : i32
    %c0_i32_1 = arith.constant 0 : i32
    return %c0_i32, %c0_i32_0 : i32, i32
  }
  func.func @transform_6(%arg0: i32) -> (i32, i32) {
    %c0_i32 = arith.constant 0 : i32
    %c0_i32_0 = arith.constant 0 : i32
    %c0_i32_1 = arith.constant 0 : i32
    return %c0_i32, %c0_i32_0 : i32, i32
  }
  func.func @transform_7(%arg0: i32) -> (i32, i32) {
    %c0_i32 = arith.constant 0 : i32
    %c0_i32_0 = arith.constant 0 : i32
    %c0_i32_1 = arith.constant 0 : i32
    return %c0_i32, %c0_i32_0 : i32, i32
  }
  func.func @transform_8(%arg0: i32) -> (i32, i32) {
    %c0_i32 = arith.constant 0 : i32
    %c0_i32_0 = arith.constant 0 : i32
    %c0_i32_1 = arith.constant 0 : i32
    return %c0_i32, %c0_i32_0 : i32, i32
  }
  func.func @transform_9(%arg0: i32) -> (i32, i32) {
    %c0_i32 = arith.constant 0 : i32
    %c0_i32_0 = arith.constant 0 : i32
    %c0_i32_1 = arith.constant 0 : i32
    return %c0_i32, %c0_i32_0 : i32, i32
  }
  func.func @transform_10(%arg0: i32) -> (i32, i32) {
    %c0_i32 = arith.constant 0 : i32
    %c0_i32_0 = arith.constant 0 : i32
    %c0_i32_1 = arith.constant 0 : i32
    return %c0_i32, %c0_i32_0 : i32, i32
  }
  func.func @transform_11(%arg0: i32) -> (i32, i32) {
    %c0_i32 = arith.constant 0 : i32
    %c0_i32_0 = arith.constant 0 : i32
    %c0_i32_1 = arith.constant 0 : i32
    return %c0_i32, %c0_i32_0 : i32, i32
  }
  func.func @transform_12(%arg0: i32) -> (i32, i32) {
    %c0_i32 = arith.constant 0 : i32
    %c0_i32_0 = arith.constant 0 : i32
    %c0_i32_1 = arith.constant 0 : i32
    return %c0_i32, %c0_i32_0 : i32, i32
  }
  func.func @transform_13(%arg0: i32) -> (i32, i32) {
    %c0_i32 = arith.constant 0 : i32
    %c0_i32_0 = arith.constant 0 : i32
    %c0_i32_1 = arith.constant 0 : i32
    return %c0_i32, %c0_i32_0 : i32, i32
  }
  func.func @transform_14(%arg0: i32) -> (i32, i32) {
    %c0_i32 = arith.constant 0 : i32
    %c0_i32_0 = arith.constant 0 : i32
    %c0_i32_1 = arith.constant 0 : i32
    return %c0_i32, %c0_i32_0 : i32, i32
  }
  func.func @transform_15(%arg0: i32) -> (i32, i32) {
    %c0_i32 = arith.constant 0 : i32
    %c0_i32_0 = arith.constant 0 : i32
    %c0_i32_1 = arith.constant 0 : i32
    return %c0_i32, %c0_i32_0 : i32, i32
  }
  func.func @transform_16(%arg0: i32) -> (i32, i32) {
    %c0_i32 = arith.constant 0 : i32
    %c0_i32_0 = arith.constant 0 : i32
    %c0_i32_1 = arith.constant 0 : i32
    return %c0_i32, %c0_i32_0 : i32, i32
  }
  func.func @transform_17(%arg0: i32) -> (i32, i32, i32) {
    %c0_i32 = arith.constant 0 : i32
    %c0_i32_0 = arith.constant 0 : i32
    %c0_i32_1 = arith.constant 0 : i32
    return %arg0, %c0_i32, %c0_i32_0 : i32, i32, i32
  }
}

module attributes {stable_mosaic.version = 11 : i64} {
  func.func @_postpool_kernel(%arg0: i32, %arg1: memref<2x1024xf32, #tpu.memory_space<vmem>>, %arg2: memref<1024x512xbf16, #tpu.memory_space<vmem>>, %arg3: memref<3x512xf32, #tpu.memory_space<vmem>>, %arg4: memref<512x256xbf16, #tpu.memory_space<vmem>>, %arg5: memref<3x256xf32, #tpu.memory_space<vmem>>, %arg6: memref<256x128xbf16, #tpu.memory_space<vmem>>, %arg7: memref<1x128xf32, #tpu.memory_space<vmem>>, %arg8: memref<16x512xf32, #tpu.memory_space<vmem>>, %arg9: memref<256x256xf32, #tpu.memory_space<vmem>>, %arg10: memref<2x128xf32, #tpu.memory_space<vmem>>) attributes {dimension_semantics = [#tpu.dimension_semantics<arbitrary>], iteration_bounds = array<i64: 1>, scalar_prefetch = 0 : i64, scratch_operands = 0 : i64, tpu.core_type = #tpu.core_type<tc>, window_params = [{pipeline_mode = #tpu.pipeline_mode<synchronous>, transform_indices = @transform_0, window_bounds = array<i64: 2, 1024>}, {pipeline_mode = #tpu.pipeline_mode<synchronous>, transform_indices = @transform_1, window_bounds = array<i64: 1024, 512>}, {pipeline_mode = #tpu.pipeline_mode<synchronous>, transform_indices = @transform_2, window_bounds = array<i64: 3, 512>}, {pipeline_mode = #tpu.pipeline_mode<synchronous>, transform_indices = @transform_3, window_bounds = array<i64: 512, 256>}, {pipeline_mode = #tpu.pipeline_mode<synchronous>, transform_indices = @transform_4, window_bounds = array<i64: 3, 256>}, {pipeline_mode = #tpu.pipeline_mode<synchronous>, transform_indices = @transform_5, window_bounds = array<i64: 256, 128>}, {pipeline_mode = #tpu.pipeline_mode<synchronous>, transform_indices = @transform_6, window_bounds = array<i64: 1, 128>}, {pipeline_mode = #tpu.pipeline_mode<synchronous>, transform_indices = @transform_7, window_bounds = array<i64: 16, 512>}, {pipeline_mode = #tpu.pipeline_mode<synchronous>, transform_indices = @transform_8, window_bounds = array<i64: 256, 256>}, {pipeline_mode = #tpu.pipeline_mode<synchronous>, transform_indices = @transform_9, window_bounds = array<i64: 2, 128>}]} {
    %c0 = arith.constant 0 : index
    %c0_0 = arith.constant 0 : index
    %0 = vector.load %arg8[%c0, %c0_0] : memref<16x512xf32, #tpu.memory_space<vmem>>, vector<16x512xf32>
    %c0_1 = arith.constant 0 : index
    %c0_2 = arith.constant 0 : index
    %1 = vector.load %arg3[%c0_1, %c0_2] : memref<3x512xf32, #tpu.memory_space<vmem>>, vector<3x512xf32>
    %c0_3 = arith.constant 0 : index
    %c0_4 = arith.constant 0 : index
    %2 = vector.load %arg5[%c0_3, %c0_4] : memref<3x256xf32, #tpu.memory_space<vmem>>, vector<3x256xf32>
    %c0_5 = arith.constant 0 : index
    %c0_6 = arith.constant 0 : index
    %3 = vector.load %arg1[%c0_5, %c0_6] : memref<2x1024xf32, #tpu.memory_space<vmem>>, vector<2x1024xf32>
    %4 = arith.truncf %3 : vector<2x1024xf32> to vector<2x1024xbf16>
    %c0_7 = arith.constant 0 : index
    %c0_8 = arith.constant 0 : index
    %5 = vector.load %arg2[%c0_7, %c0_8] : memref<1024x512xbf16, #tpu.memory_space<vmem>>, vector<1024x512xbf16>
    %cst = arith.constant dense<0.000000e+00> : vector<2x512xf32>
    %6 = tpu.matmul %4, %5, %cst {dimension_numbers = #tpu.dot_dimension_numbers<[1], [0], [0], [1], [0, 0, 1, 1], [], []>} : vector<2x1024xbf16>, vector<1024x512xbf16>, vector<2x512xf32> -> vector<2x512xf32>
    %7 = vector.extract_strided_slice %1 {offsets = [0, 0], sizes = [1, 512], strides = [1, 1]} : vector<3x512xf32> to vector<1x512xf32>
    %8 = vector.broadcast %7 : vector<1x512xf32> to vector<2x512xf32>
    %9 = arith.addf %6, %8 : vector<2x512xf32>
    %10 = vector.extract_strided_slice %1 {offsets = [1, 0], sizes = [1, 512], strides = [1, 1]} : vector<3x512xf32> to vector<1x512xf32>
    %11 = vector.extract_strided_slice %1 {offsets = [2, 0], sizes = [1, 512], strides = [1, 1]} : vector<3x512xf32> to vector<1x512xf32>
    %cst_9 = arith.constant dense<0.000000e+00> : vector<2x16xf32>
    %12 = tpu.matmul %9, %0, %cst_9 {dimension_numbers = #tpu.dot_dimension_numbers<[1], [1], [0], [0], [0, 0, 1, 0], [], []>} : vector<2x512xf32>, vector<16x512xf32>, vector<2x16xf32> -> vector<2x16xf32>
    %cst_10 = arith.constant dense<0.000000e+00> : vector<2x512xf32>
    %13 = tpu.matmul %12, %0, %cst_10 {dimension_numbers = #tpu.dot_dimension_numbers<[1], [0], [0], [1], [0, 0, 1, 1], [], []>} : vector<2x16xf32>, vector<16x512xf32>, vector<2x512xf32> -> vector<2x512xf32>
    %cst_11 = arith.constant 3.125000e-02 : f32
    %14 = vector.broadcast %cst_11 : f32 to vector<2x512xf32>
    %15 = arith.mulf %13, %14 : vector<2x512xf32>
    %16 = arith.subf %9, %15 : vector<2x512xf32>
    %17 = arith.mulf %16, %16 : vector<2x512xf32>
    %cst_12 = arith.constant dense<0.000000e+00> : vector<2x16xf32>
    %18 = tpu.matmul %17, %0, %cst_12 {dimension_numbers = #tpu.dot_dimension_numbers<[1], [1], [0], [0], [0, 0, 1, 0], [], []>} : vector<2x512xf32>, vector<16x512xf32>, vector<2x16xf32> -> vector<2x16xf32>
    %cst_13 = arith.constant dense<0.000000e+00> : vector<2x512xf32>
    %19 = tpu.matmul %18, %0, %cst_13 {dimension_numbers = #tpu.dot_dimension_numbers<[1], [0], [0], [1], [0, 0, 1, 1], [], []>} : vector<2x16xf32>, vector<16x512xf32>, vector<2x512xf32> -> vector<2x512xf32>
    %cst_14 = arith.constant 3.125000e-02 : f32
    %20 = vector.broadcast %cst_14 : f32 to vector<2x512xf32>
    %21 = arith.mulf %19, %20 : vector<2x512xf32>
    %cst_15 = arith.constant 9.99999974E-6 : f32
    %22 = vector.broadcast %cst_15 : f32 to vector<2x512xf32>
    %23 = arith.addf %21, %22 : vector<2x512xf32>
    %24 = math.rsqrt %23 : vector<2x512xf32>
    %25 = vector.broadcast %10 : vector<1x512xf32> to vector<2x512xf32>
    %26 = arith.mulf %25, %24 : vector<2x512xf32>
    %27 = arith.mulf %16, %26 : vector<2x512xf32>
    %28 = vector.broadcast %11 : vector<1x512xf32> to vector<2x512xf32>
    %29 = arith.addf %27, %28 : vector<2x512xf32>
    %cst_16 = arith.constant 0.000000e+00 : f32
    %30 = vector.broadcast %cst_16 : f32 to vector<2x512xf32>
    %31 = arith.maximumf %29, %30 : vector<2x512xf32>
    %32 = arith.truncf %31 : vector<2x512xf32> to vector<2x512xbf16>
    %c0_17 = arith.constant 0 : index
    %c0_18 = arith.constant 0 : index
    %33 = vector.load %arg4[%c0_17, %c0_18] : memref<512x256xbf16, #tpu.memory_space<vmem>>, vector<512x256xbf16>
    %cst_19 = arith.constant dense<0.000000e+00> : vector<2x256xf32>
    %34 = tpu.matmul %32, %33, %cst_19 {dimension_numbers = #tpu.dot_dimension_numbers<[1], [0], [0], [1], [0, 0, 1, 1], [], []>} : vector<2x512xbf16>, vector<512x256xbf16>, vector<2x256xf32> -> vector<2x256xf32>
    %35 = vector.extract_strided_slice %2 {offsets = [0, 0], sizes = [1, 256], strides = [1, 1]} : vector<3x256xf32> to vector<1x256xf32>
    %36 = vector.broadcast %35 : vector<1x256xf32> to vector<2x256xf32>
    %37 = arith.addf %34, %36 : vector<2x256xf32>
    %38 = vector.extract_strided_slice %2 {offsets = [1, 0], sizes = [1, 256], strides = [1, 1]} : vector<3x256xf32> to vector<1x256xf32>
    %39 = vector.extract_strided_slice %2 {offsets = [2, 0], sizes = [1, 256], strides = [1, 1]} : vector<3x256xf32> to vector<1x256xf32>
    %c0_20 = arith.constant 0 : index
    %c0_21 = arith.constant 0 : index
    %40 = vector.load %arg9[%c0_20, %c0_21] : memref<256x256xf32, #tpu.memory_space<vmem>>, vector<256x256xf32>
    %cst_22 = arith.constant dense<0.000000e+00> : vector<2x256xf32>
    %41 = tpu.matmul %37, %40, %cst_22 {dimension_numbers = #tpu.dot_dimension_numbers<[1], [0], [0], [1], [0, 0, 1, 1], [], []>} : vector<2x256xf32>, vector<256x256xf32>, vector<2x256xf32> -> vector<2x256xf32>
    %cst_23 = arith.constant 6.250000e-02 : f32
    %42 = vector.broadcast %cst_23 : f32 to vector<2x256xf32>
    %43 = arith.mulf %41, %42 : vector<2x256xf32>
    %44 = arith.subf %37, %43 : vector<2x256xf32>
    %45 = arith.mulf %44, %44 : vector<2x256xf32>
    %c0_24 = arith.constant 0 : index
    %c0_25 = arith.constant 0 : index
    %46 = vector.load %arg9[%c0_24, %c0_25] : memref<256x256xf32, #tpu.memory_space<vmem>>, vector<256x256xf32>
    %cst_26 = arith.constant dense<0.000000e+00> : vector<2x256xf32>
    %47 = tpu.matmul %45, %46, %cst_26 {dimension_numbers = #tpu.dot_dimension_numbers<[1], [0], [0], [1], [0, 0, 1, 1], [], []>} : vector<2x256xf32>, vector<256x256xf32>, vector<2x256xf32> -> vector<2x256xf32>
    %cst_27 = arith.constant 6.250000e-02 : f32
    %48 = vector.broadcast %cst_27 : f32 to vector<2x256xf32>
    %49 = arith.mulf %47, %48 : vector<2x256xf32>
    %cst_28 = arith.constant 9.99999974E-6 : f32
    %50 = vector.broadcast %cst_28 : f32 to vector<2x256xf32>
    %51 = arith.addf %49, %50 : vector<2x256xf32>
    %52 = math.rsqrt %51 : vector<2x256xf32>
    %53 = vector.broadcast %38 : vector<1x256xf32> to vector<2x256xf32>
    %54 = arith.mulf %53, %52 : vector<2x256xf32>
    %55 = arith.mulf %44, %54 : vector<2x256xf32>
    %56 = vector.broadcast %39 : vector<1x256xf32> to vector<2x256xf32>
    %57 = arith.addf %55, %56 : vector<2x256xf32>
    %cst_29 = arith.constant 0.000000e+00 : f32
    %58 = vector.broadcast %cst_29 : f32 to vector<2x256xf32>
    %59 = arith.maximumf %57, %58 : vector<2x256xf32>
    %60 = arith.truncf %59 : vector<2x256xf32> to vector<2x256xbf16>
    %c0_30 = arith.constant 0 : index
    %c0_31 = arith.constant 0 : index
    %61 = vector.load %arg6[%c0_30, %c0_31] : memref<256x128xbf16, #tpu.memory_space<vmem>>, vector<256x128xbf16>
    %cst_32 = arith.constant dense<0.000000e+00> : vector<2x128xf32>
    %62 = tpu.matmul %60, %61, %cst_32 {dimension_numbers = #tpu.dot_dimension_numbers<[1], [0], [0], [1], [0, 0, 1, 1], [], []>} : vector<2x256xbf16>, vector<256x128xbf16>, vector<2x128xf32> -> vector<2x128xf32>
    %c0_33 = arith.constant 0 : index
    %c0_34 = arith.constant 0 : index
    %63 = vector.load %arg7[%c0_33, %c0_34] : memref<1x128xf32, #tpu.memory_space<vmem>>, vector<1x128xf32>
    %64 = vector.broadcast %63 : vector<1x128xf32> to vector<2x128xf32>
    %65 = arith.addf %62, %64 : vector<2x128xf32>
    %cst_35 = arith.constant 0.000000e+00 : f32
    %66 = vector.broadcast %cst_35 : f32 to vector<2x128xf32>
    %67 = arith.maximumf %65, %66 : vector<2x128xf32>
    %68 = math.absf %65 : vector<2x128xf32>
    %cst_36 = arith.constant 0.000000e+00 : f32
    %69 = vector.broadcast %cst_36 : f32 to vector<2x128xf32>
    %70 = arith.subf %69, %68 : vector<2x128xf32>
    %71 = math.exp %70 : vector<2x128xf32>
    %cst_37 = arith.constant 1.000000e+00 : f32
    %72 = vector.broadcast %cst_37 : f32 to vector<2x128xf32>
    %73 = arith.addf %72, %71 : vector<2x128xf32>
    %74 = math.log %73 : vector<2x128xf32>
    %75 = arith.addf %67, %74 : vector<2x128xf32>
    %c0_38 = arith.constant 0 : index
    %c0_39 = arith.constant 0 : index
    %76 = vector.load %arg10[%c0_38, %c0_39] : memref<2x128xf32, #tpu.memory_space<vmem>>, vector<2x128xf32>
    tpu.vector_store %arg10[%c0_38, %c0_39], %75 {strides = array<i32>} : memref<2x128xf32, #tpu.memory_space<vmem>>, vector<2x128xf32>,
    return
  }
  func.func @transform_0(%arg0: i32) -> (i32, i32) {
    %c0_i32 = arith.constant 0 : i32
    %c0_i32_0 = arith.constant 0 : i32
    %c0_i32_1 = arith.constant 0 : i32
    return %c0_i32, %c0_i32_0 : i32, i32
  }
  func.func @transform_1(%arg0: i32) -> (i32, i32) {
    %c0_i32 = arith.constant 0 : i32
    %c0_i32_0 = arith.constant 0 : i32
    %c0_i32_1 = arith.constant 0 : i32
    return %c0_i32, %c0_i32_0 : i32, i32
  }
  func.func @transform_2(%arg0: i32) -> (i32, i32) {
    %c0_i32 = arith.constant 0 : i32
    %c0_i32_0 = arith.constant 0 : i32
    %c0_i32_1 = arith.constant 0 : i32
    return %c0_i32, %c0_i32_0 : i32, i32
  }
  func.func @transform_3(%arg0: i32) -> (i32, i32) {
    %c0_i32 = arith.constant 0 : i32
    %c0_i32_0 = arith.constant 0 : i32
    %c0_i32_1 = arith.constant 0 : i32
    return %c0_i32, %c0_i32_0 : i32, i32
  }
  func.func @transform_4(%arg0: i32) -> (i32, i32) {
    %c0_i32 = arith.constant 0 : i32
    %c0_i32_0 = arith.constant 0 : i32
    %c0_i32_1 = arith.constant 0 : i32
    return %c0_i32, %c0_i32_0 : i32, i32
  }
  func.func @transform_5(%arg0: i32) -> (i32, i32) {
    %c0_i32 = arith.constant 0 : i32
    %c0_i32_0 = arith.constant 0 : i32
    %c0_i32_1 = arith.constant 0 : i32
    return %c0_i32, %c0_i32_0 : i32, i32
  }
  func.func @transform_6(%arg0: i32) -> (i32, i32) {
    %c0_i32 = arith.constant 0 : i32
    %c0_i32_0 = arith.constant 0 : i32
    %c0_i32_1 = arith.constant 0 : i32
    return %c0_i32, %c0_i32_0 : i32, i32
  }
  func.func @transform_7(%arg0: i32) -> (i32, i32) {
    %c0_i32 = arith.constant 0 : i32
    %c0_i32_0 = arith.constant 0 : i32
    %c0_i32_1 = arith.constant 0 : i32
    return %c0_i32, %c0_i32_0 : i32, i32
  }
  func.func @transform_8(%arg0: i32) -> (i32, i32) {
    %c0_i32 = arith.constant 0 : i32
    %c0_i32_0 = arith.constant 0 : i32
    %c0_i32_1 = arith.constant 0 : i32
    return %c0_i32, %c0_i32_0 : i32, i32
  }
  func.func @transform_9(%arg0: i32) -> (i32, i32) {
    %c0_i32 = arith.constant 0 : i32
    %c0_i32_0 = arith.constant 0 : i32
    %c0_i32_1 = arith.constant 0 : i32
    return %c0_i32, %c0_i32_0 : i32, i32
  }
}

</mosaic_0001>

<llo_original>
// kernel: parameter_prediction_net.3
$region0: #{parameter_prediction_net.3}
  #allocation0 [shape = 'u32[]', space=smem, size = 0x4, offset = 0x4, fixed_abs, tag = 'smem constant byte address 0x4 - core index']
  #allocation1 [shape = 'u32[72,128]{1,0:T(1,128)}', space=vmem, size = 0x9000, scoped, tag = 'internal scratch']
  %s0 = inlined_call_operand.vmem [shape: f32[2,1024], index: 0, kind: input, shape index: {}]
  %s1 = inlined_call_operand.vmem [shape: bf16[1024,512], index: 1, kind: input, shape index: {}]
  %s2 = inlined_call_operand.vmem [shape: f32[3,512], index: 2, kind: input, shape index: {}]
  %s3 = inlined_call_operand.vmem [shape: bf16[512,256], index: 3, kind: input, shape index: {}]
  %s4 = inlined_call_operand.vmem [shape: f32[3,256], index: 4, kind: input, shape index: {}]
  %s5 = inlined_call_operand.vmem [shape: bf16[256,128], index: 5, kind: input, shape index: {}]
  %s6 = inlined_call_operand.vmem [shape: f32[1,128], index: 6, kind: input, shape index: {}]
  %s7 = inlined_call_operand.vmem [shape: f32[16,512], index: 7, kind: input, shape index: {}]
  %s8 = inlined_call_operand.vmem [shape: f32[256,256], index: 8, kind: input, shape index: {}]
  %s9 = inlined_call_operand.vmem [shape: f32[2,128], index: 9, kind: output, shape index: {}]
  %s10 = sld [smem:[#allocation0]]
  $region46: #{parameter_prediction_net.3} parent=0
    _
  %s12 = ssub.s32 1, %s10
  %s13 = scalar_select 0, %s12, %s10
  // Predicated region
  $region2: #{parameter_prediction_net.3} parent=0 // pred_check
    _
  $region3: #{parameter_prediction_net.3} parent=0 // pred_check_branch
    %15 = sbr.rel (0) target = $region5
  $region4: #{parameter_prediction_net.3} parent=0 // pred_region
    _
  $region5: #{parameter_prediction_net.3} parent=0 // pred_fallthru
    _
  // Predicated region
  $region6: #{parameter_prediction_net.3} parent=0 // pred_check
    _
  $region7: #{parameter_prediction_net.3} parent=0 // pred_check_branch
    %17 = sbr.rel (0) target = $region9
  $region8: #{parameter_prediction_net.3} parent=0 // pred_region
    _
  $region9: #{parameter_prediction_net.3} parent=0 // pred_fallthru
    _
  // Predicated region
  $region10: #{parameter_prediction_net.3} parent=0 // pred_check
    _
  $region11: #{parameter_prediction_net.3} parent=0 // pred_check_branch
    %19 = sbr.rel (0) target = $region13
  $region12: #{parameter_prediction_net.3} parent=0 // pred_region
    _
  $region13: #{parameter_prediction_net.3} parent=0 // pred_fallthru
    _
  // Predicated region
  $region14: #{parameter_prediction_net.3} parent=0 // pred_check
    _
  $region15: #{parameter_prediction_net.3} parent=0 // pred_check_branch
    %21 = sbr.rel (0) target = $region17
  $region16: #{parameter_prediction_net.3} parent=0 // pred_region
    _
  $region17: #{parameter_prediction_net.3} parent=0 // pred_fallthru
    _
  // Predicated region
  $region18: #{parameter_prediction_net.3} parent=0 // pred_check
    _
  $region19: #{parameter_prediction_net.3} parent=0 // pred_check_branch
    %23 = sbr.rel (0) target = $region21
  $region20: #{parameter_prediction_net.3} parent=0 // pred_region
    _
  $region21: #{parameter_prediction_net.3} parent=0 // pred_fallthru
    _
  // Predicated region
  $region22: #{parameter_prediction_net.3} parent=0 // pred_check
    _
  $region23: #{parameter_prediction_net.3} parent=0 // pred_check_branch
    %25 = sbr.rel (0) target = $region25
  $region24: #{parameter_prediction_net.3} parent=0 // pred_region
    _
  $region25: #{parameter_prediction_net.3} parent=0 // pred_fallthru
    _
  // Predicated region
  $region26: #{parameter_prediction_net.3} parent=0 // pred_check
    _
  $region27: #{parameter_prediction_net.3} parent=0 // pred_check_branch
    %27 = sbr.rel (0) target = $region29
  $region28: #{parameter_prediction_net.3} parent=0 // pred_region
    _
  $region29: #{parameter_prediction_net.3} parent=0 // pred_fallthru
    _
  // Predicated region
  $region30: #{parameter_prediction_net.3} parent=0 // pred_check
    _
  $region31: #{parameter_prediction_net.3} parent=0 // pred_check_branch
    %29 = sbr.rel (0) target = $region33
  $region32: #{parameter_prediction_net.3} parent=0 // pred_region
    _
  $region33: #{parameter_prediction_net.3} parent=0 // pred_fallthru
    _
  // Predicated region
  $region34: #{parameter_prediction_net.3} parent=0 // pred_check
    _
  $region35: #{parameter_prediction_net.3} parent=0 // pred_check_branch
    %31 = sbr.rel (0) target = $region37
  $region36: #{parameter_prediction_net.3} parent=0 // pred_region
    _
  $region37: #{parameter_prediction_net.3} parent=0 // pred_fallthru
    _
  %v32 = vld [vmem:[%s7] sm:$0xff]
  %v33 = vld [vmem:[%s7 + $0x8] sm:$0xff]
  %v34 = vld [vmem:[%s7 + $0x10] sm:$0xff]
  %v35 = vld [vmem:[%s7 + $0x18] sm:$0xff]
  %v36 = vld [vmem:[%s7 + $0x20] sm:$0xff]
  %v37 = vld [vmem:[%s7 + $0x28] sm:$0xff]
  %v38 = vld [vmem:[%s7 + $0x30] sm:$0xff]
  %v39 = vld [vmem:[%s7 + $0x38] sm:$0xff]
  %v40 = vld [vmem:[%s2] sm:$0x77]
  %v41 = vld [vmem:[%s2 + $0x8] sm:$0x77]
  %v42 = vld [vmem:[%s4] sm:$0x77]
  %v43 = vld [vmem:[%s0] sm:$0xff]
  %v44 = vld [vmem:[%s0 + $0x8] sm:$0xff]
  %47 = vst [vmem:[#allocation1] ss:$4 sm:$0xff] %v43
  %s48 = scalar_lea.vmem [#allocation1], 32
  %49 = vst [vmem:[%s48] ss:$4 sm:$0xff] %v44
  %v50 = vld.sshfl [vmem:[#allocation1] sm:$0xff pattern:$0x73625140]
  %v51 = vld.sshfl [vmem:[#allocation1 + $0x8] sm:$0xff pattern:$0x73625140]
  %v52 = vld.sshfl [vmem:[#allocation1 + $0x10] sm:$0xff pattern:$0x73625140]
  %v53 = vld.sshfl [vmem:[#allocation1 + $0x18] sm:$0xff pattern:$0x73625140]
  %v54 = vld.sshfl [vmem:[#allocation1 + $0x20] sm:$0xff pattern:$0x73625140]
  %v55 = vld.sshfl [vmem:[#allocation1 + $0x28] sm:$0xff pattern:$0x73625140]
  %v56 = vld.sshfl [vmem:[#allocation1 + $0x30] sm:$0xff pattern:$0x73625140]
  %v57 = vld.sshfl [vmem:[#allocation1 + $0x38] sm:$0xff pattern:$0x73625140]
  %v66 = vpack.c.bf16 %v50, %v50
  %v67 = vpack.c.bf16 %v51, %v51
  %v68 = vpack.c.bf16 %v52, %v52
  %v69 = vpack.c.bf16 %v53, %v53
  %v70 = vpack.c.bf16 %v54, %v54
  %v71 = vpack.c.bf16 %v55, %v55
  %v72 = vpack.c.bf16 %v56, %v56
  %v73 = vpack.c.bf16 %v57, %v57
  %v74 = vld [vmem:[%s1] sm:$0xff]
  %v75 = vld [vmem:[%s1 + $0x8] sm:$0xff]
  %v76 = vld [vmem:[%s1 + $0x10] sm:$0xff]
  %v77 = vld [vmem:[%s1 + $0x18] sm:$0xff]
  %v78 = vld [vmem:[%s1 + $0x20] sm:$0xff]
  %v79 = vld [vmem:[%s1 + $0x28] sm:$0xff]
  %v80 = vld [vmem:[%s1 + $0x30] sm:$0xff]
  %v81 = vld [vmem:[%s1 + $0x38] sm:$0xff]
  %v82 = vld [vmem:[%s1 + $0x40] sm:$0xff]
  %v83 = vld [vmem:[%s1 + $0x48] sm:$0xff]
  %v84 = vld [vmem:[%s1 + $0x50] sm:$0xff]
  %v85 = vld [vmem:[%s1 + $0x58] sm:$0xff]
  %v86 = vld [vmem:[%s1 + $0x60] sm:$0xff]
  %v87 = vld [vmem:[%s1 + $0x68] sm:$0xff]
  %v88 = vld [vmem:[%s1 + $0x70] sm:$0xff]
  %v89 = vld [vmem:[%s1 + $0x78] sm:$0xff]
  %v90 = vld [vmem:[%s1 + $0x80] sm:$0xff]
  %v91 = vld [vmem:[%s1 + $0x88] sm:$0xff]
  %v92 = vld [vmem:[%s1 + $0x90] sm:$0xff]
  %v93 = vld [vmem:[%s1 + $0x98] sm:$0xff]
  %v94 = vld [vmem:[%s1 + $0xa0] sm:$0xff]
  %v95 = vld [vmem:[%s1 + $0xa8] sm:$0xff]
  %v96 = vld [vmem:[%s1 + $0xb0] sm:$0xff]
  %v97 = vld [vmem:[%s1 + $0xb8] sm:$0xff]
  %v98 = vld [vmem:[%s1 + $0xc0] sm:$0xff]
  %v99 = vld [vmem:[%s1 + $0xc8] sm:$0xff]
  %v100 = vld [vmem:[%s1 + $0xd0] sm:$0xff]
  %v101 = vld [vmem:[%s1 + $0xd8] sm:$0xff]
  %v102 = vld [vmem:[%s1 + $0xe0] sm:$0xff]
  %v103 = vld [vmem:[%s1 + $0xe8] sm:$0xff]
  %v104 = vld [vmem:[%s1 + $0xf0] sm:$0xff]
  %v105 = vld [vmem:[%s1 + $0xf8] sm:$0xff]
  %v106 = vld [vmem:[%s1 + $0x100] sm:$0xff]
  %v107 = vld [vmem:[%s1 + $0x108] sm:$0xff]
  %v108 = vld [vmem:[%s1 + $0x110] sm:$0xff]
  %v109 = vld [vmem:[%s1 + $0x118] sm:$0xff]
  %v110 = vld [vmem:[%s1 + $0x120] sm:$0xff]
  %v111 = vld [vmem:[%s1 + $0x128] sm:$0xff]
  %v112 = vld [vmem:[%s1 + $0x130] sm:$0xff]
  %v113 = vld [vmem:[%s1 + $0x138] sm:$0xff]
  %v114 = vld [vmem:[%s1 + $0x140] sm:$0xff]
  %v115 = vld [vmem:[%s1 + $0x148] sm:$0xff]
  %v116 = vld [vmem:[%s1 + $0x150] sm:$0xff]
  %v117 = vld [vmem:[%s1 + $0x158] sm:$0xff]
  %v118 = vld [vmem:[%s1 + $0x160] sm:$0xff]
  %v119 = vld [vmem:[%s1 + $0x168] sm:$0xff]
  %v120 = vld [vmem:[%s1 + $0x170] sm:$0xff]
  %v121 = vld [vmem:[%s1 + $0x178] sm:$0xff]
  %v122 = vld [vmem:[%s1 + $0x180] sm:$0xff]
  %v123 = vld [vmem:[%s1 + $0x188] sm:$0xff]
  %v124 = vld [vmem:[%s1 + $0x190] sm:$0xff]
  %v125 = vld [vmem:[%s1 + $0x198] sm:$0xff]
  %v126 = vld [vmem:[%s1 + $0x1a0] sm:$0xff]
  %v127 = vld [vmem:[%s1 + $0x1a8] sm:$0xff]
  %v128 = vld [vmem:[%s1 + $0x1b0] sm:$0xff]
  %v129 = vld [vmem:[%s1 + $0x1b8] sm:$0xff]
  %v130 = vld [vmem:[%s1 + $0x1c0] sm:$0xff]
  %v131 = vld [vmem:[%s1 + $0x1c8] sm:$0xff]
  %v132 = vld [vmem:[%s1 + $0x1d0] sm:$0xff]
  %v133 = vld [vmem:[%s1 + $0x1d8] sm:$0xff]
  %v134 = vld [vmem:[%s1 + $0x1e0] sm:$0xff]
  %v135 = vld [vmem:[%s1 + $0x1e8] sm:$0xff]
  %v136 = vld [vmem:[%s1 + $0x1f0] sm:$0xff]
  %v137 = vld [vmem:[%s1 + $0x1f8] sm:$0xff]
  %v138 = vld [vmem:[%s1 + $0x200] sm:$0xff]
  %v139 = vld [vmem:[%s1 + $0x208] sm:$0xff]
  %v140 = vld [vmem:[%s1 + $0x210] sm:$0xff]
  %v141 = vld [vmem:[%s1 + $0x218] sm:$0xff]
  %v142 = vld [vmem:[%s1 + $0x220] sm:$0xff]
  %v143 = vld [vmem:[%s1 + $0x228] sm:$0xff]
  %v144 = vld [vmem:[%s1 + $0x230] sm:$0xff]
  %v145 = vld [vmem:[%s1 + $0x238] sm:$0xff]
  %v146 = vld [vmem:[%s1 + $0x240] sm:$0xff]
  %v147 = vld [vmem:[%s1 + $0x248] sm:$0xff]
  %v148 = vld [vmem:[%s1 + $0x250] sm:$0xff]
  %v149 = vld [vmem:[%s1 + $0x258] sm:$0xff]
  %v150 = vld [vmem:[%s1 + $0x260] sm:$0xff]
  %v151 = vld [vmem:[%s1 + $0x268] sm:$0xff]
  %v152 = vld [vmem:[%s1 + $0x270] sm:$0xff]
  %v153 = vld [vmem:[%s1 + $0x278] sm:$0xff]
  %v154 = vld [vmem:[%s1 + $0x280] sm:$0xff]
  %v155 = vld [vmem:[%s1 + $0x288] sm:$0xff]
  %v156 = vld [vmem:[%s1 + $0x290] sm:$0xff]
  %v157 = vld [vmem:[%s1 + $0x298] sm:$0xff]
  %v158 = vld [vmem:[%s1 + $0x2a0] sm:$0xff]
  %v159 = vld [vmem:[%s1 + $0x2a8] sm:$0xff]
  %v160 = vld [vmem:[%s1 + $0x2b0] sm:$0xff]
  %v161 = vld [vmem:[%s1 + $0x2b8] sm:$0xff]
  %v162 = vld [vmem:[%s1 + $0x2c0] sm:$0xff]
  %v163 = vld [vmem:[%s1 + $0x2c8] sm:$0xff]
  %v164 = vld [vmem:[%s1 + $0x2d0] sm:$0xff]
  %v165 = vld [vmem:[%s1 + $0x2d8] sm:$0xff]
  %v166 = vld [vmem:[%s1 + $0x2e0] sm:$0xff]
  %v167 = vld [vmem:[%s1 + $0x2e8] sm:$0xff]
  %v168 = vld [vmem:[%s1 + $0x2f0] sm:$0xff]
  %v169 = vld [vmem:[%s1 + $0x2f8] sm:$0xff]
  %v170 = vld [vmem:[%s1 + $0x300] sm:$0xff]
  %v171 = vld [vmem:[%s1 + $0x308] sm:$0xff]
  %v172 = vld [vmem:[%s1 + $0x310] sm:$0xff]
  %v173 = vld [vmem:[%s1 + $0x318] sm:$0xff]
  %v174 = vld [vmem:[%s1 + $0x320] sm:$0xff]
  %v175 = vld [vmem:[%s1 + $0x328] sm:$0xff]
  %v176 = vld [vmem:[%s1 + $0x330] sm:$0xff]
  %v177 = vld [vmem:[%s1 + $0x338] sm:$0xff]
  %v178 = vld [vmem:[%s1 + $0x340] sm:$0xff]
  %v179 = vld [vmem:[%s1 + $0x348] sm:$0xff]
  %v180 = vld [vmem:[%s1 + $0x350] sm:$0xff]
  %v181 = vld [vmem:[%s1 + $0x358] sm:$0xff]
  %v182 = vld [vmem:[%s1 + $0x360] sm:$0xff]
  %v183 = vld [vmem:[%s1 + $0x368] sm:$0xff]
  %v184 = vld [vmem:[%s1 + $0x370] sm:$0xff]
  %v185 = vld [vmem:[%s1 + $0x378] sm:$0xff]
  %v186 = vld [vmem:[%s1 + $0x380] sm:$0xff]
  %v187 = vld [vmem:[%s1 + $0x388] sm:$0xff]
  %v188 = vld [vmem:[%s1 + $0x390] sm:$0xff]
  %v189 = vld [vmem:[%s1 + $0x398] sm:$0xff]
  %v190 = vld [vmem:[%s1 + $0x3a0] sm:$0xff]
  %v191 = vld [vmem:[%s1 + $0x3a8] sm:$0xff]
  %v192 = vld [vmem:[%s1 + $0x3b0] sm:$0xff]
  %v193 = vld [vmem:[%s1 + $0x3b8] sm:$0xff]
  %v194 = vld [vmem:[%s1 + $0x3c0] sm:$0xff]
  %v195 = vld [vmem:[%s1 + $0x3c8] sm:$0xff]
  %v196 = vld [vmem:[%s1 + $0x3d0] sm:$0xff]
  %v197 = vld [vmem:[%s1 + $0x3d8] sm:$0xff]
  %v198 = vld [vmem:[%s1 + $0x3e0] sm:$0xff]
  %v199 = vld [vmem:[%s1 + $0x3e8] sm:$0xff]
  %v200 = vld [vmem:[%s1 + $0x3f0] sm:$0xff]
  %v201 = vld [vmem:[%s1 + $0x3f8] sm:$0xff]
  %v202 = vld [vmem:[%s1 + $0x400] sm:$0xff]
  %v203 = vld [vmem:[%s1 + $0x408] sm:$0xff]
  %v204 = vld [vmem:[%s1 + $0x410] sm:$0xff]
  %v205 = vld [vmem:[%s1 + $0x418] sm:$0xff]
  %v206 = vld [vmem:[%s1 + $0x420] sm:$0xff]
  %v207 = vld [vmem:[%s1 + $0x428] sm:$0xff]
  %v208 = vld [vmem:[%s1 + $0x430] sm:$0xff]
  %v209 = vld [vmem:[%s1 + $0x438] sm:$0xff]
  %v210 = vld [vmem:[%s1 + $0x440] sm:$0xff]
  %v211 = vld [vmem:[%s1 + $0x448] sm:$0xff]
  %v212 = vld [vmem:[%s1 + $0x450] sm:$0xff]
  %v213 = vld [vmem:[%s1 + $0x458] sm:$0xff]
  %v214 = vld [vmem:[%s1 + $0x460] sm:$0xff]
  %v215 = vld [vmem:[%s1 + $0x468] sm:$0xff]
  %v216 = vld [vmem:[%s1 + $0x470] sm:$0xff]
  %v217 = vld [vmem:[%s1 + $0x478] sm:$0xff]
  %v218 = vld [vmem:[%s1 + $0x480] sm:$0xff]
  %v219 = vld [vmem:[%s1 + $0x488] sm:$0xff]
  %v220 = vld [vmem:[%s1 + $0x490] sm:$0xff]
  %v221 = vld [vmem:[%s1 + $0x498] sm:$0xff]
  %v222 = vld [vmem:[%s1 + $0x4a0] sm:$0xff]
  %v223 = vld [vmem:[%s1 + $0x4a8] sm:$0xff]
  %v224 = vld [vmem:[%s1 + $0x4b0] sm:$0xff]
  %v225 = vld [vmem:[%s1 + $0x4b8] sm:$0xff]
  %v226 = vld [vmem:[%s1 + $0x4c0] sm:$0xff]
  %v227 = vld [vmem:[%s1 + $0x4c8] sm:$0xff]
  %v228 = vld [vmem:[%s1 + $0x4d0] sm:$0xff]
  %v229 = vld [vmem:[%s1 + $0x4d8] sm:$0xff]
  %v230 = vld [vmem:[%s1 + $0x4e0] sm:$0xff]
  %v231 = vld [vmem:[%s1 + $0x4e8] sm:$0xff]
  %v232 = vld [vmem:[%s1 + $0x4f0] sm:$0xff]
  %v233 = vld [vmem:[%s1 + $0x4f8] sm:$0xff]
  %v234 = vld [vmem:[%s1 + $0x500] sm:$0xff]
  %v235 = vld [vmem:[%s1 + $0x508] sm:$0xff]
  %v236 = vld [vmem:[%s1 + $0x510] sm:$0xff]
  %v237 = vld [vmem:[%s1 + $0x518] sm:$0xff]
  %v238 = vld [vmem:[%s1 + $0x520] sm:$0xff]
  %v239 = vld [vmem:[%s1 + $0x528] sm:$0xff]
  %v240 = vld [vmem:[%s1 + $0x530] sm:$0xff]
  %v241 = vld [vmem:[%s1 + $0x538] sm:$0xff]
  %v242 = vld [vmem:[%s1 + $0x540] sm:$0xff]
  %v243 = vld [vmem:[%s1 + $0x548] sm:$0xff]
  %v244 = vld [vmem:[%s1 + $0x550] sm:$0xff]
  %v245 = vld [vmem:[%s1 + $0x558] sm:$0xff]
  %v246 = vld [vmem:[%s1 + $0x560] sm:$0xff]
  %v247 = vld [vmem:[%s1 + $0x568] sm:$0xff]
  %v248 = vld [vmem:[%s1 + $0x570] sm:$0xff]
  %v249 = vld [vmem:[%s1 + $0x578] sm:$0xff]
  %v250 = vld [vmem:[%s1 + $0x580] sm:$0xff]
  %v251 = vld [vmem:[%s1 + $0x588] sm:$0xff]
  %v252 = vld [vmem:[%s1 + $0x590] sm:$0xff]
  %v253 = vld [vmem:[%s1 + $0x598] sm:$0xff]
  %v254 = vld [vmem:[%s1 + $0x5a0] sm:$0xff]
  %v255 = vld [vmem:[%s1 + $0x5a8] sm:$0xff]
  %v256 = vld [vmem:[%s1 + $0x5b0] sm:$0xff]
  %v257 = vld [vmem:[%s1 + $0x5b8] sm:$0xff]
  %v258 = vld [vmem:[%s1 + $0x5c0] sm:$0xff]
  %v259 = vld [vmem:[%s1 + $0x5c8] sm:$0xff]
  %v260 = vld [vmem:[%s1 + $0x5d0] sm:$0xff]
  %v261 = vld [vmem:[%s1 + $0x5d8] sm:$0xff]
  %v262 = vld [vmem:[%s1 + $0x5e0] sm:$0xff]
  %v263 = vld [vmem:[%s1 + $0x5e8] sm:$0xff]
  %v264 = vld [vmem:[%s1 + $0x5f0] sm:$0xff]
  %v265 = vld [vmem:[%s1 + $0x5f8] sm:$0xff]
  %v266 = vld [vmem:[%s1 + $0x600] sm:$0xff]
  %v267 = vld [vmem:[%s1 + $0x608] sm:$0xff]
  %v268 = vld [vmem:[%s1 + $0x610] sm:$0xff]
  %v269 = vld [vmem:[%s1 + $0x618] sm:$0xff]
  %v270 = vld [vmem:[%s1 + $0x620] sm:$0xff]
  %v271 = vld [vmem:[%s1 + $0x628] sm:$0xff]
  %v272 = vld [vmem:[%s1 + $0x630] sm:$0xff]
  %v273 = vld [vmem:[%s1 + $0x638] sm:$0xff]
  %v274 = vld [vmem:[%s1 + $0x640] sm:$0xff]
  %v275 = vld [vmem:[%s1 + $0x648] sm:$0xff]
  %v276 = vld [vmem:[%s1 + $0x650] sm:$0xff]
  %v277 = vld [vmem:[%s1 + $0x658] sm:$0xff]
  %v278 = vld [vmem:[%s1 + $0x660] sm:$0xff]
  %v279 = vld [vmem:[%s1 + $0x668] sm:$0xff]
  %v280 = vld [vmem:[%s1 + $0x670] sm:$0xff]
  %v281 = vld [vmem:[%s1 + $0x678] sm:$0xff]
  %v282 = vld [vmem:[%s1 + $0x680] sm:$0xff]
  %v283 = vld [vmem:[%s1 + $0x688] sm:$0xff]
  %v284 = vld [vmem:[%s1 + $0x690] sm:$0xff]
  %v285 = vld [vmem:[%s1 + $0x698] sm:$0xff]
  %v286 = vld [vmem:[%s1 + $0x6a0] sm:$0xff]
  %v287 = vld [vmem:[%s1 + $0x6a8] sm:$0xff]
  %v288 = vld [vmem:[%s1 + $0x6b0] sm:$0xff]
  %v289 = vld [vmem:[%s1 + $0x6b8] sm:$0xff]
  %v290 = vld [vmem:[%s1 + $0x6c0] sm:$0xff]
  %v291 = vld [vmem:[%s1 + $0x6c8] sm:$0xff]
  %v292 = vld [vmem:[%s1 + $0x6d0] sm:$0xff]
  %v293 = vld [vmem:[%s1 + $0x6d8] sm:$0xff]
  %v294 = vld [vmem:[%s1 + $0x6e0] sm:$0xff]
  %v295 = vld [vmem:[%s1 + $0x6e8] sm:$0xff]
  %v296 = vld [vmem:[%s1 + $0x6f0] sm:$0xff]
  %v297 = vld [vmem:[%s1 + $0x6f8] sm:$0xff]
  %v298 = vld [vmem:[%s1 + $0x700] sm:$0xff]
  %v299 = vld [vmem:[%s1 + $0x708] sm:$0xff]
  %v300 = vld [vmem:[%s1 + $0x710] sm:$0xff]
  %v301 = vld [vmem:[%s1 + $0x718] sm:$0xff]
  %v302 = vld [vmem:[%s1 + $0x720] sm:$0xff]
  %v303 = vld [vmem:[%s1 + $0x728] sm:$0xff]
  %v304 = vld [vmem:[%s1 + $0x730] sm:$0xff]
  %v305 = vld [vmem:[%s1 + $0x738] sm:$0xff]
  %v306 = vld [vmem:[%s1 + $0x740] sm:$0xff]
  %v307 = vld [vmem:[%s1 + $0x748] sm:$0xff]
  %v308 = vld [vmem:[%s1 + $0x750] sm:$0xff]
  %v309 = vld [vmem:[%s1 + $0x758] sm:$0xff]
  %v310 = vld [vmem:[%s1 + $0x760] sm:$0xff]
  %v311 = vld [vmem:[%s1 + $0x768] sm:$0xff]
  %v312 = vld [vmem:[%s1 + $0x770] sm:$0xff]
  %v313 = vld [vmem:[%s1 + $0x778] sm:$0xff]
  %v314 = vld [vmem:[%s1 + $0x780] sm:$0xff]
  %v315 = vld [vmem:[%s1 + $0x788] sm:$0xff]
  %v316 = vld [vmem:[%s1 + $0x790] sm:$0xff]
  %v317 = vld [vmem:[%s1 + $0x798] sm:$0xff]
  %v318 = vld [vmem:[%s1 + $0x7a0] sm:$0xff]
  %v319 = vld [vmem:[%s1 + $0x7a8] sm:$0xff]
  %v320 = vld [vmem:[%s1 + $0x7b0] sm:$0xff]
  %v321 = vld [vmem:[%s1 + $0x7b8] sm:$0xff]
  %v322 = vld [vmem:[%s1 + $0x7c0] sm:$0xff]
  %v323 = vld [vmem:[%s1 + $0x7c8] sm:$0xff]
  %v324 = vld [vmem:[%s1 + $0x7d0] sm:$0xff]
  %v325 = vld [vmem:[%s1 + $0x7d8] sm:$0xff]
  %v326 = vld [vmem:[%s1 + $0x7e0] sm:$0xff]
  %v327 = vld [vmem:[%s1 + $0x7e8] sm:$0xff]
  %v328 = vld [vmem:[%s1 + $0x7f0] sm:$0xff]
  %v329 = vld [vmem:[%s1 + $0x7f8] sm:$0xff]
  %v332 = vperm.slane %v40, 0
  %v333 = vperm.slane %v40, 4
  %v334 = vperm.slane %v41, 0
  %v335 = vperm.slane %v41, 4
  %v340 = vperm.slane %v332, 0
  %v341 = vperm.slane %v333, 0
  %v342 = vperm.slane %v334, 0
  %v343 = vperm.slane %v335, 0
  %v600 = vunpack.c.l.b16 %v74
  %v601 = vunpack.c.h.b16 %v74
  %v602 = vunpack.c.l.b16 %v75
  %v603 = vunpack.c.h.b16 %v75
  %v604 = vunpack.c.l.b16 %v76
  %v605 = vunpack.c.h.b16 %v76
  %v606 = vunpack.c.l.b16 %v77
  %v607 = vunpack.c.h.b16 %v77
  %v608 = vunpack.c.l.b16 %v78
  %v609 = vunpack.c.h.b16 %v78
  %v610 = vunpack.c.l.b16 %v79
  %v611 = vunpack.c.h.b16 %v79
  %v612 = vunpack.c.l.b16 %v80
  %v613 = vunpack.c.h.b16 %v80
  %v614 = vunpack.c.l.b16 %v81
  %v615 = vunpack.c.h.b16 %v81
  %v616 = vunpack.c.l.b16 %v82
  %v617 = vunpack.c.h.b16 %v82
  %v618 = vunpack.c.l.b16 %v83
  %v619 = vunpack.c.h.b16 %v83
  %v620 = vunpack.c.l.b16 %v84
  %v621 = vunpack.c.h.b16 %v84
  %v622 = vunpack.c.l.b16 %v85
  %v623 = vunpack.c.h.b16 %v85
  %v624 = vunpack.c.l.b16 %v86
  %v625 = vunpack.c.h.b16 %v86
  %v626 = vunpack.c.l.b16 %v87
  %v627 = vunpack.c.h.b16 %v87
  %v628 = vunpack.c.l.b16 %v88
  %v629 = vunpack.c.h.b16 %v88
  %v630 = vunpack.c.l.b16 %v89
  %v631 = vunpack.c.h.b16 %v89
  %v632 = vunpack.c.l.b16 %v90
  %v633 = vunpack.c.h.b16 %v90
  %v634 = vunpack.c.l.b16 %v91
  %v635 = vunpack.c.h.b16 %v91
  %v636 = vunpack.c.l.b16 %v92
  %v637 = vunpack.c.h.b16 %v92
  %v638 = vunpack.c.l.b16 %v93
  %v639 = vunpack.c.h.b16 %v93
  %v640 = vunpack.c.l.b16 %v94
  %v641 = vunpack.c.h.b16 %v94
  %v642 = vunpack.c.l.b16 %v95
  %v643 = vunpack.c.h.b16 %v95
  %v644 = vunpack.c.l.b16 %v96
  %v645 = vunpack.c.h.b16 %v96
  %v646 = vunpack.c.l.b16 %v97
  %v647 = vunpack.c.h.b16 %v97
  %v648 = vunpack.c.l.b16 %v98
  %v649 = vunpack.c.h.b16 %v98
  %v650 = vunpack.c.l.b16 %v99
  %v651 = vunpack.c.h.b16 %v99
  %v652 = vunpack.c.l.b16 %v100
  %v653 = vunpack.c.h.b16 %v100
  %v654 = vunpack.c.l.b16 %v101
  %v655 = vunpack.c.h.b16 %v101
  %v656 = vunpack.c.l.b16 %v102
  %v657 = vunpack.c.h.b16 %v102
  %v658 = vunpack.c.l.b16 %v103
  %v659 = vunpack.c.h.b16 %v103
  %v660 = vunpack.c.l.b16 %v104
  %v661 = vunpack.c.h.b16 %v104
  %v662 = vunpack.c.l.b16 %v105
  %v663 = vunpack.c.h.b16 %v105
  %v664 = vunpack.c.l.b16 %v106
  %v665 = vunpack.c.h.b16 %v106
  %v666 = vunpack.c.l.b16 %v107
  %v667 = vunpack.c.h.b16 %v107
  %v668 = vunpack.c.l.b16 %v108
  %v669 = vunpack.c.h.b16 %v108
  %v670 = vunpack.c.l.b16 %v109
  %v671 = vunpack.c.h.b16 %v109
  %v672 = vunpack.c.l.b16 %v110
  %v673 = vunpack.c.h.b16 %v110
  %v674 = vunpack.c.l.b16 %v111
  %v675 = vunpack.c.h.b16 %v111
  %v676 = vunpack.c.l.b16 %v112
  %v677 = vunpack.c.h.b16 %v112
  %v678 = vunpack.c.l.b16 %v113
  %v679 = vunpack.c.h.b16 %v113
  %v680 = vunpack.c.l.b16 %v114
  %v681 = vunpack.c.h.b16 %v114
  %v682 = vunpack.c.l.b16 %v115
  %v683 = vunpack.c.h.b16 %v115
  %v684 = vunpack.c.l.b16 %v116
  %v685 = vunpack.c.h.b16 %v116
  %v686 = vunpack.c.l.b16 %v117
  %v687 = vunpack.c.h.b16 %v117
  %v688 = vunpack.c.l.b16 %v118
  %v689 = vunpack.c.h.b16 %v118
  %v690 = vunpack.c.l.b16 %v119
  %v691 = vunpack.c.h.b16 %v119
  %v692 = vunpack.c.l.b16 %v120
  %v693 = vunpack.c.h.b16 %v120
  %v694 = vunpack.c.l.b16 %v121
  %v695 = vunpack.c.h.b16 %v121
  %v696 = vunpack.c.l.b16 %v122
  %v697 = vunpack.c.h.b16 %v122
  %v698 = vunpack.c.l.b16 %v123
  %v699 = vunpack.c.h.b16 %v123
  %v700 = vunpack.c.l.b16 %v124
  %v701 = vunpack.c.h.b16 %v124
  %v702 = vunpack.c.l.b16 %v125
  %v703 = vunpack.c.h.b16 %v125
  %v704 = vunpack.c.l.b16 %v126
  %v705 = vunpack.c.h.b16 %v126
  %v706 = vunpack.c.l.b16 %v127
  %v707 = vunpack.c.h.b16 %v127
  %v708 = vunpack.c.l.b16 %v128
  %v709 = vunpack.c.h.b16 %v128
  %v710 = vunpack.c.l.b16 %v129
  %v711 = vunpack.c.h.b16 %v129
  %v712 = vunpack.c.l.b16 %v130
  %v713 = vunpack.c.h.b16 %v130
  %v714 = vunpack.c.l.b16 %v131
  %v715 = vunpack.c.h.b16 %v131
  %v716 = vunpack.c.l.b16 %v132
  %v717 = vunpack.c.h.b16 %v132
  %v718 = vunpack.c.l.b16 %v133
  %v719 = vunpack.c.h.b16 %v133
  %v720 = vunpack.c.l.b16 %v134
  %v721 = vunpack.c.h.b16 %v134
  %v722 = vunpack.c.l.b16 %v135
  %v723 = vunpack.c.h.b16 %v135
  %v724 = vunpack.c.l.b16 %v136
  %v725 = vunpack.c.h.b16 %v136
  %v726 = vunpack.c.l.b16 %v137
  %v727 = vunpack.c.h.b16 %v137
  %v728 = vunpack.c.l.b16 %v138
  %v729 = vunpack.c.h.b16 %v138
  %v730 = vunpack.c.l.b16 %v139
  %v731 = vunpack.c.h.b16 %v139
  %v732 = vunpack.c.l.b16 %v140
  %v733 = vunpack.c.h.b16 %v140
  %v734 = vunpack.c.l.b16 %v141
  %v735 = vunpack.c.h.b16 %v141
  %v736 = vunpack.c.l.b16 %v142
  %v737 = vunpack.c.h.b16 %v142
  %v738 = vunpack.c.l.b16 %v143
  %v739 = vunpack.c.h.b16 %v143
  %v740 = vunpack.c.l.b16 %v144
  %v741 = vunpack.c.h.b16 %v144
  %v742 = vunpack.c.l.b16 %v145
  %v743 = vunpack.c.h.b16 %v145
  %v744 = vunpack.c.l.b16 %v146
  %v745 = vunpack.c.h.b16 %v146
  %v746 = vunpack.c.l.b16 %v147
  %v747 = vunpack.c.h.b16 %v147
  %v748 = vunpack.c.l.b16 %v148
  %v749 = vunpack.c.h.b16 %v148
  %v750 = vunpack.c.l.b16 %v149
  %v751 = vunpack.c.h.b16 %v149
  %v752 = vunpack.c.l.b16 %v150
  %v753 = vunpack.c.h.b16 %v150
  %v754 = vunpack.c.l.b16 %v151
  %v755 = vunpack.c.h.b16 %v151
  %v756 = vunpack.c.l.b16 %v152
  %v757 = vunpack.c.h.b16 %v152
  %v758 = vunpack.c.l.b16 %v153
  %v759 = vunpack.c.h.b16 %v153
  %v760 = vunpack.c.l.b16 %v154
  %v761 = vunpack.c.h.b16 %v154
  %v762 = vunpack.c.l.b16 %v155
  %v763 = vunpack.c.h.b16 %v155
  %v764 = vunpack.c.l.b16 %v156
  %v765 = vunpack.c.h.b16 %v156
  %v766 = vunpack.c.l.b16 %v157
  %v767 = vunpack.c.h.b16 %v157
  %v768 = vunpack.c.l.b16 %v158
  %v769 = vunpack.c.h.b16 %v158
  %v770 = vunpack.c.l.b16 %v159
  %v771 = vunpack.c.h.b16 %v159
  %v772 = vunpack.c.l.b16 %v160
  %v773 = vunpack.c.h.b16 %v160
  %v774 = vunpack.c.l.b16 %v161
  %v775 = vunpack.c.h.b16 %v161
  %v776 = vunpack.c.l.b16 %v162
  %v777 = vunpack.c.h.b16 %v162
  %v778 = vunpack.c.l.b16 %v163
  %v779 = vunpack.c.h.b16 %v163
  %v780 = vunpack.c.l.b16 %v164
  %v781 = vunpack.c.h.b16 %v164
  %v782 = vunpack.c.l.b16 %v165
  %v783 = vunpack.c.h.b16 %v165
  %v784 = vunpack.c.l.b16 %v166
  %v785 = vunpack.c.h.b16 %v166
  %v786 = vunpack.c.l.b16 %v167
  %v787 = vunpack.c.h.b16 %v167
  %v788 = vunpack.c.l.b16 %v168
  %v789 = vunpack.c.h.b16 %v168
  %v790 = vunpack.c.l.b16 %v169
  %v791 = vunpack.c.h.b16 %v169
  %v792 = vunpack.c.l.b16 %v170
  %v793 = vunpack.c.h.b16 %v170
  %v794 = vunpack.c.l.b16 %v171
  %v795 = vunpack.c.h.b16 %v171
  %v796 = vunpack.c.l.b16 %v172
  %v797 = vunpack.c.h.b16 %v172
  %v798 = vunpack.c.l.b16 %v173
  %v799 = vunpack.c.h.b16 %v173
  %v800 = vunpack.c.l.b16 %v174
  %v801 = vunpack.c.h.b16 %v174
  %v802 = vunpack.c.l.b16 %v175
  %v803 = vunpack.c.h.b16 %v175
  %v804 = vunpack.c.l.b16 %v176
  %v805 = vunpack.c.h.b16 %v176
  %v806 = vunpack.c.l.b16 %v177
  %v807 = vunpack.c.h.b16 %v177
  %v808 = vunpack.c.l.b16 %v178
  %v809 = vunpack.c.h.b16 %v178
  %v810 = vunpack.c.l.b16 %v179
  %v811 = vunpack.c.h.b16 %v179
  %v812 = vunpack.c.l.b16 %v180
  %v813 = vunpack.c.h.b16 %v180
  %v814 = vunpack.c.l.b16 %v181
  %v815 = vunpack.c.h.b16 %v181
  %v816 = vunpack.c.l.b16 %v182
  %v817 = vunpack.c.h.b16 %v182
  %v818 = vunpack.c.l.b16 %v183
  %v819 = vunpack.c.h.b16 %v183
  %v820 = vunpack.c.l.b16 %v184
  %v821 = vunpack.c.h.b16 %v184
  %v822 = vunpack.c.l.b16 %v185
  %v823 = vunpack.c.h.b16 %v185
  %v824 = vunpack.c.l.b16 %v186
  %v825 = vunpack.c.h.b16 %v186
  %v826 = vunpack.c.l.b16 %v187
  %v827 = vunpack.c.h.b16 %v187
  %v828 = vunpack.c.l.b16 %v188
  %v829 = vunpack.c.h.b16 %v188
  %v830 = vunpack.c.l.b16 %v189
  %v831 = vunpack.c.h.b16 %v189
  %v832 = vunpack.c.l.b16 %v190
  %v833 = vunpack.c.h.b16 %v190
  %v834 = vunpack.c.l.b16 %v191
  %v835 = vunpack.c.h.b16 %v191
  %v836 = vunpack.c.l.b16 %v192
  %v837 = vunpack.c.h.b16 %v192
  %v838 = vunpack.c.l.b16 %v193
  %v839 = vunpack.c.h.b16 %v193
  %v840 = vunpack.c.l.b16 %v194
  %v841 = vunpack.c.h.b16 %v194
  %v842 = vunpack.c.l.b16 %v195
  %v843 = vunpack.c.h.b16 %v195
  %v844 = vunpack.c.l.b16 %v196
  %v845 = vunpack.c.h.b16 %v196
  %v846 = vunpack.c.l.b16 %v197
  %v847 = vunpack.c.h.b16 %v197
  %v848 = vunpack.c.l.b16 %v198
  %v849 = vunpack.c.h.b16 %v198
  %v850 = vunpack.c.l.b16 %v199
  %v851 = vunpack.c.h.b16 %v199
  %v852 = vunpack.c.l.b16 %v200
  %v853 = vunpack.c.h.b16 %v200
  %v854 = vunpack.c.l.b16 %v201
  %v855 = vunpack.c.h.b16 %v201
  %v856 = vunpack.c.l.b16 %v202
  %v857 = vunpack.c.h.b16 %v202
  %v858 = vunpack.c.l.b16 %v203
  %v859 = vunpack.c.h.b16 %v203
  %v860 = vunpack.c.l.b16 %v204
  %v861 = vunpack.c.h.b16 %v204
  %v862 = vunpack.c.l.b16 %v205
  %v863 = vunpack.c.h.b16 %v205
  %v864 = vunpack.c.l.b16 %v206
  %v865 = vunpack.c.h.b16 %v206
  %v866 = vunpack.c.l.b16 %v207
  %v867 = vunpack.c.h.b16 %v207
  %v868 = vunpack.c.l.b16 %v208
  %v869 = vunpack.c.h.b16 %v208
  %v870 = vunpack.c.l.b16 %v209
  %v871 = vunpack.c.h.b16 %v209
  %v872 = vunpack.c.l.b16 %v210
  %v873 = vunpack.c.h.b16 %v210
  %v874 = vunpack.c.l.b16 %v211
  %v875 = vunpack.c.h.b16 %v211
  %v876 = vunpack.c.l.b16 %v212
  %v877 = vunpack.c.h.b16 %v212
  %v878 = vunpack.c.l.b16 %v213
  %v879 = vunpack.c.h.b16 %v213
  %v880 = vunpack.c.l.b16 %v214
  %v881 = vunpack.c.h.b16 %v214
  %v882 = vunpack.c.l.b16 %v215
  %v883 = vunpack.c.h.b16 %v215
  %v884 = vunpack.c.l.b16 %v216
  %v885 = vunpack.c.h.b16 %v216
  %v886 = vunpack.c.l.b16 %v217
  %v887 = vunpack.c.h.b16 %v217
  %v888 = vunpack.c.l.b16 %v218
  %v889 = vunpack.c.h.b16 %v218
  %v890 = vunpack.c.l.b16 %v219
  %v891 = vunpack.c.h.b16 %v219
  %v892 = vunpack.c.l.b16 %v220
  %v893 = vunpack.c.h.b16 %v220
  %v894 = vunpack.c.l.b16 %v221
  %v895 = vunpack.c.h.b16 %v221
  %v896 = vunpack.c.l.b16 %v222
  %v897 = vunpack.c.h.b16 %v222
  %v898 = vunpack.c.l.b16 %v223
  %v899 = vunpack.c.h.b16 %v223
  %v900 = vunpack.c.l.b16 %v224
  %v901 = vunpack.c.h.b16 %v224
  %v902 = vunpack.c.l.b16 %v225
  %v903 = vunpack.c.h.b16 %v225
  %v904 = vunpack.c.l.b16 %v226
  %v905 = vunpack.c.h.b16 %v226
  %v906 = vunpack.c.l.b16 %v227
  %v907 = vunpack.c.h.b16 %v227
  %v908 = vunpack.c.l.b16 %v228
  %v909 = vunpack.c.h.b16 %v228
  %v910 = vunpack.c.l.b16 %v229
  %v911 = vunpack.c.h.b16 %v229
  %v912 = vunpack.c.l.b16 %v230
  %v913 = vunpack.c.h.b16 %v230
  %v914 = vunpack.c.l.b16 %v231
  %v915 = vunpack.c.h.b16 %v231
  %v916 = vunpack.c.l.b16 %v232
  %v917 = vunpack.c.h.b16 %v232
  %v918 = vunpack.c.l.b16 %v233
  %v919 = vunpack.c.h.b16 %v233
  %v920 = vunpack.c.l.b16 %v234
  %v921 = vunpack.c.h.b16 %v234
  %v922 = vunpack.c.l.b16 %v235
  %v923 = vunpack.c.h.b16 %v235
  %v924 = vunpack.c.l.b16 %v236
  %v925 = vunpack.c.h.b16 %v236
  %v926 = vunpack.c.l.b16 %v237
  %v927 = vunpack.c.h.b16 %v237
  %v928 = vunpack.c.l.b16 %v238
  %v929 = vunpack.c.h.b16 %v238
  %v930 = vunpack.c.l.b16 %v239
  %v931 = vunpack.c.h.b16 %v239
  %v932 = vunpack.c.l.b16 %v240
  %v933 = vunpack.c.h.b16 %v240
  %v934 = vunpack.c.l.b16 %v241
  %v935 = vunpack.c.h.b16 %v241
  %v936 = vunpack.c.l.b16 %v242
  %v937 = vunpack.c.h.b16 %v242
  %v938 = vunpack.c.l.b16 %v243
  %v939 = vunpack.c.h.b16 %v243
  %v940 = vunpack.c.l.b16 %v244
  %v941 = vunpack.c.h.b16 %v244
  %v942 = vunpack.c.l.b16 %v245
  %v943 = vunpack.c.h.b16 %v245
  %v944 = vunpack.c.l.b16 %v246
  %v945 = vunpack.c.h.b16 %v246
  %v946 = vunpack.c.l.b16 %v247
  %v947 = vunpack.c.h.b16 %v247
  %v948 = vunpack.c.l.b16 %v248
  %v949 = vunpack.c.h.b16 %v248
  %v950 = vunpack.c.l.b16 %v249
  %v951 = vunpack.c.h.b16 %v249
  %v952 = vunpack.c.l.b16 %v250
  %v953 = vunpack.c.h.b16 %v250
  %v954 = vunpack.c.l.b16 %v251
  %v955 = vunpack.c.h.b16 %v251
  %v956 = vunpack.c.l.b16 %v252
  %v957 = vunpack.c.h.b16 %v252
  %v958 = vunpack.c.l.b16 %v253
  %v959 = vunpack.c.h.b16 %v253
  %v960 = vunpack.c.l.b16 %v254
  %v961 = vunpack.c.h.b16 %v254
  %v962 = vunpack.c.l.b16 %v255
  %v963 = vunpack.c.h.b16 %v255
  %v964 = vunpack.c.l.b16 %v256
  %v965 = vunpack.c.h.b16 %v256
  %v966 = vunpack.c.l.b16 %v257
  %v967 = vunpack.c.h.b16 %v257
  %v968 = vunpack.c.l.b16 %v258
  %v969 = vunpack.c.h.b16 %v258
  %v970 = vunpack.c.l.b16 %v259
  %v971 = vunpack.c.h.b16 %v259
  %v972 = vunpack.c.l.b16 %v260
  %v973 = vunpack.c.h.b16 %v260
  %v974 = vunpack.c.l.b16 %v261
  %v975 = vunpack.c.h.b16 %v261
  %v976 = vunpack.c.l.b16 %v262
  %v977 = vunpack.c.h.b16 %v262
  %v978 = vunpack.c.l.b16 %v263
  %v979 = vunpack.c.h.b16 %v263
  %v980 = vunpack.c.l.b16 %v264
  %v981 = vunpack.c.h.b16 %v264
  %v982 = vunpack.c.l.b16 %v265
  %v983 = vunpack.c.h.b16 %v265
  %v984 = vunpack.c.l.b16 %v266
  %v985 = vunpack.c.h.b16 %v266
  %v986 = vunpack.c.l.b16 %v267
  %v987 = vunpack.c.h.b16 %v267
  %v988 = vunpack.c.l.b16 %v268
  %v989 = vunpack.c.h.b16 %v268
  %v990 = vunpack.c.l.b16 %v269
  %v991 = vunpack.c.h.b16 %v269
  %v992 = vunpack.c.l.b16 %v270
  %v993 = vunpack.c.h.b16 %v270
  %v994 = vunpack.c.l.b16 %v271
  %v995 = vunpack.c.h.b16 %v271
  %v996 = vunpack.c.l.b16 %v272
  %v997 = vunpack.c.h.b16 %v272
  %v998 = vunpack.c.l.b16 %v273
  %v999 = vunpack.c.h.b16 %v273
  %v1000 = vunpack.c.l.b16 %v274
  %v1001 = vunpack.c.h.b16 %v274
  %v1002 = vunpack.c.l.b16 %v275
  %v1003 = vunpack.c.h.b16 %v275
  %v1004 = vunpack.c.l.b16 %v276
  %v1005 = vunpack.c.h.b16 %v276
  %v1006 = vunpack.c.l.b16 %v277
  %v1007 = vunpack.c.h.b16 %v277
  %v1008 = vunpack.c.l.b16 %v278
  %v1009 = vunpack.c.h.b16 %v278
  %v1010 = vunpack.c.l.b16 %v279
  %v1011 = vunpack.c.h.b16 %v279
  %v1012 = vunpack.c.l.b16 %v280
  %v1013 = vunpack.c.h.b16 %v280
  %v1014 = vunpack.c.l.b16 %v281
  %v1015 = vunpack.c.h.b16 %v281
  %v1016 = vunpack.c.l.b16 %v282
  %v1017 = vunpack.c.h.b16 %v282
  %v1018 = vunpack.c.l.b16 %v283
  %v1019 = vunpack.c.h.b16 %v283
  %v1020 = vunpack.c.l.b16 %v284
  %v1021 = vunpack.c.h.b16 %v284
  %v1022 = vunpack.c.l.b16 %v285
  %v1023 = vunpack.c.h.b16 %v285
  %v1024 = vunpack.c.l.b16 %v286
  %v1025 = vunpack.c.h.b16 %v286
  %v1026 = vunpack.c.l.b16 %v287
  %v1027 = vunpack.c.h.b16 %v287
  %v1028 = vunpack.c.l.b16 %v288
  %v1029 = vunpack.c.h.b16 %v288
  %v1030 = vunpack.c.l.b16 %v289
  %v1031 = vunpack.c.h.b16 %v289
  %v1032 = vunpack.c.l.b16 %v290
  %v1033 = vunpack.c.h.b16 %v290
  %v1034 = vunpack.c.l.b16 %v291
  %v1035 = vunpack.c.h.b16 %v291
  %v1036 = vunpack.c.l.b16 %v292
  %v1037 = vunpack.c.h.b16 %v292
  %v1038 = vunpack.c.l.b16 %v293
  %v1039 = vunpack.c.h.b16 %v293
  %v1040 = vunpack.c.l.b16 %v294
  %v1041 = vunpack.c.h.b16 %v294
  %v1042 = vunpack.c.l.b16 %v295
  %v1043 = vunpack.c.h.b16 %v295
  %v1044 = vunpack.c.l.b16 %v296
  %v1045 = vunpack.c.h.b16 %v296
  %v1046 = vunpack.c.l.b16 %v297
  %v1047 = vunpack.c.h.b16 %v297
  %v1048 = vunpack.c.l.b16 %v298
  %v1049 = vunpack.c.h.b16 %v298
  %v1050 = vunpack.c.l.b16 %v299
  %v1051 = vunpack.c.h.b16 %v299
  %v1052 = vunpack.c.l.b16 %v300
  %v1053 = vunpack.c.h.b16 %v300
  %v1054 = vunpack.c.l.b16 %v301
  %v1055 = vunpack.c.h.b16 %v301
  %v1056 = vunpack.c.l.b16 %v302
  %v1057 = vunpack.c.h.b16 %v302
  %v1058 = vunpack.c.l.b16 %v303
  %v1059 = vunpack.c.h.b16 %v303
  %v1060 = vunpack.c.l.b16 %v304
  %v1061 = vunpack.c.h.b16 %v304
  %v1062 = vunpack.c.l.b16 %v305
  %v1063 = vunpack.c.h.b16 %v305
  %v1064 = vunpack.c.l.b16 %v306
  %v1065 = vunpack.c.h.b16 %v306
  %v1066 = vunpack.c.l.b16 %v307
  %v1067 = vunpack.c.h.b16 %v307
  %v1068 = vunpack.c.l.b16 %v308
  %v1069 = vunpack.c.h.b16 %v308
  %v1070 = vunpack.c.l.b16 %v309
  %v1071 = vunpack.c.h.b16 %v309
  %v1072 = vunpack.c.l.b16 %v310
  %v1073 = vunpack.c.h.b16 %v310
  %v1074 = vunpack.c.l.b16 %v311
  %v1075 = vunpack.c.h.b16 %v311
  %v1076 = vunpack.c.l.b16 %v312
  %v1077 = vunpack.c.h.b16 %v312
  %v1078 = vunpack.c.l.b16 %v313
  %v1079 = vunpack.c.h.b16 %v313
  %v1080 = vunpack.c.l.b16 %v314
  %v1081 = vunpack.c.h.b16 %v314
  %v1082 = vunpack.c.l.b16 %v315
  %v1083 = vunpack.c.h.b16 %v315
  %v1084 = vunpack.c.l.b16 %v316
  %v1085 = vunpack.c.h.b16 %v316
  %v1086 = vunpack.c.l.b16 %v317
  %v1087 = vunpack.c.h.b16 %v317
  %v1088 = vunpack.c.l.b16 %v318
  %v1089 = vunpack.c.h.b16 %v318
  %v1090 = vunpack.c.l.b16 %v319
  %v1091 = vunpack.c.h.b16 %v319
  %v1092 = vunpack.c.l.b16 %v320
  %v1093 = vunpack.c.h.b16 %v320
  %v1094 = vunpack.c.l.b16 %v321
  %v1095 = vunpack.c.h.b16 %v321
  %v1096 = vunpack.c.l.b16 %v322
  %v1097 = vunpack.c.h.b16 %v322
  %v1098 = vunpack.c.l.b16 %v323
  %v1099 = vunpack.c.h.b16 %v323
  %v1100 = vunpack.c.l.b16 %v324
  %v1101 = vunpack.c.h.b16 %v324
  %v1102 = vunpack.c.l.b16 %v325
  %v1103 = vunpack.c.h.b16 %v325
  %v1104 = vunpack.c.l.b16 %v326
  %v1105 = vunpack.c.h.b16 %v326
  %v1106 = vunpack.c.l.b16 %v327
  %v1107 = vunpack.c.h.b16 %v327
  %v1108 = vunpack.c.l.b16 %v328
  %v1109 = vunpack.c.h.b16 %v328
  %v1110 = vunpack.c.l.b16 %v329
  %v1111 = vunpack.c.h.b16 %v329
  %v1112 = vpack.c.b16 %v604, %v600
  %v1113 = vpack.c.b16 %v605, %v601
  %v1114 = vpack.c.b16 %v606, %v602
  %v1115 = vpack.c.b16 %v607, %v603
  %v1116 = vpack.c.b16 %v612, %v608
  %v1117 = vpack.c.b16 %v613, %v609
  %v1118 = vpack.c.b16 %v614, %v610
  %v1119 = vpack.c.b16 %v615, %v611
  %v1120 = vpack.c.b16 %v620, %v616
  %v1121 = vpack.c.b16 %v621, %v617
  %v1122 = vpack.c.b16 %v622, %v618
  %v1123 = vpack.c.b16 %v623, %v619
  %v1124 = vpack.c.b16 %v628, %v624
  %v1125 = vpack.c.b16 %v629, %v625
  %v1126 = vpack.c.b16 %v630, %v626
  %v1127 = vpack.c.b16 %v631, %v627
  %v1128 = vpack.c.b16 %v636, %v632
  %v1129 = vpack.c.b16 %v637, %v633
  %v1130 = vpack.c.b16 %v638, %v634
  %v1131 = vpack.c.b16 %v639, %v635
  %v1132 = vpack.c.b16 %v644, %v640
  %v1133 = vpack.c.b16 %v645, %v641
  %v1134 = vpack.c.b16 %v646, %v642
  %v1135 = vpack.c.b16 %v647, %v643
  %v1136 = vpack.c.b16 %v652, %v648
  %v1137 = vpack.c.b16 %v653, %v649
  %v1138 = vpack.c.b16 %v654, %v650
  %v1139 = vpack.c.b16 %v655, %v651
  %v1140 = vpack.c.b16 %v660, %v656
  %v1141 = vpack.c.b16 %v661, %v657
  %v1142 = vpack.c.b16 %v662, %v658
  %v1143 = vpack.c.b16 %v663, %v659
  %v1144 = vpack.c.b16 %v668, %v664
  %v1145 = vpack.c.b16 %v669, %v665
  %v1146 = vpack.c.b16 %v670, %v666
  %v1147 = vpack.c.b16 %v671, %v667
  %v1148 = vpack.c.b16 %v676, %v672
  %v1149 = vpack.c.b16 %v677, %v673
  %v1150 = vpack.c.b16 %v678, %v674
  %v1151 = vpack.c.b16 %v679, %v675
  %v1152 = vpack.c.b16 %v684, %v680
  %v1153 = vpack.c.b16 %v685, %v681
  %v1154 = vpack.c.b16 %v686, %v682
  %v1155 = vpack.c.b16 %v687, %v683
  %v1156 = vpack.c.b16 %v692, %v688
  %v1157 = vpack.c.b16 %v693, %v689
  %v1158 = vpack.c.b16 %v694, %v690
  %v1159 = vpack.c.b16 %v695, %v691
  %v1160 = vpack.c.b16 %v700, %v696
  %v1161 = vpack.c.b16 %v701, %v697
  %v1162 = vpack.c.b16 %v702, %v698
  %v1163 = vpack.c.b16 %v703, %v699
  %v1164 = vpack.c.b16 %v708, %v704
  %v1165 = vpack.c.b16 %v709, %v705
  %v1166 = vpack.c.b16 %v710, %v706
  %v1167 = vpack.c.b16 %v711, %v707
  %v1168 = vpack.c.b16 %v716, %v712
  %v1169 = vpack.c.b16 %v717, %v713
  %v1170 = vpack.c.b16 %v718, %v714
  %v1171 = vpack.c.b16 %v719, %v715
  %v1172 = vpack.c.b16 %v724, %v720
  %v1173 = vpack.c.b16 %v725, %v721
  %v1174 = vpack.c.b16 %v726, %v722
  %v1175 = vpack.c.b16 %v727, %v723
  %v1176 = vpack.c.b16 %v732, %v728
  %v1177 = vpack.c.b16 %v733, %v729
  %v1178 = vpack.c.b16 %v734, %v730
  %v1179 = vpack.c.b16 %v735, %v731
  %v1180 = vpack.c.b16 %v740, %v736
  %v1181 = vpack.c.b16 %v741, %v737
  %v1182 = vpack.c.b16 %v742, %v738
  %v1183 = vpack.c.b16 %v743, %v739
  %v1184 = vpack.c.b16 %v748, %v744
  %v1185 = vpack.c.b16 %v749, %v745
  %v1186 = vpack.c.b16 %v750, %v746
  %v1187 = vpack.c.b16 %v751, %v747
  %v1188 = vpack.c.b16 %v756, %v752
  %v1189 = vpack.c.b16 %v757, %v753
  %v1190 = vpack.c.b16 %v758, %v754
  %v1191 = vpack.c.b16 %v759, %v755
  %v1192 = vpack.c.b16 %v764, %v760
  %v1193 = vpack.c.b16 %v765, %v761
  %v1194 = vpack.c.b16 %v766, %v762
  %v1195 = vpack.c.b16 %v767, %v763
  %v1196 = vpack.c.b16 %v772, %v768
  %v1197 = vpack.c.b16 %v773, %v769
  %v1198 = vpack.c.b16 %v774, %v770
  %v1199 = vpack.c.b16 %v775, %v771
  %v1200 = vpack.c.b16 %v780, %v776
  %v1201 = vpack.c.b16 %v781, %v777
  %v1202 = vpack.c.b16 %v782, %v778
  %v1203 = vpack.c.b16 %v783, %v779
  %v1204 = vpack.c.b16 %v788, %v784
  %v1205 = vpack.c.b16 %v789, %v785
  %v1206 = vpack.c.b16 %v790, %v786
  %v1207 = vpack.c.b16 %v791, %v787
  %v1208 = vpack.c.b16 %v796, %v792
  %v1209 = vpack.c.b16 %v797, %v793
  %v1210 = vpack.c.b16 %v798, %v794
  %v1211 = vpack.c.b16 %v799, %v795
  %v1212 = vpack.c.b16 %v804, %v800
  %v1213 = vpack.c.b16 %v805, %v801
  %v1214 = vpack.c.b16 %v806, %v802
  %v1215 = vpack.c.b16 %v807, %v803
  %v1216 = vpack.c.b16 %v812, %v808
  %v1217 = vpack.c.b16 %v813, %v809
  %v1218 = vpack.c.b16 %v814, %v810
  %v1219 = vpack.c.b16 %v815, %v811
  %v1220 = vpack.c.b16 %v820, %v816
  %v1221 = vpack.c.b16 %v821, %v817
  %v1222 = vpack.c.b16 %v822, %v818
  %v1223 = vpack.c.b16 %v823, %v819
  %v1224 = vpack.c.b16 %v828, %v824
  %v1225 = vpack.c.b16 %v829, %v825
  %v1226 = vpack.c.b16 %v830, %v826
  %v1227 = vpack.c.b16 %v831, %v827
  %v1228 = vpack.c.b16 %v836, %v832
  %v1229 = vpack.c.b16 %v837, %v833
  %v1230 = vpack.c.b16 %v838, %v834
  %v1231 = vpack.c.b16 %v839, %v835
  %v1232 = vpack.c.b16 %v844, %v840
  %v1233 = vpack.c.b16 %v845, %v841
  %v1234 = vpack.c.b16 %v846, %v842
  %v1235 = vpack.c.b16 %v847, %v843
  %v1236 = vpack.c.b16 %v852, %v848
  %v1237 = vpack.c.b16 %v853, %v849
  %v1238 = vpack.c.b16 %v854, %v850
  %v1239 = vpack.c.b16 %v855, %v851
  %v1240 = vpack.c.b16 %v860, %v856
  %v1241 = vpack.c.b16 %v861, %v857
  %v1242 = vpack.c.b16 %v862, %v858
  %v1243 = vpack.c.b16 %v863, %v859
  %v1244 = vpack.c.b16 %v868, %v864
  %v1245 = vpack.c.b16 %v869, %v865
  %v1246 = vpack.c.b16 %v870, %v866
  %v1247 = vpack.c.b16 %v871, %v867
  %v1248 = vpack.c.b16 %v876, %v872
  %v1249 = vpack.c.b16 %v877, %v873
  %v1250 = vpack.c.b16 %v878, %v874
  %v1251 = vpack.c.b16 %v879, %v875
  %v1252 = vpack.c.b16 %v884, %v880
  %v1253 = vpack.c.b16 %v885, %v881
  %v1254 = vpack.c.b16 %v886, %v882
  %v1255 = vpack.c.b16 %v887, %v883
  %v1256 = vpack.c.b16 %v892, %v888
  %v1257 = vpack.c.b16 %v893, %v889
  %v1258 = vpack.c.b16 %v894, %v890
  %v1259 = vpack.c.b16 %v895, %v891
  %v1260 = vpack.c.b16 %v900, %v896
  %v1261 = vpack.c.b16 %v901, %v897
  %v1262 = vpack.c.b16 %v902, %v898
  %v1263 = vpack.c.b16 %v903, %v899
  %v1264 = vpack.c.b16 %v908, %v904
  %v1265 = vpack.c.b16 %v909, %v905
  %v1266 = vpack.c.b16 %v910, %v906
  %v1267 = vpack.c.b16 %v911, %v907
  %v1268 = vpack.c.b16 %v916, %v912
  %v1269 = vpack.c.b16 %v917, %v913
  %v1270 = vpack.c.b16 %v918, %v914
  %v1271 = vpack.c.b16 %v919, %v915
  %v1272 = vpack.c.b16 %v924, %v920
  %v1273 = vpack.c.b16 %v925, %v921
  %v1274 = vpack.c.b16 %v926, %v922
  %v1275 = vpack.c.b16 %v927, %v923
  %v1276 = vpack.c.b16 %v932, %v928
  %v1277 = vpack.c.b16 %v933, %v929
  %v1278 = vpack.c.b16 %v934, %v930
  %v1279 = vpack.c.b16 %v935, %v931
  %v1280 = vpack.c.b16 %v940, %v936
  %v1281 = vpack.c.b16 %v941, %v937
  %v1282 = vpack.c.b16 %v942, %v938
  %v1283 = vpack.c.b16 %v943, %v939
  %v1284 = vpack.c.b16 %v948, %v944
  %v1285 = vpack.c.b16 %v949, %v945
  %v1286 = vpack.c.b16 %v950, %v946
  %v1287 = vpack.c.b16 %v951, %v947
  %v1288 = vpack.c.b16 %v956, %v952
  %v1289 = vpack.c.b16 %v957, %v953
  %v1290 = vpack.c.b16 %v958, %v954
  %v1291 = vpack.c.b16 %v959, %v955
  %v1292 = vpack.c.b16 %v964, %v960
  %v1293 = vpack.c.b16 %v965, %v961
  %v1294 = vpack.c.b16 %v966, %v962
  %v1295 = vpack.c.b16 %v967, %v963
  %v1296 = vpack.c.b16 %v972, %v968
  %v1297 = vpack.c.b16 %v973, %v969
  %v1298 = vpack.c.b16 %v974, %v970
  %v1299 = vpack.c.b16 %v975, %v971
  %v1300 = vpack.c.b16 %v980, %v976
  %v1301 = vpack.c.b16 %v981, %v977
  %v1302 = vpack.c.b16 %v982, %v978
  %v1303 = vpack.c.b16 %v983, %v979
  %v1304 = vpack.c.b16 %v988, %v984
  %v1305 = vpack.c.b16 %v989, %v985
  %v1306 = vpack.c.b16 %v990, %v986
  %v1307 = vpack.c.b16 %v991, %v987
  %v1308 = vpack.c.b16 %v996, %v992
  %v1309 = vpack.c.b16 %v997, %v993
  %v1310 = vpack.c.b16 %v998, %v994
  %v1311 = vpack.c.b16 %v999, %v995
  %v1312 = vpack.c.b16 %v1004, %v1000
  %v1313 = vpack.c.b16 %v1005, %v1001
  %v1314 = vpack.c.b16 %v1006, %v1002
  %v1315 = vpack.c.b16 %v1007, %v1003
  %v1316 = vpack.c.b16 %v1012, %v1008
  %v1317 = vpack.c.b16 %v1013, %v1009
  %v1318 = vpack.c.b16 %v1014, %v1010
  %v1319 = vpack.c.b16 %v1015, %v1011
  %v1320 = vpack.c.b16 %v1020, %v1016
  %v1321 = vpack.c.b16 %v1021, %v1017
  %v1322 = vpack.c.b16 %v1022, %v1018
  %v1323 = vpack.c.b16 %v1023, %v1019
  %v1324 = vpack.c.b16 %v1028, %v1024
  %v1325 = vpack.c.b16 %v1029, %v1025
  %v1326 = vpack.c.b16 %v1030, %v1026
  %v1327 = vpack.c.b16 %v1031, %v1027
  %v1328 = vpack.c.b16 %v1036, %v1032
  %v1329 = vpack.c.b16 %v1037, %v1033
  %v1330 = vpack.c.b16 %v1038, %v1034
  %v1331 = vpack.c.b16 %v1039, %v1035
  %v1332 = vpack.c.b16 %v1044, %v1040
  %v1333 = vpack.c.b16 %v1045, %v1041
  %v1334 = vpack.c.b16 %v1046, %v1042
  %v1335 = vpack.c.b16 %v1047, %v1043
  %v1336 = vpack.c.b16 %v1052, %v1048
  %v1337 = vpack.c.b16 %v1053, %v1049
  %v1338 = vpack.c.b16 %v1054, %v1050
  %v1339 = vpack.c.b16 %v1055, %v1051
  %v1340 = vpack.c.b16 %v1060, %v1056
  %v1341 = vpack.c.b16 %v1061, %v1057
  %v1342 = vpack.c.b16 %v1062, %v1058
  %v1343 = vpack.c.b16 %v1063, %v1059
  %v1344 = vpack.c.b16 %v1068, %v1064
  %v1345 = vpack.c.b16 %v1069, %v1065
  %v1346 = vpack.c.b16 %v1070, %v1066
  %v1347 = vpack.c.b16 %v1071, %v1067
  %v1348 = vpack.c.b16 %v1076, %v1072
  %v1349 = vpack.c.b16 %v1077, %v1073
  %v1350 = vpack.c.b16 %v1078, %v1074
  %v1351 = vpack.c.b16 %v1079, %v1075
  %v1352 = vpack.c.b16 %v1084, %v1080
  %v1353 = vpack.c.b16 %v1085, %v1081
  %v1354 = vpack.c.b16 %v1086, %v1082
  %v1355 = vpack.c.b16 %v1087, %v1083
  %v1356 = vpack.c.b16 %v1092, %v1088
  %v1357 = vpack.c.b16 %v1093, %v1089
  %v1358 = vpack.c.b16 %v1094, %v1090
  %v1359 = vpack.c.b16 %v1095, %v1091
  %v1360 = vpack.c.b16 %v1100, %v1096
  %v1361 = vpack.c.b16 %v1101, %v1097
  %v1362 = vpack.c.b16 %v1102, %v1098
  %v1363 = vpack.c.b16 %v1103, %v1099
  %v1364 = vpack.c.b16 %v1108, %v1104
  %v1365 = vpack.c.b16 %v1109, %v1105
  %v1366 = vpack.c.b16 %v1110, %v1106
  %v1367 = vpack.c.b16 %v1111, %v1107
  %1624 = vmatpush.bf16.msra.mxu0 %v1140
  %1625 = vmatpush.bf16.msra.mxu0 %v1136
  %1626 = vmatpush.bf16.msra.mxu0 %v1132
  %1627 = vmatpush.bf16.msra.mxu0 %v1128
  %1628 = vmatpush.bf16.msra.mxu0 %v1124
  %1629 = vmatpush.bf16.msra.mxu0 %v1120
  %1630 = vmatpush.bf16.msra.mxu0 %v1116
  %1631 = vmatpush.bf16.msra.mxu0 %v1112
  %1632 = vmatmul.bf16.gmra.mxu0 %v66
  %v1633 = vpop.f32.mrf.mxu0
  %v1634 = vadd.f32 %v340, %v1633
  %v1635 = vpop.f32.mrf.mxu0
  %1636 = vdwg.mxu0
  %1637 = vmatpush.bf16.msra.mxu0 %v1172
  %1638 = vmatpush.bf16.msra.mxu0 %v1168
  %1639 = vmatpush.bf16.msra.mxu0 %v1164
  %1640 = vmatpush.bf16.msra.mxu0 %v1160
  %1641 = vmatpush.bf16.msra.mxu0 %v1156
  %1642 = vmatpush.bf16.msra.mxu0 %v1152
  %1643 = vmatpush.bf16.msra.mxu0 %v1148
  %1644 = vmatpush.bf16.msra.mxu0 %v1144
  %1645 = vmatmul.bf16.gmra.mxu0 %v67
  %v1646 = vpop.f32.mrf.mxu0
  %v1647 = vadd.f32 %v1634, %v1646
  %v1648 = vpop.f32.mrf.mxu0
  %1649 = vdwg.mxu0
  %1650 = vmatpush.bf16.msra.mxu0 %v1204
  %1651 = vmatpush.bf16.msra.mxu0 %v1200
  %1652 = vmatpush.bf16.msra.mxu0 %v1196
  %1653 = vmatpush.bf16.msra.mxu0 %v1192
  %1654 = vmatpush.bf16.msra.mxu0 %v1188
  %1655 = vmatpush.bf16.msra.mxu0 %v1184
  %1656 = vmatpush.bf16.msra.mxu0 %v1180
  %1657 = vmatpush.bf16.msra.mxu0 %v1176
  %1658 = vmatmul.bf16.gmra.mxu0 %v68
  %v1659 = vpop.f32.mrf.mxu0
  %v1660 = vadd.f32 %v1647, %v1659
  %v1661 = vpop.f32.mrf.mxu0
  %1662 = vdwg.mxu0
  %1663 = vmatpush.bf16.msra.mxu0 %v1236
  %1664 = vmatpush.bf16.msra.mxu0 %v1232
  %1665 = vmatpush.bf16.msra.mxu0 %v1228
  %1666 = vmatpush.bf16.msra.mxu0 %v1224
  %1667 = vmatpush.bf16.msra.mxu0 %v1220
  %1668 = vmatpush.bf16.msra.mxu0 %v1216
  %1669 = vmatpush.bf16.msra.mxu0 %v1212
  %1670 = vmatpush.bf16.msra.mxu0 %v1208
  %1671 = vmatmul.bf16.gmra.mxu0 %v69
  %v1672 = vpop.f32.mrf.mxu0
  %v1673 = vadd.f32 %v1660, %v1672
  %v1674 = vpop.f32.mrf.mxu0
  %1675 = vdwg.mxu0
  %1676 = vmatpush.bf16.msra.mxu0 %v1268
  %1677 = vmatpush.bf16.msra.mxu0 %v1264
  %1678 = vmatpush.bf16.msra.mxu0 %v1260
  %1679 = vmatpush.bf16.msra.mxu0 %v1256
  %1680 = vmatpush.bf16.msra.mxu0 %v1252
  %1681 = vmatpush.bf16.msra.mxu0 %v1248
  %1682 = vmatpush.bf16.msra.mxu0 %v1244
  %1683 = vmatpush.bf16.msra.mxu0 %v1240
  %1684 = vmatmul.bf16.gmra.mxu0 %v70
  %v1685 = vpop.f32.mrf.mxu0
  %v1686 = vadd.f32 %v1673, %v1685
  %v1687 = vpop.f32.mrf.mxu0
  %1688 = vdwg.mxu0
  %1689 = vmatpush.bf16.msra.mxu0 %v1300
  %1690 = vmatpush.bf16.msra.mxu0 %v1296
  %1691 = vmatpush.bf16.msra.mxu0 %v1292
  %1692 = vmatpush.bf16.msra.mxu0 %v1288
  %1693 = vmatpush.bf16.msra.mxu0 %v1284
  %1694 = vmatpush.bf16.msra.mxu0 %v1280
  %1695 = vmatpush.bf16.msra.mxu0 %v1276
  %1696 = vmatpush.bf16.msra.mxu0 %v1272
  %1697 = vmatmul.bf16.gmra.mxu0 %v71
  %v1698 = vpop.f32.mrf.mxu0
  %v1699 = vadd.f32 %v1686, %v1698
  %v1700 = vpop.f32.mrf.mxu0
  %1701 = vdwg.mxu0
  %1702 = vmatpush.bf16.msra.mxu0 %v1332
  %1703 = vmatpush.bf16.msra.mxu0 %v1328
  %1704 = vmatpush.bf16.msra.mxu0 %v1324
  %1705 = vmatpush.bf16.msra.mxu0 %v1320
  %1706 = vmatpush.bf16.msra.mxu0 %v1316
  %1707 = vmatpush.bf16.msra.mxu0 %v1312
  %1708 = vmatpush.bf16.msra.mxu0 %v1308
  %1709 = vmatpush.bf16.msra.mxu0 %v1304
  %1710 = vmatmul.bf16.gmra.mxu0 %v72
  %v1711 = vpop.f32.mrf.mxu0
  %v1712 = vadd.f32 %v1699, %v1711
  %v1713 = vpop.f32.mrf.mxu0
  %1714 = vdwg.mxu0
  %1715 = vmatpush.bf16.msra.mxu0 %v1364
  %1716 = vmatpush.bf16.msra.mxu0 %v1360
  %1717 = vmatpush.bf16.msra.mxu0 %v1356
  %1718 = vmatpush.bf16.msra.mxu0 %v1352
  %1719 = vmatpush.bf16.msra.mxu0 %v1348
  %1720 = vmatpush.bf16.msra.mxu0 %v1344
  %1721 = vmatpush.bf16.msra.mxu0 %v1340
  %1722 = vmatpush.bf16.msra.mxu0 %v1336
  %1723 = vmatmul.bf16.gmra.mxu0 %v73
  %v1724 = vpop.f32.mrf.mxu0
  %v1725 = vadd.f32 %v1712, %v1724
  %v1726 = vpop.f32.mrf.mxu0
  %1727 = vdwg.mxu0
  %1728 = vmatpush.bf16.msra.mxu0 %v1141
  %1729 = vmatpush.bf16.msra.mxu0 %v1137
  %1730 = vmatpush.bf16.msra.mxu0 %v1133
  %1731 = vmatpush.bf16.msra.mxu0 %v1129
  %1732 = vmatpush.bf16.msra.mxu0 %v1125
  %1733 = vmatpush.bf16.msra.mxu0 %v1121
  %1734 = vmatpush.bf16.msra.mxu0 %v1117
  %1735 = vmatpush.bf16.msra.mxu0 %v1113
  %1736 = vmatmul.bf16.gmra.mxu0 %v66
  %v1737 = vpop.f32.mrf.mxu0
  %v1738 = vadd.f32 %v341, %v1737
  %v1739 = vpop.f32.mrf.mxu0
  %1740 = vdwg.mxu0
  %1741 = vmatpush.bf16.msra.mxu0 %v1173
  %1742 = vmatpush.bf16.msra.mxu0 %v1169
  %1743 = vmatpush.bf16.msra.mxu0 %v1165
  %1744 = vmatpush.bf16.msra.mxu0 %v1161
  %1745 = vmatpush.bf16.msra.mxu0 %v1157
  %1746 = vmatpush.bf16.msra.mxu0 %v1153
  %1747 = vmatpush.bf16.msra.mxu0 %v1149
  %1748 = vmatpush.bf16.msra.mxu0 %v1145
  %1749 = vmatmul.bf16.gmra.mxu0 %v67
  %v1750 = vpop.f32.mrf.mxu0
  %v1751 = vadd.f32 %v1738, %v1750
  %v1752 = vpop.f32.mrf.mxu0
  %1753 = vdwg.mxu0
  %1754 = vmatpush.bf16.msra.mxu0 %v1205
  %1755 = vmatpush.bf16.msra.mxu0 %v1201
  %1756 = vmatpush.bf16.msra.mxu0 %v1197
  %1757 = vmatpush.bf16.msra.mxu0 %v1193
  %1758 = vmatpush.bf16.msra.mxu0 %v1189
  %1759 = vmatpush.bf16.msra.mxu0 %v1185
  %1760 = vmatpush.bf16.msra.mxu0 %v1181
  %1761 = vmatpush.bf16.msra.mxu0 %v1177
  %1762 = vmatmul.bf16.gmra.mxu0 %v68
  %v1763 = vpop.f32.mrf.mxu0
  %v1764 = vadd.f32 %v1751, %v1763
  %v1765 = vpop.f32.mrf.mxu0
  %1766 = vdwg.mxu0
  %1767 = vmatpush.bf16.msra.mxu0 %v1237
  %1768 = vmatpush.bf16.msra.mxu0 %v1233
  %1769 = vmatpush.bf16.msra.mxu0 %v1229
  %1770 = vmatpush.bf16.msra.mxu0 %v1225
  %1771 = vmatpush.bf16.msra.mxu0 %v1221
  %1772 = vmatpush.bf16.msra.mxu0 %v1217
  %1773 = vmatpush.bf16.msra.mxu0 %v1213
  %1774 = vmatpush.bf16.msra.mxu0 %v1209
  %1775 = vmatmul.bf16.gmra.mxu0 %v69
  %v1776 = vpop.f32.mrf.mxu0
  %v1777 = vadd.f32 %v1764, %v1776
  %v1778 = vpop.f32.mrf.mxu0
  %1779 = vdwg.mxu0
  %1780 = vmatpush.bf16.msra.mxu0 %v1269
  %1781 = vmatpush.bf16.msra.mxu0 %v1265
  %1782 = vmatpush.bf16.msra.mxu0 %v1261
  %1783 = vmatpush.bf16.msra.mxu0 %v1257
  %1784 = vmatpush.bf16.msra.mxu0 %v1253
  %1785 = vmatpush.bf16.msra.mxu0 %v1249
  %1786 = vmatpush.bf16.msra.mxu0 %v1245
  %1787 = vmatpush.bf16.msra.mxu0 %v1241
  %1788 = vmatmul.bf16.gmra.mxu0 %v70
  %v1789 = vpop.f32.mrf.mxu0
  %v1790 = vadd.f32 %v1777, %v1789
  %v1791 = vpop.f32.mrf.mxu0
  %1792 = vdwg.mxu0
  %1793 = vmatpush.bf16.msra.mxu0 %v1301
  %1794 = vmatpush.bf16.msra.mxu0 %v1297
  %1795 = vmatpush.bf16.msra.mxu0 %v1293
  %1796 = vmatpush.bf16.msra.mxu0 %v1289
  %1797 = vmatpush.bf16.msra.mxu0 %v1285
  %1798 = vmatpush.bf16.msra.mxu0 %v1281
  %1799 = vmatpush.bf16.msra.mxu0 %v1277
  %1800 = vmatpush.bf16.msra.mxu0 %v1273
  %1801 = vmatmul.bf16.gmra.mxu0 %v71
  %v1802 = vpop.f32.mrf.mxu0
  %v1803 = vadd.f32 %v1790, %v1802
  %v1804 = vpop.f32.mrf.mxu0
  %1805 = vdwg.mxu0
  %1806 = vmatpush.bf16.msra.mxu0 %v1333
  %1807 = vmatpush.bf16.msra.mxu0 %v1329
  %1808 = vmatpush.bf16.msra.mxu0 %v1325
  %1809 = vmatpush.bf16.msra.mxu0 %v1321
  %1810 = vmatpush.bf16.msra.mxu0 %v1317
  %1811 = vmatpush.bf16.msra.mxu0 %v1313
  %1812 = vmatpush.bf16.msra.mxu0 %v1309
  %1813 = vmatpush.bf16.msra.mxu0 %v1305
  %1814 = vmatmul.bf16.gmra.mxu0 %v72
  %v1815 = vpop.f32.mrf.mxu0
  %v1816 = vadd.f32 %v1803, %v1815
  %v1817 = vpop.f32.mrf.mxu0
  %1818 = vdwg.mxu0
  %1819 = vmatpush.bf16.msra.mxu0 %v1365
  %1820 = vmatpush.bf16.msra.mxu0 %v1361
  %1821 = vmatpush.bf16.msra.mxu0 %v1357
  %1822 = vmatpush.bf16.msra.mxu0 %v1353
  %1823 = vmatpush.bf16.msra.mxu0 %v1349
  %1824 = vmatpush.bf16.msra.mxu0 %v1345
  %1825 = vmatpush.bf16.msra.mxu0 %v1341
  %1826 = vmatpush.bf16.msra.mxu0 %v1337
  %1827 = vmatmul.bf16.gmra.mxu0 %v73
  %v1828 = vpop.f32.mrf.mxu0
  %v1829 = vadd.f32 %v1816, %v1828
  %v1830 = vpop.f32.mrf.mxu0
  %1831 = vdwg.mxu0
  %1832 = vmatpush.bf16.msra.mxu0 %v1142
  %1833 = vmatpush.bf16.msra.mxu0 %v1138
  %1834 = vmatpush.bf16.msra.mxu0 %v1134
  %1835 = vmatpush.bf16.msra.mxu0 %v1130
  %1836 = vmatpush.bf16.msra.mxu0 %v1126
  %1837 = vmatpush.bf16.msra.mxu0 %v1122
  %1838 = vmatpush.bf16.msra.mxu0 %v1118
  %1839 = vmatpush.bf16.msra.mxu0 %v1114
  %1840 = vmatmul.bf16.gmra.mxu0 %v66
  %v1841 = vpop.f32.mrf.mxu0
  %v1842 = vadd.f32 %v342, %v1841
  %v1843 = vpop.f32.mrf.mxu0
  %1844 = vdwg.mxu0
  %1845 = vmatpush.bf16.msra.mxu0 %v1174
  %1846 = vmatpush.bf16.msra.mxu0 %v1170
  %1847 = vmatpush.bf16.msra.mxu0 %v1166
  %1848 = vmatpush.bf16.msra.mxu0 %v1162
  %1849 = vmatpush.bf16.msra.mxu0 %v1158
  %1850 = vmatpush.bf16.msra.mxu0 %v1154
  %1851 = vmatpush.bf16.msra.mxu0 %v1150
  %1852 = vmatpush.bf16.msra.mxu0 %v1146
  %1853 = vmatmul.bf16.gmra.mxu0 %v67
  %v1854 = vpop.f32.mrf.mxu0
  %v1855 = vadd.f32 %v1842, %v1854
  %v1856 = vpop.f32.mrf.mxu0
  %1857 = vdwg.mxu0
  %1858 = vmatpush.bf16.msra.mxu0 %v1206
  %1859 = vmatpush.bf16.msra.mxu0 %v1202
  %1860 = vmatpush.bf16.msra.mxu0 %v1198
  %1861 = vmatpush.bf16.msra.mxu0 %v1194
  %1862 = vmatpush.bf16.msra.mxu0 %v1190
  %1863 = vmatpush.bf16.msra.mxu0 %v1186
  %1864 = vmatpush.bf16.msra.mxu0 %v1182
  %1865 = vmatpush.bf16.msra.mxu0 %v1178
  %1866 = vmatmul.bf16.gmra.mxu0 %v68
  %v1867 = vpop.f32.mrf.mxu0
  %v1868 = vadd.f32 %v1855, %v1867
  %v1869 = vpop.f32.mrf.mxu0
  %1870 = vdwg.mxu0
  %1871 = vmatpush.bf16.msra.mxu0 %v1238
  %1872 = vmatpush.bf16.msra.mxu0 %v1234
  %1873 = vmatpush.bf16.msra.mxu0 %v1230
  %1874 = vmatpush.bf16.msra.mxu0 %v1226
  %1875 = vmatpush.bf16.msra.mxu0 %v1222
  %1876 = vmatpush.bf16.msra.mxu0 %v1218
  %1877 = vmatpush.bf16.msra.mxu0 %v1214
  %1878 = vmatpush.bf16.msra.mxu0 %v1210
  %1879 = vmatmul.bf16.gmra.mxu0 %v69
  %v1880 = vpop.f32.mrf.mxu0
  %v1881 = vadd.f32 %v1868, %v1880
  %v1882 = vpop.f32.mrf.mxu0
  %1883 = vdwg.mxu0
  %1884 = vmatpush.bf16.msra.mxu0 %v1270
  %1885 = vmatpush.bf16.msra.mxu0 %v1266
  %1886 = vmatpush.bf16.msra.mxu0 %v1262
  %1887 = vmatpush.bf16.msra.mxu0 %v1258
  %1888 = vmatpush.bf16.msra.mxu0 %v1254
  %1889 = vmatpush.bf16.msra.mxu0 %v1250
  %1890 = vmatpush.bf16.msra.mxu0 %v1246
  %1891 = vmatpush.bf16.msra.mxu0 %v1242
  %1892 = vmatmul.bf16.gmra.mxu0 %v70
  %v1893 = vpop.f32.mrf.mxu0
  %v1894 = vadd.f32 %v1881, %v1893
  %v1895 = vpop.f32.mrf.mxu0
  %1896 = vdwg.mxu0
  %1897 = vmatpush.bf16.msra.mxu0 %v1302
  %1898 = vmatpush.bf16.msra.mxu0 %v1298
  %1899 = vmatpush.bf16.msra.mxu0 %v1294
  %1900 = vmatpush.bf16.msra.mxu0 %v1290
  %1901 = vmatpush.bf16.msra.mxu0 %v1286
  %1902 = vmatpush.bf16.msra.mxu0 %v1282
  %1903 = vmatpush.bf16.msra.mxu0 %v1278
  %1904 = vmatpush.bf16.msra.mxu0 %v1274
  %1905 = vmatmul.bf16.gmra.mxu0 %v71
  %v1906 = vpop.f32.mrf.mxu0
  %v1907 = vadd.f32 %v1894, %v1906
  %v1908 = vpop.f32.mrf.mxu0
  %1909 = vdwg.mxu0
  %1910 = vmatpush.bf16.msra.mxu0 %v1334
  %1911 = vmatpush.bf16.msra.mxu0 %v1330
  %1912 = vmatpush.bf16.msra.mxu0 %v1326
  %1913 = vmatpush.bf16.msra.mxu0 %v1322
  %1914 = vmatpush.bf16.msra.mxu0 %v1318
  %1915 = vmatpush.bf16.msra.mxu0 %v1314
  %1916 = vmatpush.bf16.msra.mxu0 %v1310
  %1917 = vmatpush.bf16.msra.mxu0 %v1306
  %1918 = vmatmul.bf16.gmra.mxu0 %v72
  %v1919 = vpop.f32.mrf.mxu0
  %v1920 = vadd.f32 %v1907, %v1919
  %v1921 = vpop.f32.mrf.mxu0
  %1922 = vdwg.mxu0
  %1923 = vmatpush.bf16.msra.mxu0 %v1366
  %1924 = vmatpush.bf16.msra.mxu0 %v1362
  %1925 = vmatpush.bf16.msra.mxu0 %v1358
  %1926 = vmatpush.bf16.msra.mxu0 %v1354
  %1927 = vmatpush.bf16.msra.mxu0 %v1350
  %1928 = vmatpush.bf16.msra.mxu0 %v1346
  %1929 = vmatpush.bf16.msra.mxu0 %v1342
  %1930 = vmatpush.bf16.msra.mxu0 %v1338
  %1931 = vmatmul.bf16.gmra.mxu0 %v73
  %v1932 = vpop.f32.mrf.mxu0
  %v1933 = vadd.f32 %v1920, %v1932
  %v1934 = vpop.f32.mrf.mxu0
  %1935 = vdwg.mxu0
  %1936 = vmatpush.bf16.msra.mxu0 %v1143
  %1937 = vmatpush.bf16.msra.mxu0 %v1139
  %1938 = vmatpush.bf16.msra.mxu0 %v1135
  %1939 = vmatpush.bf16.msra.mxu0 %v1131
  %1940 = vmatpush.bf16.msra.mxu0 %v1127
  %1941 = vmatpush.bf16.msra.mxu0 %v1123
  %1942 = vmatpush.bf16.msra.mxu0 %v1119
  %1943 = vmatpush.bf16.msra.mxu0 %v1115
  %1944 = vmatmul.bf16.gmra.mxu0 %v66
  %v1945 = vpop.f32.mrf.mxu0
  %v1946 = vadd.f32 %v343, %v1945
  %v1947 = vpop.f32.mrf.mxu0
  %1948 = vdwg.mxu0
  %1949 = vmatpush.bf16.msra.mxu0 %v1175
  %1950 = vmatpush.bf16.msra.mxu0 %v1171
  %1951 = vmatpush.bf16.msra.mxu0 %v1167
  %1952 = vmatpush.bf16.msra.mxu0 %v1163
  %1953 = vmatpush.bf16.msra.mxu0 %v1159
  %1954 = vmatpush.bf16.msra.mxu0 %v1155
  %1955 = vmatpush.bf16.msra.mxu0 %v1151
  %1956 = vmatpush.bf16.msra.mxu0 %v1147
  %1957 = vmatmul.bf16.gmra.mxu0 %v67
  %v1958 = vpop.f32.mrf.mxu0
  %v1959 = vadd.f32 %v1946, %v1958
  %v1960 = vpop.f32.mrf.mxu0
  %1961 = vdwg.mxu0
  %1962 = vmatpush.bf16.msra.mxu0 %v1207
  %1963 = vmatpush.bf16.msra.mxu0 %v1203
  %1964 = vmatpush.bf16.msra.mxu0 %v1199
  %1965 = vmatpush.bf16.msra.mxu0 %v1195
  %1966 = vmatpush.bf16.msra.mxu0 %v1191
  %1967 = vmatpush.bf16.msra.mxu0 %v1187
  %1968 = vmatpush.bf16.msra.mxu0 %v1183
  %1969 = vmatpush.bf16.msra.mxu0 %v1179
  %1970 = vmatmul.bf16.gmra.mxu0 %v68
  %v1971 = vpop.f32.mrf.mxu0
  %v1972 = vadd.f32 %v1959, %v1971
  %v1973 = vpop.f32.mrf.mxu0
  %1974 = vdwg.mxu0
  %1975 = vmatpush.bf16.msra.mxu0 %v1239
  %1976 = vmatpush.bf16.msra.mxu0 %v1235
  %1977 = vmatpush.bf16.msra.mxu0 %v1231
  %1978 = vmatpush.bf16.msra.mxu0 %v1227
  %1979 = vmatpush.bf16.msra.mxu0 %v1223
  %1980 = vmatpush.bf16.msra.mxu0 %v1219
  %1981 = vmatpush.bf16.msra.mxu0 %v1215
  %1982 = vmatpush.bf16.msra.mxu0 %v1211
  %1983 = vmatmul.bf16.gmra.mxu0 %v69
  %v1984 = vpop.f32.mrf.mxu0
  %v1985 = vadd.f32 %v1972, %v1984
  %v1986 = vpop.f32.mrf.mxu0
  %1987 = vdwg.mxu0
  %1988 = vmatpush.bf16.msra.mxu0 %v1271
  %1989 = vmatpush.bf16.msra.mxu0 %v1267
  %1990 = vmatpush.bf16.msra.mxu0 %v1263
  %1991 = vmatpush.bf16.msra.mxu0 %v1259
  %1992 = vmatpush.bf16.msra.mxu0 %v1255
  %1993 = vmatpush.bf16.msra.mxu0 %v1251
  %1994 = vmatpush.bf16.msra.mxu0 %v1247
  %1995 = vmatpush.bf16.msra.mxu0 %v1243
  %1996 = vmatmul.bf16.gmra.mxu0 %v70
  %v1997 = vpop.f32.mrf.mxu0
  %v1998 = vadd.f32 %v1985, %v1997
  %v1999 = vpop.f32.mrf.mxu0
  %2000 = vdwg.mxu0
  %2001 = vmatpush.bf16.msra.mxu0 %v1303
  %2002 = vmatpush.bf16.msra.mxu0 %v1299
  %2003 = vmatpush.bf16.msra.mxu0 %v1295
  %2004 = vmatpush.bf16.msra.mxu0 %v1291
  %2005 = vmatpush.bf16.msra.mxu0 %v1287
  %2006 = vmatpush.bf16.msra.mxu0 %v1283
  %2007 = vmatpush.bf16.msra.mxu0 %v1279
  %2008 = vmatpush.bf16.msra.mxu0 %v1275
  %2009 = vmatmul.bf16.gmra.mxu0 %v71
  %v2010 = vpop.f32.mrf.mxu0
  %v2011 = vadd.f32 %v1998, %v2010
  %v2012 = vpop.f32.mrf.mxu0
  %2013 = vdwg.mxu0
  %2014 = vmatpush.bf16.msra.mxu0 %v1335
  %2015 = vmatpush.bf16.msra.mxu0 %v1331
  %2016 = vmatpush.bf16.msra.mxu0 %v1327
  %2017 = vmatpush.bf16.msra.mxu0 %v1323
  %2018 = vmatpush.bf16.msra.mxu0 %v1319
  %2019 = vmatpush.bf16.msra.mxu0 %v1315
  %2020 = vmatpush.bf16.msra.mxu0 %v1311
  %2021 = vmatpush.bf16.msra.mxu0 %v1307
  %2022 = vmatmul.bf16.gmra.mxu0 %v72
  %v2023 = vpop.f32.mrf.mxu0
  %v2024 = vadd.f32 %v2011, %v2023
  %v2025 = vpop.f32.mrf.mxu0
  %2026 = vdwg.mxu0
  %2027 = vmatpush.bf16.msra.mxu0 %v1367
  %2028 = vmatpush.bf16.msra.mxu0 %v1363
  %2029 = vmatpush.bf16.msra.mxu0 %v1359
  %2030 = vmatpush.bf16.msra.mxu0 %v1355
  %2031 = vmatpush.bf16.msra.mxu0 %v1351
  %2032 = vmatpush.bf16.msra.mxu0 %v1347
  %2033 = vmatpush.bf16.msra.mxu0 %v1343
  %2034 = vmatpush.bf16.msra.mxu0 %v1339
  %2035 = vmatmul.bf16.gmra.mxu0 %v73
  %v2036 = vpop.f32.mrf.mxu0
  %v2037 = vadd.f32 %v2024, %v2036
  %v2038 = vpop.f32.mrf.mxu0
  %2039 = vdwg.mxu0
  %2040 = vmatpush.xpose.msra.mxu0 0.0
  %2041 = vmatpush.xpose.msra.mxu0 0.0
  %2042 = vmatpush.xpose.msra.mxu0 0.0
  %2043 = vmatpush.xpose.msra.mxu0 0.0
  %2044 = vmatpush.xpose.msra.mxu0 0.0
  %2045 = vmatpush.xpose.msra.mxu0 0.0
  %2046 = vmatpush.xpose.msra.mxu0 0.0
  %2047 = vmatpush.xpose.msra.mxu0 0.0
  %2048 = vmatpush.xpose.msra.mxu0 0.0
  %2049 = vmatpush.xpose.msra.mxu0 0.0
  %2050 = vmatpush.xpose.msra.mxu0 0.0
  %2051 = vmatpush.xpose.msra.mxu0 0.0
  %2052 = vmatpush.xpose.msra.mxu0 0.0
  %2053 = vmatpush.xpose.msra.mxu0 0.0
  %2054 = vmatpush.xpose.msra.mxu0 %v36
  %2055 = vmatpush.xpose.msra.mxu0 %v32
  %2056 = vmatmul.f32.gmra.mxu0 %v1725
  %v2057 = vpop.f32.mrf.mxu0
  %v2058 = vadd.f32 0.0, %v2057
  %2059 = vdwg.mxu0
  %2060 = vmatpush.xpose.msra.mxu0 0.0
  %2061 = vmatpush.xpose.msra.mxu0 0.0
  %2062 = vmatpush.xpose.msra.mxu0 0.0
  %2063 = vmatpush.xpose.msra.mxu0 0.0
  %2064 = vmatpush.xpose.msra.mxu0 0.0
  %2065 = vmatpush.xpose.msra.mxu0 0.0
  %2066 = vmatpush.xpose.msra.mxu0 0.0
  %2067 = vmatpush.xpose.msra.mxu0 0.0
  %2068 = vmatpush.xpose.msra.mxu0 0.0
  %2069 = vmatpush.xpose.msra.mxu0 0.0
  %2070 = vmatpush.xpose.msra.mxu0 0.0
  %2071 = vmatpush.xpose.msra.mxu0 0.0
  %2072 = vmatpush.xpose.msra.mxu0 0.0
  %2073 = vmatpush.xpose.msra.mxu0 0.0
  %2074 = vmatpush.xpose.msra.mxu0 %v37
  %2075 = vmatpush.xpose.msra.mxu0 %v33
  %2076 = vmatmul.f32.gmra.mxu0 %v1829
  %v2077 = vpop.f32.mrf.mxu0
  %v2078 = vadd.f32 %v2058, %v2077
  %2079 = vdwg.mxu0
  %2080 = vmatpush.xpose.msra.mxu0 0.0
  %2081 = vmatpush.xpose.msra.mxu0 0.0
  %2082 = vmatpush.xpose.msra.mxu0 0.0
  %2083 = vmatpush.xpose.msra.mxu0 0.0
  %2084 = vmatpush.xpose.msra.mxu0 0.0
  %2085 = vmatpush.xpose.msra.mxu0 0.0
  %2086 = vmatpush.xpose.msra.mxu0 0.0
  %2087 = vmatpush.xpose.msra.mxu0 0.0
  %2088 = vmatpush.xpose.msra.mxu0 0.0
  %2089 = vmatpush.xpose.msra.mxu0 0.0
  %2090 = vmatpush.xpose.msra.mxu0 0.0
  %2091 = vmatpush.xpose.msra.mxu0 0.0
  %2092 = vmatpush.xpose.msra.mxu0 0.0
  %2093 = vmatpush.xpose.msra.mxu0 0.0
  %2094 = vmatpush.xpose.msra.mxu0 %v38
  %2095 = vmatpush.xpose.msra.mxu0 %v34
  %2096 = vmatmul.f32.gmra.mxu0 %v1933
  %v2097 = vpop.f32.mrf.mxu0
  %v2098 = vadd.f32 %v2078, %v2097
  %2099 = vdwg.mxu0
  %2100 = vmatpush.xpose.msra.mxu0 0.0
  %2101 = vmatpush.xpose.msra.mxu0 0.0
  %2102 = vmatpush.xpose.msra.mxu0 0.0
  %2103 = vmatpush.xpose.msra.mxu0 0.0
  %2104 = vmatpush.xpose.msra.mxu0 0.0
  %2105 = vmatpush.xpose.msra.mxu0 0.0
  %2106 = vmatpush.xpose.msra.mxu0 0.0
  %2107 = vmatpush.xpose.msra.mxu0 0.0
  %2108 = vmatpush.xpose.msra.mxu0 0.0
  %2109 = vmatpush.xpose.msra.mxu0 0.0
  %2110 = vmatpush.xpose.msra.mxu0 0.0
  %2111 = vmatpush.xpose.msra.mxu0 0.0
  %2112 = vmatpush.xpose.msra.mxu0 0.0
  %2113 = vmatpush.xpose.msra.mxu0 0.0
  %2114 = vmatpush.xpose.msra.mxu0 %v39
  %2115 = vmatpush.xpose.msra.mxu0 %v35
  %2116 = vmatmul.f32.gmra.mxu0 %v2037
  %v2117 = vpop.f32.mrf.mxu0
  %v2118 = vadd.f32 %v2098, %v2117
  %2119 = vdwg.mxu0
  %vm2120 = vcmask 130048
  %v2122 = vsel %vm2120, %v2118, 0
  %2124 = vmatpush.msra.mxu0 0.0
  %2125 = vmatpush.msra.mxu0 0.0
  %2126 = vmatpush.msra.mxu0 0.0
  %2127 = vmatpush.msra.mxu0 0.0
  %2128 = vmatpush.msra.mxu0 0.0
  %2129 = vmatpush.msra.mxu0 0.0
  %2130 = vmatpush.msra.mxu0 0.0
  %2131 = vmatpush.msra.mxu0 0.0
  %2132 = vmatpush.msra.mxu0 0.0
  %2133 = vmatpush.msra.mxu0 0.0
  %2134 = vmatpush.msra.mxu0 0.0
  %2135 = vmatpush.msra.mxu0 0.0
  %2136 = vmatpush.msra.mxu0 0.0
  %2137 = vmatpush.msra.mxu0 0.0
  %2138 = vmatpush.msra.mxu0 %v36
  %2139 = vmatpush.msra.mxu0 %v32
  %2140 = vmatmul.f32.gmra.mxu0 %v2122
  %v2141 = vpop.f32.mrf.mxu0
  %v2142 = vadd.f32 0.0, %v2141
  %2143 = vdwg.mxu0
  %2144 = vmatpush.msra.mxu0 0.0
  %2145 = vmatpush.msra.mxu0 0.0
  %2146 = vmatpush.msra.mxu0 0.0
  %2147 = vmatpush.msra.mxu0 0.0
  %2148 = vmatpush.msra.mxu0 0.0
  %2149 = vmatpush.msra.mxu0 0.0
  %2150 = vmatpush.msra.mxu0 0.0
  %2151 = vmatpush.msra.mxu0 0.0
  %2152 = vmatpush.msra.mxu0 0.0
  %2153 = vmatpush.msra.mxu0 0.0
  %2154 = vmatpush.msra.mxu0 0.0
  %2155 = vmatpush.msra.mxu0 0.0
  %2156 = vmatpush.msra.mxu0 0.0
  %2157 = vmatpush.msra.mxu0 0.0
  %2158 = vmatpush.msra.mxu0 %v37
  %2159 = vmatpush.msra.mxu0 %v33
  %2160 = vmatmul.f32.gmra.mxu0 %v2122
  %v2161 = vpop.f32.mrf.mxu0
  %v2162 = vadd.f32 0.0, %v2161
  %2163 = vdwg.mxu0
  %2164 = vmatpush.msra.mxu0 0.0
  %2165 = vmatpush.msra.mxu0 0.0
  %2166 = vmatpush.msra.mxu0 0.0
  %2167 = vmatpush.msra.mxu0 0.0
  %2168 = vmatpush.msra.mxu0 0.0
  %2169 = vmatpush.msra.mxu0 0.0
  %2170 = vmatpush.msra.mxu0 0.0
  %2171 = vmatpush.msra.mxu0 0.0
  %2172 = vmatpush.msra.mxu0 0.0
  %2173 = vmatpush.msra.mxu0 0.0
  %2174 = vmatpush.msra.mxu0 0.0
  %2175 = vmatpush.msra.mxu0 0.0
  %2176 = vmatpush.msra.mxu0 0.0
  %2177 = vmatpush.msra.mxu0 0.0
  %2178 = vmatpush.msra.mxu0 %v38
  %2179 = vmatpush.msra.mxu0 %v34
  %2180 = vmatmul.f32.gmra.mxu0 %v2122
  %v2181 = vpop.f32.mrf.mxu0
  %v2182 = vadd.f32 0.0, %v2181
  %2183 = vdwg.mxu0
  %2184 = vmatpush.msra.mxu0 0.0
  %2185 = vmatpush.msra.mxu0 0.0
  %2186 = vmatpush.msra.mxu0 0.0
  %2187 = vmatpush.msra.mxu0 0.0
  %2188 = vmatpush.msra.mxu0 0.0
  %2189 = vmatpush.msra.mxu0 0.0
  %2190 = vmatpush.msra.mxu0 0.0
  %2191 = vmatpush.msra.mxu0 0.0
  %2192 = vmatpush.msra.mxu0 0.0
  %2193 = vmatpush.msra.mxu0 0.0
  %2194 = vmatpush.msra.mxu0 0.0
  %2195 = vmatpush.msra.mxu0 0.0
  %2196 = vmatpush.msra.mxu0 0.0
  %2197 = vmatpush.msra.mxu0 0.0
  %2198 = vmatpush.msra.mxu0 %v39
  %2199 = vmatpush.msra.mxu0 %v35
  %2200 = vmatmul.f32.gmra.mxu0 %v2122
  %v2201 = vpop.f32.mrf.mxu0
  %v2202 = vadd.f32 0.0, %v2201
  %2203 = vdwg.mxu0
  %v2204 = vmul.f32 %v2142, 0.03125
  %v2205 = vmul.f32 %v2162, 0.03125
  %v2206 = vmul.f32 %v2182, 0.03125
  %v2207 = vmul.f32 %v2202, 0.03125
  %v2208 = vsub.f32 %v1725, %v2204
  %v2209 = vsub.f32 %v1829, %v2205
  %v2210 = vsub.f32 %v1933, %v2206
  %v2211 = vsub.f32 %v2037, %v2207
  %v2212 = vmul.f32 %v2208, %v2208
  %v2213 = vmul.f32 %v2209, %v2209
  %v2214 = vmul.f32 %v2210, %v2210
  %v2215 = vmul.f32 %v2211, %v2211
  %2216 = vmatpush.xpose.msra.mxu0 0.0
  %2217 = vmatpush.xpose.msra.mxu0 0.0
  %2218 = vmatpush.xpose.msra.mxu0 0.0
  %2219 = vmatpush.xpose.msra.mxu0 0.0
  %2220 = vmatpush.xpose.msra.mxu0 0.0
  %2221 = vmatpush.xpose.msra.mxu0 0.0
  %2222 = vmatpush.xpose.msra.mxu0 0.0
  %2223 = vmatpush.xpose.msra.mxu0 0.0
  %2224 = vmatpush.xpose.msra.mxu0 0.0
  %2225 = vmatpush.xpose.msra.mxu0 0.0
  %2226 = vmatpush.xpose.msra.mxu0 0.0
  %2227 = vmatpush.xpose.msra.mxu0 0.0
  %2228 = vmatpush.xpose.msra.mxu0 0.0
  %2229 = vmatpush.xpose.msra.mxu0 0.0
  %2230 = vmatpush.xpose.msra.mxu0 %v36
  %2231 = vmatpush.xpose.msra.mxu0 %v32
  %2232 = vmatmul.f32.gmra.mxu0 %v2212
  %v2233 = vpop.f32.mrf.mxu0
  %v2234 = vadd.f32 0.0, %v2233
  %2235 = vdwg.mxu0
  %2236 = vmatpush.xpose.msra.mxu0 0.0
  %2237 = vmatpush.xpose.msra.mxu0 0.0
  %2238 = vmatpush.xpose.msra.mxu0 0.0
  %2239 = vmatpush.xpose.msra.mxu0 0.0
  %2240 = vmatpush.xpose.msra.mxu0 0.0
  %2241 = vmatpush.xpose.msra.mxu0 0.0
  %2242 = vmatpush.xpose.msra.mxu0 0.0
  %2243 = vmatpush.xpose.msra.mxu0 0.0
  %2244 = vmatpush.xpose.msra.mxu0 0.0
  %2245 = vmatpush.xpose.msra.mxu0 0.0
  %2246 = vmatpush.xpose.msra.mxu0 0.0
  %2247 = vmatpush.xpose.msra.mxu0 0.0
  %2248 = vmatpush.xpose.msra.mxu0 0.0
  %2249 = vmatpush.xpose.msra.mxu0 0.0
  %2250 = vmatpush.xpose.msra.mxu0 %v37
  %2251 = vmatpush.xpose.msra.mxu0 %v33
  %2252 = vmatmul.f32.gmra.mxu0 %v2213
  %v2253 = vpop.f32.mrf.mxu0
  %v2254 = vadd.f32 %v2234, %v2253
  %2255 = vdwg.mxu0
  %2256 = vmatpush.xpose.msra.mxu0 0.0
  %2257 = vmatpush.xpose.msra.mxu0 0.0
  %2258 = vmatpush.xpose.msra.mxu0 0.0
  %2259 = vmatpush.xpose.msra.mxu0 0.0
  %2260 = vmatpush.xpose.msra.mxu0 0.0
  %2261 = vmatpush.xpose.msra.mxu0 0.0
  %2262 = vmatpush.xpose.msra.mxu0 0.0
  %2263 = vmatpush.xpose.msra.mxu0 0.0
  %2264 = vmatpush.xpose.msra.mxu0 0.0
  %2265 = vmatpush.xpose.msra.mxu0 0.0
  %2266 = vmatpush.xpose.msra.mxu0 0.0
  %2267 = vmatpush.xpose.msra.mxu0 0.0
  %2268 = vmatpush.xpose.msra.mxu0 0.0
  %2269 = vmatpush.xpose.msra.mxu0 0.0
  %2270 = vmatpush.xpose.msra.mxu0 %v38
  %2271 = vmatpush.xpose.msra.mxu0 %v34
  %2272 = vmatmul.f32.gmra.mxu0 %v2214
  %v2273 = vpop.f32.mrf.mxu0
  %v2274 = vadd.f32 %v2254, %v2273
  %2275 = vdwg.mxu0
  %2276 = vmatpush.xpose.msra.mxu0 0.0
  %2277 = vmatpush.xpose.msra.mxu0 0.0
  %2278 = vmatpush.xpose.msra.mxu0 0.0
  %2279 = vmatpush.xpose.msra.mxu0 0.0
  %2280 = vmatpush.xpose.msra.mxu0 0.0
  %2281 = vmatpush.xpose.msra.mxu0 0.0
  %2282 = vmatpush.xpose.msra.mxu0 0.0
  %2283 = vmatpush.xpose.msra.mxu0 0.0
  %2284 = vmatpush.xpose.msra.mxu0 0.0
  %2285 = vmatpush.xpose.msra.mxu0 0.0
  %2286 = vmatpush.xpose.msra.mxu0 0.0
  %2287 = vmatpush.xpose.msra.mxu0 0.0
  %2288 = vmatpush.xpose.msra.mxu0 0.0
  %2289 = vmatpush.xpose.msra.mxu0 0.0
  %2290 = vmatpush.xpose.msra.mxu0 %v39
  %2291 = vmatpush.xpose.msra.mxu0 %v35
  %2292 = vmatmul.f32.gmra.mxu0 %v2215
  %v2293 = vpop.f32.mrf.mxu0
  %v2294 = vadd.f32 %v2274, %v2293
  %2295 = vdwg.mxu0
  %v2297 = vsel %vm2120, %v2294, 0
  %2299 = vmatpush.msra.mxu0 0.0
  %2300 = vmatpush.msra.mxu0 0.0
  %2301 = vmatpush.msra.mxu0 0.0
  %2302 = vmatpush.msra.mxu0 0.0
  %2303 = vmatpush.msra.mxu0 0.0
  %2304 = vmatpush.msra.mxu0 0.0
  %2305 = vmatpush.msra.mxu0 0.0
  %2306 = vmatpush.msra.mxu0 0.0
  %2307 = vmatpush.msra.mxu0 0.0
  %2308 = vmatpush.msra.mxu0 0.0
  %2309 = vmatpush.msra.mxu0 0.0
  %2310 = vmatpush.msra.mxu0 0.0
  %2311 = vmatpush.msra.mxu0 0.0
  %2312 = vmatpush.msra.mxu0 0.0
  %2313 = vmatpush.msra.mxu0 %v36
  %2314 = vmatpush.msra.mxu0 %v32
  %2315 = vmatmul.f32.gmra.mxu0 %v2297
  %v2316 = vpop.f32.mrf.mxu0
  %v2317 = vadd.f32 0.0, %v2316
  %2318 = vdwg.mxu0
  %2319 = vmatpush.msra.mxu0 0.0
  %2320 = vmatpush.msra.mxu0 0.0
  %2321 = vmatpush.msra.mxu0 0.0
  %2322 = vmatpush.msra.mxu0 0.0
  %2323 = vmatpush.msra.mxu0 0.0
  %2324 = vmatpush.msra.mxu0 0.0
  %2325 = vmatpush.msra.mxu0 0.0
  %2326 = vmatpush.msra.mxu0 0.0
  %2327 = vmatpush.msra.mxu0 0.0
  %2328 = vmatpush.msra.mxu0 0.0
  %2329 = vmatpush.msra.mxu0 0.0
  %2330 = vmatpush.msra.mxu0 0.0
  %2331 = vmatpush.msra.mxu0 0.0
  %2332 = vmatpush.msra.mxu0 0.0
  %2333 = vmatpush.msra.mxu0 %v37
  %2334 = vmatpush.msra.mxu0 %v33
  %2335 = vmatmul.f32.gmra.mxu0 %v2297
  %v2336 = vpop.f32.mrf.mxu0
  %v2337 = vadd.f32 0.0, %v2336
  %2338 = vdwg.mxu0
  %2339 = vmatpush.msra.mxu0 0.0
  %2340 = vmatpush.msra.mxu0 0.0
  %2341 = vmatpush.msra.mxu0 0.0
  %2342 = vmatpush.msra.mxu0 0.0
  %2343 = vmatpush.msra.mxu0 0.0
  %2344 = vmatpush.msra.mxu0 0.0
  %2345 = vmatpush.msra.mxu0 0.0
  %2346 = vmatpush.msra.mxu0 0.0
  %2347 = vmatpush.msra.mxu0 0.0
  %2348 = vmatpush.msra.mxu0 0.0
  %2349 = vmatpush.msra.mxu0 0.0
  %2350 = vmatpush.msra.mxu0 0.0
  %2351 = vmatpush.msra.mxu0 0.0
  %2352 = vmatpush.msra.mxu0 0.0
  %2353 = vmatpush.msra.mxu0 %v38
  %2354 = vmatpush.msra.mxu0 %v34
  %2355 = vmatmul.f32.gmra.mxu0 %v2297
  %v2356 = vpop.f32.mrf.mxu0
  %v2357 = vadd.f32 0.0, %v2356
  %2358 = vdwg.mxu0
  %2359 = vmatpush.msra.mxu0 0.0
  %2360 = vmatpush.msra.mxu0 0.0
  %2361 = vmatpush.msra.mxu0 0.0
  %2362 = vmatpush.msra.mxu0 0.0
  %2363 = vmatpush.msra.mxu0 0.0
  %2364 = vmatpush.msra.mxu0 0.0
  %2365 = vmatpush.msra.mxu0 0.0
  %2366 = vmatpush.msra.mxu0 0.0
  %2367 = vmatpush.msra.mxu0 0.0
  %2368 = vmatpush.msra.mxu0 0.0
  %2369 = vmatpush.msra.mxu0 0.0
  %2370 = vmatpush.msra.mxu0 0.0
  %2371 = vmatpush.msra.mxu0 0.0
  %2372 = vmatpush.msra.mxu0 0.0
  %2373 = vmatpush.msra.mxu0 %v39
  %2374 = vmatpush.msra.mxu0 %v35
  %2375 = vmatmul.f32.gmra.mxu0 %v2297
  %v2376 = vpop.f32.mrf.mxu0
  %v2377 = vadd.f32 0.0, %v2376
  %2378 = vdwg.mxu0
  %v2379 = vmul.f32 %v2317, 0.03125
  %v2380 = vmul.f32 %v2337, 0.03125
  %v2381 = vmul.f32 %v2357, 0.03125
  %v2382 = vmul.f32 %v2377, 0.03125
  %v2383 = vadd.f32 %v2379, 1e-05
  %v2384 = vadd.f32 %v2380, 1e-05
  %v2385 = vadd.f32 %v2381, 1e-05
  %v2386 = vadd.f32 %v2382, 1e-05
  %v2387 = vrsqrt.pop %v2383
  %v2388 = vmul.f32 %v2387, %v2383
  %v2389 = vmul.f32 %v2388, %v2387
  %v2390 = vmul.f32 0.5, %v2389
  %v2391 = vsub.f32 1.5, %v2390
  %v2392 = vmul.f32 %v2387, %v2391
  %vm2393 = vweird.f32 %v2383
  %vm2394 = vweird.f32 %v2387
  %vm2395 = vmor %vm2393, %vm2394
  %v2396 = vsel %vm2395, %v2387, %v2392
  %v2397 = vrsqrt.pop %v2384
  %v2398 = vmul.f32 %v2397, %v2384
  %v2399 = vmul.f32 %v2398, %v2397
  %v2400 = vmul.f32 0.5, %v2399
  %v2401 = vsub.f32 1.5, %v2400
  %v2402 = vmul.f32 %v2397, %v2401
  %vm2403 = vweird.f32 %v2384
  %vm2404 = vweird.f32 %v2397
  %vm2405 = vmor %vm2403, %vm2404
  %v2406 = vsel %vm2405, %v2397, %v2402
  %v2407 = vrsqrt.pop %v2385
  %v2408 = vmul.f32 %v2407, %v2385
  %v2409 = vmul.f32 %v2408, %v2407
  %v2410 = vmul.f32 0.5, %v2409
  %v2411 = vsub.f32 1.5, %v2410
  %v2412 = vmul.f32 %v2407, %v2411
  %vm2413 = vweird.f32 %v2385
  %vm2414 = vweird.f32 %v2407
  %vm2415 = vmor %vm2413, %vm2414
  %v2416 = vsel %vm2415, %v2407, %v2412
  %v2417 = vrsqrt.pop %v2386
  %v2418 = vmul.f32 %v2417, %v2386
  %v2419 = vmul.f32 %v2418, %v2417
  %v2420 = vmul.f32 0.5, %v2419
  %v2421 = vsub.f32 1.5, %v2420
  %v2422 = vmul.f32 %v2417, %v2421
  %vm2423 = vweird.f32 %v2386
  %vm2424 = vweird.f32 %v2417
  %vm2425 = vmor %vm2423, %vm2424
  %v2426 = vsel %vm2425, %v2417, %v2422
  %v2427 = vperm.slane %v40, 1
  %v2428 = vperm.slane %v40, 5
  %v2429 = vperm.slane %v41, 1
  %v2430 = vperm.slane %v41, 5
  %v2435 = vperm.slane %v2427, 1
  %v2436 = vperm.slane %v2428, 1
  %v2437 = vperm.slane %v2429, 1
  %v2438 = vperm.slane %v2430, 1
  %v2439 = vmul.f32 %v2435, %v2396
  %v2440 = vmul.f32 %v2436, %v2406
  %v2441 = vmul.f32 %v2437, %v2416
  %v2442 = vmul.f32 %v2438, %v2426
  %v2443 = vmul.f32 %v2208, %v2439
  %v2444 = vmul.f32 %v2209, %v2440
  %v2445 = vmul.f32 %v2210, %v2441
  %v2446 = vmul.f32 %v2211, %v2442
  %v2447 = vperm.slane %v40, 2
  %v2448 = vperm.slane %v40, 6
  %v2449 = vperm.slane %v41, 2
  %v2450 = vperm.slane %v41, 6
  %v2455 = vperm.slane %v2447, 2
  %v2456 = vperm.slane %v2448, 2
  %v2457 = vperm.slane %v2449, 2
  %v2458 = vperm.slane %v2450, 2
  %v2459 = vadd.f32 %v2443, %v2455
  %v2460 = vadd.f32 %v2444, %v2456
  %v2461 = vadd.f32 %v2445, %v2457
  %v2462 = vadd.f32 %v2446, %v2458
  %v2463 = vmax.f32 %v2459, 0.0
  %v2464 = vmax.f32 %v2460, 0.0
  %v2465 = vmax.f32 %v2461, 0.0
  %v2466 = vmax.f32 %v2462, 0.0
  %v2467 = vpack.c.bf16 %v2463, %v2463
  %v2468 = vpack.c.bf16 %v2464, %v2464
  %v2469 = vpack.c.bf16 %v2465, %v2465
  %v2470 = vpack.c.bf16 %v2466, %v2466
  %v2471 = vld [vmem:[%s3] sm:$0xff]
  %v2472 = vld [vmem:[%s3 + $0x8] sm:$0xff]
  %v2473 = vld [vmem:[%s3 + $0x10] sm:$0xff]
  %v2474 = vld [vmem:[%s3 + $0x18] sm:$0xff]
  %v2475 = vld [vmem:[%s3 + $0x20] sm:$0xff]
  %v2476 = vld [vmem:[%s3 + $0x28] sm:$0xff]
  %v2477 = vld [vmem:[%s3 + $0x30] sm:$0xff]
  %v2478 = vld [vmem:[%s3 + $0x38] sm:$0xff]
  %v2479 = vld [vmem:[%s3 + $0x40] sm:$0xff]
  %v2480 = vld [vmem:[%s3 + $0x48] sm:$0xff]
  %v2481 = vld [vmem:[%s3 + $0x50] sm:$0xff]
  %v2482 = vld [vmem:[%s3 + $0x58] sm:$0xff]
  %v2483 = vld [vmem:[%s3 + $0x60] sm:$0xff]
  %v2484 = vld [vmem:[%s3 + $0x68] sm:$0xff]
  %v2485 = vld [vmem:[%s3 + $0x70] sm:$0xff]
  %v2486 = vld [vmem:[%s3 + $0x78] sm:$0xff]
  %v2487 = vld [vmem:[%s3 + $0x80] sm:$0xff]
  %v2488 = vld [vmem:[%s3 + $0x88] sm:$0xff]
  %v2489 = vld [vmem:[%s3 + $0x90] sm:$0xff]
  %v2490 = vld [vmem:[%s3 + $0x98] sm:$0xff]
  %v2491 = vld [vmem:[%s3 + $0xa0] sm:$0xff]
  %v2492 = vld [vmem:[%s3 + $0xa8] sm:$0xff]
  %v2493 = vld [vmem:[%s3 + $0xb0] sm:$0xff]
  %v2494 = vld [vmem:[%s3 + $0xb8] sm:$0xff]
  %v2495 = vld [vmem:[%s3 + $0xc0] sm:$0xff]
  %v2496 = vld [vmem:[%s3 + $0xc8] sm:$0xff]
  %v2497 = vld [vmem:[%s3 + $0xd0] sm:$0xff]
  %v2498 = vld [vmem:[%s3 + $0xd8] sm:$0xff]
  %v2499 = vld [vmem:[%s3 + $0xe0] sm:$0xff]
  %v2500 = vld [vmem:[%s3 + $0xe8] sm:$0xff]
  %v2501 = vld [vmem:[%s3 + $0xf0] sm:$0xff]
  %v2502 = vld [vmem:[%s3 + $0xf8] sm:$0xff]
  %v2503 = vld [vmem:[%s3 + $0x100] sm:$0xff]
  %v2504 = vld [vmem:[%s3 + $0x108] sm:$0xff]
  %v2505 = vld [vmem:[%s3 + $0x110] sm:$0xff]
  %v2506 = vld [vmem:[%s3 + $0x118] sm:$0xff]
  %v2507 = vld [vmem:[%s3 + $0x120] sm:$0xff]
  %v2508 = vld [vmem:[%s3 + $0x128] sm:$0xff]
  %v2509 = vld [vmem:[%s3 + $0x130] sm:$0xff]
  %v2510 = vld [vmem:[%s3 + $0x138] sm:$0xff]
  %v2511 = vld [vmem:[%s3 + $0x140] sm:$0xff]
  %v2512 = vld [vmem:[%s3 + $0x148] sm:$0xff]
  %v2513 = vld [vmem:[%s3 + $0x150] sm:$0xff]
  %v2514 = vld [vmem:[%s3 + $0x158] sm:$0xff]
  %v2515 = vld [vmem:[%s3 + $0x160] sm:$0xff]
  %v2516 = vld [vmem:[%s3 + $0x168] sm:$0xff]
  %v2517 = vld [vmem:[%s3 + $0x170] sm:$0xff]
  %v2518 = vld [vmem:[%s3 + $0x178] sm:$0xff]
  %v2519 = vld [vmem:[%s3 + $0x180] sm:$0xff]
  %v2520 = vld [vmem:[%s3 + $0x188] sm:$0xff]
  %v2521 = vld [vmem:[%s3 + $0x190] sm:$0xff]
  %v2522 = vld [vmem:[%s3 + $0x198] sm:$0xff]
  %v2523 = vld [vmem:[%s3 + $0x1a0] sm:$0xff]
  %v2524 = vld [vmem:[%s3 + $0x1a8] sm:$0xff]
  %v2525 = vld [vmem:[%s3 + $0x1b0] sm:$0xff]
  %v2526 = vld [vmem:[%s3 + $0x1b8] sm:$0xff]
  %v2527 = vld [vmem:[%s3 + $0x1c0] sm:$0xff]
  %v2528 = vld [vmem:[%s3 + $0x1c8] sm:$0xff]
  %v2529 = vld [vmem:[%s3 + $0x1d0] sm:$0xff]
  %v2530 = vld [vmem:[%s3 + $0x1d8] sm:$0xff]
  %v2531 = vld [vmem:[%s3 + $0x1e0] sm:$0xff]
  %v2532 = vld [vmem:[%s3 + $0x1e8] sm:$0xff]
  %v2533 = vld [vmem:[%s3 + $0x1f0] sm:$0xff]
  %v2534 = vld [vmem:[%s3 + $0x1f8] sm:$0xff]
  %v2536 = vperm.slane %v42, 0
  %v2537 = vperm.slane %v42, 4
  %v2540 = vperm.slane %v2536, 0
  %v2541 = vperm.slane %v2537, 0
  %v2606 = vunpack.c.l.b16 %v2471
  %v2607 = vunpack.c.h.b16 %v2471
  %v2608 = vunpack.c.l.b16 %v2472
  %v2609 = vunpack.c.h.b16 %v2472
  %v2610 = vunpack.c.l.b16 %v2473
  %v2611 = vunpack.c.h.b16 %v2473
  %v2612 = vunpack.c.l.b16 %v2474
  %v2613 = vunpack.c.h.b16 %v2474
  %v2614 = vunpack.c.l.b16 %v2475
  %v2615 = vunpack.c.h.b16 %v2475
  %v2616 = vunpack.c.l.b16 %v2476
  %v2617 = vunpack.c.h.b16 %v2476
  %v2618 = vunpack.c.l.b16 %v2477
  %v2619 = vunpack.c.h.b16 %v2477
  %v2620 = vunpack.c.l.b16 %v2478
  %v2621 = vunpack.c.h.b16 %v2478
  %v2622 = vunpack.c.l.b16 %v2479
  %v2623 = vunpack.c.h.b16 %v2479
  %v2624 = vunpack.c.l.b16 %v2480
  %v2625 = vunpack.c.h.b16 %v2480
  %v2626 = vunpack.c.l.b16 %v2481
  %v2627 = vunpack.c.h.b16 %v2481
  %v2628 = vunpack.c.l.b16 %v2482
  %v2629 = vunpack.c.h.b16 %v2482
  %v2630 = vunpack.c.l.b16 %v2483
  %v2631 = vunpack.c.h.b16 %v2483
  %v2632 = vunpack.c.l.b16 %v2484
  %v2633 = vunpack.c.h.b16 %v2484
  %v2634 = vunpack.c.l.b16 %v2485
  %v2635 = vunpack.c.h.b16 %v2485
  %v2636 = vunpack.c.l.b16 %v2486
  %v2637 = vunpack.c.h.b16 %v2486
  %v2638 = vunpack.c.l.b16 %v2487
  %v2639 = vunpack.c.h.b16 %v2487
  %v2640 = vunpack.c.l.b16 %v2488
  %v2641 = vunpack.c.h.b16 %v2488
  %v2642 = vunpack.c.l.b16 %v2489
  %v2643 = vunpack.c.h.b16 %v2489
  %v2644 = vunpack.c.l.b16 %v2490
  %v2645 = vunpack.c.h.b16 %v2490
  %v2646 = vunpack.c.l.b16 %v2491
  %v2647 = vunpack.c.h.b16 %v2491
  %v2648 = vunpack.c.l.b16 %v2492
  %v2649 = vunpack.c.h.b16 %v2492
  %v2650 = vunpack.c.l.b16 %v2493
  %v2651 = vunpack.c.h.b16 %v2493
  %v2652 = vunpack.c.l.b16 %v2494
  %v2653 = vunpack.c.h.b16 %v2494
  %v2654 = vunpack.c.l.b16 %v2495
  %v2655 = vunpack.c.h.b16 %v2495
  %v2656 = vunpack.c.l.b16 %v2496
  %v2657 = vunpack.c.h.b16 %v2496
  %v2658 = vunpack.c.l.b16 %v2497
  %v2659 = vunpack.c.h.b16 %v2497
  %v2660 = vunpack.c.l.b16 %v2498
  %v2661 = vunpack.c.h.b16 %v2498
  %v2662 = vunpack.c.l.b16 %v2499
  %v2663 = vunpack.c.h.b16 %v2499
  %v2664 = vunpack.c.l.b16 %v2500
  %v2665 = vunpack.c.h.b16 %v2500
  %v2666 = vunpack.c.l.b16 %v2501
  %v2667 = vunpack.c.h.b16 %v2501
  %v2668 = vunpack.c.l.b16 %v2502
  %v2669 = vunpack.c.h.b16 %v2502
  %v2670 = vunpack.c.l.b16 %v2503
  %v2671 = vunpack.c.h.b16 %v2503
  %v2672 = vunpack.c.l.b16 %v2504
  %v2673 = vunpack.c.h.b16 %v2504
  %v2674 = vunpack.c.l.b16 %v2505
  %v2675 = vunpack.c.h.b16 %v2505
  %v2676 = vunpack.c.l.b16 %v2506
  %v2677 = vunpack.c.h.b16 %v2506
  %v2678 = vunpack.c.l.b16 %v2507
  %v2679 = vunpack.c.h.b16 %v2507
  %v2680 = vunpack.c.l.b16 %v2508
  %v2681 = vunpack.c.h.b16 %v2508
  %v2682 = vunpack.c.l.b16 %v2509
  %v2683 = vunpack.c.h.b16 %v2509
  %v2684 = vunpack.c.l.b16 %v2510
  %v2685 = vunpack.c.h.b16 %v2510
  %v2686 = vunpack.c.l.b16 %v2511
  %v2687 = vunpack.c.h.b16 %v2511
  %v2688 = vunpack.c.l.b16 %v2512
  %v2689 = vunpack.c.h.b16 %v2512
  %v2690 = vunpack.c.l.b16 %v2513
  %v2691 = vunpack.c.h.b16 %v2513
  %v2692 = vunpack.c.l.b16 %v2514
  %v2693 = vunpack.c.h.b16 %v2514
  %v2694 = vunpack.c.l.b16 %v2515
  %v2695 = vunpack.c.h.b16 %v2515
  %v2696 = vunpack.c.l.b16 %v2516
  %v2697 = vunpack.c.h.b16 %v2516
  %v2698 = vunpack.c.l.b16 %v2517
  %v2699 = vunpack.c.h.b16 %v2517
  %v2700 = vunpack.c.l.b16 %v2518
  %v2701 = vunpack.c.h.b16 %v2518
  %v2702 = vunpack.c.l.b16 %v2519
  %v2703 = vunpack.c.h.b16 %v2519
  %v2704 = vunpack.c.l.b16 %v2520
  %v2705 = vunpack.c.h.b16 %v2520
  %v2706 = vunpack.c.l.b16 %v2521
  %v2707 = vunpack.c.h.b16 %v2521
  %v2708 = vunpack.c.l.b16 %v2522
  %v2709 = vunpack.c.h.b16 %v2522
  %v2710 = vunpack.c.l.b16 %v2523
  %v2711 = vunpack.c.h.b16 %v2523
  %v2712 = vunpack.c.l.b16 %v2524
  %v2713 = vunpack.c.h.b16 %v2524
  %v2714 = vunpack.c.l.b16 %v2525
  %v2715 = vunpack.c.h.b16 %v2525
  %v2716 = vunpack.c.l.b16 %v2526
  %v2717 = vunpack.c.h.b16 %v2526
  %v2718 = vunpack.c.l.b16 %v2527
  %v2719 = vunpack.c.h.b16 %v2527
  %v2720 = vunpack.c.l.b16 %v2528
  %v2721 = vunpack.c.h.b16 %v2528
  %v2722 = vunpack.c.l.b16 %v2529
  %v2723 = vunpack.c.h.b16 %v2529
  %v2724 = vunpack.c.l.b16 %v2530
  %v2725 = vunpack.c.h.b16 %v2530
  %v2726 = vunpack.c.l.b16 %v2531
  %v2727 = vunpack.c.h.b16 %v2531
  %v2728 = vunpack.c.l.b16 %v2532
  %v2729 = vunpack.c.h.b16 %v2532
  %v2730 = vunpack.c.l.b16 %v2533
  %v2731 = vunpack.c.h.b16 %v2533
  %v2732 = vunpack.c.l.b16 %v2534
  %v2733 = vunpack.c.h.b16 %v2534
  %v2734 = vpack.c.b16 %v2608, %v2606
  %v2735 = vpack.c.b16 %v2609, %v2607
  %v2736 = vpack.c.b16 %v2612, %v2610
  %v2737 = vpack.c.b16 %v2613, %v2611
  %v2738 = vpack.c.b16 %v2616, %v2614
  %v2739 = vpack.c.b16 %v2617, %v2615
  %v2740 = vpack.c.b16 %v2620, %v2618
  %v2741 = vpack.c.b16 %v2621, %v2619
  %v2742 = vpack.c.b16 %v2624, %v2622
  %v2743 = vpack.c.b16 %v2625, %v2623
  %v2744 = vpack.c.b16 %v2628, %v2626
  %v2745 = vpack.c.b16 %v2629, %v2627
  %v2746 = vpack.c.b16 %v2632, %v2630
  %v2747 = vpack.c.b16 %v2633, %v2631
  %v2748 = vpack.c.b16 %v2636, %v2634
  %v2749 = vpack.c.b16 %v2637, %v2635
  %v2750 = vpack.c.b16 %v2640, %v2638
  %v2751 = vpack.c.b16 %v2641, %v2639
  %v2752 = vpack.c.b16 %v2644, %v2642
  %v2753 = vpack.c.b16 %v2645, %v2643
  %v2754 = vpack.c.b16 %v2648, %v2646
  %v2755 = vpack.c.b16 %v2649, %v2647
  %v2756 = vpack.c.b16 %v2652, %v2650
  %v2757 = vpack.c.b16 %v2653, %v2651
  %v2758 = vpack.c.b16 %v2656, %v2654
  %v2759 = vpack.c.b16 %v2657, %v2655
  %v2760 = vpack.c.b16 %v2660, %v2658
  %v2761 = vpack.c.b16 %v2661, %v2659
  %v2762 = vpack.c.b16 %v2664, %v2662
  %v2763 = vpack.c.b16 %v2665, %v2663
  %v2764 = vpack.c.b16 %v2668, %v2666
  %v2765 = vpack.c.b16 %v2669, %v2667
  %v2766 = vpack.c.b16 %v2672, %v2670
  %v2767 = vpack.c.b16 %v2673, %v2671
  %v2768 = vpack.c.b16 %v2676, %v2674
  %v2769 = vpack.c.b16 %v2677, %v2675
  %v2770 = vpack.c.b16 %v2680, %v2678
  %v2771 = vpack.c.b16 %v2681, %v2679
  %v2772 = vpack.c.b16 %v2684, %v2682
  %v2773 = vpack.c.b16 %v2685, %v2683
  %v2774 = vpack.c.b16 %v2688, %v2686
  %v2775 = vpack.c.b16 %v2689, %v2687
  %v2776 = vpack.c.b16 %v2692, %v2690
  %v2777 = vpack.c.b16 %v2693, %v2691
  %v2778 = vpack.c.b16 %v2696, %v2694
  %v2779 = vpack.c.b16 %v2697, %v2695
  %v2780 = vpack.c.b16 %v2700, %v2698
  %v2781 = vpack.c.b16 %v2701, %v2699
  %v2782 = vpack.c.b16 %v2704, %v2702
  %v2783 = vpack.c.b16 %v2705, %v2703
  %v2784 = vpack.c.b16 %v2708, %v2706
  %v2785 = vpack.c.b16 %v2709, %v2707
  %v2786 = vpack.c.b16 %v2712, %v2710
  %v2787 = vpack.c.b16 %v2713, %v2711
  %v2788 = vpack.c.b16 %v2716, %v2714
  %v2789 = vpack.c.b16 %v2717, %v2715
  %v2790 = vpack.c.b16 %v2720, %v2718
  %v2791 = vpack.c.b16 %v2721, %v2719
  %v2792 = vpack.c.b16 %v2724, %v2722
  %v2793 = vpack.c.b16 %v2725, %v2723
  %v2794 = vpack.c.b16 %v2728, %v2726
  %v2795 = vpack.c.b16 %v2729, %v2727
  %v2796 = vpack.c.b16 %v2732, %v2730
  %v2797 = vpack.c.b16 %v2733, %v2731
  %2862 = vmatpush.bf16.msra.mxu0 %v2748
  %2863 = vmatpush.bf16.msra.mxu0 %v2746
  %2864 = vmatpush.bf16.msra.mxu0 %v2744
  %2865 = vmatpush.bf16.msra.mxu0 %v2742
  %2866 = vmatpush.bf16.msra.mxu0 %v2740
  %2867 = vmatpush.bf16.msra.mxu0 %v2738
  %2868 = vmatpush.bf16.msra.mxu0 %v2736
  %2869 = vmatpush.bf16.msra.mxu0 %v2734
  %2870 = vmatmul.bf16.gmra.mxu0 %v2467
  %v2871 = vpop.f32.mrf.mxu0
  %v2872 = vadd.f32 %v2540, %v2871
  %v2873 = vpop.f32.mrf.mxu0
  %2874 = vdwg.mxu0
  %2875 = vmatpush.bf16.msra.mxu0 %v2764
  %2876 = vmatpush.bf16.msra.mxu0 %v2762
  %2877 = vmatpush.bf16.msra.mxu0 %v2760
  %2878 = vmatpush.bf16.msra.mxu0 %v2758
  %2879 = vmatpush.bf16.msra.mxu0 %v2756
  %2880 = vmatpush.bf16.msra.mxu0 %v2754
  %2881 = vmatpush.bf16.msra.mxu0 %v2752
  %2882 = vmatpush.bf16.msra.mxu0 %v2750
  %2883 = vmatmul.bf16.gmra.mxu0 %v2468
  %v2884 = vpop.f32.mrf.mxu0
  %v2885 = vadd.f32 %v2872, %v2884
  %v2886 = vpop.f32.mrf.mxu0
  %2887 = vdwg.mxu0
  %2888 = vmatpush.bf16.msra.mxu0 %v2780
  %2889 = vmatpush.bf16.msra.mxu0 %v2778
  %2890 = vmatpush.bf16.msra.mxu0 %v2776
  %2891 = vmatpush.bf16.msra.mxu0 %v2774
  %2892 = vmatpush.bf16.msra.mxu0 %v2772
  %2893 = vmatpush.bf16.msra.mxu0 %v2770
  %2894 = vmatpush.bf16.msra.mxu0 %v2768
  %2895 = vmatpush.bf16.msra.mxu0 %v2766
  %2896 = vmatmul.bf16.gmra.mxu0 %v2469
  %v2897 = vpop.f32.mrf.mxu0
  %v2898 = vadd.f32 %v2885, %v2897
  %v2899 = vpop.f32.mrf.mxu0
  %2900 = vdwg.mxu0
  %2901 = vmatpush.bf16.msra.mxu0 %v2796
  %2902 = vmatpush.bf16.msra.mxu0 %v2794
  %2903 = vmatpush.bf16.msra.mxu0 %v2792
  %2904 = vmatpush.bf16.msra.mxu0 %v2790
  %2905 = vmatpush.bf16.msra.mxu0 %v2788
  %2906 = vmatpush.bf16.msra.mxu0 %v2786
  %2907 = vmatpush.bf16.msra.mxu0 %v2784
  %2908 = vmatpush.bf16.msra.mxu0 %v2782
  %2909 = vmatmul.bf16.gmra.mxu0 %v2470
  %v2910 = vpop.f32.mrf.mxu0
  %v2911 = vadd.f32 %v2898, %v2910
  %v2912 = vpop.f32.mrf.mxu0
  %2913 = vdwg.mxu0
  %2914 = vmatpush.bf16.msra.mxu0 %v2749
  %2915 = vmatpush.bf16.msra.mxu0 %v2747
  %2916 = vmatpush.bf16.msra.mxu0 %v2745
  %2917 = vmatpush.bf16.msra.mxu0 %v2743
  %2918 = vmatpush.bf16.msra.mxu0 %v2741
  %2919 = vmatpush.bf16.msra.mxu0 %v2739
  %2920 = vmatpush.bf16.msra.mxu0 %v2737
  %2921 = vmatpush.bf16.msra.mxu0 %v2735
  %2922 = vmatmul.bf16.gmra.mxu0 %v2467
  %v2923 = vpop.f32.mrf.mxu0
  %v2924 = vadd.f32 %v2541, %v2923
  %v2925 = vpop.f32.mrf.mxu0
  %2926 = vdwg.mxu0
  %2927 = vmatpush.bf16.msra.mxu0 %v2765
  %2928 = vmatpush.bf16.msra.mxu0 %v2763
  %2929 = vmatpush.bf16.msra.mxu0 %v2761
  %2930 = vmatpush.bf16.msra.mxu0 %v2759
  %2931 = vmatpush.bf16.msra.mxu0 %v2757
  %2932 = vmatpush.bf16.msra.mxu0 %v2755
  %2933 = vmatpush.bf16.msra.mxu0 %v2753
  %2934 = vmatpush.bf16.msra.mxu0 %v2751
  %2935 = vmatmul.bf16.gmra.mxu0 %v2468
  %v2936 = vpop.f32.mrf.mxu0
  %v2937 = vadd.f32 %v2924, %v2936
  %v2938 = vpop.f32.mrf.mxu0
  %2939 = vdwg.mxu0
  %2940 = vmatpush.bf16.msra.mxu0 %v2781
  %2941 = vmatpush.bf16.msra.mxu0 %v2779
  %2942 = vmatpush.bf16.msra.mxu0 %v2777
  %2943 = vmatpush.bf16.msra.mxu0 %v2775
  %2944 = vmatpush.bf16.msra.mxu0 %v2773
  %2945 = vmatpush.bf16.msra.mxu0 %v2771
  %2946 = vmatpush.bf16.msra.mxu0 %v2769
  %2947 = vmatpush.bf16.msra.mxu0 %v2767
  %2948 = vmatmul.bf16.gmra.mxu0 %v2469
  %v2949 = vpop.f32.mrf.mxu0
  %v2950 = vadd.f32 %v2937, %v2949
  %v2951 = vpop.f32.mrf.mxu0
  %2952 = vdwg.mxu0
  %2953 = vmatpush.bf16.msra.mxu0 %v2797
  %2954 = vmatpush.bf16.msra.mxu0 %v2795
  %2955 = vmatpush.bf16.msra.mxu0 %v2793
  %2956 = vmatpush.bf16.msra.mxu0 %v2791
  %2957 = vmatpush.bf16.msra.mxu0 %v2789
  %2958 = vmatpush.bf16.msra.mxu0 %v2787
  %2959 = vmatpush.bf16.msra.mxu0 %v2785
  %2960 = vmatpush.bf16.msra.mxu0 %v2783
  %2961 = vmatmul.bf16.gmra.mxu0 %v2470
  %v2962 = vpop.f32.mrf.mxu0
  %v2963 = vadd.f32 %v2950, %v2962
  %v2964 = vpop.f32.mrf.mxu0
  %2965 = vdwg.mxu0
  %v2966 = vld [vmem:[%s8] sm:$0xff]
  %v2967 = vld [vmem:[%s8 + $0x8] sm:$0xff]
  %v2968 = vld [vmem:[%s8 + $0x10] sm:$0xff]
  %v2969 = vld [vmem:[%s8 + $0x18] sm:$0xff]
  %v2970 = vld [vmem:[%s8 + $0x20] sm:$0xff]
  %v2971 = vld [vmem:[%s8 + $0x28] sm:$0xff]
  %v2972 = vld [vmem:[%s8 + $0x30] sm:$0xff]
  %v2973 = vld [vmem:[%s8 + $0x38] sm:$0xff]
  %v2974 = vld [vmem:[%s8 + $0x40] sm:$0xff]
  %v2975 = vld [vmem:[%s8 + $0x48] sm:$0xff]
  %v2976 = vld [vmem:[%s8 + $0x50] sm:$0xff]
  %v2977 = vld [vmem:[%s8 + $0x58] sm:$0xff]
  %v2978 = vld [vmem:[%s8 + $0x60] sm:$0xff]
  %v2979 = vld [vmem:[%s8 + $0x68] sm:$0xff]
  %v2980 = vld [vmem:[%s8 + $0x70] sm:$0xff]
  %v2981 = vld [vmem:[%s8 + $0x78] sm:$0xff]
  %v2982 = vld [vmem:[%s8 + $0x80] sm:$0xff]
  %v2983 = vld [vmem:[%s8 + $0x88] sm:$0xff]
  %v2984 = vld [vmem:[%s8 + $0x90] sm:$0xff]
  %v2985 = vld [vmem:[%s8 + $0x98] sm:$0xff]
  %v2986 = vld [vmem:[%s8 + $0xa0] sm:$0xff]
  %v2987 = vld [vmem:[%s8 + $0xa8] sm:$0xff]
  %v2988 = vld [vmem:[%s8 + $0xb0] sm:$0xff]
  %v2989 = vld [vmem:[%s8 + $0xb8] sm:$0xff]
  %v2990 = vld [vmem:[%s8 + $0xc0] sm:$0xff]
  %v2991 = vld [vmem:[%s8 + $0xc8] sm:$0xff]
  %v2992 = vld [vmem:[%s8 + $0xd0] sm:$0xff]
  %v2993 = vld [vmem:[%s8 + $0xd8] sm:$0xff]
  %v2994 = vld [vmem:[%s8 + $0xe0] sm:$0xff]
  %v2995 = vld [vmem:[%s8 + $0xe8] sm:$0xff]
  %v2996 = vld [vmem:[%s8 + $0xf0] sm:$0xff]
  %v2997 = vld [vmem:[%s8 + $0xf8] sm:$0xff]
  %v2998 = vld [vmem:[%s8 + $0x100] sm:$0xff]
  %v2999 = vld [vmem:[%s8 + $0x108] sm:$0xff]
  %v3000 = vld [vmem:[%s8 + $0x110] sm:$0xff]
  %v3001 = vld [vmem:[%s8 + $0x118] sm:$0xff]
  %v3002 = vld [vmem:[%s8 + $0x120] sm:$0xff]
  %v3003 = vld [vmem:[%s8 + $0x128] sm:$0xff]
  %v3004 = vld [vmem:[%s8 + $0x130] sm:$0xff]
  %v3005 = vld [vmem:[%s8 + $0x138] sm:$0xff]
  %v3006 = vld [vmem:[%s8 + $0x140] sm:$0xff]
  %v3007 = vld [vmem:[%s8 + $0x148] sm:$0xff]
  %v3008 = vld [vmem:[%s8 + $0x150] sm:$0xff]
  %v3009 = vld [vmem:[%s8 + $0x158] sm:$0xff]
  %v3010 = vld [vmem:[%s8 + $0x160] sm:$0xff]
  %v3011 = vld [vmem:[%s8 + $0x168] sm:$0xff]
  %v3012 = vld [vmem:[%s8 + $0x170] sm:$0xff]
  %v3013 = vld [vmem:[%s8 + $0x178] sm:$0xff]
  %v3014 = vld [vmem:[%s8 + $0x180] sm:$0xff]
  %v3015 = vld [vmem:[%s8 + $0x188] sm:$0xff]
  %v3016 = vld [vmem:[%s8 + $0x190] sm:$0xff]
  %v3017 = vld [vmem:[%s8 + $0x198] sm:$0xff]
  %v3018 = vld [vmem:[%s8 + $0x1a0] sm:$0xff]
  %v3019 = vld [vmem:[%s8 + $0x1a8] sm:$0xff]
  %v3020 = vld [vmem:[%s8 + $0x1b0] sm:$0xff]
  %v3021 = vld [vmem:[%s8 + $0x1b8] sm:$0xff]
  %v3022 = vld [vmem:[%s8 + $0x1c0] sm:$0xff]
  %v3023 = vld [vmem:[%s8 + $0x1c8] sm:$0xff]
  %v3024 = vld [vmem:[%s8 + $0x1d0] sm:$0xff]
  %v3025 = vld [vmem:[%s8 + $0x1d8] sm:$0xff]
  %v3026 = vld [vmem:[%s8 + $0x1e0] sm:$0xff]
  %v3027 = vld [vmem:[%s8 + $0x1e8] sm:$0xff]
  %v3028 = vld [vmem:[%s8 + $0x1f0] sm:$0xff]
  %v3029 = vld [vmem:[%s8 + $0x1f8] sm:$0xff]
  %3030 = vmatpush.msra.mxu0 %v2996
  %3031 = vmatpush.msra.mxu0 %v2994
  %3032 = vmatpush.msra.mxu0 %v2992
  %3033 = vmatpush.msra.mxu0 %v2990
  %3034 = vmatpush.msra.mxu0 %v2988
  %3035 = vmatpush.msra.mxu0 %v2986
  %3036 = vmatpush.msra.mxu0 %v2984
  %3037 = vmatpush.msra.mxu0 %v2982
  %3038 = vmatpush.msra.mxu0 %v2980
  %3039 = vmatpush.msra.mxu0 %v2978
  %3040 = vmatpush.msra.mxu0 %v2976
  %3041 = vmatpush.msra.mxu0 %v2974
  %3042 = vmatpush.msra.mxu0 %v2972
  %3043 = vmatpush.msra.mxu0 %v2970
  %3044 = vmatpush.msra.mxu0 %v2968
  %3045 = vmatpush.msra.mxu0 %v2966
  %3046 = vmatmul.f32.gmra.mxu0 %v2911
  %v3047 = vpop.f32.mrf.mxu0
  %v3048 = vadd.f32 0.0, %v3047
  %3049 = vdwg.mxu0
  %3050 = vmatpush.msra.mxu0 %v3028
  %3051 = vmatpush.msra.mxu0 %v3026
  %3052 = vmatpush.msra.mxu0 %v3024
  %3053 = vmatpush.msra.mxu0 %v3022
  %3054 = vmatpush.msra.mxu0 %v3020
  %3055 = vmatpush.msra.mxu0 %v3018
  %3056 = vmatpush.msra.mxu0 %v3016
  %3057 = vmatpush.msra.mxu0 %v3014
  %3058 = vmatpush.msra.mxu0 %v3012
  %3059 = vmatpush.msra.mxu0 %v3010
  %3060 = vmatpush.msra.mxu0 %v3008
  %3061 = vmatpush.msra.mxu0 %v3006
  %3062 = vmatpush.msra.mxu0 %v3004
  %3063 = vmatpush.msra.mxu0 %v3002
  %3064 = vmatpush.msra.mxu0 %v3000
  %3065 = vmatpush.msra.mxu0 %v2998
  %3066 = vmatmul.f32.gmra.mxu0 %v2963
  %v3067 = vpop.f32.mrf.mxu0
  %v3068 = vadd.f32 %v3048, %v3067
  %3069 = vdwg.mxu0
  %3070 = vmatpush.msra.mxu0 %v2997
  %3071 = vmatpush.msra.mxu0 %v2995
  %3072 = vmatpush.msra.mxu0 %v2993
  %3073 = vmatpush.msra.mxu0 %v2991
  %3074 = vmatpush.msra.mxu0 %v2989
  %3075 = vmatpush.msra.mxu0 %v2987
  %3076 = vmatpush.msra.mxu0 %v2985
  %3077 = vmatpush.msra.mxu0 %v2983
  %3078 = vmatpush.msra.mxu0 %v2981
  %3079 = vmatpush.msra.mxu0 %v2979
  %3080 = vmatpush.msra.mxu0 %v2977
  %3081 = vmatpush.msra.mxu0 %v2975
  %3082 = vmatpush.msra.mxu0 %v2973
  %3083 = vmatpush.msra.mxu0 %v2971
  %3084 = vmatpush.msra.mxu0 %v2969
  %3085 = vmatpush.msra.mxu0 %v2967
  %3086 = vmatmul.f32.gmra.mxu0 %v2911
  %v3087 = vpop.f32.mrf.mxu0
  %v3088 = vadd.f32 0.0, %v3087
  %3089 = vdwg.mxu0
  %3090 = vmatpush.msra.mxu0 %v3029
  %3091 = vmatpush.msra.mxu0 %v3027
  %3092 = vmatpush.msra.mxu0 %v3025
  %3093 = vmatpush.msra.mxu0 %v3023
  %3094 = vmatpush.msra.mxu0 %v3021
  %3095 = vmatpush.msra.mxu0 %v3019
  %3096 = vmatpush.msra.mxu0 %v3017
  %3097 = vmatpush.msra.mxu0 %v3015
  %3098 = vmatpush.msra.mxu0 %v3013
  %3099 = vmatpush.msra.mxu0 %v3011
  %3100 = vmatpush.msra.mxu0 %v3009
  %3101 = vmatpush.msra.mxu0 %v3007
  %3102 = vmatpush.msra.mxu0 %v3005
  %3103 = vmatpush.msra.mxu0 %v3003
  %3104 = vmatpush.msra.mxu0 %v3001
  %3105 = vmatpush.msra.mxu0 %v2999
  %3106 = vmatmul.f32.gmra.mxu0 %v2963
  %v3107 = vpop.f32.mrf.mxu0
  %v3108 = vadd.f32 %v3088, %v3107
  %3109 = vdwg.mxu0
  %v3110 = vmul.f32 %v3068, 0.0625
  %v3111 = vmul.f32 %v3108, 0.0625
  %v3112 = vsub.f32 %v2911, %v3110
  %v3113 = vsub.f32 %v2963, %v3111
  %v3114 = vmul.f32 %v3112, %v3112
  %v3115 = vmul.f32 %v3113, %v3113
  %3116 = vmatpush.msra.mxu0 %v2996
  %3117 = vmatpush.msra.mxu0 %v2994
  %3118 = vmatpush.msra.mxu0 %v2992
  %3119 = vmatpush.msra.mxu0 %v2990
  %3120 = vmatpush.msra.mxu0 %v2988
  %3121 = vmatpush.msra.mxu0 %v2986
  %3122 = vmatpush.msra.mxu0 %v2984
  %3123 = vmatpush.msra.mxu0 %v2982
  %3124 = vmatpush.msra.mxu0 %v2980
  %3125 = vmatpush.msra.mxu0 %v2978
  %3126 = vmatpush.msra.mxu0 %v2976
  %3127 = vmatpush.msra.mxu0 %v2974
  %3128 = vmatpush.msra.mxu0 %v2972
  %3129 = vmatpush.msra.mxu0 %v2970
  %3130 = vmatpush.msra.mxu0 %v2968
  %3131 = vmatpush.msra.mxu0 %v2966
  %3132 = vmatmul.f32.gmra.mxu0 %v3114
  %v3133 = vpop.f32.mrf.mxu0
  %v3134 = vadd.f32 0.0, %v3133
  %3135 = vdwg.mxu0
  %3136 = vmatpush.msra.mxu0 %v3028
  %3137 = vmatpush.msra.mxu0 %v3026
  %3138 = vmatpush.msra.mxu0 %v3024
  %3139 = vmatpush.msra.mxu0 %v3022
  %3140 = vmatpush.msra.mxu0 %v3020
  %3141 = vmatpush.msra.mxu0 %v3018
  %3142 = vmatpush.msra.mxu0 %v3016
  %3143 = vmatpush.msra.mxu0 %v3014
  %3144 = vmatpush.msra.mxu0 %v3012
  %3145 = vmatpush.msra.mxu0 %v3010
  %3146 = vmatpush.msra.mxu0 %v3008
  %3147 = vmatpush.msra.mxu0 %v3006
  %3148 = vmatpush.msra.mxu0 %v3004
  %3149 = vmatpush.msra.mxu0 %v3002
  %3150 = vmatpush.msra.mxu0 %v3000
  %3151 = vmatpush.msra.mxu0 %v2998
  %3152 = vmatmul.f32.gmra.mxu0 %v3115
  %v3153 = vpop.f32.mrf.mxu0
  %v3154 = vadd.f32 %v3134, %v3153
  %3155 = vdwg.mxu0
  %3156 = vmatpush.msra.mxu0 %v2997
  %3157 = vmatpush.msra.mxu0 %v2995
  %3158 = vmatpush.msra.mxu0 %v2993
  %3159 = vmatpush.msra.mxu0 %v2991
  %3160 = vmatpush.msra.mxu0 %v2989
  %3161 = vmatpush.msra.mxu0 %v2987
  %3162 = vmatpush.msra.mxu0 %v2985
  %3163 = vmatpush.msra.mxu0 %v2983
  %3164 = vmatpush.msra.mxu0 %v2981
  %3165 = vmatpush.msra.mxu0 %v2979
  %3166 = vmatpush.msra.mxu0 %v2977
  %3167 = vmatpush.msra.mxu0 %v2975
  %3168 = vmatpush.msra.mxu0 %v2973
  %3169 = vmatpush.msra.mxu0 %v2971
  %3170 = vmatpush.msra.mxu0 %v2969
  %3171 = vmatpush.msra.mxu0 %v2967
  %3172 = vmatmul.f32.gmra.mxu0 %v3114
  %v3173 = vpop.f32.mrf.mxu0
  %v3174 = vadd.f32 0.0, %v3173
  %3175 = vdwg.mxu0
  %3176 = vmatpush.msra.mxu0 %v3029
  %3177 = vmatpush.msra.mxu0 %v3027
  %3178 = vmatpush.msra.mxu0 %v3025
  %3179 = vmatpush.msra.mxu0 %v3023
  %3180 = vmatpush.msra.mxu0 %v3021
  %3181 = vmatpush.msra.mxu0 %v3019
  %3182 = vmatpush.msra.mxu0 %v3017
  %3183 = vmatpush.msra.mxu0 %v3015
  %3184 = vmatpush.msra.mxu0 %v3013
  %3185 = vmatpush.msra.mxu0 %v3011
  %3186 = vmatpush.msra.mxu0 %v3009
  %3187 = vmatpush.msra.mxu0 %v3007
  %3188 = vmatpush.msra.mxu0 %v3005
  %3189 = vmatpush.msra.mxu0 %v3003
  %3190 = vmatpush.msra.mxu0 %v3001
  %3191 = vmatpush.msra.mxu0 %v2999
  %3192 = vmatmul.f32.gmra.mxu0 %v3115
  %v3193 = vpop.f32.mrf.mxu0
  %v3194 = vadd.f32 %v3174, %v3193
  %3195 = vdwg.mxu0
  %v3196 = vmul.f32 %v3154, 0.0625
  %v3197 = vmul.f32 %v3194, 0.0625
  %v3198 = vadd.f32 %v3196, 1e-05
  %v3199 = vadd.f32 %v3197, 1e-05
  %v3200 = vrsqrt.pop %v3198
  %v3201 = vmul.f32 %v3200, %v3198
  %v3202 = vmul.f32 %v3201, %v3200
  %v3203 = vmul.f32 0.5, %v3202
  %v3204 = vsub.f32 1.5, %v3203
  %v3205 = vmul.f32 %v3200, %v3204
  %vm3206 = vweird.f32 %v3198
  %vm3207 = vweird.f32 %v3200
  %vm3208 = vmor %vm3206, %vm3207
  %v3209 = vsel %vm3208, %v3200, %v3205
  %v3210 = vrsqrt.pop %v3199
  %v3211 = vmul.f32 %v3210, %v3199
  %v3212 = vmul.f32 %v3211, %v3210
  %v3213 = vmul.f32 0.5, %v3212
  %v3214 = vsub.f32 1.5, %v3213
  %v3215 = vmul.f32 %v3210, %v3214
  %vm3216 = vweird.f32 %v3199
  %vm3217 = vweird.f32 %v3210
  %vm3218 = vmor %vm3216, %vm3217
  %v3219 = vsel %vm3218, %v3210, %v3215
  %v3220 = vperm.slane %v42, 1
  %v3221 = vperm.slane %v42, 5
  %v3224 = vperm.slane %v3220, 1
  %v3225 = vperm.slane %v3221, 1
  %v3226 = vmul.f32 %v3224, %v3209
  %v3227 = vmul.f32 %v3225, %v3219
  %v3228 = vmul.f32 %v3112, %v3226
  %v3229 = vmul.f32 %v3113, %v3227
  %v3230 = vperm.slane %v42, 2
  %v3231 = vperm.slane %v42, 6
  %v3234 = vperm.slane %v3230, 2
  %v3235 = vperm.slane %v3231, 2
  %v3236 = vadd.f32 %v3228, %v3234
  %v3237 = vadd.f32 %v3229, %v3235
  %v3238 = vmax.f32 %v3236, 0.0
  %v3239 = vmax.f32 %v3237, 0.0
  %v3240 = vpack.c.bf16 %v3238, %v3238
  %v3241 = vpack.c.bf16 %v3239, %v3239
  %v3242 = vld [vmem:[%s5] sm:$0xf]
  %v3243 = vld [vmem:[%s5 + $0x4] sm:$0xf]
  %v3244 = vld [vmem:[%s5 + $0x8] sm:$0xf]
  %v3245 = vld [vmem:[%s5 + $0xc] sm:$0xf]
  %v3246 = vld [vmem:[%s5 + $0x10] sm:$0xf]
  %v3247 = vld [vmem:[%s5 + $0x14] sm:$0xf]
  %v3248 = vld [vmem:[%s5 + $0x18] sm:$0xf]
  %v3249 = vld [vmem:[%s5 + $0x1c] sm:$0xf]
  %v3250 = vld [vmem:[%s5 + $0x20] sm:$0xf]
  %v3251 = vld [vmem:[%s5 + $0x24] sm:$0xf]
  %v3252 = vld [vmem:[%s5 + $0x28] sm:$0xf]
  %v3253 = vld [vmem:[%s5 + $0x2c] sm:$0xf]
  %v3254 = vld [vmem:[%s5 + $0x30] sm:$0xf]
  %v3255 = vld [vmem:[%s5 + $0x34] sm:$0xf]
  %v3256 = vld [vmem:[%s5 + $0x38] sm:$0xf]
  %v3257 = vld [vmem:[%s5 + $0x3c] sm:$0xf]
  %v3258 = vld [vmem:[%s5 + $0x40] sm:$0xf]
  %v3259 = vld [vmem:[%s5 + $0x44] sm:$0xf]
  %v3260 = vld [vmem:[%s5 + $0x48] sm:$0xf]
  %v3261 = vld [vmem:[%s5 + $0x4c] sm:$0xf]
  %v3262 = vld [vmem:[%s5 + $0x50] sm:$0xf]
  %v3263 = vld [vmem:[%s5 + $0x54] sm:$0xf]
  %v3264 = vld [vmem:[%s5 + $0x58] sm:$0xf]
  %v3265 = vld [vmem:[%s5 + $0x5c] sm:$0xf]
  %v3266 = vld [vmem:[%s5 + $0x60] sm:$0xf]
  %v3267 = vld [vmem:[%s5 + $0x64] sm:$0xf]
  %v3268 = vld [vmem:[%s5 + $0x68] sm:$0xf]
  %v3269 = vld [vmem:[%s5 + $0x6c] sm:$0xf]
  %v3270 = vld [vmem:[%s5 + $0x70] sm:$0xf]
  %v3271 = vld [vmem:[%s5 + $0x74] sm:$0xf]
  %v3272 = vld [vmem:[%s5 + $0x78] sm:$0xf]
  %v3273 = vld [vmem:[%s5 + $0x7c] sm:$0xf]
  %v3274 = vld [vmem:[%s6] sm:$0x1]
  %v3276 = vperm.slane %v3274, 0
  %v3310 = vunpack.c.l.b16 %v3242
  %v3311 = vunpack.c.l.b16 %v3243
  %v3312 = vunpack.c.l.b16 %v3244
  %v3313 = vunpack.c.l.b16 %v3245
  %v3314 = vunpack.c.l.b16 %v3246
  %v3315 = vunpack.c.l.b16 %v3247
  %v3316 = vunpack.c.l.b16 %v3248
  %v3317 = vunpack.c.l.b16 %v3249
  %v3318 = vunpack.c.l.b16 %v3250
  %v3319 = vunpack.c.l.b16 %v3251
  %v3320 = vunpack.c.l.b16 %v3252
  %v3321 = vunpack.c.l.b16 %v3253
  %v3322 = vunpack.c.l.b16 %v3254
  %v3323 = vunpack.c.l.b16 %v3255
  %v3324 = vunpack.c.l.b16 %v3256
  %v3325 = vunpack.c.l.b16 %v3257
  %v3326 = vunpack.c.l.b16 %v3258
  %v3327 = vunpack.c.l.b16 %v3259
  %v3328 = vunpack.c.l.b16 %v3260
  %v3329 = vunpack.c.l.b16 %v3261
  %v3330 = vunpack.c.l.b16 %v3262
  %v3331 = vunpack.c.l.b16 %v3263
  %v3332 = vunpack.c.l.b16 %v3264
  %v3333 = vunpack.c.l.b16 %v3265
  %v3334 = vunpack.c.l.b16 %v3266
  %v3335 = vunpack.c.l.b16 %v3267
  %v3336 = vunpack.c.l.b16 %v3268
  %v3337 = vunpack.c.l.b16 %v3269
  %v3338 = vunpack.c.l.b16 %v3270
  %v3339 = vunpack.c.l.b16 %v3271
  %v3340 = vunpack.c.l.b16 %v3272
  %v3341 = vunpack.c.l.b16 %v3273
  %v3342 = vpack.c.b16 %v3311, %v3310
  %v3343 = vpack.c.b16 %v3313, %v3312
  %v3344 = vpack.c.b16 %v3315, %v3314
  %v3345 = vpack.c.b16 %v3317, %v3316
  %v3346 = vpack.c.b16 %v3319, %v3318
  %v3347 = vpack.c.b16 %v3321, %v3320
  %v3348 = vpack.c.b16 %v3323, %v3322
  %v3349 = vpack.c.b16 %v3325, %v3324
  %v3350 = vpack.c.b16 %v3327, %v3326
  %v3351 = vpack.c.b16 %v3329, %v3328
  %v3352 = vpack.c.b16 %v3331, %v3330
  %v3353 = vpack.c.b16 %v3333, %v3332
  %v3354 = vpack.c.b16 %v3335, %v3334
  %v3355 = vpack.c.b16 %v3337, %v3336
  %v3356 = vpack.c.b16 %v3339, %v3338
  %v3357 = vpack.c.b16 %v3341, %v3340
  %3374 = vmatpush.bf16.msra.mxu0 %v3349
  %3375 = vmatpush.bf16.msra.mxu0 %v3348
  %3376 = vmatpush.bf16.msra.mxu0 %v3347
  %3377 = vmatpush.bf16.msra.mxu0 %v3346
  %3378 = vmatpush.bf16.msra.mxu0 %v3345
  %3379 = vmatpush.bf16.msra.mxu0 %v3344
  %3380 = vmatpush.bf16.msra.mxu0 %v3343
  %3381 = vmatpush.bf16.msra.mxu0 %v3342
  %3382 = vmatmul.bf16.gmra.mxu0 %v3240
  %v3383 = vpop.f32.mrf.mxu0
  %v3384 = vadd.f32 %v3276, %v3383
  %v3385 = vpop.f32.mrf.mxu0
  %3386 = vdwg.mxu0
  %3387 = vmatpush.bf16.msra.mxu0 %v3357
  %3388 = vmatpush.bf16.msra.mxu0 %v3356
  %3389 = vmatpush.bf16.msra.mxu0 %v3355
  %3390 = vmatpush.bf16.msra.mxu0 %v3354
  %3391 = vmatpush.bf16.msra.mxu0 %v3353
  %3392 = vmatpush.bf16.msra.mxu0 %v3352
  %3393 = vmatpush.bf16.msra.mxu0 %v3351
  %3394 = vmatpush.bf16.msra.mxu0 %v3350
  %3395 = vmatmul.bf16.gmra.mxu0 %v3241
  %v3396 = vpop.f32.mrf.mxu0
  %v3397 = vadd.f32 %v3384, %v3396
  %v3398 = vpop.f32.mrf.mxu0
  %3399 = vdwg.mxu0
  %v3400 = vmax.f32 %v3397, 0.0
  %v3401 = vand.u32 2147483647, %v3397
  %v3402 = vsub.f32 0.0, %v3401
  %v3403 = vmul.f32 %v3402, 1.442695
  %v3404 = vpow.pop %v3403
  %v3405 = vadd.f32 %v3404, 1.0
  %v3406 = vlog2.pop %v3405
  %v3407 = vmul.f32 %v3406, 0.6931472
  %v3408 = vadd.f32 %v3400, %v3407
  %3409 = vst [vmem:[%s9] sm:$0x3] %v3408
  // Predicated region
  $region38: #{parameter_prediction_net.3} parent=0 // pred_check
    _
  $region39: #{parameter_prediction_net.3} parent=0 // pred_check_branch
    %3411 = sbr.rel (0) target = $region41
  $region40: #{parameter_prediction_net.3} parent=0 // pred_region
    _
  $region41: #{parameter_prediction_net.3} parent=0 // pred_fallthru
    _
  // Predicated region
  $region42: #{parameter_prediction_net.3} parent=0 // pred_check
    _
  $region43: #{parameter_prediction_net.3} parent=0 // pred_check_branch
    %3413 = sbr.rel (0) target = $region45
  $region44: #{parameter_prediction_net.3} parent=0 // pred_region
    _
  $region45: #{parameter_prediction_net.3} parent=0 // pred_fallthru
    _

// kernel: parameter_prediction_net.2
$region0: #{parameter_prediction_net.2}
  #allocation0 [shape = 'u32[]', space=smem, size = 0x4, offset = 0x4, fixed_abs, tag = 'smem constant byte address 0x4 - core index']
  #allocation1 [shape = 'u32[72,128]{1,0:T(1,128)}', space=vmem, size = 0x9000, scoped, tag = 'internal scratch']
  #allocation2 [shape = 'f32[64,64]{1,0:T(8,128)}', space=vmem, size = 0x8000, scoped, tag = 'scratch operand']
  %s0 = inlined_call_operand.vmem [shape: f32[32,3], index: 0, kind: input, shape index: {}]
  %s1 = inlined_call_operand.vmem [shape: f32[32,3], index: 1, kind: input, shape index: {}]
  %s2 = inlined_call_operand.vmem [shape: f32[2,64], index: 2, kind: input, shape index: {}]
  %s3 = inlined_call_operand.vmem [shape: f32[64,2], index: 3, kind: input, shape index: {}]
  %s4 = inlined_call_operand.hbm [shape: f32[3,64], index: 4, kind: input, shape index: {}]
  %s5 = inlined_call_operand.vmem [shape: f32[4,64], index: 5, kind: input, shape index: {}]
  %s6 = inlined_call_operand.vmem [shape: bf16[64,64], index: 6, kind: input, shape index: {}]
  %s7 = inlined_call_operand.vmem [shape: f32[3,64], index: 7, kind: input, shape index: {}]
  %s8 = inlined_call_operand.vmem [shape: bf16[64,64], index: 8, kind: input, shape index: {}]
  %s9 = inlined_call_operand.vmem [shape: f32[3,64], index: 9, kind: input, shape index: {}]
  %s10 = inlined_call_operand.vmem [shape: bf16[64,128], index: 10, kind: input, shape index: {}]
  %s11 = inlined_call_operand.vmem [shape: f32[3,128], index: 11, kind: input, shape index: {}]
  %s12 = inlined_call_operand.vmem [shape: bf16[128,1024], index: 12, kind: input, shape index: {}]
  %s13 = inlined_call_operand.vmem [shape: f32[3,1024], index: 13, kind: input, shape index: {}]
  %s14 = inlined_call_operand.vmem [shape: f32[64,64], index: 14, kind: input, shape index: {}]
  %s15 = inlined_call_operand.vmem [shape: f32[128,128], index: 15, kind: input, shape index: {}]
  %s16 = inlined_call_operand.vmem [shape: f32[16,1024], index: 16, kind: input, shape index: {}]
  %s17 = inlined_call_operand.vmem [shape: f32[1,2,1024], index: 17, kind: output, shape index: {}]
  %s18 = sld [smem:[#allocation0]]
  $region82: #{parameter_prediction_net.2} parent=0
    _
  %s20 = ssub.s32 1, %s18
  %s21 = scalar_select 0, %s20, %s18
  $region1: #{parameter_prediction_net.2} parent=0
    #allocation3 [shape = 'u8[2048]{0}', space=vmem, size = 0x800, scoped, tag = 'input window, operand 4, single buffered']
    #allocation4 [shape = 's32[1]{0}', space=sflag, size = 0x4, scoped, tag = 'scoped memory for parameter_prediction_net.2']
    %22 = vsyncpa [#allocation4], 0
    // Predicated region
    $region2: #{parameter_prediction_net.2} parent=1 // pred_check
      _
    $region3: #{parameter_prediction_net.2} parent=1 // pred_check_branch
      %24 = sbr.rel (0) target = $region5
    $region4: #{parameter_prediction_net.2} parent=1 // pred_region
      _
    $region5: #{parameter_prediction_net.2} parent=1 // pred_fallthru
      _
    // Predicated region
    $region6: #{parameter_prediction_net.2} parent=1 // pred_check
      _
    $region7: #{parameter_prediction_net.2} parent=1 // pred_check_branch
      %26 = sbr.rel (0) target = $region9
    $region8: #{parameter_prediction_net.2} parent=1 // pred_region
      _
    $region9: #{parameter_prediction_net.2} parent=1 // pred_fallthru
      _
    // Predicated region
    $region10: #{parameter_prediction_net.2} parent=1 // pred_check
      _
    $region11: #{parameter_prediction_net.2} parent=1 // pred_check_branch
      %28 = sbr.rel (0) target = $region13
    $region12: #{parameter_prediction_net.2} parent=1 // pred_region
      _
    $region13: #{parameter_prediction_net.2} parent=1 // pred_fallthru
      _
    // Predicated region
    $region14: #{parameter_prediction_net.2} parent=1 // pred_check
      _
    $region15: #{parameter_prediction_net.2} parent=1 // pred_check_branch
      %30 = sbr.rel (0) target = $region17
    $region16: #{parameter_prediction_net.2} parent=1 // pred_region
      _
    $region17: #{parameter_prediction_net.2} parent=1 // pred_fallthru
      _
    // Predicated region
    $region18: #{parameter_prediction_net.2} parent=1 // pred_check
      _
    $region19: #{parameter_prediction_net.2} parent=1 // pred_check_branch
      %32 = sbr.rel (0) target = $region21
    $region20: #{parameter_prediction_net.2} parent=1 // pred_region
      %34 = vsyncadd [#allocation4], 0
      %s36 = sshll.u32 %s4, 4
      %s37 = int_to_ptr.hbm [resolvable:$true] %s36
      %s38 = sshll.u32 [#allocation3], 4
      %s39 = int_to_ptr.vmem [resolvable:$true] %s38
      %41 = dma.hbm_to_vmem [thread:$0]  %s37, 64, %s39, [#allocation4]
    $region21: #{parameter_prediction_net.2} parent=1 // pred_fallthru
      _
    // Predicated region
    $region22: #{parameter_prediction_net.2} parent=1 // pred_check
      _
    $region23: #{parameter_prediction_net.2} parent=1 // pred_check_branch
      %43 = sbr.rel (0) target = $region25
    $region24: #{parameter_prediction_net.2} parent=1 // pred_region
      _
    $region25: #{parameter_prediction_net.2} parent=1 // pred_fallthru
      _
    // Predicated region
    $region26: #{parameter_prediction_net.2} parent=1 // pred_check
      _
    $region27: #{parameter_prediction_net.2} parent=1 // pred_check_branch
      %45 = sbr.rel (0) target = $region29
    $region28: #{parameter_prediction_net.2} parent=1 // pred_region
      _
    $region29: #{parameter_prediction_net.2} parent=1 // pred_fallthru
      _
    // Predicated region
    $region30: #{parameter_prediction_net.2} parent=1 // pred_check
      _
    $region31: #{parameter_prediction_net.2} parent=1 // pred_check_branch
      %47 = sbr.rel (0) target = $region33
    $region32: #{parameter_prediction_net.2} parent=1 // pred_region
      _
    $region33: #{parameter_prediction_net.2} parent=1 // pred_fallthru
      _
    // Predicated region
    $region34: #{parameter_prediction_net.2} parent=1 // pred_check
      _
    $region35: #{parameter_prediction_net.2} parent=1 // pred_check_branch
      %49 = sbr.rel (0) target = $region37
    $region36: #{parameter_prediction_net.2} parent=1 // pred_region
      _
    $region37: #{parameter_prediction_net.2} parent=1 // pred_fallthru
      _
    // Predicated region
    $region38: #{parameter_prediction_net.2} parent=1 // pred_check
      _
    $region39: #{parameter_prediction_net.2} parent=1 // pred_check_branch
      %51 = sbr.rel (0) target = $region41
    $region40: #{parameter_prediction_net.2} parent=1 // pred_region
      _
    $region41: #{parameter_prediction_net.2} parent=1 // pred_fallthru
      _
    // Predicated region
    $region42: #{parameter_prediction_net.2} parent=1 // pred_check
      _
    $region43: #{parameter_prediction_net.2} parent=1 // pred_check_branch
      %53 = sbr.rel (0) target = $region45
    $region44: #{parameter_prediction_net.2} parent=1 // pred_region
      _
    $region45: #{parameter_prediction_net.2} parent=1 // pred_fallthru
      _
    // Predicated region
    $region46: #{parameter_prediction_net.2} parent=1 // pred_check
      _
    $region47: #{parameter_prediction_net.2} parent=1 // pred_check_branch
      %55 = sbr.rel (0) target = $region49
    $region48: #{parameter_prediction_net.2} parent=1 // pred_region
      _
    $region49: #{parameter_prediction_net.2} parent=1 // pred_fallthru
      _
    // Predicated region
    $region50: #{parameter_prediction_net.2} parent=1 // pred_check
      _
    $region51: #{parameter_prediction_net.2} parent=1 // pred_check_branch
      %57 = sbr.rel (0) target = $region53
    $region52: #{parameter_prediction_net.2} parent=1 // pred_region
      _
    $region53: #{parameter_prediction_net.2} parent=1 // pred_fallthru
      _
    // Predicated region
    $region54: #{parameter_prediction_net.2} parent=1 // pred_check
      _
    $region55: #{parameter_prediction_net.2} parent=1 // pred_check_branch
      %59 = sbr.rel (0) target = $region57
    $region56: #{parameter_prediction_net.2} parent=1 // pred_region
      _
    $region57: #{parameter_prediction_net.2} parent=1 // pred_fallthru
      _
    // Predicated region
    $region58: #{parameter_prediction_net.2} parent=1 // pred_check
      _
    $region59: #{parameter_prediction_net.2} parent=1 // pred_check_branch
      %61 = sbr.rel (0) target = $region61
    $region60: #{parameter_prediction_net.2} parent=1 // pred_region
      _
    $region61: #{parameter_prediction_net.2} parent=1 // pred_fallthru
      _
    // Predicated region
    $region62: #{parameter_prediction_net.2} parent=1 // pred_check
      _
    $region63: #{parameter_prediction_net.2} parent=1 // pred_check_branch
      %63 = sbr.rel (0) target = $region65
    $region64: #{parameter_prediction_net.2} parent=1 // pred_region
      _
    $region65: #{parameter_prediction_net.2} parent=1 // pred_fallthru
      _
    // Predicated region
    $region66: #{parameter_prediction_net.2} parent=1 // pred_check
      _
    $region67: #{parameter_prediction_net.2} parent=1 // pred_check_branch
      %65 = sbr.rel (0) target = $region69
    $region68: #{parameter_prediction_net.2} parent=1 // pred_region
      _
    $region69: #{parameter_prediction_net.2} parent=1 // pred_fallthru
      _
    // Predicated region
    $region70: #{parameter_prediction_net.2} parent=1 // pred_check
      _
    $region71: #{parameter_prediction_net.2} parent=1 // pred_check_branch
      %67 = sbr.rel (0) target = $region73
    $region72: #{parameter_prediction_net.2} parent=1 // pred_region
      %69 = dma.done [#allocation4], 64
    $region73: #{parameter_prediction_net.2} parent=1 // pred_fallthru
      _
    %v71 = vld [vmem:[%s2] sm:$0x3]
    %v72 = vld [vmem:[%s3] sm:$0xff]
    %v73 = vld [vmem:[%s3 + $0x8] sm:$0xff]
    %v74 = vld [vmem:[%s3 + $0x10] sm:$0xff]
    %v75 = vld [vmem:[%s3 + $0x18] sm:$0xff]
    %v76 = vld [vmem:[%s3 + $0x20] sm:$0xff]
    %v77 = vld [vmem:[%s3 + $0x28] sm:$0xff]
    %v78 = vld [vmem:[%s3 + $0x30] sm:$0xff]
    %v79 = vld [vmem:[%s3 + $0x38] sm:$0xff]
    %v80 = vld [vmem:[%s14] sm:$0xff]
    %v81 = vld [vmem:[%s14 + $0x8] sm:$0xff]
    %v82 = vld [vmem:[%s14 + $0x10] sm:$0xff]
    %v83 = vld [vmem:[%s14 + $0x18] sm:$0xff]
    %v84 = vld [vmem:[%s14 + $0x20] sm:$0xff]
    %v85 = vld [vmem:[%s14 + $0x28] sm:$0xff]
    %v86 = vld [vmem:[%s14 + $0x30] sm:$0xff]
    %v87 = vld [vmem:[%s14 + $0x38] sm:$0xff]
    %v88 = vld [vmem:[%s16] sm:$0xff]
    %v89 = vld [vmem:[%s16 + $0x8] sm:$0xff]
    %v90 = vld [vmem:[%s16 + $0x10] sm:$0xff]
    %v91 = vld [vmem:[%s16 + $0x18] sm:$0xff]
    %v92 = vld [vmem:[%s16 + $0x20] sm:$0xff]
    %v93 = vld [vmem:[%s16 + $0x28] sm:$0xff]
    %v94 = vld [vmem:[%s16 + $0x30] sm:$0xff]
    %v95 = vld [vmem:[%s16 + $0x38] sm:$0xff]
    %v96 = vld [vmem:[%s16 + $0x40] sm:$0xff]
    %v97 = vld [vmem:[%s16 + $0x48] sm:$0xff]
    %v98 = vld [vmem:[%s16 + $0x50] sm:$0xff]
    %v99 = vld [vmem:[%s16 + $0x58] sm:$0xff]
    %v100 = vld [vmem:[%s16 + $0x60] sm:$0xff]
    %v101 = vld [vmem:[%s16 + $0x68] sm:$0xff]
    %v102 = vld [vmem:[%s16 + $0x70] sm:$0xff]
    %v103 = vld [vmem:[%s16 + $0x78] sm:$0xff]
    %v104 = vld [vmem:[#allocation3] sm:$0x7]
    %v105 = vld [vmem:[%s5] sm:$0xf]
    %v106 = vld [vmem:[%s0] sm:$0xff]
    %v107 = vld [vmem:[%s0 + $0x8] sm:$0xff]
    %v108 = vld [vmem:[%s0 + $0x10] sm:$0xff]
    %v109 = vld [vmem:[%s0 + $0x18] sm:$0xff]
    %v110 = vperm.slane %v105, 0
    %vm111 = vcmask 23552
    %v113 = vsel %vm111, %v106, 0
    %v116 = vsel %vm111, %v107, 0
    %v119 = vsel %vm111, %v108, 0
    %v122 = vsel %vm111, %v109, 0
    %vm124 = vcmask 1042432
    %v126 = vsel %vm124, %v104, 0
    %128 = vmatpush.msra.mxu0 0.0
    %129 = vmatpush.msra.mxu0 0.0
    %130 = vmatpush.msra.mxu0 0.0
    %131 = vmatpush.msra.mxu0 0.0
    %132 = vmatpush.msra.mxu0 0.0
    %133 = vmatpush.msra.mxu0 0.0
    %134 = vmatpush.msra.mxu0 0.0
    %135 = vmatpush.msra.mxu0 0.0
    %136 = vmatpush.msra.mxu0 0.0
    %137 = vmatpush.msra.mxu0 0.0
    %138 = vmatpush.msra.mxu0 0.0
    %139 = vmatpush.msra.mxu0 0.0
    %140 = vmatpush.msra.mxu0 0.0
    %141 = vmatpush.msra.mxu0 0.0
    %142 = vmatpush.msra.mxu0 0.0
    %143 = vmatpush.msra.mxu0 %v126
    %144 = vmatmul.f32.gmra.mxu0 %v113
    %v145 = vpop.f32.mrf.mxu0
    %v146 = vadd.f32 %v110, %v145
    %147 = vmatmul.f32.gmra.mxu0 %v116
    %v148 = vpop.f32.mrf.mxu0
    %v149 = vadd.f32 %v110, %v148
    %150 = vmatmul.f32.gmra.mxu0 %v119
    %v151 = vpop.f32.mrf.mxu0
    %v152 = vadd.f32 %v110, %v151
    %153 = vmatmul.f32.gmra.mxu0 %v122
    %v154 = vpop.f32.mrf.mxu0
    %v155 = vadd.f32 %v110, %v154
    %156 = vdwg.mxu0
    %vm157 = vcmask 523264
    %158 = vst.msk [vmem:[#allocation2] sm:$0xff] %vm157, %v146
    %159 = vst.msk [vmem:[#allocation2 + $0x8] sm:$0xff] %vm157, %v149
    %160 = vst.msk [vmem:[#allocation2 + $0x10] sm:$0xff] %vm157, %v152
    %161 = vst.msk [vmem:[#allocation2 + $0x18] sm:$0xff] %vm157, %v155
    %v162 = vld [vmem:[%s1] sm:$0xff]
    %v163 = vld [vmem:[%s1 + $0x8] sm:$0xff]
    %v164 = vld [vmem:[%s1 + $0x10] sm:$0xff]
    %v165 = vld [vmem:[%s1 + $0x18] sm:$0xff]
    %v166 = vperm.slane %v105, 1
    %v168 = vsel %vm111, %v162, 0
    %v171 = vsel %vm111, %v163, 0
    %v174 = vsel %vm111, %v164, 0
    %v177 = vsel %vm111, %v165, 0
    %179 = vmatpush.msra.mxu0 0.0
    %180 = vmatpush.msra.mxu0 0.0
    %181 = vmatpush.msra.mxu0 0.0
    %182 = vmatpush.msra.mxu0 0.0
    %183 = vmatpush.msra.mxu0 0.0
    %184 = vmatpush.msra.mxu0 0.0
    %185 = vmatpush.msra.mxu0 0.0
    %186 = vmatpush.msra.mxu0 0.0
    %187 = vmatpush.msra.mxu0 0.0
    %188 = vmatpush.msra.mxu0 0.0
    %189 = vmatpush.msra.mxu0 0.0
    %190 = vmatpush.msra.mxu0 0.0
    %191 = vmatpush.msra.mxu0 0.0
    %192 = vmatpush.msra.mxu0 0.0
    %193 = vmatpush.msra.mxu0 0.0
    %194 = vmatpush.msra.mxu0 %v126
    %195 = vmatmul.f32.gmra.mxu0 %v168
    %v196 = vpop.f32.mrf.mxu0
    %v197 = vadd.f32 %v166, %v196
    %198 = vmatmul.f32.gmra.mxu0 %v171
    %v199 = vpop.f32.mrf.mxu0
    %v200 = vadd.f32 %v166, %v199
    %201 = vmatmul.f32.gmra.mxu0 %v174
    %v202 = vpop.f32.mrf.mxu0
    %v203 = vadd.f32 %v166, %v202
    %204 = vmatmul.f32.gmra.mxu0 %v177
    %v205 = vpop.f32.mrf.mxu0
    %v206 = vadd.f32 %v166, %v205
    %207 = vdwg.mxu0
    %208 = vst.msk [vmem:[#allocation2 + $0x20] sm:$0xff] %vm157, %v197
    %209 = vst.msk [vmem:[#allocation2 + $0x28] sm:$0xff] %vm157, %v200
    %210 = vst.msk [vmem:[#allocation2 + $0x30] sm:$0xff] %vm157, %v203
    %211 = vst.msk [vmem:[#allocation2 + $0x38] sm:$0xff] %vm157, %v206
    %v212 = vld [vmem:[#allocation2] sm:$0xff]
    %v213 = vld [vmem:[#allocation2 + $0x8] sm:$0xff]
    %v214 = vld [vmem:[#allocation2 + $0x10] sm:$0xff]
    %v215 = vld [vmem:[#allocation2 + $0x18] sm:$0xff]
    %v216 = vld [vmem:[#allocation2 + $0x20] sm:$0xff]
    %v217 = vld [vmem:[#allocation2 + $0x28] sm:$0xff]
    %v218 = vld [vmem:[#allocation2 + $0x30] sm:$0xff]
    %v219 = vld [vmem:[#allocation2 + $0x38] sm:$0xff]
    %v221 = vsel %vm157, %v71, 0
    %223 = vmatpush.msra.mxu0 0.0
    %224 = vmatpush.msra.mxu0 0.0
    %225 = vmatpush.msra.mxu0 0.0
    %226 = vmatpush.msra.mxu0 0.0
    %227 = vmatpush.msra.mxu0 0.0
    %228 = vmatpush.msra.mxu0 0.0
    %229 = vmatpush.msra.mxu0 0.0
    %230 = vmatpush.msra.mxu0 0.0
    %231 = vmatpush.msra.mxu0 %v219
    %232 = vmatpush.msra.mxu0 %v218
    %233 = vmatpush.msra.mxu0 %v217
    %234 = vmatpush.msra.mxu0 %v216
    %235 = vmatpush.msra.mxu0 %v215
    %236 = vmatpush.msra.mxu0 %v214
    %237 = vmatpush.msra.mxu0 %v213
    %238 = vmatpush.msra.mxu0 %v212
    %239 = vmatmul.f32.gmra.mxu0 %v221
    %v240 = vpop.f32.mrf.mxu0
    %v241 = vadd.f32 0.0, %v240
    %242 = vdwg.mxu0
    %v244 = vsel %vm157, %v241, 0
    %246 = vmatpush.msra.mxu0 0.0
    %247 = vmatpush.msra.mxu0 0.0
    %248 = vmatpush.msra.mxu0 0.0
    %249 = vmatpush.msra.mxu0 0.0
    %250 = vmatpush.msra.mxu0 0.0
    %251 = vmatpush.msra.mxu0 0.0
    %252 = vmatpush.msra.mxu0 0.0
    %253 = vmatpush.msra.mxu0 0.0
    %254 = vmatpush.msra.mxu0 %v87
    %255 = vmatpush.msra.mxu0 %v86
    %256 = vmatpush.msra.mxu0 %v85
    %257 = vmatpush.msra.mxu0 %v84
    %258 = vmatpush.msra.mxu0 %v83
    %259 = vmatpush.msra.mxu0 %v82
    %260 = vmatpush.msra.mxu0 %v81
    %261 = vmatpush.msra.mxu0 %v80
    %262 = vmatmul.f32.gmra.mxu0 %v244
    %v263 = vpop.f32.mrf.mxu0
    %v264 = vadd.f32 0.0, %v263
    %265 = vdwg.mxu0
    %v266 = vmul.f32 %v264, 0.00390625
    %vm267 = vcmask 15360
    %v269 = vsel %vm267, %v72, 0
    %v272 = vsel %vm267, %v73, 0
    %v275 = vsel %vm267, %v74, 0
    %v278 = vsel %vm267, %v75, 0
    %v281 = vsel %vm267, %v76, 0
    %v284 = vsel %vm267, %v77, 0
    %v287 = vsel %vm267, %v78, 0
    %v290 = vsel %vm267, %v79, 0
    %vm292 = vcmask 1041408
    %v294 = vsel %vm292, %v266, 0
    %296 = vmatpush.msra.mxu0 0.0
    %297 = vmatpush.msra.mxu0 0.0
    %298 = vmatpush.msra.mxu0 0.0
    %299 = vmatpush.msra.mxu0 0.0
    %300 = vmatpush.msra.mxu0 0.0
    %301 = vmatpush.msra.mxu0 0.0
    %302 = vmatpush.msra.mxu0 0.0
    %303 = vmatpush.msra.mxu0 0.0
    %304 = vmatpush.msra.mxu0 0.0
    %305 = vmatpush.msra.mxu0 0.0
    %306 = vmatpush.msra.mxu0 0.0
    %307 = vmatpush.msra.mxu0 0.0
    %308 = vmatpush.msra.mxu0 0.0
    %309 = vmatpush.msra.mxu0 0.0
    %310 = vmatpush.msra.mxu0 0.0
    %311 = vmatpush.msra.mxu0 %v294
    %312 = vmatmul.f32.gmra.mxu0 %v269
    %v313 = vpop.f32.mrf.mxu0
    %v314 = vadd.f32 0.0, %v313
    %315 = vmatmul.f32.gmra.mxu0 %v272
    %v316 = vpop.f32.mrf.mxu0
    %v317 = vadd.f32 0.0, %v316
    %318 = vmatmul.f32.gmra.mxu0 %v275
    %v319 = vpop.f32.mrf.mxu0
    %v320 = vadd.f32 0.0, %v319
    %321 = vmatmul.f32.gmra.mxu0 %v278
    %v322 = vpop.f32.mrf.mxu0
    %v323 = vadd.f32 0.0, %v322
    %324 = vmatmul.f32.gmra.mxu0 %v281
    %v325 = vpop.f32.mrf.mxu0
    %v326 = vadd.f32 0.0, %v325
    %327 = vmatmul.f32.gmra.mxu0 %v284
    %v328 = vpop.f32.mrf.mxu0
    %v329 = vadd.f32 0.0, %v328
    %330 = vmatmul.f32.gmra.mxu0 %v287
    %v331 = vpop.f32.mrf.mxu0
    %v332 = vadd.f32 0.0, %v331
    %333 = vmatmul.f32.gmra.mxu0 %v290
    %v334 = vpop.f32.mrf.mxu0
    %v335 = vadd.f32 0.0, %v334
    %336 = vdwg.mxu0
    %v337 = vsub.f32 %v212, %v314
    %v338 = vsub.f32 %v213, %v317
    %v339 = vsub.f32 %v214, %v320
    %v340 = vsub.f32 %v215, %v323
    %v341 = vsub.f32 %v216, %v326
    %v342 = vsub.f32 %v217, %v329
    %v343 = vsub.f32 %v218, %v332
    %v344 = vsub.f32 %v219, %v335
    %v345 = vmul.f32 %v337, %v337
    %v346 = vmul.f32 %v338, %v338
    %v347 = vmul.f32 %v339, %v339
    %v348 = vmul.f32 %v340, %v340
    %v349 = vmul.f32 %v341, %v341
    %v350 = vmul.f32 %v342, %v342
    %v351 = vmul.f32 %v343, %v343
    %v352 = vmul.f32 %v344, %v344
    %353 = vmatpush.msra.mxu0 0.0
    %354 = vmatpush.msra.mxu0 0.0
    %355 = vmatpush.msra.mxu0 0.0
    %356 = vmatpush.msra.mxu0 0.0
    %357 = vmatpush.msra.mxu0 0.0
    %358 = vmatpush.msra.mxu0 0.0
    %359 = vmatpush.msra.mxu0 0.0
    %360 = vmatpush.msra.mxu0 0.0
    %361 = vmatpush.msra.mxu0 %v352
    %362 = vmatpush.msra.mxu0 %v351
    %363 = vmatpush.msra.mxu0 %v350
    %364 = vmatpush.msra.mxu0 %v349
    %365 = vmatpush.msra.mxu0 %v348
    %366 = vmatpush.msra.mxu0 %v347
    %367 = vmatpush.msra.mxu0 %v346
    %368 = vmatpush.msra.mxu0 %v345
    %369 = vmatmul.f32.gmra.mxu0 %v221
    %v370 = vpop.f32.mrf.mxu0
    %v371 = vadd.f32 0.0, %v370
    %372 = vdwg.mxu0
    %v374 = vsel %vm157, %v371, 0
    %376 = vmatpush.msra.mxu0 0.0
    %377 = vmatpush.msra.mxu0 0.0
    %378 = vmatpush.msra.mxu0 0.0
    %379 = vmatpush.msra.mxu0 0.0
    %380 = vmatpush.msra.mxu0 0.0
    %381 = vmatpush.msra.mxu0 0.0
    %382 = vmatpush.msra.mxu0 0.0
    %383 = vmatpush.msra.mxu0 0.0
    %384 = vmatpush.msra.mxu0 %v87
    %385 = vmatpush.msra.mxu0 %v86
    %386 = vmatpush.msra.mxu0 %v85
    %387 = vmatpush.msra.mxu0 %v84
    %388 = vmatpush.msra.mxu0 %v83
    %389 = vmatpush.msra.mxu0 %v82
    %390 = vmatpush.msra.mxu0 %v81
    %391 = vmatpush.msra.mxu0 %v80
    %392 = vmatmul.f32.gmra.mxu0 %v374
    %v393 = vpop.f32.mrf.mxu0
    %v394 = vadd.f32 0.0, %v393
    %395 = vdwg.mxu0
    %v396 = vmul.f32 %v394, 0.00390625
    %v397 = vadd.f32 %v396, 1e-05
    %v398 = vrsqrt.pop %v397
    %v399 = vmul.f32 %v398, %v397
    %v400 = vmul.f32 %v399, %v398
    %v401 = vmul.f32 0.5, %v400
    %v402 = vsub.f32 1.5, %v401
    %v403 = vmul.f32 %v398, %v402
    %vm404 = vweird.f32 %v397
    %vm405 = vweird.f32 %v398
    %vm406 = vmor %vm404, %vm405
    %v407 = vsel %vm406, %v398, %v403
    %v408 = vperm.slane %v105, 2
    %v409 = vmul.f32 %v408, %v407
    %v411 = vsel %vm292, %v409, 0
    %413 = vmatpush.msra.mxu0 0.0
    %414 = vmatpush.msra.mxu0 0.0
    %415 = vmatpush.msra.mxu0 0.0
    %416 = vmatpush.msra.mxu0 0.0
    %417 = vmatpush.msra.mxu0 0.0
    %418 = vmatpush.msra.mxu0 0.0
    %419 = vmatpush.msra.mxu0 0.0
    %420 = vmatpush.msra.mxu0 0.0
    %421 = vmatpush.msra.mxu0 0.0
    %422 = vmatpush.msra.mxu0 0.0
    %423 = vmatpush.msra.mxu0 0.0
    %424 = vmatpush.msra.mxu0 0.0
    %425 = vmatpush.msra.mxu0 0.0
    %426 = vmatpush.msra.mxu0 0.0
    %427 = vmatpush.msra.mxu0 0.0
    %428 = vmatpush.msra.mxu0 %v411
    %429 = vmatmul.f32.gmra.mxu0 %v269
    %v430 = vpop.f32.mrf.mxu0
    %v431 = vadd.f32 0.0, %v430
    %432 = vmatmul.f32.gmra.mxu0 %v272
    %v433 = vpop.f32.mrf.mxu0
    %v434 = vadd.f32 0.0, %v433
    %435 = vmatmul.f32.gmra.mxu0 %v275
    %v436 = vpop.f32.mrf.mxu0
    %v437 = vadd.f32 0.0, %v436
    %438 = vmatmul.f32.gmra.mxu0 %v278
    %v439 = vpop.f32.mrf.mxu0
    %v440 = vadd.f32 0.0, %v439
    %441 = vmatmul.f32.gmra.mxu0 %v281
    %v442 = vpop.f32.mrf.mxu0
    %v443 = vadd.f32 0.0, %v442
    %444 = vmatmul.f32.gmra.mxu0 %v284
    %v445 = vpop.f32.mrf.mxu0
    %v446 = vadd.f32 0.0, %v445
    %447 = vmatmul.f32.gmra.mxu0 %v287
    %v448 = vpop.f32.mrf.mxu0
    %v449 = vadd.f32 0.0, %v448
    %450 = vmatmul.f32.gmra.mxu0 %v290
    %v451 = vpop.f32.mrf.mxu0
    %v452 = vadd.f32 0.0, %v451
    %453 = vdwg.mxu0
    %v454 = vmul.f32 %v337, %v431
    %v455 = vmul.f32 %v338, %v434
    %v456 = vmul.f32 %v339, %v437
    %v457 = vmul.f32 %v340, %v440
    %v458 = vmul.f32 %v341, %v443
    %v459 = vmul.f32 %v342, %v446
    %v460 = vmul.f32 %v343, %v449
    %v461 = vmul.f32 %v344, %v452
    %v462 = vperm.slane %v105, 3
    %v463 = vadd.f32 %v454, %v462
    %v464 = vadd.f32 %v455, %v462
    %v465 = vadd.f32 %v456, %v462
    %v466 = vadd.f32 %v457, %v462
    %v467 = vadd.f32 %v458, %v462
    %v468 = vadd.f32 %v459, %v462
    %v469 = vadd.f32 %v460, %v462
    %v470 = vadd.f32 %v461, %v462
    %v471 = vmax.f32 %v463, 0.0
    %v472 = vmax.f32 %v464, 0.0
    %v473 = vmax.f32 %v465, 0.0
    %v474 = vmax.f32 %v466, 0.0
    %v475 = vmax.f32 %v467, 0.0
    %v476 = vmax.f32 %v468, 0.0
    %v477 = vmax.f32 %v469, 0.0
    %v478 = vmax.f32 %v470, 0.0
    %v479 = vpack.c.bf16 %v472, %v471
    %v480 = vpack.c.bf16 %v474, %v473
    %v481 = vpack.c.bf16 %v476, %v475
    %v482 = vpack.c.bf16 %v478, %v477
    %v483 = vld [vmem:[%s7] sm:$0x7]
    %v484 = vld [vmem:[%s6] sm:$0xf]
    %v485 = vld [vmem:[%s6 + $0x4] sm:$0xf]
    %v486 = vld [vmem:[%s6 + $0x8] sm:$0xf]
    %v487 = vld [vmem:[%s6 + $0xc] sm:$0xf]
    %v488 = vld [vmem:[%s6 + $0x10] sm:$0xf]
    %v489 = vld [vmem:[%s6 + $0x14] sm:$0xf]
    %v490 = vld [vmem:[%s6 + $0x18] sm:$0xf]
    %v491 = vld [vmem:[%s6 + $0x1c] sm:$0xf]
    %v492 = vperm.slane %v483, 0
    %v501 = vunpack.c.l.b16 %v484
    %v502 = vunpack.c.l.b16 %v485
    %v503 = vunpack.c.l.b16 %v486
    %v504 = vunpack.c.l.b16 %v487
    %v505 = vunpack.c.l.b16 %v488
    %v506 = vunpack.c.l.b16 %v489
    %v507 = vunpack.c.l.b16 %v490
    %v508 = vunpack.c.l.b16 %v491
    %v509 = vpack.c.b16 %v502, %v501
    %v510 = vpack.c.b16 %v504, %v503
    %v511 = vpack.c.b16 %v506, %v505
    %v512 = vpack.c.b16 %v508, %v507
    %v518 = vsel %vm157, %v479, 0
    %v521 = vsel %vm157, %v480, 0
    %v524 = vsel %vm157, %v481, 0
    %v527 = vsel %vm157, %v482, 0
    %529 = vmatpush.bf16.msra.mxu0 0
    %530 = vmatpush.bf16.msra.mxu0 0
    %531 = vmatpush.bf16.msra.mxu0 0
    %532 = vmatpush.bf16.msra.mxu0 0
    %533 = vmatpush.bf16.msra.mxu0 %v512
    %534 = vmatpush.bf16.msra.mxu0 %v511
    %535 = vmatpush.bf16.msra.mxu0 %v510
    %536 = vmatpush.bf16.msra.mxu0 %v509
    %537 = vmatmul.bf16.gmra.mxu0 %v518
    %v538 = vpop.f32.mrf.mxu0
    %v539 = vadd.f32 %v492, %v538
    %v540 = vpop.f32.mrf.mxu0
    %v541 = vadd.f32 %v492, %v540
    %542 = vmatmul.bf16.gmra.mxu0 %v521
    %v543 = vpop.f32.mrf.mxu0
    %v544 = vadd.f32 %v492, %v543
    %v545 = vpop.f32.mrf.mxu0
    %v546 = vadd.f32 %v492, %v545
    %547 = vmatmul.bf16.gmra.mxu0 %v524
    %v548 = vpop.f32.mrf.mxu0
    %v549 = vadd.f32 %v492, %v548
    %v550 = vpop.f32.mrf.mxu0
    %v551 = vadd.f32 %v492, %v550
    %552 = vmatmul.bf16.gmra.mxu0 %v527
    %v553 = vpop.f32.mrf.mxu0
    %v554 = vadd.f32 %v492, %v553
    %v555 = vpop.f32.mrf.mxu0
    %v556 = vadd.f32 %v492, %v555
    %557 = vdwg.mxu0
    %558 = vmatpush.msra.mxu0 0.0
    %559 = vmatpush.msra.mxu0 0.0
    %560 = vmatpush.msra.mxu0 0.0
    %561 = vmatpush.msra.mxu0 0.0
    %562 = vmatpush.msra.mxu0 0.0
    %563 = vmatpush.msra.mxu0 0.0
    %564 = vmatpush.msra.mxu0 0.0
    %565 = vmatpush.msra.mxu0 0.0
    %566 = vmatpush.msra.mxu0 %v556
    %567 = vmatpush.msra.mxu0 %v554
    %568 = vmatpush.msra.mxu0 %v551
    %569 = vmatpush.msra.mxu0 %v549
    %570 = vmatpush.msra.mxu0 %v546
    %571 = vmatpush.msra.mxu0 %v544
    %572 = vmatpush.msra.mxu0 %v541
    %573 = vmatpush.msra.mxu0 %v539
    %574 = vmatmul.f32.gmra.mxu0 %v221
    %v575 = vpop.f32.mrf.mxu0
    %v576 = vadd.f32 0.0, %v575
    %577 = vdwg.mxu0
    %v579 = vsel %vm157, %v576, 0
    %581 = vmatpush.msra.mxu0 0.0
    %582 = vmatpush.msra.mxu0 0.0
    %583 = vmatpush.msra.mxu0 0.0
    %584 = vmatpush.msra.mxu0 0.0
    %585 = vmatpush.msra.mxu0 0.0
    %586 = vmatpush.msra.mxu0 0.0
    %587 = vmatpush.msra.mxu0 0.0
    %588 = vmatpush.msra.mxu0 0.0
    %589 = vmatpush.msra.mxu0 %v87
    %590 = vmatpush.msra.mxu0 %v86
    %591 = vmatpush.msra.mxu0 %v85
    %592 = vmatpush.msra.mxu0 %v84
    %593 = vmatpush.msra.mxu0 %v83
    %594 = vmatpush.msra.mxu0 %v82
    %595 = vmatpush.msra.mxu0 %v81
    %596 = vmatpush.msra.mxu0 %v80
    %597 = vmatmul.f32.gmra.mxu0 %v579
    %v598 = vpop.f32.mrf.mxu0
    %v599 = vadd.f32 0.0, %v598
    %600 = vdwg.mxu0
    %v601 = vmul.f32 %v599, 0.00390625
    %v603 = vsel %vm292, %v601, 0
    %605 = vmatpush.msra.mxu0 0.0
    %606 = vmatpush.msra.mxu0 0.0
    %607 = vmatpush.msra.mxu0 0.0
    %608 = vmatpush.msra.mxu0 0.0
    %609 = vmatpush.msra.mxu0 0.0
    %610 = vmatpush.msra.mxu0 0.0
    %611 = vmatpush.msra.mxu0 0.0
    %612 = vmatpush.msra.mxu0 0.0
    %613 = vmatpush.msra.mxu0 0.0
    %614 = vmatpush.msra.mxu0 0.0
    %615 = vmatpush.msra.mxu0 0.0
    %616 = vmatpush.msra.mxu0 0.0
    %617 = vmatpush.msra.mxu0 0.0
    %618 = vmatpush.msra.mxu0 0.0
    %619 = vmatpush.msra.mxu0 0.0
    %620 = vmatpush.msra.mxu0 %v603
    %621 = vmatmul.f32.gmra.mxu0 %v269
    %v622 = vpop.f32.mrf.mxu0
    %v623 = vadd.f32 0.0, %v622
    %624 = vmatmul.f32.gmra.mxu0 %v272
    %v625 = vpop.f32.mrf.mxu0
    %v626 = vadd.f32 0.0, %v625
    %627 = vmatmul.f32.gmra.mxu0 %v275
    %v628 = vpop.f32.mrf.mxu0
    %v629 = vadd.f32 0.0, %v628
    %630 = vmatmul.f32.gmra.mxu0 %v278
    %v631 = vpop.f32.mrf.mxu0
    %v632 = vadd.f32 0.0, %v631
    %633 = vmatmul.f32.gmra.mxu0 %v281
    %v634 = vpop.f32.mrf.mxu0
    %v635 = vadd.f32 0.0, %v634
    %636 = vmatmul.f32.gmra.mxu0 %v284
    %v637 = vpop.f32.mrf.mxu0
    %v638 = vadd.f32 0.0, %v637
    %639 = vmatmul.f32.gmra.mxu0 %v287
    %v640 = vpop.f32.mrf.mxu0
    %v641 = vadd.f32 0.0, %v640
    %642 = vmatmul.f32.gmra.mxu0 %v290
    %v643 = vpop.f32.mrf.mxu0
    %v644 = vadd.f32 0.0, %v643
    %645 = vdwg.mxu0
    %v646 = vsub.f32 %v539, %v623
    %v647 = vsub.f32 %v541, %v626
    %v648 = vsub.f32 %v544, %v629
    %v649 = vsub.f32 %v546, %v632
    %v650 = vsub.f32 %v549, %v635
    %v651 = vsub.f32 %v551, %v638
    %v652 = vsub.f32 %v554, %v641
    %v653 = vsub.f32 %v556, %v644
    %v654 = vmul.f32 %v646, %v646
    %v655 = vmul.f32 %v647, %v647
    %v656 = vmul.f32 %v648, %v648
    %v657 = vmul.f32 %v649, %v649
    %v658 = vmul.f32 %v650, %v650
    %v659 = vmul.f32 %v651, %v651
    %v660 = vmul.f32 %v652, %v652
    %v661 = vmul.f32 %v653, %v653
    %662 = vmatpush.msra.mxu0 0.0
    %663 = vmatpush.msra.mxu0 0.0
    %664 = vmatpush.msra.mxu0 0.0
    %665 = vmatpush.msra.mxu0 0.0
    %666 = vmatpush.msra.mxu0 0.0
    %667 = vmatpush.msra.mxu0 0.0
    %668 = vmatpush.msra.mxu0 0.0
    %669 = vmatpush.msra.mxu0 0.0
    %670 = vmatpush.msra.mxu0 %v661
    %671 = vmatpush.msra.mxu0 %v660
    %672 = vmatpush.msra.mxu0 %v659
    %673 = vmatpush.msra.mxu0 %v658
    %674 = vmatpush.msra.mxu0 %v657
    %675 = vmatpush.msra.mxu0 %v656
    %676 = vmatpush.msra.mxu0 %v655
    %677 = vmatpush.msra.mxu0 %v654
    %678 = vmatmul.f32.gmra.mxu0 %v221
    %v679 = vpop.f32.mrf.mxu0
    %v680 = vadd.f32 0.0, %v679
    %681 = vdwg.mxu0
    %v683 = vsel %vm157, %v680, 0
    %685 = vmatpush.msra.mxu0 0.0
    %686 = vmatpush.msra.mxu0 0.0
    %687 = vmatpush.msra.mxu0 0.0
    %688 = vmatpush.msra.mxu0 0.0
    %689 = vmatpush.msra.mxu0 0.0
    %690 = vmatpush.msra.mxu0 0.0
    %691 = vmatpush.msra.mxu0 0.0
    %692 = vmatpush.msra.mxu0 0.0
    %693 = vmatpush.msra.mxu0 %v87
    %694 = vmatpush.msra.mxu0 %v86
    %695 = vmatpush.msra.mxu0 %v85
    %696 = vmatpush.msra.mxu0 %v84
    %697 = vmatpush.msra.mxu0 %v83
    %698 = vmatpush.msra.mxu0 %v82
    %699 = vmatpush.msra.mxu0 %v81
    %700 = vmatpush.msra.mxu0 %v80
    %701 = vmatmul.f32.gmra.mxu0 %v683
    %v702 = vpop.f32.mrf.mxu0
    %v703 = vadd.f32 0.0, %v702
    %704 = vdwg.mxu0
    %v705 = vmul.f32 %v703, 0.00390625
    %v706 = vadd.f32 %v705, 1e-05
    %v707 = vrsqrt.pop %v706
    %v708 = vmul.f32 %v707, %v706
    %v709 = vmul.f32 %v708, %v707
    %v710 = vmul.f32 0.5, %v709
    %v711 = vsub.f32 1.5, %v710
    %v712 = vmul.f32 %v707, %v711
    %vm713 = vweird.f32 %v706
    %vm714 = vweird.f32 %v707
    %vm715 = vmor %vm713, %vm714
    %v716 = vsel %vm715, %v707, %v712
    %v717 = vperm.slane %v483, 1
    %v718 = vmul.f32 %v717, %v716
    %v720 = vsel %vm292, %v718, 0
    %722 = vmatpush.msra.mxu0 0.0
    %723 = vmatpush.msra.mxu0 0.0
    %724 = vmatpush.msra.mxu0 0.0
    %725 = vmatpush.msra.mxu0 0.0
    %726 = vmatpush.msra.mxu0 0.0
    %727 = vmatpush.msra.mxu0 0.0
    %728 = vmatpush.msra.mxu0 0.0
    %729 = vmatpush.msra.mxu0 0.0
    %730 = vmatpush.msra.mxu0 0.0
    %731 = vmatpush.msra.mxu0 0.0
    %732 = vmatpush.msra.mxu0 0.0
    %733 = vmatpush.msra.mxu0 0.0
    %734 = vmatpush.msra.mxu0 0.0
    %735 = vmatpush.msra.mxu0 0.0
    %736 = vmatpush.msra.mxu0 0.0
    %737 = vmatpush.msra.mxu0 %v720
    %738 = vmatmul.f32.gmra.mxu0 %v269
    %v739 = vpop.f32.mrf.mxu0
    %v740 = vadd.f32 0.0, %v739
    %741 = vmatmul.f32.gmra.mxu0 %v272
    %v742 = vpop.f32.mrf.mxu0
    %v743 = vadd.f32 0.0, %v742
    %744 = vmatmul.f32.gmra.mxu0 %v275
    %v745 = vpop.f32.mrf.mxu0
    %v746 = vadd.f32 0.0, %v745
    %747 = vmatmul.f32.gmra.mxu0 %v278
    %v748 = vpop.f32.mrf.mxu0
    %v749 = vadd.f32 0.0, %v748
    %750 = vmatmul.f32.gmra.mxu0 %v281
    %v751 = vpop.f32.mrf.mxu0
    %v752 = vadd.f32 0.0, %v751
    %753 = vmatmul.f32.gmra.mxu0 %v284
    %v754 = vpop.f32.mrf.mxu0
    %v755 = vadd.f32 0.0, %v754
    %756 = vmatmul.f32.gmra.mxu0 %v287
    %v757 = vpop.f32.mrf.mxu0
    %v758 = vadd.f32 0.0, %v757
    %759 = vmatmul.f32.gmra.mxu0 %v290
    %v760 = vpop.f32.mrf.mxu0
    %v761 = vadd.f32 0.0, %v760
    %762 = vdwg.mxu0
    %v763 = vmul.f32 %v646, %v740
    %v764 = vmul.f32 %v647, %v743
    %v765 = vmul.f32 %v648, %v746
    %v766 = vmul.f32 %v649, %v749
    %v767 = vmul.f32 %v650, %v752
    %v768 = vmul.f32 %v651, %v755
    %v769 = vmul.f32 %v652, %v758
    %v770 = vmul.f32 %v653, %v761
    %v771 = vperm.slane %v483, 2
    %v772 = vadd.f32 %v763, %v771
    %v773 = vadd.f32 %v764, %v771
    %v774 = vadd.f32 %v765, %v771
    %v775 = vadd.f32 %v766, %v771
    %v776 = vadd.f32 %v767, %v771
    %v777 = vadd.f32 %v768, %v771
    %v778 = vadd.f32 %v769, %v771
    %v779 = vadd.f32 %v770, %v771
    %v780 = vmax.f32 %v772, 0.0
    %v781 = vmax.f32 %v773, 0.0
    %v782 = vmax.f32 %v774, 0.0
    %v783 = vmax.f32 %v775, 0.0
    %v784 = vmax.f32 %v776, 0.0
    %v785 = vmax.f32 %v777, 0.0
    %v786 = vmax.f32 %v778, 0.0
    %v787 = vmax.f32 %v779, 0.0
    %v788 = vpack.c.bf16 %v781, %v780
    %v789 = vpack.c.bf16 %v783, %v782
    %v790 = vpack.c.bf16 %v785, %v784
    %v791 = vpack.c.bf16 %v787, %v786
    %v792 = vld [vmem:[%s9] sm:$0x7]
    %v793 = vld [vmem:[%s8] sm:$0xf]
    %v794 = vld [vmem:[%s8 + $0x4] sm:$0xf]
    %v795 = vld [vmem:[%s8 + $0x8] sm:$0xf]
    %v796 = vld [vmem:[%s8 + $0xc] sm:$0xf]
    %v797 = vld [vmem:[%s8 + $0x10] sm:$0xf]
    %v798 = vld [vmem:[%s8 + $0x14] sm:$0xf]
    %v799 = vld [vmem:[%s8 + $0x18] sm:$0xf]
    %v800 = vld [vmem:[%s8 + $0x1c] sm:$0xf]
    %v801 = vperm.slane %v792, 0
    %v810 = vunpack.c.l.b16 %v793
    %v811 = vunpack.c.l.b16 %v794
    %v812 = vunpack.c.l.b16 %v795
    %v813 = vunpack.c.l.b16 %v796
    %v814 = vunpack.c.l.b16 %v797
    %v815 = vunpack.c.l.b16 %v798
    %v816 = vunpack.c.l.b16 %v799
    %v817 = vunpack.c.l.b16 %v800
    %v818 = vpack.c.b16 %v811, %v810
    %v819 = vpack.c.b16 %v813, %v812
    %v820 = vpack.c.b16 %v815, %v814
    %v821 = vpack.c.b16 %v817, %v816
    %v827 = vsel %vm157, %v788, 0
    %v830 = vsel %vm157, %v789, 0
    %v833 = vsel %vm157, %v790, 0
    %v836 = vsel %vm157, %v791, 0
    %838 = vmatpush.bf16.msra.mxu0 0
    %839 = vmatpush.bf16.msra.mxu0 0
    %840 = vmatpush.bf16.msra.mxu0 0
    %841 = vmatpush.bf16.msra.mxu0 0
    %842 = vmatpush.bf16.msra.mxu0 %v821
    %843 = vmatpush.bf16.msra.mxu0 %v820
    %844 = vmatpush.bf16.msra.mxu0 %v819
    %845 = vmatpush.bf16.msra.mxu0 %v818
    %846 = vmatmul.bf16.gmra.mxu0 %v827
    %v847 = vpop.f32.mrf.mxu0
    %v848 = vadd.f32 %v801, %v847
    %v849 = vpop.f32.mrf.mxu0
    %v850 = vadd.f32 %v801, %v849
    %851 = vmatmul.bf16.gmra.mxu0 %v830
    %v852 = vpop.f32.mrf.mxu0
    %v853 = vadd.f32 %v801, %v852
    %v854 = vpop.f32.mrf.mxu0
    %v855 = vadd.f32 %v801, %v854
    %856 = vmatmul.bf16.gmra.mxu0 %v833
    %v857 = vpop.f32.mrf.mxu0
    %v858 = vadd.f32 %v801, %v857
    %v859 = vpop.f32.mrf.mxu0
    %v860 = vadd.f32 %v801, %v859
    %861 = vmatmul.bf16.gmra.mxu0 %v836
    %v862 = vpop.f32.mrf.mxu0
    %v863 = vadd.f32 %v801, %v862
    %v864 = vpop.f32.mrf.mxu0
    %v865 = vadd.f32 %v801, %v864
    %866 = vdwg.mxu0
    %867 = vmatpush.msra.mxu0 0.0
    %868 = vmatpush.msra.mxu0 0.0
    %869 = vmatpush.msra.mxu0 0.0
    %870 = vmatpush.msra.mxu0 0.0
    %871 = vmatpush.msra.mxu0 0.0
    %872 = vmatpush.msra.mxu0 0.0
    %873 = vmatpush.msra.mxu0 0.0
    %874 = vmatpush.msra.mxu0 0.0
    %875 = vmatpush.msra.mxu0 %v865
    %876 = vmatpush.msra.mxu0 %v863
    %877 = vmatpush.msra.mxu0 %v860
    %878 = vmatpush.msra.mxu0 %v858
    %879 = vmatpush.msra.mxu0 %v855
    %880 = vmatpush.msra.mxu0 %v853
    %881 = vmatpush.msra.mxu0 %v850
    %882 = vmatpush.msra.mxu0 %v848
    %883 = vmatmul.f32.gmra.mxu0 %v221
    %v884 = vpop.f32.mrf.mxu0
    %v885 = vadd.f32 0.0, %v884
    %886 = vdwg.mxu0
    %v888 = vsel %vm157, %v885, 0
    %890 = vmatpush.msra.mxu0 0.0
    %891 = vmatpush.msra.mxu0 0.0
    %892 = vmatpush.msra.mxu0 0.0
    %893 = vmatpush.msra.mxu0 0.0
    %894 = vmatpush.msra.mxu0 0.0
    %895 = vmatpush.msra.mxu0 0.0
    %896 = vmatpush.msra.mxu0 0.0
    %897 = vmatpush.msra.mxu0 0.0
    %898 = vmatpush.msra.mxu0 %v87
    %899 = vmatpush.msra.mxu0 %v86
    %900 = vmatpush.msra.mxu0 %v85
    %901 = vmatpush.msra.mxu0 %v84
    %902 = vmatpush.msra.mxu0 %v83
    %903 = vmatpush.msra.mxu0 %v82
    %904 = vmatpush.msra.mxu0 %v81
    %905 = vmatpush.msra.mxu0 %v80
    %906 = vmatmul.f32.gmra.mxu0 %v888
    %v907 = vpop.f32.mrf.mxu0
    %v908 = vadd.f32 0.0, %v907
    %909 = vdwg.mxu0
    %v910 = vmul.f32 %v908, 0.00390625
    %v912 = vsel %vm292, %v910, 0
    %914 = vmatpush.msra.mxu0 0.0
    %915 = vmatpush.msra.mxu0 0.0
    %916 = vmatpush.msra.mxu0 0.0
    %917 = vmatpush.msra.mxu0 0.0
    %918 = vmatpush.msra.mxu0 0.0
    %919 = vmatpush.msra.mxu0 0.0
    %920 = vmatpush.msra.mxu0 0.0
    %921 = vmatpush.msra.mxu0 0.0
    %922 = vmatpush.msra.mxu0 0.0
    %923 = vmatpush.msra.mxu0 0.0
    %924 = vmatpush.msra.mxu0 0.0
    %925 = vmatpush.msra.mxu0 0.0
    %926 = vmatpush.msra.mxu0 0.0
    %927 = vmatpush.msra.mxu0 0.0
    %928 = vmatpush.msra.mxu0 0.0
    %929 = vmatpush.msra.mxu0 %v912
    %930 = vmatmul.f32.gmra.mxu0 %v269
    %v931 = vpop.f32.mrf.mxu0
    %v932 = vadd.f32 0.0, %v931
    %933 = vmatmul.f32.gmra.mxu0 %v272
    %v934 = vpop.f32.mrf.mxu0
    %v935 = vadd.f32 0.0, %v934
    %936 = vmatmul.f32.gmra.mxu0 %v275
    %v937 = vpop.f32.mrf.mxu0
    %v938 = vadd.f32 0.0, %v937
    %939 = vmatmul.f32.gmra.mxu0 %v278
    %v940 = vpop.f32.mrf.mxu0
    %v941 = vadd.f32 0.0, %v940
    %942 = vmatmul.f32.gmra.mxu0 %v281
    %v943 = vpop.f32.mrf.mxu0
    %v944 = vadd.f32 0.0, %v943
    %945 = vmatmul.f32.gmra.mxu0 %v284
    %v946 = vpop.f32.mrf.mxu0
    %v947 = vadd.f32 0.0, %v946
    %948 = vmatmul.f32.gmra.mxu0 %v287
    %v949 = vpop.f32.mrf.mxu0
    %v950 = vadd.f32 0.0, %v949
    %951 = vmatmul.f32.gmra.mxu0 %v290
    %v952 = vpop.f32.mrf.mxu0
    %v953 = vadd.f32 0.0, %v952
    %954 = vdwg.mxu0
    %v955 = vsub.f32 %v848, %v932
    %v956 = vsub.f32 %v850, %v935
    %v957 = vsub.f32 %v853, %v938
    %v958 = vsub.f32 %v855, %v941
    %v959 = vsub.f32 %v858, %v944
    %v960 = vsub.f32 %v860, %v947
    %v961 = vsub.f32 %v863, %v950
    %v962 = vsub.f32 %v865, %v953
    %v963 = vmul.f32 %v955, %v955
    %v964 = vmul.f32 %v956, %v956
    %v965 = vmul.f32 %v957, %v957
    %v966 = vmul.f32 %v958, %v958
    %v967 = vmul.f32 %v959, %v959
    %v968 = vmul.f32 %v960, %v960
    %v969 = vmul.f32 %v961, %v961
    %v970 = vmul.f32 %v962, %v962
    %971 = vmatpush.msra.mxu0 0.0
    %972 = vmatpush.msra.mxu0 0.0
    %973 = vmatpush.msra.mxu0 0.0
    %974 = vmatpush.msra.mxu0 0.0
    %975 = vmatpush.msra.mxu0 0.0
    %976 = vmatpush.msra.mxu0 0.0
    %977 = vmatpush.msra.mxu0 0.0
    %978 = vmatpush.msra.mxu0 0.0
    %979 = vmatpush.msra.mxu0 %v970
    %980 = vmatpush.msra.mxu0 %v969
    %981 = vmatpush.msra.mxu0 %v968
    %982 = vmatpush.msra.mxu0 %v967
    %983 = vmatpush.msra.mxu0 %v966
    %984 = vmatpush.msra.mxu0 %v965
    %985 = vmatpush.msra.mxu0 %v964
    %986 = vmatpush.msra.mxu0 %v963
    %987 = vmatmul.f32.gmra.mxu0 %v221
    %v988 = vpop.f32.mrf.mxu0
    %v989 = vadd.f32 0.0, %v988
    %990 = vdwg.mxu0
    %v992 = vsel %vm157, %v989, 0
    %994 = vmatpush.msra.mxu0 0.0
    %995 = vmatpush.msra.mxu0 0.0
    %996 = vmatpush.msra.mxu0 0.0
    %997 = vmatpush.msra.mxu0 0.0
    %998 = vmatpush.msra.mxu0 0.0
    %999 = vmatpush.msra.mxu0 0.0
    %1000 = vmatpush.msra.mxu0 0.0
    %1001 = vmatpush.msra.mxu0 0.0
    %1002 = vmatpush.msra.mxu0 %v87
    %1003 = vmatpush.msra.mxu0 %v86
    %1004 = vmatpush.msra.mxu0 %v85
    %1005 = vmatpush.msra.mxu0 %v84
    %1006 = vmatpush.msra.mxu0 %v83
    %1007 = vmatpush.msra.mxu0 %v82
    %1008 = vmatpush.msra.mxu0 %v81
    %1009 = vmatpush.msra.mxu0 %v80
    %1010 = vmatmul.f32.gmra.mxu0 %v992
    %v1011 = vpop.f32.mrf.mxu0
    %v1012 = vadd.f32 0.0, %v1011
    %1013 = vdwg.mxu0
    %v1014 = vmul.f32 %v1012, 0.00390625
    %v1015 = vadd.f32 %v1014, 1e-05
    %v1016 = vrsqrt.pop %v1015
    %v1017 = vmul.f32 %v1016, %v1015
    %v1018 = vmul.f32 %v1017, %v1016
    %v1019 = vmul.f32 0.5, %v1018
    %v1020 = vsub.f32 1.5, %v1019
    %v1021 = vmul.f32 %v1016, %v1020
    %vm1022 = vweird.f32 %v1015
    %vm1023 = vweird.f32 %v1016
    %vm1024 = vmor %vm1022, %vm1023
    %v1025 = vsel %vm1024, %v1016, %v1021
    %v1026 = vperm.slane %v792, 1
    %v1027 = vmul.f32 %v1026, %v1025
    %v1029 = vsel %vm292, %v1027, 0
    %1031 = vmatpush.msra.mxu0 0.0
    %1032 = vmatpush.msra.mxu0 0.0
    %1033 = vmatpush.msra.mxu0 0.0
    %1034 = vmatpush.msra.mxu0 0.0
    %1035 = vmatpush.msra.mxu0 0.0
    %1036 = vmatpush.msra.mxu0 0.0
    %1037 = vmatpush.msra.mxu0 0.0
    %1038 = vmatpush.msra.mxu0 0.0
    %1039 = vmatpush.msra.mxu0 0.0
    %1040 = vmatpush.msra.mxu0 0.0
    %1041 = vmatpush.msra.mxu0 0.0
    %1042 = vmatpush.msra.mxu0 0.0
    %1043 = vmatpush.msra.mxu0 0.0
    %1044 = vmatpush.msra.mxu0 0.0
    %1045 = vmatpush.msra.mxu0 0.0
    %1046 = vmatpush.msra.mxu0 %v1029
    %1047 = vmatmul.f32.gmra.mxu0 %v269
    %v1048 = vpop.f32.mrf.mxu0
    %v1049 = vadd.f32 0.0, %v1048
    %1050 = vmatmul.f32.gmra.mxu0 %v272
    %v1051 = vpop.f32.mrf.mxu0
    %v1052 = vadd.f32 0.0, %v1051
    %1053 = vmatmul.f32.gmra.mxu0 %v275
    %v1054 = vpop.f32.mrf.mxu0
    %v1055 = vadd.f32 0.0, %v1054
    %1056 = vmatmul.f32.gmra.mxu0 %v278
    %v1057 = vpop.f32.mrf.mxu0
    %v1058 = vadd.f32 0.0, %v1057
    %1059 = vmatmul.f32.gmra.mxu0 %v281
    %v1060 = vpop.f32.mrf.mxu0
    %v1061 = vadd.f32 0.0, %v1060
    %1062 = vmatmul.f32.gmra.mxu0 %v284
    %v1063 = vpop.f32.mrf.mxu0
    %v1064 = vadd.f32 0.0, %v1063
    %1065 = vmatmul.f32.gmra.mxu0 %v287
    %v1066 = vpop.f32.mrf.mxu0
    %v1067 = vadd.f32 0.0, %v1066
    %1068 = vmatmul.f32.gmra.mxu0 %v290
    %v1069 = vpop.f32.mrf.mxu0
    %v1070 = vadd.f32 0.0, %v1069
    %1071 = vdwg.mxu0
    %v1072 = vmul.f32 %v955, %v1049
    %v1073 = vmul.f32 %v956, %v1052
    %v1074 = vmul.f32 %v957, %v1055
    %v1075 = vmul.f32 %v958, %v1058
    %v1076 = vmul.f32 %v959, %v1061
    %v1077 = vmul.f32 %v960, %v1064
    %v1078 = vmul.f32 %v961, %v1067
    %v1079 = vmul.f32 %v962, %v1070
    %v1080 = vperm.slane %v792, 2
    %v1081 = vadd.f32 %v1072, %v1080
    %v1082 = vadd.f32 %v1073, %v1080
    %v1083 = vadd.f32 %v1074, %v1080
    %v1084 = vadd.f32 %v1075, %v1080
    %v1085 = vadd.f32 %v1076, %v1080
    %v1086 = vadd.f32 %v1077, %v1080
    %v1087 = vadd.f32 %v1078, %v1080
    %v1088 = vadd.f32 %v1079, %v1080
    %v1089 = vmax.f32 %v1081, 0.0
    %v1090 = vmax.f32 %v1082, 0.0
    %v1091 = vmax.f32 %v1083, 0.0
    %v1092 = vmax.f32 %v1084, 0.0
    %v1093 = vmax.f32 %v1085, 0.0
    %v1094 = vmax.f32 %v1086, 0.0
    %v1095 = vmax.f32 %v1087, 0.0
    %v1096 = vmax.f32 %v1088, 0.0
    %v1097 = vpack.c.bf16 %v1090, %v1089
    %v1098 = vpack.c.bf16 %v1092, %v1091
    %v1099 = vpack.c.bf16 %v1094, %v1093
    %v1100 = vpack.c.bf16 %v1096, %v1095
    %v1101 = vld [vmem:[%s11] sm:$0x7]
    %v1102 = vld [vmem:[%s10] sm:$0xf]
    %v1103 = vld [vmem:[%s10 + $0x4] sm:$0xf]
    %v1104 = vld [vmem:[%s10 + $0x8] sm:$0xf]
    %v1105 = vld [vmem:[%s10 + $0xc] sm:$0xf]
    %v1106 = vld [vmem:[%s10 + $0x10] sm:$0xf]
    %v1107 = vld [vmem:[%s10 + $0x14] sm:$0xf]
    %v1108 = vld [vmem:[%s10 + $0x18] sm:$0xf]
    %v1109 = vld [vmem:[%s10 + $0x1c] sm:$0xf]
    %v1110 = vperm.slane %v1101, 0
    %v1119 = vunpack.c.l.b16 %v1102
    %v1120 = vunpack.c.l.b16 %v1103
    %v1121 = vunpack.c.l.b16 %v1104
    %v1122 = vunpack.c.l.b16 %v1105
    %v1123 = vunpack.c.l.b16 %v1106
    %v1124 = vunpack.c.l.b16 %v1107
    %v1125 = vunpack.c.l.b16 %v1108
    %v1126 = vunpack.c.l.b16 %v1109
    %v1127 = vpack.c.b16 %v1120, %v1119
    %v1128 = vpack.c.b16 %v1122, %v1121
    %v1129 = vpack.c.b16 %v1124, %v1123
    %v1130 = vpack.c.b16 %v1126, %v1125
    %v1136 = vsel %vm157, %v1097, 0
    %v1139 = vsel %vm157, %v1098, 0
    %v1142 = vsel %vm157, %v1099, 0
    %v1145 = vsel %vm157, %v1100, 0
    %1147 = vmatpush.bf16.msra.mxu0 0
    %1148 = vmatpush.bf16.msra.mxu0 0
    %1149 = vmatpush.bf16.msra.mxu0 0
    %1150 = vmatpush.bf16.msra.mxu0 0
    %1151 = vmatpush.bf16.msra.mxu0 %v1130
    %1152 = vmatpush.bf16.msra.mxu0 %v1129
    %1153 = vmatpush.bf16.msra.mxu0 %v1128
    %1154 = vmatpush.bf16.msra.mxu0 %v1127
    %1155 = vmatmul.bf16.gmra.mxu0 %v1136
    %v1156 = vpop.f32.mrf.mxu0
    %v1157 = vadd.f32 %v1110, %v1156
    %v1158 = vpop.f32.mrf.mxu0
    %v1159 = vadd.f32 %v1110, %v1158
    %1160 = vmatmul.bf16.gmra.mxu0 %v1139
    %v1161 = vpop.f32.mrf.mxu0
    %v1162 = vadd.f32 %v1110, %v1161
    %v1163 = vpop.f32.mrf.mxu0
    %v1164 = vadd.f32 %v1110, %v1163
    %1165 = vmatmul.bf16.gmra.mxu0 %v1142
    %v1166 = vpop.f32.mrf.mxu0
    %v1167 = vadd.f32 %v1110, %v1166
    %v1168 = vpop.f32.mrf.mxu0
    %v1169 = vadd.f32 %v1110, %v1168
    %1170 = vmatmul.bf16.gmra.mxu0 %v1145
    %v1171 = vpop.f32.mrf.mxu0
    %v1172 = vadd.f32 %v1110, %v1171
    %v1173 = vpop.f32.mrf.mxu0
    %v1174 = vadd.f32 %v1110, %v1173
    %1175 = vdwg.mxu0
    %1176 = vmatpush.msra.mxu0 0.0
    %1177 = vmatpush.msra.mxu0 0.0
    %1178 = vmatpush.msra.mxu0 0.0
    %1179 = vmatpush.msra.mxu0 0.0
    %1180 = vmatpush.msra.mxu0 0.0
    %1181 = vmatpush.msra.mxu0 0.0
    %1182 = vmatpush.msra.mxu0 0.0
    %1183 = vmatpush.msra.mxu0 0.0
    %1184 = vmatpush.msra.mxu0 %v1174
    %1185 = vmatpush.msra.mxu0 %v1172
    %1186 = vmatpush.msra.mxu0 %v1169
    %1187 = vmatpush.msra.mxu0 %v1167
    %1188 = vmatpush.msra.mxu0 %v1164
    %1189 = vmatpush.msra.mxu0 %v1162
    %1190 = vmatpush.msra.mxu0 %v1159
    %1191 = vmatpush.msra.mxu0 %v1157
    %1192 = vmatmul.f32.gmra.mxu0 %v221
    %v1193 = vpop.f32.mrf.mxu0
    %v1194 = vadd.f32 0.0, %v1193
    %1195 = vdwg.mxu0
    %v1196 = vld [vmem:[%s15] sm:$0xff]
    %v1197 = vld [vmem:[%s15 + $0x8] sm:$0xff]
    %v1198 = vld [vmem:[%s15 + $0x10] sm:$0xff]
    %v1199 = vld [vmem:[%s15 + $0x18] sm:$0xff]
    %v1200 = vld [vmem:[%s15 + $0x20] sm:$0xff]
    %v1201 = vld [vmem:[%s15 + $0x28] sm:$0xff]
    %v1202 = vld [vmem:[%s15 + $0x30] sm:$0xff]
    %v1203 = vld [vmem:[%s15 + $0x38] sm:$0xff]
    %v1204 = vld [vmem:[%s15 + $0x40] sm:$0xff]
    %v1205 = vld [vmem:[%s15 + $0x48] sm:$0xff]
    %v1206 = vld [vmem:[%s15 + $0x50] sm:$0xff]
    %v1207 = vld [vmem:[%s15 + $0x58] sm:$0xff]
    %v1208 = vld [vmem:[%s15 + $0x60] sm:$0xff]
    %v1209 = vld [vmem:[%s15 + $0x68] sm:$0xff]
    %v1210 = vld [vmem:[%s15 + $0x70] sm:$0xff]
    %v1211 = vld [vmem:[%s15 + $0x78] sm:$0xff]
    %1212 = vmatpush.msra.mxu0 %v1211
    %1213 = vmatpush.msra.mxu0 %v1210
    %1214 = vmatpush.msra.mxu0 %v1209
    %1215 = vmatpush.msra.mxu0 %v1208
    %1216 = vmatpush.msra.mxu0 %v1207
    %1217 = vmatpush.msra.mxu0 %v1206
    %1218 = vmatpush.msra.mxu0 %v1205
    %1219 = vmatpush.msra.mxu0 %v1204
    %1220 = vmatpush.msra.mxu0 %v1203
    %1221 = vmatpush.msra.mxu0 %v1202
    %1222 = vmatpush.msra.mxu0 %v1201
    %1223 = vmatpush.msra.mxu0 %v1200
    %1224 = vmatpush.msra.mxu0 %v1199
    %1225 = vmatpush.msra.mxu0 %v1198
    %1226 = vmatpush.msra.mxu0 %v1197
    %1227 = vmatpush.msra.mxu0 %v1196
    %1228 = vmatmul.f32.gmra.mxu0 %v1194
    %v1229 = vpop.f32.mrf.mxu0
    %v1230 = vadd.f32 0.0, %v1229
    %1231 = vdwg.mxu0
    %v1232 = vmul.f32 %v1230, 0.001953125
    %v1234 = vsel %vm292, %v1232, 0
    %1236 = vmatpush.msra.mxu0 0.0
    %1237 = vmatpush.msra.mxu0 0.0
    %1238 = vmatpush.msra.mxu0 0.0
    %1239 = vmatpush.msra.mxu0 0.0
    %1240 = vmatpush.msra.mxu0 0.0
    %1241 = vmatpush.msra.mxu0 0.0
    %1242 = vmatpush.msra.mxu0 0.0
    %1243 = vmatpush.msra.mxu0 0.0
    %1244 = vmatpush.msra.mxu0 0.0
    %1245 = vmatpush.msra.mxu0 0.0
    %1246 = vmatpush.msra.mxu0 0.0
    %1247 = vmatpush.msra.mxu0 0.0
    %1248 = vmatpush.msra.mxu0 0.0
    %1249 = vmatpush.msra.mxu0 0.0
    %1250 = vmatpush.msra.mxu0 0.0
    %1251 = vmatpush.msra.mxu0 %v1234
    %1252 = vmatmul.f32.gmra.mxu0 %v269
    %v1253 = vpop.f32.mrf.mxu0
    %v1254 = vadd.f32 0.0, %v1253
    %1255 = vmatmul.f32.gmra.mxu0 %v272
    %v1256 = vpop.f32.mrf.mxu0
    %v1257 = vadd.f32 0.0, %v1256
    %1258 = vmatmul.f32.gmra.mxu0 %v275
    %v1259 = vpop.f32.mrf.mxu0
    %v1260 = vadd.f32 0.0, %v1259
    %1261 = vmatmul.f32.gmra.mxu0 %v278
    %v1262 = vpop.f32.mrf.mxu0
    %v1263 = vadd.f32 0.0, %v1262
    %1264 = vmatmul.f32.gmra.mxu0 %v281
    %v1265 = vpop.f32.mrf.mxu0
    %v1266 = vadd.f32 0.0, %v1265
    %1267 = vmatmul.f32.gmra.mxu0 %v284
    %v1268 = vpop.f32.mrf.mxu0
    %v1269 = vadd.f32 0.0, %v1268
    %1270 = vmatmul.f32.gmra.mxu0 %v287
    %v1271 = vpop.f32.mrf.mxu0
    %v1272 = vadd.f32 0.0, %v1271
    %1273 = vmatmul.f32.gmra.mxu0 %v290
    %v1274 = vpop.f32.mrf.mxu0
    %v1275 = vadd.f32 0.0, %v1274
    %1276 = vdwg.mxu0
    %v1277 = vsub.f32 %v1157, %v1254
    %v1278 = vsub.f32 %v1159, %v1257
    %v1279 = vsub.f32 %v1162, %v1260
    %v1280 = vsub.f32 %v1164, %v1263
    %v1281 = vsub.f32 %v1167, %v1266
    %v1282 = vsub.f32 %v1169, %v1269
    %v1283 = vsub.f32 %v1172, %v1272
    %v1284 = vsub.f32 %v1174, %v1275
    %v1285 = vmul.f32 %v1277, %v1277
    %v1286 = vmul.f32 %v1278, %v1278
    %v1287 = vmul.f32 %v1279, %v1279
    %v1288 = vmul.f32 %v1280, %v1280
    %v1289 = vmul.f32 %v1281, %v1281
    %v1290 = vmul.f32 %v1282, %v1282
    %v1291 = vmul.f32 %v1283, %v1283
    %v1292 = vmul.f32 %v1284, %v1284
    %1293 = vmatpush.msra.mxu0 0.0
    %1294 = vmatpush.msra.mxu0 0.0
    %1295 = vmatpush.msra.mxu0 0.0
    %1296 = vmatpush.msra.mxu0 0.0
    %1297 = vmatpush.msra.mxu0 0.0
    %1298 = vmatpush.msra.mxu0 0.0
    %1299 = vmatpush.msra.mxu0 0.0
    %1300 = vmatpush.msra.mxu0 0.0
    %1301 = vmatpush.msra.mxu0 %v1292
    %1302 = vmatpush.msra.mxu0 %v1291
    %1303 = vmatpush.msra.mxu0 %v1290
    %1304 = vmatpush.msra.mxu0 %v1289
    %1305 = vmatpush.msra.mxu0 %v1288
    %1306 = vmatpush.msra.mxu0 %v1287
    %1307 = vmatpush.msra.mxu0 %v1286
    %1308 = vmatpush.msra.mxu0 %v1285
    %1309 = vmatmul.f32.gmra.mxu0 %v221
    %v1310 = vpop.f32.mrf.mxu0
    %v1311 = vadd.f32 0.0, %v1310
    %1312 = vdwg.mxu0
    %1313 = vmatpush.msra.mxu0 %v1211
    %1314 = vmatpush.msra.mxu0 %v1210
    %1315 = vmatpush.msra.mxu0 %v1209
    %1316 = vmatpush.msra.mxu0 %v1208
    %1317 = vmatpush.msra.mxu0 %v1207
    %1318 = vmatpush.msra.mxu0 %v1206
    %1319 = vmatpush.msra.mxu0 %v1205
    %1320 = vmatpush.msra.mxu0 %v1204
    %1321 = vmatpush.msra.mxu0 %v1203
    %1322 = vmatpush.msra.mxu0 %v1202
    %1323 = vmatpush.msra.mxu0 %v1201
    %1324 = vmatpush.msra.mxu0 %v1200
    %1325 = vmatpush.msra.mxu0 %v1199
    %1326 = vmatpush.msra.mxu0 %v1198
    %1327 = vmatpush.msra.mxu0 %v1197
    %1328 = vmatpush.msra.mxu0 %v1196
    %1329 = vmatmul.f32.gmra.mxu0 %v1311
    %v1330 = vpop.f32.mrf.mxu0
    %v1331 = vadd.f32 0.0, %v1330
    %1332 = vdwg.mxu0
    %v1333 = vmul.f32 %v1331, 0.001953125
    %v1334 = vadd.f32 %v1333, 1e-05
    %v1335 = vrsqrt.pop %v1334
    %v1336 = vmul.f32 %v1335, %v1334
    %v1337 = vmul.f32 %v1336, %v1335
    %v1338 = vmul.f32 0.5, %v1337
    %v1339 = vsub.f32 1.5, %v1338
    %v1340 = vmul.f32 %v1335, %v1339
    %vm1341 = vweird.f32 %v1334
    %vm1342 = vweird.f32 %v1335
    %vm1343 = vmor %vm1341, %vm1342
    %v1344 = vsel %vm1343, %v1335, %v1340
    %v1345 = vperm.slane %v1101, 1
    %v1346 = vmul.f32 %v1345, %v1344
    %v1348 = vsel %vm292, %v1346, 0
    %1350 = vmatpush.msra.mxu0 0.0
    %1351 = vmatpush.msra.mxu0 0.0
    %1352 = vmatpush.msra.mxu0 0.0
    %1353 = vmatpush.msra.mxu0 0.0
    %1354 = vmatpush.msra.mxu0 0.0
    %1355 = vmatpush.msra.mxu0 0.0
    %1356 = vmatpush.msra.mxu0 0.0
    %1357 = vmatpush.msra.mxu0 0.0
    %1358 = vmatpush.msra.mxu0 0.0
    %1359 = vmatpush.msra.mxu0 0.0
    %1360 = vmatpush.msra.mxu0 0.0
    %1361 = vmatpush.msra.mxu0 0.0
    %1362 = vmatpush.msra.mxu0 0.0
    %1363 = vmatpush.msra.mxu0 0.0
    %1364 = vmatpush.msra.mxu0 0.0
    %1365 = vmatpush.msra.mxu0 %v1348
    %1366 = vmatmul.f32.gmra.mxu0 %v269
    %v1367 = vpop.f32.mrf.mxu0
    %v1368 = vadd.f32 0.0, %v1367
    %1369 = vmatmul.f32.gmra.mxu0 %v272
    %v1370 = vpop.f32.mrf.mxu0
    %v1371 = vadd.f32 0.0, %v1370
    %1372 = vmatmul.f32.gmra.mxu0 %v275
    %v1373 = vpop.f32.mrf.mxu0
    %v1374 = vadd.f32 0.0, %v1373
    %1375 = vmatmul.f32.gmra.mxu0 %v278
    %v1376 = vpop.f32.mrf.mxu0
    %v1377 = vadd.f32 0.0, %v1376
    %1378 = vmatmul.f32.gmra.mxu0 %v281
    %v1379 = vpop.f32.mrf.mxu0
    %v1380 = vadd.f32 0.0, %v1379
    %1381 = vmatmul.f32.gmra.mxu0 %v284
    %v1382 = vpop.f32.mrf.mxu0
    %v1383 = vadd.f32 0.0, %v1382
    %1384 = vmatmul.f32.gmra.mxu0 %v287
    %v1385 = vpop.f32.mrf.mxu0
    %v1386 = vadd.f32 0.0, %v1385
    %1387 = vmatmul.f32.gmra.mxu0 %v290
    %v1388 = vpop.f32.mrf.mxu0
    %v1389 = vadd.f32 0.0, %v1388
    %1390 = vdwg.mxu0
    %v1391 = vmul.f32 %v1277, %v1368
    %v1392 = vmul.f32 %v1278, %v1371
    %v1393 = vmul.f32 %v1279, %v1374
    %v1394 = vmul.f32 %v1280, %v1377
    %v1395 = vmul.f32 %v1281, %v1380
    %v1396 = vmul.f32 %v1282, %v1383
    %v1397 = vmul.f32 %v1283, %v1386
    %v1398 = vmul.f32 %v1284, %v1389
    %v1399 = vperm.slane %v1101, 2
    %v1400 = vadd.f32 %v1391, %v1399
    %v1401 = vadd.f32 %v1392, %v1399
    %v1402 = vadd.f32 %v1393, %v1399
    %v1403 = vadd.f32 %v1394, %v1399
    %v1404 = vadd.f32 %v1395, %v1399
    %v1405 = vadd.f32 %v1396, %v1399
    %v1406 = vadd.f32 %v1397, %v1399
    %v1407 = vadd.f32 %v1398, %v1399
    %v1408 = vmax.f32 %v1400, 0.0
    %v1409 = vmax.f32 %v1401, 0.0
    %v1410 = vmax.f32 %v1402, 0.0
    %v1411 = vmax.f32 %v1403, 0.0
    %v1412 = vmax.f32 %v1404, 0.0
    %v1413 = vmax.f32 %v1405, 0.0
    %v1414 = vmax.f32 %v1406, 0.0
    %v1415 = vmax.f32 %v1407, 0.0
    %v1416 = vpack.c.bf16 %v1409, %v1408
    %v1417 = vpack.c.bf16 %v1411, %v1410
    %v1418 = vpack.c.bf16 %v1413, %v1412
    %v1419 = vpack.c.bf16 %v1415, %v1414
    %v1420 = vld [vmem:[%s13] sm:$0x77]
    %v1421 = vld [vmem:[%s13 + $0x8] sm:$0x77]
    %v1422 = vld [vmem:[%s13 + $0x10] sm:$0x77]
    %v1423 = vld [vmem:[%s13 + $0x18] sm:$0x77]
    %v1424 = vld [vmem:[%s12] sm:$0xff]
    %v1425 = vld [vmem:[%s12 + $0x8] sm:$0xff]
    %v1426 = vld [vmem:[%s12 + $0x10] sm:$0xff]
    %v1427 = vld [vmem:[%s12 + $0x18] sm:$0xff]
    %v1428 = vld [vmem:[%s12 + $0x20] sm:$0xff]
    %v1429 = vld [vmem:[%s12 + $0x28] sm:$0xff]
    %v1430 = vld [vmem:[%s12 + $0x30] sm:$0xff]
    %v1431 = vld [vmem:[%s12 + $0x38] sm:$0xff]
    %v1432 = vld [vmem:[%s12 + $0x40] sm:$0xff]
    %v1433 = vld [vmem:[%s12 + $0x48] sm:$0xff]
    %v1434 = vld [vmem:[%s12 + $0x50] sm:$0xff]
    %v1435 = vld [vmem:[%s12 + $0x58] sm:$0xff]
    %v1436 = vld [vmem:[%s12 + $0x60] sm:$0xff]
    %v1437 = vld [vmem:[%s12 + $0x68] sm:$0xff]
    %v1438 = vld [vmem:[%s12 + $0x70] sm:$0xff]
    %v1439 = vld [vmem:[%s12 + $0x78] sm:$0xff]
    %v1440 = vld [vmem:[%s12 + $0x80] sm:$0xff]
    %v1441 = vld [vmem:[%s12 + $0x88] sm:$0xff]
    %v1442 = vld [vmem:[%s12 + $0x90] sm:$0xff]
    %v1443 = vld [vmem:[%s12 + $0x98] sm:$0xff]
    %v1444 = vld [vmem:[%s12 + $0xa0] sm:$0xff]
    %v1445 = vld [vmem:[%s12 + $0xa8] sm:$0xff]
    %v1446 = vld [vmem:[%s12 + $0xb0] sm:$0xff]
    %v1447 = vld [vmem:[%s12 + $0xb8] sm:$0xff]
    %v1448 = vld [vmem:[%s12 + $0xc0] sm:$0xff]
    %v1449 = vld [vmem:[%s12 + $0xc8] sm:$0xff]
    %v1450 = vld [vmem:[%s12 + $0xd0] sm:$0xff]
    %v1451 = vld [vmem:[%s12 + $0xd8] sm:$0xff]
    %v1452 = vld [vmem:[%s12 + $0xe0] sm:$0xff]
    %v1453 = vld [vmem:[%s12 + $0xe8] sm:$0xff]
    %v1454 = vld [vmem:[%s12 + $0xf0] sm:$0xff]
    %v1455 = vld [vmem:[%s12 + $0xf8] sm:$0xff]
    %v1456 = vld [vmem:[%s12 + $0x100] sm:$0xff]
    %v1457 = vld [vmem:[%s12 + $0x108] sm:$0xff]
    %v1458 = vld [vmem:[%s12 + $0x110] sm:$0xff]
    %v1459 = vld [vmem:[%s12 + $0x118] sm:$0xff]
    %v1460 = vld [vmem:[%s12 + $0x120] sm:$0xff]
    %v1461 = vld [vmem:[%s12 + $0x128] sm:$0xff]
    %v1462 = vld [vmem:[%s12 + $0x130] sm:$0xff]
    %v1463 = vld [vmem:[%s12 + $0x138] sm:$0xff]
    %v1464 = vld [vmem:[%s12 + $0x140] sm:$0xff]
    %v1465 = vld [vmem:[%s12 + $0x148] sm:$0xff]
    %v1466 = vld [vmem:[%s12 + $0x150] sm:$0xff]
    %v1467 = vld [vmem:[%s12 + $0x158] sm:$0xff]
    %v1468 = vld [vmem:[%s12 + $0x160] sm:$0xff]
    %v1469 = vld [vmem:[%s12 + $0x168] sm:$0xff]
    %v1470 = vld [vmem:[%s12 + $0x170] sm:$0xff]
    %v1471 = vld [vmem:[%s12 + $0x178] sm:$0xff]
    %v1472 = vld [vmem:[%s12 + $0x180] sm:$0xff]
    %v1473 = vld [vmem:[%s12 + $0x188] sm:$0xff]
    %v1474 = vld [vmem:[%s12 + $0x190] sm:$0xff]
    %v1475 = vld [vmem:[%s12 + $0x198] sm:$0xff]
    %v1476 = vld [vmem:[%s12 + $0x1a0] sm:$0xff]
    %v1477 = vld [vmem:[%s12 + $0x1a8] sm:$0xff]
    %v1478 = vld [vmem:[%s12 + $0x1b0] sm:$0xff]
    %v1479 = vld [vmem:[%s12 + $0x1b8] sm:$0xff]
    %v1480 = vld [vmem:[%s12 + $0x1c0] sm:$0xff]
    %v1481 = vld [vmem:[%s12 + $0x1c8] sm:$0xff]
    %v1482 = vld [vmem:[%s12 + $0x1d0] sm:$0xff]
    %v1483 = vld [vmem:[%s12 + $0x1d8] sm:$0xff]
    %v1484 = vld [vmem:[%s12 + $0x1e0] sm:$0xff]
    %v1485 = vld [vmem:[%s12 + $0x1e8] sm:$0xff]
    %v1486 = vld [vmem:[%s12 + $0x1f0] sm:$0xff]
    %v1487 = vld [vmem:[%s12 + $0x1f8] sm:$0xff]
    %v1492 = vperm.slane %v1420, 0
    %v1493 = vperm.slane %v1420, 4
    %v1494 = vperm.slane %v1421, 0
    %v1495 = vperm.slane %v1421, 4
    %v1496 = vperm.slane %v1422, 0
    %v1497 = vperm.slane %v1422, 4
    %v1498 = vperm.slane %v1423, 0
    %v1499 = vperm.slane %v1423, 4
    %v1508 = vperm.slane %v1492, 0
    %v1509 = vperm.slane %v1493, 0
    %v1510 = vperm.slane %v1494, 0
    %v1511 = vperm.slane %v1495, 0
    %v1512 = vperm.slane %v1496, 0
    %v1513 = vperm.slane %v1497, 0
    %v1514 = vperm.slane %v1498, 0
    %v1515 = vperm.slane %v1499, 0
    %v1580 = vunpack.c.l.b16 %v1424
    %v1581 = vunpack.c.h.b16 %v1424
    %v1582 = vunpack.c.l.b16 %v1425
    %v1583 = vunpack.c.h.b16 %v1425
    %v1584 = vunpack.c.l.b16 %v1426
    %v1585 = vunpack.c.h.b16 %v1426
    %v1586 = vunpack.c.l.b16 %v1427
    %v1587 = vunpack.c.h.b16 %v1427
    %v1588 = vunpack.c.l.b16 %v1428
    %v1589 = vunpack.c.h.b16 %v1428
    %v1590 = vunpack.c.l.b16 %v1429
    %v1591 = vunpack.c.h.b16 %v1429
    %v1592 = vunpack.c.l.b16 %v1430
    %v1593 = vunpack.c.h.b16 %v1430
    %v1594 = vunpack.c.l.b16 %v1431
    %v1595 = vunpack.c.h.b16 %v1431
    %v1596 = vunpack.c.l.b16 %v1432
    %v1597 = vunpack.c.h.b16 %v1432
    %v1598 = vunpack.c.l.b16 %v1433
    %v1599 = vunpack.c.h.b16 %v1433
    %v1600 = vunpack.c.l.b16 %v1434
    %v1601 = vunpack.c.h.b16 %v1434
    %v1602 = vunpack.c.l.b16 %v1435
    %v1603 = vunpack.c.h.b16 %v1435
    %v1604 = vunpack.c.l.b16 %v1436
    %v1605 = vunpack.c.h.b16 %v1436
    %v1606 = vunpack.c.l.b16 %v1437
    %v1607 = vunpack.c.h.b16 %v1437
    %v1608 = vunpack.c.l.b16 %v1438
    %v1609 = vunpack.c.h.b16 %v1438
    %v1610 = vunpack.c.l.b16 %v1439
    %v1611 = vunpack.c.h.b16 %v1439
    %v1612 = vunpack.c.l.b16 %v1440
    %v1613 = vunpack.c.h.b16 %v1440
    %v1614 = vunpack.c.l.b16 %v1441
    %v1615 = vunpack.c.h.b16 %v1441
    %v1616 = vunpack.c.l.b16 %v1442
    %v1617 = vunpack.c.h.b16 %v1442
    %v1618 = vunpack.c.l.b16 %v1443
    %v1619 = vunpack.c.h.b16 %v1443
    %v1620 = vunpack.c.l.b16 %v1444
    %v1621 = vunpack.c.h.b16 %v1444
    %v1622 = vunpack.c.l.b16 %v1445
    %v1623 = vunpack.c.h.b16 %v1445
    %v1624 = vunpack.c.l.b16 %v1446
    %v1625 = vunpack.c.h.b16 %v1446
    %v1626 = vunpack.c.l.b16 %v1447
    %v1627 = vunpack.c.h.b16 %v1447
    %v1628 = vunpack.c.l.b16 %v1448
    %v1629 = vunpack.c.h.b16 %v1448
    %v1630 = vunpack.c.l.b16 %v1449
    %v1631 = vunpack.c.h.b16 %v1449
    %v1632 = vunpack.c.l.b16 %v1450
    %v1633 = vunpack.c.h.b16 %v1450
    %v1634 = vunpack.c.l.b16 %v1451
    %v1635 = vunpack.c.h.b16 %v1451
    %v1636 = vunpack.c.l.b16 %v1452
    %v1637 = vunpack.c.h.b16 %v1452
    %v1638 = vunpack.c.l.b16 %v1453
    %v1639 = vunpack.c.h.b16 %v1453
    %v1640 = vunpack.c.l.b16 %v1454
    %v1641 = vunpack.c.h.b16 %v1454
    %v1642 = vunpack.c.l.b16 %v1455
    %v1643 = vunpack.c.h.b16 %v1455
    %v1644 = vunpack.c.l.b16 %v1456
    %v1645 = vunpack.c.h.b16 %v1456
    %v1646 = vunpack.c.l.b16 %v1457
    %v1647 = vunpack.c.h.b16 %v1457
    %v1648 = vunpack.c.l.b16 %v1458
    %v1649 = vunpack.c.h.b16 %v1458
    %v1650 = vunpack.c.l.b16 %v1459
    %v1651 = vunpack.c.h.b16 %v1459
    %v1652 = vunpack.c.l.b16 %v1460
    %v1653 = vunpack.c.h.b16 %v1460
    %v1654 = vunpack.c.l.b16 %v1461
    %v1655 = vunpack.c.h.b16 %v1461
    %v1656 = vunpack.c.l.b16 %v1462
    %v1657 = vunpack.c.h.b16 %v1462
    %v1658 = vunpack.c.l.b16 %v1463
    %v1659 = vunpack.c.h.b16 %v1463
    %v1660 = vunpack.c.l.b16 %v1464
    %v1661 = vunpack.c.h.b16 %v1464
    %v1662 = vunpack.c.l.b16 %v1465
    %v1663 = vunpack.c.h.b16 %v1465
    %v1664 = vunpack.c.l.b16 %v1466
    %v1665 = vunpack.c.h.b16 %v1466
    %v1666 = vunpack.c.l.b16 %v1467
    %v1667 = vunpack.c.h.b16 %v1467
    %v1668 = vunpack.c.l.b16 %v1468
    %v1669 = vunpack.c.h.b16 %v1468
    %v1670 = vunpack.c.l.b16 %v1469
    %v1671 = vunpack.c.h.b16 %v1469
    %v1672 = vunpack.c.l.b16 %v1470
    %v1673 = vunpack.c.h.b16 %v1470
    %v1674 = vunpack.c.l.b16 %v1471
    %v1675 = vunpack.c.h.b16 %v1471
    %v1676 = vunpack.c.l.b16 %v1472
    %v1677 = vunpack.c.h.b16 %v1472
    %v1678 = vunpack.c.l.b16 %v1473
    %v1679 = vunpack.c.h.b16 %v1473
    %v1680 = vunpack.c.l.b16 %v1474
    %v1681 = vunpack.c.h.b16 %v1474
    %v1682 = vunpack.c.l.b16 %v1475
    %v1683 = vunpack.c.h.b16 %v1475
    %v1684 = vunpack.c.l.b16 %v1476
    %v1685 = vunpack.c.h.b16 %v1476
    %v1686 = vunpack.c.l.b16 %v1477
    %v1687 = vunpack.c.h.b16 %v1477
    %v1688 = vunpack.c.l.b16 %v1478
    %v1689 = vunpack.c.h.b16 %v1478
    %v1690 = vunpack.c.l.b16 %v1479
    %v1691 = vunpack.c.h.b16 %v1479
    %v1692 = vunpack.c.l.b16 %v1480
    %v1693 = vunpack.c.h.b16 %v1480
    %v1694 = vunpack.c.l.b16 %v1481
    %v1695 = vunpack.c.h.b16 %v1481
    %v1696 = vunpack.c.l.b16 %v1482
    %v1697 = vunpack.c.h.b16 %v1482
    %v1698 = vunpack.c.l.b16 %v1483
    %v1699 = vunpack.c.h.b16 %v1483
    %v1700 = vunpack.c.l.b16 %v1484
    %v1701 = vunpack.c.h.b16 %v1484
    %v1702 = vunpack.c.l.b16 %v1485
    %v1703 = vunpack.c.h.b16 %v1485
    %v1704 = vunpack.c.l.b16 %v1486
    %v1705 = vunpack.c.h.b16 %v1486
    %v1706 = vunpack.c.l.b16 %v1487
    %v1707 = vunpack.c.h.b16 %v1487
    %v1708 = vpack.c.b16 %v1588, %v1580
    %v1709 = vpack.c.b16 %v1589, %v1581
    %v1710 = vpack.c.b16 %v1590, %v1582
    %v1711 = vpack.c.b16 %v1591, %v1583
    %v1712 = vpack.c.b16 %v1592, %v1584
    %v1713 = vpack.c.b16 %v1593, %v1585
    %v1714 = vpack.c.b16 %v1594, %v1586
    %v1715 = vpack.c.b16 %v1595, %v1587
    %v1716 = vpack.c.b16 %v1604, %v1596
    %v1717 = vpack.c.b16 %v1605, %v1597
    %v1718 = vpack.c.b16 %v1606, %v1598
    %v1719 = vpack.c.b16 %v1607, %v1599
    %v1720 = vpack.c.b16 %v1608, %v1600
    %v1721 = vpack.c.b16 %v1609, %v1601
    %v1722 = vpack.c.b16 %v1610, %v1602
    %v1723 = vpack.c.b16 %v1611, %v1603
    %v1724 = vpack.c.b16 %v1620, %v1612
    %v1725 = vpack.c.b16 %v1621, %v1613
    %v1726 = vpack.c.b16 %v1622, %v1614
    %v1727 = vpack.c.b16 %v1623, %v1615
    %v1728 = vpack.c.b16 %v1624, %v1616
    %v1729 = vpack.c.b16 %v1625, %v1617
    %v1730 = vpack.c.b16 %v1626, %v1618
    %v1731 = vpack.c.b16 %v1627, %v1619
    %v1732 = vpack.c.b16 %v1636, %v1628
    %v1733 = vpack.c.b16 %v1637, %v1629
    %v1734 = vpack.c.b16 %v1638, %v1630
    %v1735 = vpack.c.b16 %v1639, %v1631
    %v1736 = vpack.c.b16 %v1640, %v1632
    %v1737 = vpack.c.b16 %v1641, %v1633
    %v1738 = vpack.c.b16 %v1642, %v1634
    %v1739 = vpack.c.b16 %v1643, %v1635
    %v1740 = vpack.c.b16 %v1652, %v1644
    %v1741 = vpack.c.b16 %v1653, %v1645
    %v1742 = vpack.c.b16 %v1654, %v1646
    %v1743 = vpack.c.b16 %v1655, %v1647
    %v1744 = vpack.c.b16 %v1656, %v1648
    %v1745 = vpack.c.b16 %v1657, %v1649
    %v1746 = vpack.c.b16 %v1658, %v1650
    %v1747 = vpack.c.b16 %v1659, %v1651
    %v1748 = vpack.c.b16 %v1668, %v1660
    %v1749 = vpack.c.b16 %v1669, %v1661
    %v1750 = vpack.c.b16 %v1670, %v1662
    %v1751 = vpack.c.b16 %v1671, %v1663
    %v1752 = vpack.c.b16 %v1672, %v1664
    %v1753 = vpack.c.b16 %v1673, %v1665
    %v1754 = vpack.c.b16 %v1674, %v1666
    %v1755 = vpack.c.b16 %v1675, %v1667
    %v1756 = vpack.c.b16 %v1684, %v1676
    %v1757 = vpack.c.b16 %v1685, %v1677
    %v1758 = vpack.c.b16 %v1686, %v1678
    %v1759 = vpack.c.b16 %v1687, %v1679
    %v1760 = vpack.c.b16 %v1688, %v1680
    %v1761 = vpack.c.b16 %v1689, %v1681
    %v1762 = vpack.c.b16 %v1690, %v1682
    %v1763 = vpack.c.b16 %v1691, %v1683
    %v1764 = vpack.c.b16 %v1700, %v1692
    %v1765 = vpack.c.b16 %v1701, %v1693
    %v1766 = vpack.c.b16 %v1702, %v1694
    %v1767 = vpack.c.b16 %v1703, %v1695
    %v1768 = vpack.c.b16 %v1704, %v1696
    %v1769 = vpack.c.b16 %v1705, %v1697
    %v1770 = vpack.c.b16 %v1706, %v1698
    %v1771 = vpack.c.b16 %v1707, %v1699
    %1836 = vmatpush.bf16.msra.mxu0 %v1764
    %1837 = vmatpush.bf16.msra.mxu0 %v1756
    %1838 = vmatpush.bf16.msra.mxu0 %v1748
    %1839 = vmatpush.bf16.msra.mxu0 %v1740
    %1840 = vmatpush.bf16.msra.mxu0 %v1732
    %1841 = vmatpush.bf16.msra.mxu0 %v1724
    %1842 = vmatpush.bf16.msra.mxu0 %v1716
    %1843 = vmatpush.bf16.msra.mxu0 %v1708
    %1844 = vmatmul.bf16.gmra.mxu0 %v1416
    %v1845 = vpop.f32.mrf.mxu0
    %v1846 = vadd.f32 %v1508, %v1845
    %v1847 = vpop.f32.mrf.mxu0
    %v1848 = vadd.f32 %v1508, %v1847
    %1849 = vmatmul.bf16.gmra.mxu0 %v1417
    %v1850 = vpop.f32.mrf.mxu0
    %v1851 = vadd.f32 %v1508, %v1850
    %v1852 = vpop.f32.mrf.mxu0
    %v1853 = vadd.f32 %v1508, %v1852
    %1854 = vmatmul.bf16.gmra.mxu0 %v1418
    %v1855 = vpop.f32.mrf.mxu0
    %v1856 = vadd.f32 %v1508, %v1855
    %v1857 = vpop.f32.mrf.mxu0
    %v1858 = vadd.f32 %v1508, %v1857
    %1859 = vmatmul.bf16.gmra.mxu0 %v1419
    %v1860 = vpop.f32.mrf.mxu0
    %v1861 = vadd.f32 %v1508, %v1860
    %v1862 = vpop.f32.mrf.mxu0
    %v1863 = vadd.f32 %v1508, %v1862
    %1864 = vdwg.mxu0
    %1865 = vmatpush.bf16.msra.mxu0 %v1765
    %1866 = vmatpush.bf16.msra.mxu0 %v1757
    %1867 = vmatpush.bf16.msra.mxu0 %v1749
    %1868 = vmatpush.bf16.msra.mxu0 %v1741
    %1869 = vmatpush.bf16.msra.mxu0 %v1733
    %1870 = vmatpush.bf16.msra.mxu0 %v1725
    %1871 = vmatpush.bf16.msra.mxu0 %v1717
    %1872 = vmatpush.bf16.msra.mxu0 %v1709
    %1873 = vmatmul.bf16.gmra.mxu0 %v1416
    %v1874 = vpop.f32.mrf.mxu0
    %v1875 = vadd.f32 %v1509, %v1874
    %v1876 = vpop.f32.mrf.mxu0
    %v1877 = vadd.f32 %v1509, %v1876
    %1878 = vmatmul.bf16.gmra.mxu0 %v1417
    %v1879 = vpop.f32.mrf.mxu0
    %v1880 = vadd.f32 %v1509, %v1879
    %v1881 = vpop.f32.mrf.mxu0
    %v1882 = vadd.f32 %v1509, %v1881
    %1883 = vmatmul.bf16.gmra.mxu0 %v1418
    %v1884 = vpop.f32.mrf.mxu0
    %v1885 = vadd.f32 %v1509, %v1884
    %v1886 = vpop.f32.mrf.mxu0
    %v1887 = vadd.f32 %v1509, %v1886
    %1888 = vmatmul.bf16.gmra.mxu0 %v1419
    %v1889 = vpop.f32.mrf.mxu0
    %v1890 = vadd.f32 %v1509, %v1889
    %v1891 = vpop.f32.mrf.mxu0
    %v1892 = vadd.f32 %v1509, %v1891
    %1893 = vdwg.mxu0
    %1894 = vmatpush.bf16.msra.mxu0 %v1766
    %1895 = vmatpush.bf16.msra.mxu0 %v1758
    %1896 = vmatpush.bf16.msra.mxu0 %v1750
    %1897 = vmatpush.bf16.msra.mxu0 %v1742
    %1898 = vmatpush.bf16.msra.mxu0 %v1734
    %1899 = vmatpush.bf16.msra.mxu0 %v1726
    %1900 = vmatpush.bf16.msra.mxu0 %v1718
    %1901 = vmatpush.bf16.msra.mxu0 %v1710
    %1902 = vmatmul.bf16.gmra.mxu0 %v1416
    %v1903 = vpop.f32.mrf.mxu0
    %v1904 = vadd.f32 %v1510, %v1903
    %v1905 = vpop.f32.mrf.mxu0
    %v1906 = vadd.f32 %v1510, %v1905
    %1907 = vmatmul.bf16.gmra.mxu0 %v1417
    %v1908 = vpop.f32.mrf.mxu0
    %v1909 = vadd.f32 %v1510, %v1908
    %v1910 = vpop.f32.mrf.mxu0
    %v1911 = vadd.f32 %v1510, %v1910
    %1912 = vmatmul.bf16.gmra.mxu0 %v1418
    %v1913 = vpop.f32.mrf.mxu0
    %v1914 = vadd.f32 %v1510, %v1913
    %v1915 = vpop.f32.mrf.mxu0
    %v1916 = vadd.f32 %v1510, %v1915
    %1917 = vmatmul.bf16.gmra.mxu0 %v1419
    %v1918 = vpop.f32.mrf.mxu0
    %v1919 = vadd.f32 %v1510, %v1918
    %v1920 = vpop.f32.mrf.mxu0
    %v1921 = vadd.f32 %v1510, %v1920
    %1922 = vdwg.mxu0
    %1923 = vmatpush.bf16.msra.mxu0 %v1767
    %1924 = vmatpush.bf16.msra.mxu0 %v1759
    %1925 = vmatpush.bf16.msra.mxu0 %v1751
    %1926 = vmatpush.bf16.msra.mxu0 %v1743
    %1927 = vmatpush.bf16.msra.mxu0 %v1735
    %1928 = vmatpush.bf16.msra.mxu0 %v1727
    %1929 = vmatpush.bf16.msra.mxu0 %v1719
    %1930 = vmatpush.bf16.msra.mxu0 %v1711
    %1931 = vmatmul.bf16.gmra.mxu0 %v1416
    %v1932 = vpop.f32.mrf.mxu0
    %v1933 = vadd.f32 %v1511, %v1932
    %v1934 = vpop.f32.mrf.mxu0
    %v1935 = vadd.f32 %v1511, %v1934
    %1936 = vmatmul.bf16.gmra.mxu0 %v1417
    %v1937 = vpop.f32.mrf.mxu0
    %v1938 = vadd.f32 %v1511, %v1937
    %v1939 = vpop.f32.mrf.mxu0
    %v1940 = vadd.f32 %v1511, %v1939
    %1941 = vmatmul.bf16.gmra.mxu0 %v1418
    %v1942 = vpop.f32.mrf.mxu0
    %v1943 = vadd.f32 %v1511, %v1942
    %v1944 = vpop.f32.mrf.mxu0
    %v1945 = vadd.f32 %v1511, %v1944
    %1946 = vmatmul.bf16.gmra.mxu0 %v1419
    %v1947 = vpop.f32.mrf.mxu0
    %v1948 = vadd.f32 %v1511, %v1947
    %v1949 = vpop.f32.mrf.mxu0
    %v1950 = vadd.f32 %v1511, %v1949
    %1951 = vdwg.mxu0
    %1952 = vmatpush.bf16.msra.mxu0 %v1768
    %1953 = vmatpush.bf16.msra.mxu0 %v1760
    %1954 = vmatpush.bf16.msra.mxu0 %v1752
    %1955 = vmatpush.bf16.msra.mxu0 %v1744
    %1956 = vmatpush.bf16.msra.mxu0 %v1736
    %1957 = vmatpush.bf16.msra.mxu0 %v1728
    %1958 = vmatpush.bf16.msra.mxu0 %v1720
    %1959 = vmatpush.bf16.msra.mxu0 %v1712
    %1960 = vmatmul.bf16.gmra.mxu0 %v1416
    %v1961 = vpop.f32.mrf.mxu0
    %v1962 = vadd.f32 %v1512, %v1961
    %v1963 = vpop.f32.mrf.mxu0
    %v1964 = vadd.f32 %v1512, %v1963
    %1965 = vmatmul.bf16.gmra.mxu0 %v1417
    %v1966 = vpop.f32.mrf.mxu0
    %v1967 = vadd.f32 %v1512, %v1966
    %v1968 = vpop.f32.mrf.mxu0
    %v1969 = vadd.f32 %v1512, %v1968
    %1970 = vmatmul.bf16.gmra.mxu0 %v1418
    %v1971 = vpop.f32.mrf.mxu0
    %v1972 = vadd.f32 %v1512, %v1971
    %v1973 = vpop.f32.mrf.mxu0
    %v1974 = vadd.f32 %v1512, %v1973
    %1975 = vmatmul.bf16.gmra.mxu0 %v1419
    %v1976 = vpop.f32.mrf.mxu0
    %v1977 = vadd.f32 %v1512, %v1976
    %v1978 = vpop.f32.mrf.mxu0
    %v1979 = vadd.f32 %v1512, %v1978
    %1980 = vdwg.mxu0
    %1981 = vmatpush.bf16.msra.mxu0 %v1769
    %1982 = vmatpush.bf16.msra.mxu0 %v1761
    %1983 = vmatpush.bf16.msra.mxu0 %v1753
    %1984 = vmatpush.bf16.msra.mxu0 %v1745
    %1985 = vmatpush.bf16.msra.mxu0 %v1737
    %1986 = vmatpush.bf16.msra.mxu0 %v1729
    %1987 = vmatpush.bf16.msra.mxu0 %v1721
    %1988 = vmatpush.bf16.msra.mxu0 %v1713
    %1989 = vmatmul.bf16.gmra.mxu0 %v1416
    %v1990 = vpop.f32.mrf.mxu0
    %v1991 = vadd.f32 %v1513, %v1990
    %v1992 = vpop.f32.mrf.mxu0
    %v1993 = vadd.f32 %v1513, %v1992
    %1994 = vmatmul.bf16.gmra.mxu0 %v1417
    %v1995 = vpop.f32.mrf.mxu0
    %v1996 = vadd.f32 %v1513, %v1995
    %v1997 = vpop.f32.mrf.mxu0
    %v1998 = vadd.f32 %v1513, %v1997
    %1999 = vmatmul.bf16.gmra.mxu0 %v1418
    %v2000 = vpop.f32.mrf.mxu0
    %v2001 = vadd.f32 %v1513, %v2000
    %v2002 = vpop.f32.mrf.mxu0
    %v2003 = vadd.f32 %v1513, %v2002
    %2004 = vmatmul.bf16.gmra.mxu0 %v1419
    %v2005 = vpop.f32.mrf.mxu0
    %v2006 = vadd.f32 %v1513, %v2005
    %v2007 = vpop.f32.mrf.mxu0
    %v2008 = vadd.f32 %v1513, %v2007
    %2009 = vdwg.mxu0
    %2010 = vmatpush.bf16.msra.mxu0 %v1770
    %2011 = vmatpush.bf16.msra.mxu0 %v1762
    %2012 = vmatpush.bf16.msra.mxu0 %v1754
    %2013 = vmatpush.bf16.msra.mxu0 %v1746
    %2014 = vmatpush.bf16.msra.mxu0 %v1738
    %2015 = vmatpush.bf16.msra.mxu0 %v1730
    %2016 = vmatpush.bf16.msra.mxu0 %v1722
    %2017 = vmatpush.bf16.msra.mxu0 %v1714
    %2018 = vmatmul.bf16.gmra.mxu0 %v1416
    %v2019 = vpop.f32.mrf.mxu0
    %v2020 = vadd.f32 %v1514, %v2019
    %v2021 = vpop.f32.mrf.mxu0
    %v2022 = vadd.f32 %v1514, %v2021
    %2023 = vmatmul.bf16.gmra.mxu0 %v1417
    %v2024 = vpop.f32.mrf.mxu0
    %v2025 = vadd.f32 %v1514, %v2024
    %v2026 = vpop.f32.mrf.mxu0
    %v2027 = vadd.f32 %v1514, %v2026
    %2028 = vmatmul.bf16.gmra.mxu0 %v1418
    %v2029 = vpop.f32.mrf.mxu0
    %v2030 = vadd.f32 %v1514, %v2029
    %v2031 = vpop.f32.mrf.mxu0
    %v2032 = vadd.f32 %v1514, %v2031
    %2033 = vmatmul.bf16.gmra.mxu0 %v1419
    %v2034 = vpop.f32.mrf.mxu0
    %v2035 = vadd.f32 %v1514, %v2034
    %v2036 = vpop.f32.mrf.mxu0
    %v2037 = vadd.f32 %v1514, %v2036
    %2038 = vdwg.mxu0
    %2039 = vmatpush.bf16.msra.mxu0 %v1771
    %2040 = vmatpush.bf16.msra.mxu0 %v1763
    %2041 = vmatpush.bf16.msra.mxu0 %v1755
    %2042 = vmatpush.bf16.msra.mxu0 %v1747
    %2043 = vmatpush.bf16.msra.mxu0 %v1739
    %2044 = vmatpush.bf16.msra.mxu0 %v1731
    %2045 = vmatpush.bf16.msra.mxu0 %v1723
    %2046 = vmatpush.bf16.msra.mxu0 %v1715
    %2047 = vmatmul.bf16.gmra.mxu0 %v1416
    %v2048 = vpop.f32.mrf.mxu0
    %v2049 = vadd.f32 %v1515, %v2048
    %v2050 = vpop.f32.mrf.mxu0
    %v2051 = vadd.f32 %v1515, %v2050
    %2052 = vmatmul.bf16.gmra.mxu0 %v1417
    %v2053 = vpop.f32.mrf.mxu0
    %v2054 = vadd.f32 %v1515, %v2053
    %v2055 = vpop.f32.mrf.mxu0
    %v2056 = vadd.f32 %v1515, %v2055
    %2057 = vmatmul.bf16.gmra.mxu0 %v1418
    %v2058 = vpop.f32.mrf.mxu0
    %v2059 = vadd.f32 %v1515, %v2058
    %v2060 = vpop.f32.mrf.mxu0
    %v2061 = vadd.f32 %v1515, %v2060
    %2062 = vmatmul.bf16.gmra.mxu0 %v1419
    %v2063 = vpop.f32.mrf.mxu0
    %v2064 = vadd.f32 %v1515, %v2063
    %v2065 = vpop.f32.mrf.mxu0
    %v2066 = vadd.f32 %v1515, %v2065
    %2067 = vdwg.mxu0
    %2068 = vmatpush.msra.mxu0 0.0
    %2069 = vmatpush.msra.mxu0 0.0
    %2070 = vmatpush.msra.mxu0 0.0
    %2071 = vmatpush.msra.mxu0 0.0
    %2072 = vmatpush.msra.mxu0 0.0
    %2073 = vmatpush.msra.mxu0 0.0
    %2074 = vmatpush.msra.mxu0 0.0
    %2075 = vmatpush.msra.mxu0 0.0
    %2076 = vmatpush.msra.mxu0 %v1863
    %2077 = vmatpush.msra.mxu0 %v1861
    %2078 = vmatpush.msra.mxu0 %v1858
    %2079 = vmatpush.msra.mxu0 %v1856
    %2080 = vmatpush.msra.mxu0 %v1853
    %2081 = vmatpush.msra.mxu0 %v1851
    %2082 = vmatpush.msra.mxu0 %v1848
    %2083 = vmatpush.msra.mxu0 %v1846
    %2084 = vmatmul.f32.gmra.mxu0 %v221
    %v2085 = vpop.f32.mrf.mxu0
    %v2086 = vadd.f32 0.0, %v2085
    %2087 = vdwg.mxu0
    %2088 = vmatpush.msra.mxu0 0.0
    %2089 = vmatpush.msra.mxu0 0.0
    %2090 = vmatpush.msra.mxu0 0.0
    %2091 = vmatpush.msra.mxu0 0.0
    %2092 = vmatpush.msra.mxu0 0.0
    %2093 = vmatpush.msra.mxu0 0.0
    %2094 = vmatpush.msra.mxu0 0.0
    %2095 = vmatpush.msra.mxu0 0.0
    %2096 = vmatpush.msra.mxu0 %v1892
    %2097 = vmatpush.msra.mxu0 %v1890
    %2098 = vmatpush.msra.mxu0 %v1887
    %2099 = vmatpush.msra.mxu0 %v1885
    %2100 = vmatpush.msra.mxu0 %v1882
    %2101 = vmatpush.msra.mxu0 %v1880
    %2102 = vmatpush.msra.mxu0 %v1877
    %2103 = vmatpush.msra.mxu0 %v1875
    %2104 = vmatmul.f32.gmra.mxu0 %v221
    %v2105 = vpop.f32.mrf.mxu0
    %v2106 = vadd.f32 0.0, %v2105
    %2107 = vdwg.mxu0
    %2108 = vmatpush.msra.mxu0 0.0
    %2109 = vmatpush.msra.mxu0 0.0
    %2110 = vmatpush.msra.mxu0 0.0
    %2111 = vmatpush.msra.mxu0 0.0
    %2112 = vmatpush.msra.mxu0 0.0
    %2113 = vmatpush.msra.mxu0 0.0
    %2114 = vmatpush.msra.mxu0 0.0
    %2115 = vmatpush.msra.mxu0 0.0
    %2116 = vmatpush.msra.mxu0 %v1921
    %2117 = vmatpush.msra.mxu0 %v1919
    %2118 = vmatpush.msra.mxu0 %v1916
    %2119 = vmatpush.msra.mxu0 %v1914
    %2120 = vmatpush.msra.mxu0 %v1911
    %2121 = vmatpush.msra.mxu0 %v1909
    %2122 = vmatpush.msra.mxu0 %v1906
    %2123 = vmatpush.msra.mxu0 %v1904
    %2124 = vmatmul.f32.gmra.mxu0 %v221
    %v2125 = vpop.f32.mrf.mxu0
    %v2126 = vadd.f32 0.0, %v2125
    %2127 = vdwg.mxu0
    %2128 = vmatpush.msra.mxu0 0.0
    %2129 = vmatpush.msra.mxu0 0.0
    %2130 = vmatpush.msra.mxu0 0.0
    %2131 = vmatpush.msra.mxu0 0.0
    %2132 = vmatpush.msra.mxu0 0.0
    %2133 = vmatpush.msra.mxu0 0.0
    %2134 = vmatpush.msra.mxu0 0.0
    %2135 = vmatpush.msra.mxu0 0.0
    %2136 = vmatpush.msra.mxu0 %v1950
    %2137 = vmatpush.msra.mxu0 %v1948
    %2138 = vmatpush.msra.mxu0 %v1945
    %2139 = vmatpush.msra.mxu0 %v1943
    %2140 = vmatpush.msra.mxu0 %v1940
    %2141 = vmatpush.msra.mxu0 %v1938
    %2142 = vmatpush.msra.mxu0 %v1935
    %2143 = vmatpush.msra.mxu0 %v1933
    %2144 = vmatmul.f32.gmra.mxu0 %v221
    %v2145 = vpop.f32.mrf.mxu0
    %v2146 = vadd.f32 0.0, %v2145
    %2147 = vdwg.mxu0
    %2148 = vmatpush.msra.mxu0 0.0
    %2149 = vmatpush.msra.mxu0 0.0
    %2150 = vmatpush.msra.mxu0 0.0
    %2151 = vmatpush.msra.mxu0 0.0
    %2152 = vmatpush.msra.mxu0 0.0
    %2153 = vmatpush.msra.mxu0 0.0
    %2154 = vmatpush.msra.mxu0 0.0
    %2155 = vmatpush.msra.mxu0 0.0
    %2156 = vmatpush.msra.mxu0 %v1979
    %2157 = vmatpush.msra.mxu0 %v1977
    %2158 = vmatpush.msra.mxu0 %v1974
    %2159 = vmatpush.msra.mxu0 %v1972
    %2160 = vmatpush.msra.mxu0 %v1969
    %2161 = vmatpush.msra.mxu0 %v1967
    %2162 = vmatpush.msra.mxu0 %v1964
    %2163 = vmatpush.msra.mxu0 %v1962
    %2164 = vmatmul.f32.gmra.mxu0 %v221
    %v2165 = vpop.f32.mrf.mxu0
    %v2166 = vadd.f32 0.0, %v2165
    %2167 = vdwg.mxu0
    %2168 = vmatpush.msra.mxu0 0.0
    %2169 = vmatpush.msra.mxu0 0.0
    %2170 = vmatpush.msra.mxu0 0.0
    %2171 = vmatpush.msra.mxu0 0.0
    %2172 = vmatpush.msra.mxu0 0.0
    %2173 = vmatpush.msra.mxu0 0.0
    %2174 = vmatpush.msra.mxu0 0.0
    %2175 = vmatpush.msra.mxu0 0.0
    %2176 = vmatpush.msra.mxu0 %v2008
    %2177 = vmatpush.msra.mxu0 %v2006
    %2178 = vmatpush.msra.mxu0 %v2003
    %2179 = vmatpush.msra.mxu0 %v2001
    %2180 = vmatpush.msra.mxu0 %v1998
    %2181 = vmatpush.msra.mxu0 %v1996
    %2182 = vmatpush.msra.mxu0 %v1993
    %2183 = vmatpush.msra.mxu0 %v1991
    %2184 = vmatmul.f32.gmra.mxu0 %v221
    %v2185 = vpop.f32.mrf.mxu0
    %v2186 = vadd.f32 0.0, %v2185
    %2187 = vdwg.mxu0
    %2188 = vmatpush.msra.mxu0 0.0
    %2189 = vmatpush.msra.mxu0 0.0
    %2190 = vmatpush.msra.mxu0 0.0
    %2191 = vmatpush.msra.mxu0 0.0
    %2192 = vmatpush.msra.mxu0 0.0
    %2193 = vmatpush.msra.mxu0 0.0
    %2194 = vmatpush.msra.mxu0 0.0
    %2195 = vmatpush.msra.mxu0 0.0
    %2196 = vmatpush.msra.mxu0 %v2037
    %2197 = vmatpush.msra.mxu0 %v2035
    %2198 = vmatpush.msra.mxu0 %v2032
    %2199 = vmatpush.msra.mxu0 %v2030
    %2200 = vmatpush.msra.mxu0 %v2027
    %2201 = vmatpush.msra.mxu0 %v2025
    %2202 = vmatpush.msra.mxu0 %v2022
    %2203 = vmatpush.msra.mxu0 %v2020
    %2204 = vmatmul.f32.gmra.mxu0 %v221
    %v2205 = vpop.f32.mrf.mxu0
    %v2206 = vadd.f32 0.0, %v2205
    %2207 = vdwg.mxu0
    %2208 = vmatpush.msra.mxu0 0.0
    %2209 = vmatpush.msra.mxu0 0.0
    %2210 = vmatpush.msra.mxu0 0.0
    %2211 = vmatpush.msra.mxu0 0.0
    %2212 = vmatpush.msra.mxu0 0.0
    %2213 = vmatpush.msra.mxu0 0.0
    %2214 = vmatpush.msra.mxu0 0.0
    %2215 = vmatpush.msra.mxu0 0.0
    %2216 = vmatpush.msra.mxu0 %v2066
    %2217 = vmatpush.msra.mxu0 %v2064
    %2218 = vmatpush.msra.mxu0 %v2061
    %2219 = vmatpush.msra.mxu0 %v2059
    %2220 = vmatpush.msra.mxu0 %v2056
    %2221 = vmatpush.msra.mxu0 %v2054
    %2222 = vmatpush.msra.mxu0 %v2051
    %2223 = vmatpush.msra.mxu0 %v2049
    %2224 = vmatmul.f32.gmra.mxu0 %v221
    %v2225 = vpop.f32.mrf.mxu0
    %v2226 = vadd.f32 0.0, %v2225
    %2227 = vdwg.mxu0
    %2228 = vmatpush.xpose.msra.mxu0 0.0
    %2229 = vmatpush.xpose.msra.mxu0 0.0
    %2230 = vmatpush.xpose.msra.mxu0 0.0
    %2231 = vmatpush.xpose.msra.mxu0 0.0
    %2232 = vmatpush.xpose.msra.mxu0 0.0
    %2233 = vmatpush.xpose.msra.mxu0 0.0
    %2234 = vmatpush.xpose.msra.mxu0 0.0
    %2235 = vmatpush.xpose.msra.mxu0 0.0
    %2236 = vmatpush.xpose.msra.mxu0 0.0
    %2237 = vmatpush.xpose.msra.mxu0 0.0
    %2238 = vmatpush.xpose.msra.mxu0 0.0
    %2239 = vmatpush.xpose.msra.mxu0 0.0
    %2240 = vmatpush.xpose.msra.mxu0 0.0
    %2241 = vmatpush.xpose.msra.mxu0 0.0
    %2242 = vmatpush.xpose.msra.mxu0 %v96
    %2243 = vmatpush.xpose.msra.mxu0 %v88
    %2244 = vmatmul.f32.gmra.mxu0 %v2086
    %v2245 = vpop.f32.mrf.mxu0
    %v2246 = vadd.f32 0.0, %v2245
    %2247 = vdwg.mxu0
    %2248 = vmatpush.xpose.msra.mxu0 0.0
    %2249 = vmatpush.xpose.msra.mxu0 0.0
    %2250 = vmatpush.xpose.msra.mxu0 0.0
    %2251 = vmatpush.xpose.msra.mxu0 0.0
    %2252 = vmatpush.xpose.msra.mxu0 0.0
    %2253 = vmatpush.xpose.msra.mxu0 0.0
    %2254 = vmatpush.xpose.msra.mxu0 0.0
    %2255 = vmatpush.xpose.msra.mxu0 0.0
    %2256 = vmatpush.xpose.msra.mxu0 0.0
    %2257 = vmatpush.xpose.msra.mxu0 0.0
    %2258 = vmatpush.xpose.msra.mxu0 0.0
    %2259 = vmatpush.xpose.msra.mxu0 0.0
    %2260 = vmatpush.xpose.msra.mxu0 0.0
    %2261 = vmatpush.xpose.msra.mxu0 0.0
    %2262 = vmatpush.xpose.msra.mxu0 %v97
    %2263 = vmatpush.xpose.msra.mxu0 %v89
    %2264 = vmatmul.f32.gmra.mxu0 %v2106
    %v2265 = vpop.f32.mrf.mxu0
    %v2266 = vadd.f32 %v2246, %v2265
    %2267 = vdwg.mxu0
    %2268 = vmatpush.xpose.msra.mxu0 0.0
    %2269 = vmatpush.xpose.msra.mxu0 0.0
    %2270 = vmatpush.xpose.msra.mxu0 0.0
    %2271 = vmatpush.xpose.msra.mxu0 0.0
    %2272 = vmatpush.xpose.msra.mxu0 0.0
    %2273 = vmatpush.xpose.msra.mxu0 0.0
    %2274 = vmatpush.xpose.msra.mxu0 0.0
    %2275 = vmatpush.xpose.msra.mxu0 0.0
    %2276 = vmatpush.xpose.msra.mxu0 0.0
    %2277 = vmatpush.xpose.msra.mxu0 0.0
    %2278 = vmatpush.xpose.msra.mxu0 0.0
    %2279 = vmatpush.xpose.msra.mxu0 0.0
    %2280 = vmatpush.xpose.msra.mxu0 0.0
    %2281 = vmatpush.xpose.msra.mxu0 0.0
    %2282 = vmatpush.xpose.msra.mxu0 %v98
    %2283 = vmatpush.xpose.msra.mxu0 %v90
    %2284 = vmatmul.f32.gmra.mxu0 %v2126
    %v2285 = vpop.f32.mrf.mxu0
    %v2286 = vadd.f32 %v2266, %v2285
    %2287 = vdwg.mxu0
    %2288 = vmatpush.xpose.msra.mxu0 0.0
    %2289 = vmatpush.xpose.msra.mxu0 0.0
    %2290 = vmatpush.xpose.msra.mxu0 0.0
    %2291 = vmatpush.xpose.msra.mxu0 0.0
    %2292 = vmatpush.xpose.msra.mxu0 0.0
    %2293 = vmatpush.xpose.msra.mxu0 0.0
    %2294 = vmatpush.xpose.msra.mxu0 0.0
    %2295 = vmatpush.xpose.msra.mxu0 0.0
    %2296 = vmatpush.xpose.msra.mxu0 0.0
    %2297 = vmatpush.xpose.msra.mxu0 0.0
    %2298 = vmatpush.xpose.msra.mxu0 0.0
    %2299 = vmatpush.xpose.msra.mxu0 0.0
    %2300 = vmatpush.xpose.msra.mxu0 0.0
    %2301 = vmatpush.xpose.msra.mxu0 0.0
    %2302 = vmatpush.xpose.msra.mxu0 %v99
    %2303 = vmatpush.xpose.msra.mxu0 %v91
    %2304 = vmatmul.f32.gmra.mxu0 %v2146
    %v2305 = vpop.f32.mrf.mxu0
    %v2306 = vadd.f32 %v2286, %v2305
    %2307 = vdwg.mxu0
    %2308 = vmatpush.xpose.msra.mxu0 0.0
    %2309 = vmatpush.xpose.msra.mxu0 0.0
    %2310 = vmatpush.xpose.msra.mxu0 0.0
    %2311 = vmatpush.xpose.msra.mxu0 0.0
    %2312 = vmatpush.xpose.msra.mxu0 0.0
    %2313 = vmatpush.xpose.msra.mxu0 0.0
    %2314 = vmatpush.xpose.msra.mxu0 0.0
    %2315 = vmatpush.xpose.msra.mxu0 0.0
    %2316 = vmatpush.xpose.msra.mxu0 0.0
    %2317 = vmatpush.xpose.msra.mxu0 0.0
    %2318 = vmatpush.xpose.msra.mxu0 0.0
    %2319 = vmatpush.xpose.msra.mxu0 0.0
    %2320 = vmatpush.xpose.msra.mxu0 0.0
    %2321 = vmatpush.xpose.msra.mxu0 0.0
    %2322 = vmatpush.xpose.msra.mxu0 %v100
    %2323 = vmatpush.xpose.msra.mxu0 %v92
    %2324 = vmatmul.f32.gmra.mxu0 %v2166
    %v2325 = vpop.f32.mrf.mxu0
    %v2326 = vadd.f32 %v2306, %v2325
    %2327 = vdwg.mxu0
    %2328 = vmatpush.xpose.msra.mxu0 0.0
    %2329 = vmatpush.xpose.msra.mxu0 0.0
    %2330 = vmatpush.xpose.msra.mxu0 0.0
    %2331 = vmatpush.xpose.msra.mxu0 0.0
    %2332 = vmatpush.xpose.msra.mxu0 0.0
    %2333 = vmatpush.xpose.msra.mxu0 0.0
    %2334 = vmatpush.xpose.msra.mxu0 0.0
    %2335 = vmatpush.xpose.msra.mxu0 0.0
    %2336 = vmatpush.xpose.msra.mxu0 0.0
    %2337 = vmatpush.xpose.msra.mxu0 0.0
    %2338 = vmatpush.xpose.msra.mxu0 0.0
    %2339 = vmatpush.xpose.msra.mxu0 0.0
    %2340 = vmatpush.xpose.msra.mxu0 0.0
    %2341 = vmatpush.xpose.msra.mxu0 0.0
    %2342 = vmatpush.xpose.msra.mxu0 %v101
    %2343 = vmatpush.xpose.msra.mxu0 %v93
    %2344 = vmatmul.f32.gmra.mxu0 %v2186
    %v2345 = vpop.f32.mrf.mxu0
    %v2346 = vadd.f32 %v2326, %v2345
    %2347 = vdwg.mxu0
    %2348 = vmatpush.xpose.msra.mxu0 0.0
    %2349 = vmatpush.xpose.msra.mxu0 0.0
    %2350 = vmatpush.xpose.msra.mxu0 0.0
    %2351 = vmatpush.xpose.msra.mxu0 0.0
    %2352 = vmatpush.xpose.msra.mxu0 0.0
    %2353 = vmatpush.xpose.msra.mxu0 0.0
    %2354 = vmatpush.xpose.msra.mxu0 0.0
    %2355 = vmatpush.xpose.msra.mxu0 0.0
    %2356 = vmatpush.xpose.msra.mxu0 0.0
    %2357 = vmatpush.xpose.msra.mxu0 0.0
    %2358 = vmatpush.xpose.msra.mxu0 0.0
    %2359 = vmatpush.xpose.msra.mxu0 0.0
    %2360 = vmatpush.xpose.msra.mxu0 0.0
    %2361 = vmatpush.xpose.msra.mxu0 0.0
    %2362 = vmatpush.xpose.msra.mxu0 %v102
    %2363 = vmatpush.xpose.msra.mxu0 %v94
    %2364 = vmatmul.f32.gmra.mxu0 %v2206
    %v2365 = vpop.f32.mrf.mxu0
    %v2366 = vadd.f32 %v2346, %v2365
    %2367 = vdwg.mxu0
    %2368 = vmatpush.xpose.msra.mxu0 0.0
    %2369 = vmatpush.xpose.msra.mxu0 0.0
    %2370 = vmatpush.xpose.msra.mxu0 0.0
    %2371 = vmatpush.xpose.msra.mxu0 0.0
    %2372 = vmatpush.xpose.msra.mxu0 0.0
    %2373 = vmatpush.xpose.msra.mxu0 0.0
    %2374 = vmatpush.xpose.msra.mxu0 0.0
    %2375 = vmatpush.xpose.msra.mxu0 0.0
    %2376 = vmatpush.xpose.msra.mxu0 0.0
    %2377 = vmatpush.xpose.msra.mxu0 0.0
    %2378 = vmatpush.xpose.msra.mxu0 0.0
    %2379 = vmatpush.xpose.msra.mxu0 0.0
    %2380 = vmatpush.xpose.msra.mxu0 0.0
    %2381 = vmatpush.xpose.msra.mxu0 0.0
    %2382 = vmatpush.xpose.msra.mxu0 %v103
    %2383 = vmatpush.xpose.msra.mxu0 %v95
    %2384 = vmatmul.f32.gmra.mxu0 %v2226
    %v2385 = vpop.f32.mrf.mxu0
    %v2386 = vadd.f32 %v2366, %v2385
    %2387 = vdwg.mxu0
    %vm2388 = vcmask 130048
    %v2390 = vsel %vm2388, %v2386, 0
    %2392 = vmatpush.msra.mxu0 0.0
    %2393 = vmatpush.msra.mxu0 0.0
    %2394 = vmatpush.msra.mxu0 0.0
    %2395 = vmatpush.msra.mxu0 0.0
    %2396 = vmatpush.msra.mxu0 0.0
    %2397 = vmatpush.msra.mxu0 0.0
    %2398 = vmatpush.msra.mxu0 0.0
    %2399 = vmatpush.msra.mxu0 0.0
    %2400 = vmatpush.msra.mxu0 0.0
    %2401 = vmatpush.msra.mxu0 0.0
    %2402 = vmatpush.msra.mxu0 0.0
    %2403 = vmatpush.msra.mxu0 0.0
    %2404 = vmatpush.msra.mxu0 0.0
    %2405 = vmatpush.msra.mxu0 0.0
    %2406 = vmatpush.msra.mxu0 %v96
    %2407 = vmatpush.msra.mxu0 %v88
    %2408 = vmatmul.f32.gmra.mxu0 %v2390
    %v2409 = vpop.f32.mrf.mxu0
    %v2410 = vadd.f32 0.0, %v2409
    %2411 = vdwg.mxu0
    %2412 = vmatpush.msra.mxu0 0.0
    %2413 = vmatpush.msra.mxu0 0.0
    %2414 = vmatpush.msra.mxu0 0.0
    %2415 = vmatpush.msra.mxu0 0.0
    %2416 = vmatpush.msra.mxu0 0.0
    %2417 = vmatpush.msra.mxu0 0.0
    %2418 = vmatpush.msra.mxu0 0.0
    %2419 = vmatpush.msra.mxu0 0.0
    %2420 = vmatpush.msra.mxu0 0.0
    %2421 = vmatpush.msra.mxu0 0.0
    %2422 = vmatpush.msra.mxu0 0.0
    %2423 = vmatpush.msra.mxu0 0.0
    %2424 = vmatpush.msra.mxu0 0.0
    %2425 = vmatpush.msra.mxu0 0.0
    %2426 = vmatpush.msra.mxu0 %v97
    %2427 = vmatpush.msra.mxu0 %v89
    %2428 = vmatmul.f32.gmra.mxu0 %v2390
    %v2429 = vpop.f32.mrf.mxu0
    %v2430 = vadd.f32 0.0, %v2429
    %2431 = vdwg.mxu0
    %2432 = vmatpush.msra.mxu0 0.0
    %2433 = vmatpush.msra.mxu0 0.0
    %2434 = vmatpush.msra.mxu0 0.0
    %2435 = vmatpush.msra.mxu0 0.0
    %2436 = vmatpush.msra.mxu0 0.0
    %2437 = vmatpush.msra.mxu0 0.0
    %2438 = vmatpush.msra.mxu0 0.0
    %2439 = vmatpush.msra.mxu0 0.0
    %2440 = vmatpush.msra.mxu0 0.0
    %2441 = vmatpush.msra.mxu0 0.0
    %2442 = vmatpush.msra.mxu0 0.0
    %2443 = vmatpush.msra.mxu0 0.0
    %2444 = vmatpush.msra.mxu0 0.0
    %2445 = vmatpush.msra.mxu0 0.0
    %2446 = vmatpush.msra.mxu0 %v98
    %2447 = vmatpush.msra.mxu0 %v90
    %2448 = vmatmul.f32.gmra.mxu0 %v2390
    %v2449 = vpop.f32.mrf.mxu0
    %v2450 = vadd.f32 0.0, %v2449
    %2451 = vdwg.mxu0
    %2452 = vmatpush.msra.mxu0 0.0
    %2453 = vmatpush.msra.mxu0 0.0
    %2454 = vmatpush.msra.mxu0 0.0
    %2455 = vmatpush.msra.mxu0 0.0
    %2456 = vmatpush.msra.mxu0 0.0
    %2457 = vmatpush.msra.mxu0 0.0
    %2458 = vmatpush.msra.mxu0 0.0
    %2459 = vmatpush.msra.mxu0 0.0
    %2460 = vmatpush.msra.mxu0 0.0
    %2461 = vmatpush.msra.mxu0 0.0
    %2462 = vmatpush.msra.mxu0 0.0
    %2463 = vmatpush.msra.mxu0 0.0
    %2464 = vmatpush.msra.mxu0 0.0
    %2465 = vmatpush.msra.mxu0 0.0
    %2466 = vmatpush.msra.mxu0 %v99
    %2467 = vmatpush.msra.mxu0 %v91
    %2468 = vmatmul.f32.gmra.mxu0 %v2390
    %v2469 = vpop.f32.mrf.mxu0
    %v2470 = vadd.f32 0.0, %v2469
    %2471 = vdwg.mxu0
    %2472 = vmatpush.msra.mxu0 0.0
    %2473 = vmatpush.msra.mxu0 0.0
    %2474 = vmatpush.msra.mxu0 0.0
    %2475 = vmatpush.msra.mxu0 0.0
    %2476 = vmatpush.msra.mxu0 0.0
    %2477 = vmatpush.msra.mxu0 0.0
    %2478 = vmatpush.msra.mxu0 0.0
    %2479 = vmatpush.msra.mxu0 0.0
    %2480 = vmatpush.msra.mxu0 0.0
    %2481 = vmatpush.msra.mxu0 0.0
    %2482 = vmatpush.msra.mxu0 0.0
    %2483 = vmatpush.msra.mxu0 0.0
    %2484 = vmatpush.msra.mxu0 0.0
    %2485 = vmatpush.msra.mxu0 0.0
    %2486 = vmatpush.msra.mxu0 %v100
    %2487 = vmatpush.msra.mxu0 %v92
    %2488 = vmatmul.f32.gmra.mxu0 %v2390
    %v2489 = vpop.f32.mrf.mxu0
    %v2490 = vadd.f32 0.0, %v2489
    %2491 = vdwg.mxu0
    %2492 = vmatpush.msra.mxu0 0.0
    %2493 = vmatpush.msra.mxu0 0.0
    %2494 = vmatpush.msra.mxu0 0.0
    %2495 = vmatpush.msra.mxu0 0.0
    %2496 = vmatpush.msra.mxu0 0.0
    %2497 = vmatpush.msra.mxu0 0.0
    %2498 = vmatpush.msra.mxu0 0.0
    %2499 = vmatpush.msra.mxu0 0.0
    %2500 = vmatpush.msra.mxu0 0.0
    %2501 = vmatpush.msra.mxu0 0.0
    %2502 = vmatpush.msra.mxu0 0.0
    %2503 = vmatpush.msra.mxu0 0.0
    %2504 = vmatpush.msra.mxu0 0.0
    %2505 = vmatpush.msra.mxu0 0.0
    %2506 = vmatpush.msra.mxu0 %v101
    %2507 = vmatpush.msra.mxu0 %v93
    %2508 = vmatmul.f32.gmra.mxu0 %v2390
    %v2509 = vpop.f32.mrf.mxu0
    %v2510 = vadd.f32 0.0, %v2509
    %2511 = vdwg.mxu0
    %2512 = vmatpush.msra.mxu0 0.0
    %2513 = vmatpush.msra.mxu0 0.0
    %2514 = vmatpush.msra.mxu0 0.0
    %2515 = vmatpush.msra.mxu0 0.0
    %2516 = vmatpush.msra.mxu0 0.0
    %2517 = vmatpush.msra.mxu0 0.0
    %2518 = vmatpush.msra.mxu0 0.0
    %2519 = vmatpush.msra.mxu0 0.0
    %2520 = vmatpush.msra.mxu0 0.0
    %2521 = vmatpush.msra.mxu0 0.0
    %2522 = vmatpush.msra.mxu0 0.0
    %2523 = vmatpush.msra.mxu0 0.0
    %2524 = vmatpush.msra.mxu0 0.0
    %2525 = vmatpush.msra.mxu0 0.0
    %2526 = vmatpush.msra.mxu0 %v102
    %2527 = vmatpush.msra.mxu0 %v94
    %2528 = vmatmul.f32.gmra.mxu0 %v2390
    %v2529 = vpop.f32.mrf.mxu0
    %v2530 = vadd.f32 0.0, %v2529
    %2531 = vdwg.mxu0
    %2532 = vmatpush.msra.mxu0 0.0
    %2533 = vmatpush.msra.mxu0 0.0
    %2534 = vmatpush.msra.mxu0 0.0
    %2535 = vmatpush.msra.mxu0 0.0
    %2536 = vmatpush.msra.mxu0 0.0
    %2537 = vmatpush.msra.mxu0 0.0
    %2538 = vmatpush.msra.mxu0 0.0
    %2539 = vmatpush.msra.mxu0 0.0
    %2540 = vmatpush.msra.mxu0 0.0
    %2541 = vmatpush.msra.mxu0 0.0
    %2542 = vmatpush.msra.mxu0 0.0
    %2543 = vmatpush.msra.mxu0 0.0
    %2544 = vmatpush.msra.mxu0 0.0
    %2545 = vmatpush.msra.mxu0 0.0
    %2546 = vmatpush.msra.mxu0 %v103
    %2547 = vmatpush.msra.mxu0 %v95
    %2548 = vmatmul.f32.gmra.mxu0 %v2390
    %v2549 = vpop.f32.mrf.mxu0
    %v2550 = vadd.f32 0.0, %v2549
    %2551 = vdwg.mxu0
    %v2552 = vmul.f32 %v2410, 0.00048828125
    %v2553 = vmul.f32 %v2430, 0.00048828125
    %v2554 = vmul.f32 %v2450, 0.00048828125
    %v2555 = vmul.f32 %v2470, 0.00048828125
    %v2556 = vmul.f32 %v2490, 0.00048828125
    %v2557 = vmul.f32 %v2510, 0.00048828125
    %v2558 = vmul.f32 %v2530, 0.00048828125
    %v2559 = vmul.f32 %v2550, 0.00048828125
    %v2561 = vsel %vm292, %v2552, 0
    %v2564 = vsel %vm292, %v2553, 0
    %v2567 = vsel %vm292, %v2554, 0
    %v2570 = vsel %vm292, %v2555, 0
    %v2573 = vsel %vm292, %v2556, 0
    %v2576 = vsel %vm292, %v2557, 0
    %v2579 = vsel %vm292, %v2558, 0
    %v2582 = vsel %vm292, %v2559, 0
    %2584 = vmatpush.msra.mxu0 0.0
    %2585 = vmatpush.msra.mxu0 0.0
    %2586 = vmatpush.msra.mxu0 0.0
    %2587 = vmatpush.msra.mxu0 0.0
    %2588 = vmatpush.msra.mxu0 0.0
    %2589 = vmatpush.msra.mxu0 0.0
    %2590 = vmatpush.msra.mxu0 0.0
    %2591 = vmatpush.msra.mxu0 0.0
    %2592 = vmatpush.msra.mxu0 0.0
    %2593 = vmatpush.msra.mxu0 0.0
    %2594 = vmatpush.msra.mxu0 0.0
    %2595 = vmatpush.msra.mxu0 0.0
    %2596 = vmatpush.msra.mxu0 0.0
    %2597 = vmatpush.msra.mxu0 0.0
    %2598 = vmatpush.msra.mxu0 0.0
    %2599 = vmatpush.msra.mxu0 %v2561
    %2600 = vmatmul.f32.gmra.mxu0 %v269
    %v2601 = vpop.f32.mrf.mxu0
    %v2602 = vadd.f32 0.0, %v2601
    %2603 = vmatmul.f32.gmra.mxu0 %v272
    %v2604 = vpop.f32.mrf.mxu0
    %v2605 = vadd.f32 0.0, %v2604
    %2606 = vmatmul.f32.gmra.mxu0 %v275
    %v2607 = vpop.f32.mrf.mxu0
    %v2608 = vadd.f32 0.0, %v2607
    %2609 = vmatmul.f32.gmra.mxu0 %v278
    %v2610 = vpop.f32.mrf.mxu0
    %v2611 = vadd.f32 0.0, %v2610
    %2612 = vmatmul.f32.gmra.mxu0 %v281
    %v2613 = vpop.f32.mrf.mxu0
    %v2614 = vadd.f32 0.0, %v2613
    %2615 = vmatmul.f32.gmra.mxu0 %v284
    %v2616 = vpop.f32.mrf.mxu0
    %v2617 = vadd.f32 0.0, %v2616
    %2618 = vmatmul.f32.gmra.mxu0 %v287
    %v2619 = vpop.f32.mrf.mxu0
    %v2620 = vadd.f32 0.0, %v2619
    %2621 = vmatmul.f32.gmra.mxu0 %v290
    %v2622 = vpop.f32.mrf.mxu0
    %v2623 = vadd.f32 0.0, %v2622
    %2624 = vdwg.mxu0
    %2625 = vmatpush.msra.mxu0 0.0
    %2626 = vmatpush.msra.mxu0 0.0
    %2627 = vmatpush.msra.mxu0 0.0
    %2628 = vmatpush.msra.mxu0 0.0
    %2629 = vmatpush.msra.mxu0 0.0
    %2630 = vmatpush.msra.mxu0 0.0
    %2631 = vmatpush.msra.mxu0 0.0
    %2632 = vmatpush.msra.mxu0 0.0
    %2633 = vmatpush.msra.mxu0 0.0
    %2634 = vmatpush.msra.mxu0 0.0
    %2635 = vmatpush.msra.mxu0 0.0
    %2636 = vmatpush.msra.mxu0 0.0
    %2637 = vmatpush.msra.mxu0 0.0
    %2638 = vmatpush.msra.mxu0 0.0
    %2639 = vmatpush.msra.mxu0 0.0
    %2640 = vmatpush.msra.mxu0 %v2564
    %2641 = vmatmul.f32.gmra.mxu0 %v269
    %v2642 = vpop.f32.mrf.mxu0
    %v2643 = vadd.f32 0.0, %v2642
    %2644 = vmatmul.f32.gmra.mxu0 %v272
    %v2645 = vpop.f32.mrf.mxu0
    %v2646 = vadd.f32 0.0, %v2645
    %2647 = vmatmul.f32.gmra.mxu0 %v275
    %v2648 = vpop.f32.mrf.mxu0
    %v2649 = vadd.f32 0.0, %v2648
    %2650 = vmatmul.f32.gmra.mxu0 %v278
    %v2651 = vpop.f32.mrf.mxu0
    %v2652 = vadd.f32 0.0, %v2651
    %2653 = vmatmul.f32.gmra.mxu0 %v281
    %v2654 = vpop.f32.mrf.mxu0
    %v2655 = vadd.f32 0.0, %v2654
    %2656 = vmatmul.f32.gmra.mxu0 %v284
    %v2657 = vpop.f32.mrf.mxu0
    %v2658 = vadd.f32 0.0, %v2657
    %2659 = vmatmul.f32.gmra.mxu0 %v287
    %v2660 = vpop.f32.mrf.mxu0
    %v2661 = vadd.f32 0.0, %v2660
    %2662 = vmatmul.f32.gmra.mxu0 %v290
    %v2663 = vpop.f32.mrf.mxu0
    %v2664 = vadd.f32 0.0, %v2663
    %2665 = vdwg.mxu0
    %2666 = vmatpush.msra.mxu0 0.0
    %2667 = vmatpush.msra.mxu0 0.0
    %2668 = vmatpush.msra.mxu0 0.0
    %2669 = vmatpush.msra.mxu0 0.0
    %2670 = vmatpush.msra.mxu0 0.0
    %2671 = vmatpush.msra.mxu0 0.0
    %2672 = vmatpush.msra.mxu0 0.0
    %2673 = vmatpush.msra.mxu0 0.0
    %2674 = vmatpush.msra.mxu0 0.0
    %2675 = vmatpush.msra.mxu0 0.0
    %2676 = vmatpush.msra.mxu0 0.0
    %2677 = vmatpush.msra.mxu0 0.0
    %2678 = vmatpush.msra.mxu0 0.0
    %2679 = vmatpush.msra.mxu0 0.0
    %2680 = vmatpush.msra.mxu0 0.0
    %2681 = vmatpush.msra.mxu0 %v2567
    %2682 = vmatmul.f32.gmra.mxu0 %v269
    %v2683 = vpop.f32.mrf.mxu0
    %v2684 = vadd.f32 0.0, %v2683
    %2685 = vmatmul.f32.gmra.mxu0 %v272
    %v2686 = vpop.f32.mrf.mxu0
    %v2687 = vadd.f32 0.0, %v2686
    %2688 = vmatmul.f32.gmra.mxu0 %v275
    %v2689 = vpop.f32.mrf.mxu0
    %v2690 = vadd.f32 0.0, %v2689
    %2691 = vmatmul.f32.gmra.mxu0 %v278
    %v2692 = vpop.f32.mrf.mxu0
    %v2693 = vadd.f32 0.0, %v2692
    %2694 = vmatmul.f32.gmra.mxu0 %v281
    %v2695 = vpop.f32.mrf.mxu0
    %v2696 = vadd.f32 0.0, %v2695
    %2697 = vmatmul.f32.gmra.mxu0 %v284
    %v2698 = vpop.f32.mrf.mxu0
    %v2699 = vadd.f32 0.0, %v2698
    %2700 = vmatmul.f32.gmra.mxu0 %v287
    %v2701 = vpop.f32.mrf.mxu0
    %v2702 = vadd.f32 0.0, %v2701
    %2703 = vmatmul.f32.gmra.mxu0 %v290
    %v2704 = vpop.f32.mrf.mxu0
    %v2705 = vadd.f32 0.0, %v2704
    %2706 = vdwg.mxu0
    %2707 = vmatpush.msra.mxu0 0.0
    %2708 = vmatpush.msra.mxu0 0.0
    %2709 = vmatpush.msra.mxu0 0.0
    %2710 = vmatpush.msra.mxu0 0.0
    %2711 = vmatpush.msra.mxu0 0.0
    %2712 = vmatpush.msra.mxu0 0.0
    %2713 = vmatpush.msra.mxu0 0.0
    %2714 = vmatpush.msra.mxu0 0.0
    %2715 = vmatpush.msra.mxu0 0.0
    %2716 = vmatpush.msra.mxu0 0.0
    %2717 = vmatpush.msra.mxu0 0.0
    %2718 = vmatpush.msra.mxu0 0.0
    %2719 = vmatpush.msra.mxu0 0.0
    %2720 = vmatpush.msra.mxu0 0.0
    %2721 = vmatpush.msra.mxu0 0.0
    %2722 = vmatpush.msra.mxu0 %v2570
    %2723 = vmatmul.f32.gmra.mxu0 %v269
    %v2724 = vpop.f32.mrf.mxu0
    %v2725 = vadd.f32 0.0, %v2724
    %2726 = vmatmul.f32.gmra.mxu0 %v272
    %v2727 = vpop.f32.mrf.mxu0
    %v2728 = vadd.f32 0.0, %v2727
    %2729 = vmatmul.f32.gmra.mxu0 %v275
    %v2730 = vpop.f32.mrf.mxu0
    %v2731 = vadd.f32 0.0, %v2730
    %2732 = vmatmul.f32.gmra.mxu0 %v278
    %v2733 = vpop.f32.mrf.mxu0
    %v2734 = vadd.f32 0.0, %v2733
    %2735 = vmatmul.f32.gmra.mxu0 %v281
    %v2736 = vpop.f32.mrf.mxu0
    %v2737 = vadd.f32 0.0, %v2736
    %2738 = vmatmul.f32.gmra.mxu0 %v284
    %v2739 = vpop.f32.mrf.mxu0
    %v2740 = vadd.f32 0.0, %v2739
    %2741 = vmatmul.f32.gmra.mxu0 %v287
    %v2742 = vpop.f32.mrf.mxu0
    %v2743 = vadd.f32 0.0, %v2742
    %2744 = vmatmul.f32.gmra.mxu0 %v290
    %v2745 = vpop.f32.mrf.mxu0
    %v2746 = vadd.f32 0.0, %v2745
    %2747 = vdwg.mxu0
    %2748 = vmatpush.msra.mxu0 0.0
    %2749 = vmatpush.msra.mxu0 0.0
    %2750 = vmatpush.msra.mxu0 0.0
    %2751 = vmatpush.msra.mxu0 0.0
    %2752 = vmatpush.msra.mxu0 0.0
    %2753 = vmatpush.msra.mxu0 0.0
    %2754 = vmatpush.msra.mxu0 0.0
    %2755 = vmatpush.msra.mxu0 0.0
    %2756 = vmatpush.msra.mxu0 0.0
    %2757 = vmatpush.msra.mxu0 0.0
    %2758 = vmatpush.msra.mxu0 0.0
    %2759 = vmatpush.msra.mxu0 0.0
    %2760 = vmatpush.msra.mxu0 0.0
    %2761 = vmatpush.msra.mxu0 0.0
    %2762 = vmatpush.msra.mxu0 0.0
    %2763 = vmatpush.msra.mxu0 %v2573
    %2764 = vmatmul.f32.gmra.mxu0 %v269
    %v2765 = vpop.f32.mrf.mxu0
    %v2766 = vadd.f32 0.0, %v2765
    %2767 = vmatmul.f32.gmra.mxu0 %v272
    %v2768 = vpop.f32.mrf.mxu0
    %v2769 = vadd.f32 0.0, %v2768
    %2770 = vmatmul.f32.gmra.mxu0 %v275
    %v2771 = vpop.f32.mrf.mxu0
    %v2772 = vadd.f32 0.0, %v2771
    %2773 = vmatmul.f32.gmra.mxu0 %v278
    %v2774 = vpop.f32.mrf.mxu0
    %v2775 = vadd.f32 0.0, %v2774
    %2776 = vmatmul.f32.gmra.mxu0 %v281
    %v2777 = vpop.f32.mrf.mxu0
    %v2778 = vadd.f32 0.0, %v2777
    %2779 = vmatmul.f32.gmra.mxu0 %v284
    %v2780 = vpop.f32.mrf.mxu0
    %v2781 = vadd.f32 0.0, %v2780
    %2782 = vmatmul.f32.gmra.mxu0 %v287
    %v2783 = vpop.f32.mrf.mxu0
    %v2784 = vadd.f32 0.0, %v2783
    %2785 = vmatmul.f32.gmra.mxu0 %v290
    %v2786 = vpop.f32.mrf.mxu0
    %v2787 = vadd.f32 0.0, %v2786
    %2788 = vdwg.mxu0
    %2789 = vmatpush.msra.mxu0 0.0
    %2790 = vmatpush.msra.mxu0 0.0
    %2791 = vmatpush.msra.mxu0 0.0
    %2792 = vmatpush.msra.mxu0 0.0
    %2793 = vmatpush.msra.mxu0 0.0
    %2794 = vmatpush.msra.mxu0 0.0
    %2795 = vmatpush.msra.mxu0 0.0
    %2796 = vmatpush.msra.mxu0 0.0
    %2797 = vmatpush.msra.mxu0 0.0
    %2798 = vmatpush.msra.mxu0 0.0
    %2799 = vmatpush.msra.mxu0 0.0
    %2800 = vmatpush.msra.mxu0 0.0
    %2801 = vmatpush.msra.mxu0 0.0
    %2802 = vmatpush.msra.mxu0 0.0
    %2803 = vmatpush.msra.mxu0 0.0
    %2804 = vmatpush.msra.mxu0 %v2576
    %2805 = vmatmul.f32.gmra.mxu0 %v269
    %v2806 = vpop.f32.mrf.mxu0
    %v2807 = vadd.f32 0.0, %v2806
    %2808 = vmatmul.f32.gmra.mxu0 %v272
    %v2809 = vpop.f32.mrf.mxu0
    %v2810 = vadd.f32 0.0, %v2809
    %2811 = vmatmul.f32.gmra.mxu0 %v275
    %v2812 = vpop.f32.mrf.mxu0
    %v2813 = vadd.f32 0.0, %v2812
    %2814 = vmatmul.f32.gmra.mxu0 %v278
    %v2815 = vpop.f32.mrf.mxu0
    %v2816 = vadd.f32 0.0, %v2815
    %2817 = vmatmul.f32.gmra.mxu0 %v281
    %v2818 = vpop.f32.mrf.mxu0
    %v2819 = vadd.f32 0.0, %v2818
    %2820 = vmatmul.f32.gmra.mxu0 %v284
    %v2821 = vpop.f32.mrf.mxu0
    %v2822 = vadd.f32 0.0, %v2821
    %2823 = vmatmul.f32.gmra.mxu0 %v287
    %v2824 = vpop.f32.mrf.mxu0
    %v2825 = vadd.f32 0.0, %v2824
    %2826 = vmatmul.f32.gmra.mxu0 %v290
    %v2827 = vpop.f32.mrf.mxu0
    %v2828 = vadd.f32 0.0, %v2827
    %2829 = vdwg.mxu0
    %2830 = vmatpush.msra.mxu0 0.0
    %2831 = vmatpush.msra.mxu0 0.0
    %2832 = vmatpush.msra.mxu0 0.0
    %2833 = vmatpush.msra.mxu0 0.0
    %2834 = vmatpush.msra.mxu0 0.0
    %2835 = vmatpush.msra.mxu0 0.0
    %2836 = vmatpush.msra.mxu0 0.0
    %2837 = vmatpush.msra.mxu0 0.0
    %2838 = vmatpush.msra.mxu0 0.0
    %2839 = vmatpush.msra.mxu0 0.0
    %2840 = vmatpush.msra.mxu0 0.0
    %2841 = vmatpush.msra.mxu0 0.0
    %2842 = vmatpush.msra.mxu0 0.0
    %2843 = vmatpush.msra.mxu0 0.0
    %2844 = vmatpush.msra.mxu0 0.0
    %2845 = vmatpush.msra.mxu0 %v2579
    %2846 = vmatmul.f32.gmra.mxu0 %v269
    %v2847 = vpop.f32.mrf.mxu0
    %v2848 = vadd.f32 0.0, %v2847
    %2849 = vmatmul.f32.gmra.mxu0 %v272
    %v2850 = vpop.f32.mrf.mxu0
    %v2851 = vadd.f32 0.0, %v2850
    %2852 = vmatmul.f32.gmra.mxu0 %v275
    %v2853 = vpop.f32.mrf.mxu0
    %v2854 = vadd.f32 0.0, %v2853
    %2855 = vmatmul.f32.gmra.mxu0 %v278
    %v2856 = vpop.f32.mrf.mxu0
    %v2857 = vadd.f32 0.0, %v2856
    %2858 = vmatmul.f32.gmra.mxu0 %v281
    %v2859 = vpop.f32.mrf.mxu0
    %v2860 = vadd.f32 0.0, %v2859
    %2861 = vmatmul.f32.gmra.mxu0 %v284
    %v2862 = vpop.f32.mrf.mxu0
    %v2863 = vadd.f32 0.0, %v2862
    %2864 = vmatmul.f32.gmra.mxu0 %v287
    %v2865 = vpop.f32.mrf.mxu0
    %v2866 = vadd.f32 0.0, %v2865
    %2867 = vmatmul.f32.gmra.mxu0 %v290
    %v2868 = vpop.f32.mrf.mxu0
    %v2869 = vadd.f32 0.0, %v2868
    %2870 = vdwg.mxu0
    %2871 = vmatpush.msra.mxu0 0.0
    %2872 = vmatpush.msra.mxu0 0.0
    %2873 = vmatpush.msra.mxu0 0.0
    %2874 = vmatpush.msra.mxu0 0.0
    %2875 = vmatpush.msra.mxu0 0.0
    %2876 = vmatpush.msra.mxu0 0.0
    %2877 = vmatpush.msra.mxu0 0.0
    %2878 = vmatpush.msra.mxu0 0.0
    %2879 = vmatpush.msra.mxu0 0.0
    %2880 = vmatpush.msra.mxu0 0.0
    %2881 = vmatpush.msra.mxu0 0.0
    %2882 = vmatpush.msra.mxu0 0.0
    %2883 = vmatpush.msra.mxu0 0.0
    %2884 = vmatpush.msra.mxu0 0.0
    %2885 = vmatpush.msra.mxu0 0.0
    %2886 = vmatpush.msra.mxu0 %v2582
    %2887 = vmatmul.f32.gmra.mxu0 %v269
    %v2888 = vpop.f32.mrf.mxu0
    %v2889 = vadd.f32 0.0, %v2888
    %2890 = vmatmul.f32.gmra.mxu0 %v272
    %v2891 = vpop.f32.mrf.mxu0
    %v2892 = vadd.f32 0.0, %v2891
    %2893 = vmatmul.f32.gmra.mxu0 %v275
    %v2894 = vpop.f32.mrf.mxu0
    %v2895 = vadd.f32 0.0, %v2894
    %2896 = vmatmul.f32.gmra.mxu0 %v278
    %v2897 = vpop.f32.mrf.mxu0
    %v2898 = vadd.f32 0.0, %v2897
    %2899 = vmatmul.f32.gmra.mxu0 %v281
    %v2900 = vpop.f32.mrf.mxu0
    %v2901 = vadd.f32 0.0, %v2900
    %2902 = vmatmul.f32.gmra.mxu0 %v284
    %v2903 = vpop.f32.mrf.mxu0
    %v2904 = vadd.f32 0.0, %v2903
    %2905 = vmatmul.f32.gmra.mxu0 %v287
    %v2906 = vpop.f32.mrf.mxu0
    %v2907 = vadd.f32 0.0, %v2906
    %2908 = vmatmul.f32.gmra.mxu0 %v290
    %v2909 = vpop.f32.mrf.mxu0
    %v2910 = vadd.f32 0.0, %v2909
    %2911 = vdwg.mxu0
    %v2912 = vsub.f32 %v1846, %v2602
    %v2913 = vsub.f32 %v1875, %v2643
    %v2914 = vsub.f32 %v1904, %v2684
    %v2915 = vsub.f32 %v1933, %v2725
    %v2916 = vsub.f32 %v1962, %v2766
    %v2917 = vsub.f32 %v1991, %v2807
    %v2918 = vsub.f32 %v2020, %v2848
    %v2919 = vsub.f32 %v2049, %v2889
    %v2920 = vsub.f32 %v1848, %v2605
    %v2921 = vsub.f32 %v1877, %v2646
    %v2922 = vsub.f32 %v1906, %v2687
    %v2923 = vsub.f32 %v1935, %v2728
    %v2924 = vsub.f32 %v1964, %v2769
    %v2925 = vsub.f32 %v1993, %v2810
    %v2926 = vsub.f32 %v2022, %v2851
    %v2927 = vsub.f32 %v2051, %v2892
    %v2928 = vsub.f32 %v1851, %v2608
    %v2929 = vsub.f32 %v1880, %v2649
    %v2930 = vsub.f32 %v1909, %v2690
    %v2931 = vsub.f32 %v1938, %v2731
    %v2932 = vsub.f32 %v1967, %v2772
    %v2933 = vsub.f32 %v1996, %v2813
    %v2934 = vsub.f32 %v2025, %v2854
    %v2935 = vsub.f32 %v2054, %v2895
    %v2936 = vsub.f32 %v1853, %v2611
    %v2937 = vsub.f32 %v1882, %v2652
    %v2938 = vsub.f32 %v1911, %v2693
    %v2939 = vsub.f32 %v1940, %v2734
    %v2940 = vsub.f32 %v1969, %v2775
    %v2941 = vsub.f32 %v1998, %v2816
    %v2942 = vsub.f32 %v2027, %v2857
    %v2943 = vsub.f32 %v2056, %v2898
    %v2944 = vsub.f32 %v1856, %v2614
    %v2945 = vsub.f32 %v1885, %v2655
    %v2946 = vsub.f32 %v1914, %v2696
    %v2947 = vsub.f32 %v1943, %v2737
    %v2948 = vsub.f32 %v1972, %v2778
    %v2949 = vsub.f32 %v2001, %v2819
    %v2950 = vsub.f32 %v2030, %v2860
    %v2951 = vsub.f32 %v2059, %v2901
    %v2952 = vsub.f32 %v1858, %v2617
    %v2953 = vsub.f32 %v1887, %v2658
    %v2954 = vsub.f32 %v1916, %v2699
    %v2955 = vsub.f32 %v1945, %v2740
    %v2956 = vsub.f32 %v1974, %v2781
    %v2957 = vsub.f32 %v2003, %v2822
    %v2958 = vsub.f32 %v2032, %v2863
    %v2959 = vsub.f32 %v2061, %v2904
    %v2960 = vsub.f32 %v1861, %v2620
    %v2961 = vsub.f32 %v1890, %v2661
    %v2962 = vsub.f32 %v1919, %v2702
    %v2963 = vsub.f32 %v1948, %v2743
    %v2964 = vsub.f32 %v1977, %v2784
    %v2965 = vsub.f32 %v2006, %v2825
    %v2966 = vsub.f32 %v2035, %v2866
    %v2967 = vsub.f32 %v2064, %v2907
    %v2968 = vsub.f32 %v1863, %v2623
    %v2969 = vsub.f32 %v1892, %v2664
    %v2970 = vsub.f32 %v1921, %v2705
    %v2971 = vsub.f32 %v1950, %v2746
    %v2972 = vsub.f32 %v1979, %v2787
    %v2973 = vsub.f32 %v2008, %v2828
    %v2974 = vsub.f32 %v2037, %v2869
    %v2975 = vsub.f32 %v2066, %v2910
    %v2976 = vmul.f32 %v2912, %v2912
    %v2977 = vmul.f32 %v2913, %v2913
    %v2978 = vmul.f32 %v2914, %v2914
    %v2979 = vmul.f32 %v2915, %v2915
    %v2980 = vmul.f32 %v2916, %v2916
    %v2981 = vmul.f32 %v2917, %v2917
    %v2982 = vmul.f32 %v2918, %v2918
    %v2983 = vmul.f32 %v2919, %v2919
    %v2984 = vmul.f32 %v2920, %v2920
    %v2985 = vmul.f32 %v2921, %v2921
    %v2986 = vmul.f32 %v2922, %v2922
    %v2987 = vmul.f32 %v2923, %v2923
    %v2988 = vmul.f32 %v2924, %v2924
    %v2989 = vmul.f32 %v2925, %v2925
    %v2990 = vmul.f32 %v2926, %v2926
    %v2991 = vmul.f32 %v2927, %v2927
    %v2992 = vmul.f32 %v2928, %v2928
    %v2993 = vmul.f32 %v2929, %v2929
    %v2994 = vmul.f32 %v2930, %v2930
    %v2995 = vmul.f32 %v2931, %v2931
    %v2996 = vmul.f32 %v2932, %v2932
    %v2997 = vmul.f32 %v2933, %v2933
    %v2998 = vmul.f32 %v2934, %v2934
    %v2999 = vmul.f32 %v2935, %v2935
    %v3000 = vmul.f32 %v2936, %v2936
    %v3001 = vmul.f32 %v2937, %v2937
    %v3002 = vmul.f32 %v2938, %v2938
    %v3003 = vmul.f32 %v2939, %v2939
    %v3004 = vmul.f32 %v2940, %v2940
    %v3005 = vmul.f32 %v2941, %v2941
    %v3006 = vmul.f32 %v2942, %v2942
    %v3007 = vmul.f32 %v2943, %v2943
    %v3008 = vmul.f32 %v2944, %v2944
    %v3009 = vmul.f32 %v2945, %v2945
    %v3010 = vmul.f32 %v2946, %v2946
    %v3011 = vmul.f32 %v2947, %v2947
    %v3012 = vmul.f32 %v2948, %v2948
    %v3013 = vmul.f32 %v2949, %v2949
    %v3014 = vmul.f32 %v2950, %v2950
    %v3015 = vmul.f32 %v2951, %v2951
    %v3016 = vmul.f32 %v2952, %v2952
    %v3017 = vmul.f32 %v2953, %v2953
    %v3018 = vmul.f32 %v2954, %v2954
    %v3019 = vmul.f32 %v2955, %v2955
    %v3020 = vmul.f32 %v2956, %v2956
    %v3021 = vmul.f32 %v2957, %v2957
    %v3022 = vmul.f32 %v2958, %v2958
    %v3023 = vmul.f32 %v2959, %v2959
    %v3024 = vmul.f32 %v2960, %v2960
    %v3025 = vmul.f32 %v2961, %v2961
    %v3026 = vmul.f32 %v2962, %v2962
    %v3027 = vmul.f32 %v2963, %v2963
    %v3028 = vmul.f32 %v2964, %v2964
    %v3029 = vmul.f32 %v2965, %v2965
    %v3030 = vmul.f32 %v2966, %v2966
    %v3031 = vmul.f32 %v2967, %v2967
    %v3032 = vmul.f32 %v2968, %v2968
    %v3033 = vmul.f32 %v2969, %v2969
    %v3034 = vmul.f32 %v2970, %v2970
    %v3035 = vmul.f32 %v2971, %v2971
    %v3036 = vmul.f32 %v2972, %v2972
    %v3037 = vmul.f32 %v2973, %v2973
    %v3038 = vmul.f32 %v2974, %v2974
    %v3039 = vmul.f32 %v2975, %v2975
    %3040 = vmatpush.msra.mxu0 0.0
    %3041 = vmatpush.msra.mxu0 0.0
    %3042 = vmatpush.msra.mxu0 0.0
    %3043 = vmatpush.msra.mxu0 0.0
    %3044 = vmatpush.msra.mxu0 0.0
    %3045 = vmatpush.msra.mxu0 0.0
    %3046 = vmatpush.msra.mxu0 0.0
    %3047 = vmatpush.msra.mxu0 0.0
    %3048 = vmatpush.msra.mxu0 %v3032
    %3049 = vmatpush.msra.mxu0 %v3024
    %3050 = vmatpush.msra.mxu0 %v3016
    %3051 = vmatpush.msra.mxu0 %v3008
    %3052 = vmatpush.msra.mxu0 %v3000
    %3053 = vmatpush.msra.mxu0 %v2992
    %3054 = vmatpush.msra.mxu0 %v2984
    %3055 = vmatpush.msra.mxu0 %v2976
    %3056 = vmatmul.f32.gmra.mxu0 %v221
    %v3057 = vpop.f32.mrf.mxu0
    %v3058 = vadd.f32 0.0, %v3057
    %3059 = vdwg.mxu0
    %3060 = vmatpush.msra.mxu0 0.0
    %3061 = vmatpush.msra.mxu0 0.0
    %3062 = vmatpush.msra.mxu0 0.0
    %3063 = vmatpush.msra.mxu0 0.0
    %3064 = vmatpush.msra.mxu0 0.0
    %3065 = vmatpush.msra.mxu0 0.0
    %3066 = vmatpush.msra.mxu0 0.0
    %3067 = vmatpush.msra.mxu0 0.0
    %3068 = vmatpush.msra.mxu0 %v3033
    %3069 = vmatpush.msra.mxu0 %v3025
    %3070 = vmatpush.msra.mxu0 %v3017
    %3071 = vmatpush.msra.mxu0 %v3009
    %3072 = vmatpush.msra.mxu0 %v3001
    %3073 = vmatpush.msra.mxu0 %v2993
    %3074 = vmatpush.msra.mxu0 %v2985
    %3075 = vmatpush.msra.mxu0 %v2977
    %3076 = vmatmul.f32.gmra.mxu0 %v221
    %v3077 = vpop.f32.mrf.mxu0
    %v3078 = vadd.f32 0.0, %v3077
    %3079 = vdwg.mxu0
    %3080 = vmatpush.msra.mxu0 0.0
    %3081 = vmatpush.msra.mxu0 0.0
    %3082 = vmatpush.msra.mxu0 0.0
    %3083 = vmatpush.msra.mxu0 0.0
    %3084 = vmatpush.msra.mxu0 0.0
    %3085 = vmatpush.msra.mxu0 0.0
    %3086 = vmatpush.msra.mxu0 0.0
    %3087 = vmatpush.msra.mxu0 0.0
    %3088 = vmatpush.msra.mxu0 %v3034
    %3089 = vmatpush.msra.mxu0 %v3026
    %3090 = vmatpush.msra.mxu0 %v3018
    %3091 = vmatpush.msra.mxu0 %v3010
    %3092 = vmatpush.msra.mxu0 %v3002
    %3093 = vmatpush.msra.mxu0 %v2994
    %3094 = vmatpush.msra.mxu0 %v2986
    %3095 = vmatpush.msra.mxu0 %v2978
    %3096 = vmatmul.f32.gmra.mxu0 %v221
    %v3097 = vpop.f32.mrf.mxu0
    %v3098 = vadd.f32 0.0, %v3097
    %3099 = vdwg.mxu0
    %3100 = vmatpush.msra.mxu0 0.0
    %3101 = vmatpush.msra.mxu0 0.0
    %3102 = vmatpush.msra.mxu0 0.0
    %3103 = vmatpush.msra.mxu0 0.0
    %3104 = vmatpush.msra.mxu0 0.0
    %3105 = vmatpush.msra.mxu0 0.0
    %3106 = vmatpush.msra.mxu0 0.0
    %3107 = vmatpush.msra.mxu0 0.0
    %3108 = vmatpush.msra.mxu0 %v3035
    %3109 = vmatpush.msra.mxu0 %v3027
    %3110 = vmatpush.msra.mxu0 %v3019
    %3111 = vmatpush.msra.mxu0 %v3011
    %3112 = vmatpush.msra.mxu0 %v3003
    %3113 = vmatpush.msra.mxu0 %v2995
    %3114 = vmatpush.msra.mxu0 %v2987
    %3115 = vmatpush.msra.mxu0 %v2979
    %3116 = vmatmul.f32.gmra.mxu0 %v221
    %v3117 = vpop.f32.mrf.mxu0
    %v3118 = vadd.f32 0.0, %v3117
    %3119 = vdwg.mxu0
    %3120 = vmatpush.msra.mxu0 0.0
    %3121 = vmatpush.msra.mxu0 0.0
    %3122 = vmatpush.msra.mxu0 0.0
    %3123 = vmatpush.msra.mxu0 0.0
    %3124 = vmatpush.msra.mxu0 0.0
    %3125 = vmatpush.msra.mxu0 0.0
    %3126 = vmatpush.msra.mxu0 0.0
    %3127 = vmatpush.msra.mxu0 0.0
    %3128 = vmatpush.msra.mxu0 %v3036
    %3129 = vmatpush.msra.mxu0 %v3028
    %3130 = vmatpush.msra.mxu0 %v3020
    %3131 = vmatpush.msra.mxu0 %v3012
    %3132 = vmatpush.msra.mxu0 %v3004
    %3133 = vmatpush.msra.mxu0 %v2996
    %3134 = vmatpush.msra.mxu0 %v2988
    %3135 = vmatpush.msra.mxu0 %v2980
    %3136 = vmatmul.f32.gmra.mxu0 %v221
    %v3137 = vpop.f32.mrf.mxu0
    %v3138 = vadd.f32 0.0, %v3137
    %3139 = vdwg.mxu0
    %3140 = vmatpush.msra.mxu0 0.0
    %3141 = vmatpush.msra.mxu0 0.0
    %3142 = vmatpush.msra.mxu0 0.0
    %3143 = vmatpush.msra.mxu0 0.0
    %3144 = vmatpush.msra.mxu0 0.0
    %3145 = vmatpush.msra.mxu0 0.0
    %3146 = vmatpush.msra.mxu0 0.0
    %3147 = vmatpush.msra.mxu0 0.0
    %3148 = vmatpush.msra.mxu0 %v3037
    %3149 = vmatpush.msra.mxu0 %v3029
    %3150 = vmatpush.msra.mxu0 %v3021
    %3151 = vmatpush.msra.mxu0 %v3013
    %3152 = vmatpush.msra.mxu0 %v3005
    %3153 = vmatpush.msra.mxu0 %v2997
    %3154 = vmatpush.msra.mxu0 %v2989
    %3155 = vmatpush.msra.mxu0 %v2981
    %3156 = vmatmul.f32.gmra.mxu0 %v221
    %v3157 = vpop.f32.mrf.mxu0
    %v3158 = vadd.f32 0.0, %v3157
    %3159 = vdwg.mxu0
    %3160 = vmatpush.msra.mxu0 0.0
    %3161 = vmatpush.msra.mxu0 0.0
    %3162 = vmatpush.msra.mxu0 0.0
    %3163 = vmatpush.msra.mxu0 0.0
    %3164 = vmatpush.msra.mxu0 0.0
    %3165 = vmatpush.msra.mxu0 0.0
    %3166 = vmatpush.msra.mxu0 0.0
    %3167 = vmatpush.msra.mxu0 0.0
    %3168 = vmatpush.msra.mxu0 %v3038
    %3169 = vmatpush.msra.mxu0 %v3030
    %3170 = vmatpush.msra.mxu0 %v3022
    %3171 = vmatpush.msra.mxu0 %v3014
    %3172 = vmatpush.msra.mxu0 %v3006
    %3173 = vmatpush.msra.mxu0 %v2998
    %3174 = vmatpush.msra.mxu0 %v2990
    %3175 = vmatpush.msra.mxu0 %v2982
    %3176 = vmatmul.f32.gmra.mxu0 %v221
    %v3177 = vpop.f32.mrf.mxu0
    %v3178 = vadd.f32 0.0, %v3177
    %3179 = vdwg.mxu0
    %3180 = vmatpush.msra.mxu0 0.0
    %3181 = vmatpush.msra.mxu0 0.0
    %3182 = vmatpush.msra.mxu0 0.0
    %3183 = vmatpush.msra.mxu0 0.0
    %3184 = vmatpush.msra.mxu0 0.0
    %3185 = vmatpush.msra.mxu0 0.0
    %3186 = vmatpush.msra.mxu0 0.0
    %3187 = vmatpush.msra.mxu0 0.0
    %3188 = vmatpush.msra.mxu0 %v3039
    %3189 = vmatpush.msra.mxu0 %v3031
    %3190 = vmatpush.msra.mxu0 %v3023
    %3191 = vmatpush.msra.mxu0 %v3015
    %3192 = vmatpush.msra.mxu0 %v3007
    %3193 = vmatpush.msra.mxu0 %v2999
    %3194 = vmatpush.msra.mxu0 %v2991
    %3195 = vmatpush.msra.mxu0 %v2983
    %3196 = vmatmul.f32.gmra.mxu0 %v221
    %v3197 = vpop.f32.mrf.mxu0
    %v3198 = vadd.f32 0.0, %v3197
    %3199 = vdwg.mxu0
    %3200 = vmatpush.xpose.msra.mxu0 0.0
    %3201 = vmatpush.xpose.msra.mxu0 0.0
    %3202 = vmatpush.xpose.msra.mxu0 0.0
    %3203 = vmatpush.xpose.msra.mxu0 0.0
    %3204 = vmatpush.xpose.msra.mxu0 0.0
    %3205 = vmatpush.xpose.msra.mxu0 0.0
    %3206 = vmatpush.xpose.msra.mxu0 0.0
    %3207 = vmatpush.xpose.msra.mxu0 0.0
    %3208 = vmatpush.xpose.msra.mxu0 0.0
    %3209 = vmatpush.xpose.msra.mxu0 0.0
    %3210 = vmatpush.xpose.msra.mxu0 0.0
    %3211 = vmatpush.xpose.msra.mxu0 0.0
    %3212 = vmatpush.xpose.msra.mxu0 0.0
    %3213 = vmatpush.xpose.msra.mxu0 0.0
    %3214 = vmatpush.xpose.msra.mxu0 %v96
    %3215 = vmatpush.xpose.msra.mxu0 %v88
    %3216 = vmatmul.f32.gmra.mxu0 %v3058
    %v3217 = vpop.f32.mrf.mxu0
    %v3218 = vadd.f32 0.0, %v3217
    %3219 = vdwg.mxu0
    %3220 = vmatpush.xpose.msra.mxu0 0.0
    %3221 = vmatpush.xpose.msra.mxu0 0.0
    %3222 = vmatpush.xpose.msra.mxu0 0.0
    %3223 = vmatpush.xpose.msra.mxu0 0.0
    %3224 = vmatpush.xpose.msra.mxu0 0.0
    %3225 = vmatpush.xpose.msra.mxu0 0.0
    %3226 = vmatpush.xpose.msra.mxu0 0.0
    %3227 = vmatpush.xpose.msra.mxu0 0.0
    %3228 = vmatpush.xpose.msra.mxu0 0.0
    %3229 = vmatpush.xpose.msra.mxu0 0.0
    %3230 = vmatpush.xpose.msra.mxu0 0.0
    %3231 = vmatpush.xpose.msra.mxu0 0.0
    %3232 = vmatpush.xpose.msra.mxu0 0.0
    %3233 = vmatpush.xpose.msra.mxu0 0.0
    %3234 = vmatpush.xpose.msra.mxu0 %v97
    %3235 = vmatpush.xpose.msra.mxu0 %v89
    %3236 = vmatmul.f32.gmra.mxu0 %v3078
    %v3237 = vpop.f32.mrf.mxu0
    %v3238 = vadd.f32 %v3218, %v3237
    %3239 = vdwg.mxu0
    %3240 = vmatpush.xpose.msra.mxu0 0.0
    %3241 = vmatpush.xpose.msra.mxu0 0.0
    %3242 = vmatpush.xpose.msra.mxu0 0.0
    %3243 = vmatpush.xpose.msra.mxu0 0.0
    %3244 = vmatpush.xpose.msra.mxu0 0.0
    %3245 = vmatpush.xpose.msra.mxu0 0.0
    %3246 = vmatpush.xpose.msra.mxu0 0.0
    %3247 = vmatpush.xpose.msra.mxu0 0.0
    %3248 = vmatpush.xpose.msra.mxu0 0.0
    %3249 = vmatpush.xpose.msra.mxu0 0.0
    %3250 = vmatpush.xpose.msra.mxu0 0.0
    %3251 = vmatpush.xpose.msra.mxu0 0.0
    %3252 = vmatpush.xpose.msra.mxu0 0.0
    %3253 = vmatpush.xpose.msra.mxu0 0.0
    %3254 = vmatpush.xpose.msra.mxu0 %v98
    %3255 = vmatpush.xpose.msra.mxu0 %v90
    %3256 = vmatmul.f32.gmra.mxu0 %v3098
    %v3257 = vpop.f32.mrf.mxu0
    %v3258 = vadd.f32 %v3238, %v3257
    %3259 = vdwg.mxu0
    %3260 = vmatpush.xpose.msra.mxu0 0.0
    %3261 = vmatpush.xpose.msra.mxu0 0.0
    %3262 = vmatpush.xpose.msra.mxu0 0.0
    %3263 = vmatpush.xpose.msra.mxu0 0.0
    %3264 = vmatpush.xpose.msra.mxu0 0.0
    %3265 = vmatpush.xpose.msra.mxu0 0.0
    %3266 = vmatpush.xpose.msra.mxu0 0.0
    %3267 = vmatpush.xpose.msra.mxu0 0.0
    %3268 = vmatpush.xpose.msra.mxu0 0.0
    %3269 = vmatpush.xpose.msra.mxu0 0.0
    %3270 = vmatpush.xpose.msra.mxu0 0.0
    %3271 = vmatpush.xpose.msra.mxu0 0.0
    %3272 = vmatpush.xpose.msra.mxu0 0.0
    %3273 = vmatpush.xpose.msra.mxu0 0.0
    %3274 = vmatpush.xpose.msra.mxu0 %v99
    %3275 = vmatpush.xpose.msra.mxu0 %v91
    %3276 = vmatmul.f32.gmra.mxu0 %v3118
    %v3277 = vpop.f32.mrf.mxu0
    %v3278 = vadd.f32 %v3258, %v3277
    %3279 = vdwg.mxu0
    %3280 = vmatpush.xpose.msra.mxu0 0.0
    %3281 = vmatpush.xpose.msra.mxu0 0.0
    %3282 = vmatpush.xpose.msra.mxu0 0.0
    %3283 = vmatpush.xpose.msra.mxu0 0.0
    %3284 = vmatpush.xpose.msra.mxu0 0.0
    %3285 = vmatpush.xpose.msra.mxu0 0.0
    %3286 = vmatpush.xpose.msra.mxu0 0.0
    %3287 = vmatpush.xpose.msra.mxu0 0.0
    %3288 = vmatpush.xpose.msra.mxu0 0.0
    %3289 = vmatpush.xpose.msra.mxu0 0.0
    %3290 = vmatpush.xpose.msra.mxu0 0.0
    %3291 = vmatpush.xpose.msra.mxu0 0.0
    %3292 = vmatpush.xpose.msra.mxu0 0.0
    %3293 = vmatpush.xpose.msra.mxu0 0.0
    %3294 = vmatpush.xpose.msra.mxu0 %v100
    %3295 = vmatpush.xpose.msra.mxu0 %v92
    %3296 = vmatmul.f32.gmra.mxu0 %v3138
    %v3297 = vpop.f32.mrf.mxu0
    %v3298 = vadd.f32 %v3278, %v3297
    %3299 = vdwg.mxu0
    %3300 = vmatpush.xpose.msra.mxu0 0.0
    %3301 = vmatpush.xpose.msra.mxu0 0.0
    %3302 = vmatpush.xpose.msra.mxu0 0.0
    %3303 = vmatpush.xpose.msra.mxu0 0.0
    %3304 = vmatpush.xpose.msra.mxu0 0.0
    %3305 = vmatpush.xpose.msra.mxu0 0.0
    %3306 = vmatpush.xpose.msra.mxu0 0.0
    %3307 = vmatpush.xpose.msra.mxu0 0.0
    %3308 = vmatpush.xpose.msra.mxu0 0.0
    %3309 = vmatpush.xpose.msra.mxu0 0.0
    %3310 = vmatpush.xpose.msra.mxu0 0.0
    %3311 = vmatpush.xpose.msra.mxu0 0.0
    %3312 = vmatpush.xpose.msra.mxu0 0.0
    %3313 = vmatpush.xpose.msra.mxu0 0.0
    %3314 = vmatpush.xpose.msra.mxu0 %v101
    %3315 = vmatpush.xpose.msra.mxu0 %v93
    %3316 = vmatmul.f32.gmra.mxu0 %v3158
    %v3317 = vpop.f32.mrf.mxu0
    %v3318 = vadd.f32 %v3298, %v3317
    %3319 = vdwg.mxu0
    %3320 = vmatpush.xpose.msra.mxu0 0.0
    %3321 = vmatpush.xpose.msra.mxu0 0.0
    %3322 = vmatpush.xpose.msra.mxu0 0.0
    %3323 = vmatpush.xpose.msra.mxu0 0.0
    %3324 = vmatpush.xpose.msra.mxu0 0.0
    %3325 = vmatpush.xpose.msra.mxu0 0.0
    %3326 = vmatpush.xpose.msra.mxu0 0.0
    %3327 = vmatpush.xpose.msra.mxu0 0.0
    %3328 = vmatpush.xpose.msra.mxu0 0.0
    %3329 = vmatpush.xpose.msra.mxu0 0.0
    %3330 = vmatpush.xpose.msra.mxu0 0.0
    %3331 = vmatpush.xpose.msra.mxu0 0.0
    %3332 = vmatpush.xpose.msra.mxu0 0.0
    %3333 = vmatpush.xpose.msra.mxu0 0.0
    %3334 = vmatpush.xpose.msra.mxu0 %v102
    %3335 = vmatpush.xpose.msra.mxu0 %v94
    %3336 = vmatmul.f32.gmra.mxu0 %v3178
    %v3337 = vpop.f32.mrf.mxu0
    %v3338 = vadd.f32 %v3318, %v3337
    %3339 = vdwg.mxu0
    %3340 = vmatpush.xpose.msra.mxu0 0.0
    %3341 = vmatpush.xpose.msra.mxu0 0.0
    %3342 = vmatpush.xpose.msra.mxu0 0.0
    %3343 = vmatpush.xpose.msra.mxu0 0.0
    %3344 = vmatpush.xpose.msra.mxu0 0.0
    %3345 = vmatpush.xpose.msra.mxu0 0.0
    %3346 = vmatpush.xpose.msra.mxu0 0.0
    %3347 = vmatpush.xpose.msra.mxu0 0.0
    %3348 = vmatpush.xpose.msra.mxu0 0.0
    %3349 = vmatpush.xpose.msra.mxu0 0.0
    %3350 = vmatpush.xpose.msra.mxu0 0.0
    %3351 = vmatpush.xpose.msra.mxu0 0.0
    %3352 = vmatpush.xpose.msra.mxu0 0.0
    %3353 = vmatpush.xpose.msra.mxu0 0.0
    %3354 = vmatpush.xpose.msra.mxu0 %v103
    %3355 = vmatpush.xpose.msra.mxu0 %v95
    %3356 = vmatmul.f32.gmra.mxu0 %v3198
    %v3357 = vpop.f32.mrf.mxu0
    %v3358 = vadd.f32 %v3338, %v3357
    %3359 = vdwg.mxu0
    %v3361 = vsel %vm2388, %v3358, 0
    %3363 = vmatpush.msra.mxu0 0.0
    %3364 = vmatpush.msra.mxu0 0.0
    %3365 = vmatpush.msra.mxu0 0.0
    %3366 = vmatpush.msra.mxu0 0.0
    %3367 = vmatpush.msra.mxu0 0.0
    %3368 = vmatpush.msra.mxu0 0.0
    %3369 = vmatpush.msra.mxu0 0.0
    %3370 = vmatpush.msra.mxu0 0.0
    %3371 = vmatpush.msra.mxu0 0.0
    %3372 = vmatpush.msra.mxu0 0.0
    %3373 = vmatpush.msra.mxu0 0.0
    %3374 = vmatpush.msra.mxu0 0.0
    %3375 = vmatpush.msra.mxu0 0.0
    %3376 = vmatpush.msra.mxu0 0.0
    %3377 = vmatpush.msra.mxu0 %v96
    %3378 = vmatpush.msra.mxu0 %v88
    %3379 = vmatmul.f32.gmra.mxu0 %v3361
    %v3380 = vpop.f32.mrf.mxu0
    %v3381 = vadd.f32 0.0, %v3380
    %3382 = vdwg.mxu0
    %3383 = vmatpush.msra.mxu0 0.0
    %3384 = vmatpush.msra.mxu0 0.0
    %3385 = vmatpush.msra.mxu0 0.0
    %3386 = vmatpush.msra.mxu0 0.0
    %3387 = vmatpush.msra.mxu0 0.0
    %3388 = vmatpush.msra.mxu0 0.0
    %3389 = vmatpush.msra.mxu0 0.0
    %3390 = vmatpush.msra.mxu0 0.0
    %3391 = vmatpush.msra.mxu0 0.0
    %3392 = vmatpush.msra.mxu0 0.0
    %3393 = vmatpush.msra.mxu0 0.0
    %3394 = vmatpush.msra.mxu0 0.0
    %3395 = vmatpush.msra.mxu0 0.0
    %3396 = vmatpush.msra.mxu0 0.0
    %3397 = vmatpush.msra.mxu0 %v97
    %3398 = vmatpush.msra.mxu0 %v89
    %3399 = vmatmul.f32.gmra.mxu0 %v3361
    %v3400 = vpop.f32.mrf.mxu0
    %v3401 = vadd.f32 0.0, %v3400
    %3402 = vdwg.mxu0
    %3403 = vmatpush.msra.mxu0 0.0
    %3404 = vmatpush.msra.mxu0 0.0
    %3405 = vmatpush.msra.mxu0 0.0
    %3406 = vmatpush.msra.mxu0 0.0
    %3407 = vmatpush.msra.mxu0 0.0
    %3408 = vmatpush.msra.mxu0 0.0
    %3409 = vmatpush.msra.mxu0 0.0
    %3410 = vmatpush.msra.mxu0 0.0
    %3411 = vmatpush.msra.mxu0 0.0
    %3412 = vmatpush.msra.mxu0 0.0
    %3413 = vmatpush.msra.mxu0 0.0
    %3414 = vmatpush.msra.mxu0 0.0
    %3415 = vmatpush.msra.mxu0 0.0
    %3416 = vmatpush.msra.mxu0 0.0
    %3417 = vmatpush.msra.mxu0 %v98
    %3418 = vmatpush.msra.mxu0 %v90
    %3419 = vmatmul.f32.gmra.mxu0 %v3361
    %v3420 = vpop.f32.mrf.mxu0
    %v3421 = vadd.f32 0.0, %v3420
    %3422 = vdwg.mxu0
    %3423 = vmatpush.msra.mxu0 0.0
    %3424 = vmatpush.msra.mxu0 0.0
    %3425 = vmatpush.msra.mxu0 0.0
    %3426 = vmatpush.msra.mxu0 0.0
    %3427 = vmatpush.msra.mxu0 0.0
    %3428 = vmatpush.msra.mxu0 0.0
    %3429 = vmatpush.msra.mxu0 0.0
    %3430 = vmatpush.msra.mxu0 0.0
    %3431 = vmatpush.msra.mxu0 0.0
    %3432 = vmatpush.msra.mxu0 0.0
    %3433 = vmatpush.msra.mxu0 0.0
    %3434 = vmatpush.msra.mxu0 0.0
    %3435 = vmatpush.msra.mxu0 0.0
    %3436 = vmatpush.msra.mxu0 0.0
    %3437 = vmatpush.msra.mxu0 %v99
    %3438 = vmatpush.msra.mxu0 %v91
    %3439 = vmatmul.f32.gmra.mxu0 %v3361
    %v3440 = vpop.f32.mrf.mxu0
    %v3441 = vadd.f32 0.0, %v3440
    %3442 = vdwg.mxu0
    %3443 = vmatpush.msra.mxu0 0.0
    %3444 = vmatpush.msra.mxu0 0.0
    %3445 = vmatpush.msra.mxu0 0.0
    %3446 = vmatpush.msra.mxu0 0.0
    %3447 = vmatpush.msra.mxu0 0.0
    %3448 = vmatpush.msra.mxu0 0.0
    %3449 = vmatpush.msra.mxu0 0.0
    %3450 = vmatpush.msra.mxu0 0.0
    %3451 = vmatpush.msra.mxu0 0.0
    %3452 = vmatpush.msra.mxu0 0.0
    %3453 = vmatpush.msra.mxu0 0.0
    %3454 = vmatpush.msra.mxu0 0.0
    %3455 = vmatpush.msra.mxu0 0.0
    %3456 = vmatpush.msra.mxu0 0.0
    %3457 = vmatpush.msra.mxu0 %v100
    %3458 = vmatpush.msra.mxu0 %v92
    %3459 = vmatmul.f32.gmra.mxu0 %v3361
    %v3460 = vpop.f32.mrf.mxu0
    %v3461 = vadd.f32 0.0, %v3460
    %3462 = vdwg.mxu0
    %3463 = vmatpush.msra.mxu0 0.0
    %3464 = vmatpush.msra.mxu0 0.0
    %3465 = vmatpush.msra.mxu0 0.0
    %3466 = vmatpush.msra.mxu0 0.0
    %3467 = vmatpush.msra.mxu0 0.0
    %3468 = vmatpush.msra.mxu0 0.0
    %3469 = vmatpush.msra.mxu0 0.0
    %3470 = vmatpush.msra.mxu0 0.0
    %3471 = vmatpush.msra.mxu0 0.0
    %3472 = vmatpush.msra.mxu0 0.0
    %3473 = vmatpush.msra.mxu0 0.0
    %3474 = vmatpush.msra.mxu0 0.0
    %3475 = vmatpush.msra.mxu0 0.0
    %3476 = vmatpush.msra.mxu0 0.0
    %3477 = vmatpush.msra.mxu0 %v101
    %3478 = vmatpush.msra.mxu0 %v93
    %3479 = vmatmul.f32.gmra.mxu0 %v3361
    %v3480 = vpop.f32.mrf.mxu0
    %v3481 = vadd.f32 0.0, %v3480
    %3482 = vdwg.mxu0
    %3483 = vmatpush.msra.mxu0 0.0
    %3484 = vmatpush.msra.mxu0 0.0
    %3485 = vmatpush.msra.mxu0 0.0
    %3486 = vmatpush.msra.mxu0 0.0
    %3487 = vmatpush.msra.mxu0 0.0
    %3488 = vmatpush.msra.mxu0 0.0
    %3489 = vmatpush.msra.mxu0 0.0
    %3490 = vmatpush.msra.mxu0 0.0
    %3491 = vmatpush.msra.mxu0 0.0
    %3492 = vmatpush.msra.mxu0 0.0
    %3493 = vmatpush.msra.mxu0 0.0
    %3494 = vmatpush.msra.mxu0 0.0
    %3495 = vmatpush.msra.mxu0 0.0
    %3496 = vmatpush.msra.mxu0 0.0
    %3497 = vmatpush.msra.mxu0 %v102
    %3498 = vmatpush.msra.mxu0 %v94
    %3499 = vmatmul.f32.gmra.mxu0 %v3361
    %v3500 = vpop.f32.mrf.mxu0
    %v3501 = vadd.f32 0.0, %v3500
    %3502 = vdwg.mxu0
    %3503 = vmatpush.msra.mxu0 0.0
    %3504 = vmatpush.msra.mxu0 0.0
    %3505 = vmatpush.msra.mxu0 0.0
    %3506 = vmatpush.msra.mxu0 0.0
    %3507 = vmatpush.msra.mxu0 0.0
    %3508 = vmatpush.msra.mxu0 0.0
    %3509 = vmatpush.msra.mxu0 0.0
    %3510 = vmatpush.msra.mxu0 0.0
    %3511 = vmatpush.msra.mxu0 0.0
    %3512 = vmatpush.msra.mxu0 0.0
    %3513 = vmatpush.msra.mxu0 0.0
    %3514 = vmatpush.msra.mxu0 0.0
    %3515 = vmatpush.msra.mxu0 0.0
    %3516 = vmatpush.msra.mxu0 0.0
    %3517 = vmatpush.msra.mxu0 %v103
    %3518 = vmatpush.msra.mxu0 %v95
    %3519 = vmatmul.f32.gmra.mxu0 %v3361
    %v3520 = vpop.f32.mrf.mxu0
    %v3521 = vadd.f32 0.0, %v3520
    %3522 = vdwg.mxu0
    %v3523 = vmul.f32 %v3381, 0.00048828125
    %v3524 = vmul.f32 %v3401, 0.00048828125
    %v3525 = vmul.f32 %v3421, 0.00048828125
    %v3526 = vmul.f32 %v3441, 0.00048828125
    %v3527 = vmul.f32 %v3461, 0.00048828125
    %v3528 = vmul.f32 %v3481, 0.00048828125
    %v3529 = vmul.f32 %v3501, 0.00048828125
    %v3530 = vmul.f32 %v3521, 0.00048828125
    %v3531 = vadd.f32 %v3523, 1e-05
    %v3532 = vadd.f32 %v3524, 1e-05
    %v3533 = vadd.f32 %v3525, 1e-05
    %v3534 = vadd.f32 %v3526, 1e-05
    %v3535 = vadd.f32 %v3527, 1e-05
    %v3536 = vadd.f32 %v3528, 1e-05
    %v3537 = vadd.f32 %v3529, 1e-05
    %v3538 = vadd.f32 %v3530, 1e-05
    %v3539 = vrsqrt.pop %v3531
    %v3540 = vmul.f32 %v3539, %v3531
    %v3541 = vmul.f32 %v3540, %v3539
    %v3542 = vmul.f32 0.5, %v3541
    %v3543 = vsub.f32 1.5, %v3542
    %v3544 = vmul.f32 %v3539, %v3543
    %vm3545 = vweird.f32 %v3531
    %vm3546 = vweird.f32 %v3539
    %vm3547 = vmor %vm3545, %vm3546
    %v3548 = vsel %vm3547, %v3539, %v3544
    %v3549 = vrsqrt.pop %v3532
    %v3550 = vmul.f32 %v3549, %v3532
    %v3551 = vmul.f32 %v3550, %v3549
    %v3552 = vmul.f32 0.5, %v3551
    %v3553 = vsub.f32 1.5, %v3552
    %v3554 = vmul.f32 %v3549, %v3553
    %vm3555 = vweird.f32 %v3532
    %vm3556 = vweird.f32 %v3549
    %vm3557 = vmor %vm3555, %vm3556
    %v3558 = vsel %vm3557, %v3549, %v3554
    %v3559 = vrsqrt.pop %v3533
    %v3560 = vmul.f32 %v3559, %v3533
    %v3561 = vmul.f32 %v3560, %v3559
    %v3562 = vmul.f32 0.5, %v3561
    %v3563 = vsub.f32 1.5, %v3562
    %v3564 = vmul.f32 %v3559, %v3563
    %vm3565 = vweird.f32 %v3533
    %vm3566 = vweird.f32 %v3559
    %vm3567 = vmor %vm3565, %vm3566
    %v3568 = vsel %vm3567, %v3559, %v3564
    %v3569 = vrsqrt.pop %v3534
    %v3570 = vmul.f32 %v3569, %v3534
    %v3571 = vmul.f32 %v3570, %v3569
    %v3572 = vmul.f32 0.5, %v3571
    %v3573 = vsub.f32 1.5, %v3572
    %v3574 = vmul.f32 %v3569, %v3573
    %vm3575 = vweird.f32 %v3534
    %vm3576 = vweird.f32 %v3569
    %vm3577 = vmor %vm3575, %vm3576
    %v3578 = vsel %vm3577, %v3569, %v3574
    %v3579 = vrsqrt.pop %v3535
    %v3580 = vmul.f32 %v3579, %v3535
    %v3581 = vmul.f32 %v3580, %v3579
    %v3582 = vmul.f32 0.5, %v3581
    %v3583 = vsub.f32 1.5, %v3582
    %v3584 = vmul.f32 %v3579, %v3583
    %vm3585 = vweird.f32 %v3535
    %vm3586 = vweird.f32 %v3579
    %vm3587 = vmor %vm3585, %vm3586
    %v3588 = vsel %vm3587, %v3579, %v3584
    %v3589 = vrsqrt.pop %v3536
    %v3590 = vmul.f32 %v3589, %v3536
    %v3591 = vmul.f32 %v3590, %v3589
    %v3592 = vmul.f32 0.5, %v3591
    %v3593 = vsub.f32 1.5, %v3592
    %v3594 = vmul.f32 %v3589, %v3593
    %vm3595 = vweird.f32 %v3536
    %vm3596 = vweird.f32 %v3589
    %vm3597 = vmor %vm3595, %vm3596
    %v3598 = vsel %vm3597, %v3589, %v3594
    %v3599 = vrsqrt.pop %v3537
    %v3600 = vmul.f32 %v3599, %v3537
    %v3601 = vmul.f32 %v3600, %v3599
    %v3602 = vmul.f32 0.5, %v3601
    %v3603 = vsub.f32 1.5, %v3602
    %v3604 = vmul.f32 %v3599, %v3603
    %vm3605 = vweird.f32 %v3537
    %vm3606 = vweird.f32 %v3599
    %vm3607 = vmor %vm3605, %vm3606
    %v3608 = vsel %vm3607, %v3599, %v3604
    %v3609 = vrsqrt.pop %v3538
    %v3610 = vmul.f32 %v3609, %v3538
    %v3611 = vmul.f32 %v3610, %v3609
    %v3612 = vmul.f32 0.5, %v3611
    %v3613 = vsub.f32 1.5, %v3612
    %v3614 = vmul.f32 %v3609, %v3613
    %vm3615 = vweird.f32 %v3538
    %vm3616 = vweird.f32 %v3609
    %vm3617 = vmor %vm3615, %vm3616
    %v3618 = vsel %vm3617, %v3609, %v3614
    %v3619 = vperm.slane %v1420, 1
    %v3620 = vperm.slane %v1420, 5
    %v3621 = vperm.slane %v1421, 1
    %v3622 = vperm.slane %v1421, 5
    %v3623 = vperm.slane %v1422, 1
    %v3624 = vperm.slane %v1422, 5
    %v3625 = vperm.slane %v1423, 1
    %v3626 = vperm.slane %v1423, 5
    %v3635 = vperm.slane %v3619, 1
    %v3636 = vperm.slane %v3620, 1
    %v3637 = vperm.slane %v3621, 1
    %v3638 = vperm.slane %v3622, 1
    %v3639 = vperm.slane %v3623, 1
    %v3640 = vperm.slane %v3624, 1
    %v3641 = vperm.slane %v3625, 1
    %v3642 = vperm.slane %v3626, 1
    %v3643 = vmul.f32 %v3635, %v3548
    %v3644 = vmul.f32 %v3636, %v3558
    %v3645 = vmul.f32 %v3637, %v3568
    %v3646 = vmul.f32 %v3638, %v3578
    %v3647 = vmul.f32 %v3639, %v3588
    %v3648 = vmul.f32 %v3640, %v3598
    %v3649 = vmul.f32 %v3641, %v3608
    %v3650 = vmul.f32 %v3642, %v3618
    %v3652 = vsel %vm292, %v3643, 0
    %v3655 = vsel %vm292, %v3644, 0
    %v3658 = vsel %vm292, %v3645, 0
    %v3661 = vsel %vm292, %v3646, 0
    %v3664 = vsel %vm292, %v3647, 0
    %v3667 = vsel %vm292, %v3648, 0
    %v3670 = vsel %vm292, %v3649, 0
    %v3673 = vsel %vm292, %v3650, 0
    %3675 = vmatpush.msra.mxu0 0.0
    %3676 = vmatpush.msra.mxu0 0.0
    %3677 = vmatpush.msra.mxu0 0.0
    %3678 = vmatpush.msra.mxu0 0.0
    %3679 = vmatpush.msra.mxu0 0.0
    %3680 = vmatpush.msra.mxu0 0.0
    %3681 = vmatpush.msra.mxu0 0.0
    %3682 = vmatpush.msra.mxu0 0.0
    %3683 = vmatpush.msra.mxu0 0.0
    %3684 = vmatpush.msra.mxu0 0.0
    %3685 = vmatpush.msra.mxu0 0.0
    %3686 = vmatpush.msra.mxu0 0.0
    %3687 = vmatpush.msra.mxu0 0.0
    %3688 = vmatpush.msra.mxu0 0.0
    %3689 = vmatpush.msra.mxu0 0.0
    %3690 = vmatpush.msra.mxu0 %v3652
    %3691 = vmatmul.f32.gmra.mxu0 %v269
    %v3692 = vpop.f32.mrf.mxu0
    %v3693 = vadd.f32 0.0, %v3692
    %3694 = vmatmul.f32.gmra.mxu0 %v272
    %v3695 = vpop.f32.mrf.mxu0
    %v3696 = vadd.f32 0.0, %v3695
    %3697 = vmatmul.f32.gmra.mxu0 %v275
    %v3698 = vpop.f32.mrf.mxu0
    %v3699 = vadd.f32 0.0, %v3698
    %3700 = vmatmul.f32.gmra.mxu0 %v278
    %v3701 = vpop.f32.mrf.mxu0
    %v3702 = vadd.f32 0.0, %v3701
    %3703 = vmatmul.f32.gmra.mxu0 %v281
    %v3704 = vpop.f32.mrf.mxu0
    %v3705 = vadd.f32 0.0, %v3704
    %3706 = vmatmul.f32.gmra.mxu0 %v284
    %v3707 = vpop.f32.mrf.mxu0
    %v3708 = vadd.f32 0.0, %v3707
    %3709 = vmatmul.f32.gmra.mxu0 %v287
    %v3710 = vpop.f32.mrf.mxu0
    %v3711 = vadd.f32 0.0, %v3710
    %3712 = vmatmul.f32.gmra.mxu0 %v290
    %v3713 = vpop.f32.mrf.mxu0
    %v3714 = vadd.f32 0.0, %v3713
    %3715 = vdwg.mxu0
    %3716 = vmatpush.msra.mxu0 0.0
    %3717 = vmatpush.msra.mxu0 0.0
    %3718 = vmatpush.msra.mxu0 0.0
    %3719 = vmatpush.msra.mxu0 0.0
    %3720 = vmatpush.msra.mxu0 0.0
    %3721 = vmatpush.msra.mxu0 0.0
    %3722 = vmatpush.msra.mxu0 0.0
    %3723 = vmatpush.msra.mxu0 0.0
    %3724 = vmatpush.msra.mxu0 0.0
    %3725 = vmatpush.msra.mxu0 0.0
    %3726 = vmatpush.msra.mxu0 0.0
    %3727 = vmatpush.msra.mxu0 0.0
    %3728 = vmatpush.msra.mxu0 0.0
    %3729 = vmatpush.msra.mxu0 0.0
    %3730 = vmatpush.msra.mxu0 0.0
    %3731 = vmatpush.msra.mxu0 %v3655
    %3732 = vmatmul.f32.gmra.mxu0 %v269
    %v3733 = vpop.f32.mrf.mxu0
    %v3734 = vadd.f32 0.0, %v3733
    %3735 = vmatmul.f32.gmra.mxu0 %v272
    %v3736 = vpop.f32.mrf.mxu0
    %v3737 = vadd.f32 0.0, %v3736
    %3738 = vmatmul.f32.gmra.mxu0 %v275
    %v3739 = vpop.f32.mrf.mxu0
    %v3740 = vadd.f32 0.0, %v3739
    %3741 = vmatmul.f32.gmra.mxu0 %v278
    %v3742 = vpop.f32.mrf.mxu0
    %v3743 = vadd.f32 0.0, %v3742
    %3744 = vmatmul.f32.gmra.mxu0 %v281
    %v3745 = vpop.f32.mrf.mxu0
    %v3746 = vadd.f32 0.0, %v3745
    %3747 = vmatmul.f32.gmra.mxu0 %v284
    %v3748 = vpop.f32.mrf.mxu0
    %v3749 = vadd.f32 0.0, %v3748
    %3750 = vmatmul.f32.gmra.mxu0 %v287
    %v3751 = vpop.f32.mrf.mxu0
    %v3752 = vadd.f32 0.0, %v3751
    %3753 = vmatmul.f32.gmra.mxu0 %v290
    %v3754 = vpop.f32.mrf.mxu0
    %v3755 = vadd.f32 0.0, %v3754
    %3756 = vdwg.mxu0
    %3757 = vmatpush.msra.mxu0 0.0
    %3758 = vmatpush.msra.mxu0 0.0
    %3759 = vmatpush.msra.mxu0 0.0
    %3760 = vmatpush.msra.mxu0 0.0
    %3761 = vmatpush.msra.mxu0 0.0
    %3762 = vmatpush.msra.mxu0 0.0
    %3763 = vmatpush.msra.mxu0 0.0
    %3764 = vmatpush.msra.mxu0 0.0
    %3765 = vmatpush.msra.mxu0 0.0
    %3766 = vmatpush.msra.mxu0 0.0
    %3767 = vmatpush.msra.mxu0 0.0
    %3768 = vmatpush.msra.mxu0 0.0
    %3769 = vmatpush.msra.mxu0 0.0
    %3770 = vmatpush.msra.mxu0 0.0
    %3771 = vmatpush.msra.mxu0 0.0
    %3772 = vmatpush.msra.mxu0 %v3658
    %3773 = vmatmul.f32.gmra.mxu0 %v269
    %v3774 = vpop.f32.mrf.mxu0
    %v3775 = vadd.f32 0.0, %v3774
    %3776 = vmatmul.f32.gmra.mxu0 %v272
    %v3777 = vpop.f32.mrf.mxu0
    %v3778 = vadd.f32 0.0, %v3777
    %3779 = vmatmul.f32.gmra.mxu0 %v275
    %v3780 = vpop.f32.mrf.mxu0
    %v3781 = vadd.f32 0.0, %v3780
    %3782 = vmatmul.f32.gmra.mxu0 %v278
    %v3783 = vpop.f32.mrf.mxu0
    %v3784 = vadd.f32 0.0, %v3783
    %3785 = vmatmul.f32.gmra.mxu0 %v281
    %v3786 = vpop.f32.mrf.mxu0
    %v3787 = vadd.f32 0.0, %v3786
    %3788 = vmatmul.f32.gmra.mxu0 %v284
    %v3789 = vpop.f32.mrf.mxu0
    %v3790 = vadd.f32 0.0, %v3789
    %3791 = vmatmul.f32.gmra.mxu0 %v287
    %v3792 = vpop.f32.mrf.mxu0
    %v3793 = vadd.f32 0.0, %v3792
    %3794 = vmatmul.f32.gmra.mxu0 %v290
    %v3795 = vpop.f32.mrf.mxu0
    %v3796 = vadd.f32 0.0, %v3795
    %3797 = vdwg.mxu0
    %3798 = vmatpush.msra.mxu0 0.0
    %3799 = vmatpush.msra.mxu0 0.0
    %3800 = vmatpush.msra.mxu0 0.0
    %3801 = vmatpush.msra.mxu0 0.0
    %3802 = vmatpush.msra.mxu0 0.0
    %3803 = vmatpush.msra.mxu0 0.0
    %3804 = vmatpush.msra.mxu0 0.0
    %3805 = vmatpush.msra.mxu0 0.0
    %3806 = vmatpush.msra.mxu0 0.0
    %3807 = vmatpush.msra.mxu0 0.0
    %3808 = vmatpush.msra.mxu0 0.0
    %3809 = vmatpush.msra.mxu0 0.0
    %3810 = vmatpush.msra.mxu0 0.0
    %3811 = vmatpush.msra.mxu0 0.0
    %3812 = vmatpush.msra.mxu0 0.0
    %3813 = vmatpush.msra.mxu0 %v3661
    %3814 = vmatmul.f32.gmra.mxu0 %v269
    %v3815 = vpop.f32.mrf.mxu0
    %v3816 = vadd.f32 0.0, %v3815
    %3817 = vmatmul.f32.gmra.mxu0 %v272
    %v3818 = vpop.f32.mrf.mxu0
    %v3819 = vadd.f32 0.0, %v3818
    %3820 = vmatmul.f32.gmra.mxu0 %v275
    %v3821 = vpop.f32.mrf.mxu0
    %v3822 = vadd.f32 0.0, %v3821
    %3823 = vmatmul.f32.gmra.mxu0 %v278
    %v3824 = vpop.f32.mrf.mxu0
    %v3825 = vadd.f32 0.0, %v3824
    %3826 = vmatmul.f32.gmra.mxu0 %v281
    %v3827 = vpop.f32.mrf.mxu0
    %v3828 = vadd.f32 0.0, %v3827
    %3829 = vmatmul.f32.gmra.mxu0 %v284
    %v3830 = vpop.f32.mrf.mxu0
    %v3831 = vadd.f32 0.0, %v3830
    %3832 = vmatmul.f32.gmra.mxu0 %v287
    %v3833 = vpop.f32.mrf.mxu0
    %v3834 = vadd.f32 0.0, %v3833
    %3835 = vmatmul.f32.gmra.mxu0 %v290
    %v3836 = vpop.f32.mrf.mxu0
    %v3837 = vadd.f32 0.0, %v3836
    %3838 = vdwg.mxu0
    %3839 = vmatpush.msra.mxu0 0.0
    %3840 = vmatpush.msra.mxu0 0.0
    %3841 = vmatpush.msra.mxu0 0.0
    %3842 = vmatpush.msra.mxu0 0.0
    %3843 = vmatpush.msra.mxu0 0.0
    %3844 = vmatpush.msra.mxu0 0.0
    %3845 = vmatpush.msra.mxu0 0.0
    %3846 = vmatpush.msra.mxu0 0.0
    %3847 = vmatpush.msra.mxu0 0.0
    %3848 = vmatpush.msra.mxu0 0.0
    %3849 = vmatpush.msra.mxu0 0.0
    %3850 = vmatpush.msra.mxu0 0.0
    %3851 = vmatpush.msra.mxu0 0.0
    %3852 = vmatpush.msra.mxu0 0.0
    %3853 = vmatpush.msra.mxu0 0.0
    %3854 = vmatpush.msra.mxu0 %v3664
    %3855 = vmatmul.f32.gmra.mxu0 %v269
    %v3856 = vpop.f32.mrf.mxu0
    %v3857 = vadd.f32 0.0, %v3856
    %3858 = vmatmul.f32.gmra.mxu0 %v272
    %v3859 = vpop.f32.mrf.mxu0
    %v3860 = vadd.f32 0.0, %v3859
    %3861 = vmatmul.f32.gmra.mxu0 %v275
    %v3862 = vpop.f32.mrf.mxu0
    %v3863 = vadd.f32 0.0, %v3862
    %3864 = vmatmul.f32.gmra.mxu0 %v278
    %v3865 = vpop.f32.mrf.mxu0
    %v3866 = vadd.f32 0.0, %v3865
    %3867 = vmatmul.f32.gmra.mxu0 %v281
    %v3868 = vpop.f32.mrf.mxu0
    %v3869 = vadd.f32 0.0, %v3868
    %3870 = vmatmul.f32.gmra.mxu0 %v284
    %v3871 = vpop.f32.mrf.mxu0
    %v3872 = vadd.f32 0.0, %v3871
    %3873 = vmatmul.f32.gmra.mxu0 %v287
    %v3874 = vpop.f32.mrf.mxu0
    %v3875 = vadd.f32 0.0, %v3874
    %3876 = vmatmul.f32.gmra.mxu0 %v290
    %v3877 = vpop.f32.mrf.mxu0
    %v3878 = vadd.f32 0.0, %v3877
    %3879 = vdwg.mxu0
    %3880 = vmatpush.msra.mxu0 0.0
    %3881 = vmatpush.msra.mxu0 0.0
    %3882 = vmatpush.msra.mxu0 0.0
    %3883 = vmatpush.msra.mxu0 0.0
    %3884 = vmatpush.msra.mxu0 0.0
    %3885 = vmatpush.msra.mxu0 0.0
    %3886 = vmatpush.msra.mxu0 0.0
    %3887 = vmatpush.msra.mxu0 0.0
    %3888 = vmatpush.msra.mxu0 0.0
    %3889 = vmatpush.msra.mxu0 0.0
    %3890 = vmatpush.msra.mxu0 0.0
    %3891 = vmatpush.msra.mxu0 0.0
    %3892 = vmatpush.msra.mxu0 0.0
    %3893 = vmatpush.msra.mxu0 0.0
    %3894 = vmatpush.msra.mxu0 0.0
    %3895 = vmatpush.msra.mxu0 %v3667
    %3896 = vmatmul.f32.gmra.mxu0 %v269
    %v3897 = vpop.f32.mrf.mxu0
    %v3898 = vadd.f32 0.0, %v3897
    %3899 = vmatmul.f32.gmra.mxu0 %v272
    %v3900 = vpop.f32.mrf.mxu0
    %v3901 = vadd.f32 0.0, %v3900
    %3902 = vmatmul.f32.gmra.mxu0 %v275
    %v3903 = vpop.f32.mrf.mxu0
    %v3904 = vadd.f32 0.0, %v3903
    %3905 = vmatmul.f32.gmra.mxu0 %v278
    %v3906 = vpop.f32.mrf.mxu0
    %v3907 = vadd.f32 0.0, %v3906
    %3908 = vmatmul.f32.gmra.mxu0 %v281
    %v3909 = vpop.f32.mrf.mxu0
    %v3910 = vadd.f32 0.0, %v3909
    %3911 = vmatmul.f32.gmra.mxu0 %v284
    %v3912 = vpop.f32.mrf.mxu0
    %v3913 = vadd.f32 0.0, %v3912
    %3914 = vmatmul.f32.gmra.mxu0 %v287
    %v3915 = vpop.f32.mrf.mxu0
    %v3916 = vadd.f32 0.0, %v3915
    %3917 = vmatmul.f32.gmra.mxu0 %v290
    %v3918 = vpop.f32.mrf.mxu0
    %v3919 = vadd.f32 0.0, %v3918
    %3920 = vdwg.mxu0
    %3921 = vmatpush.msra.mxu0 0.0
    %3922 = vmatpush.msra.mxu0 0.0
    %3923 = vmatpush.msra.mxu0 0.0
    %3924 = vmatpush.msra.mxu0 0.0
    %3925 = vmatpush.msra.mxu0 0.0
    %3926 = vmatpush.msra.mxu0 0.0
    %3927 = vmatpush.msra.mxu0 0.0
    %3928 = vmatpush.msra.mxu0 0.0
    %3929 = vmatpush.msra.mxu0 0.0
    %3930 = vmatpush.msra.mxu0 0.0
    %3931 = vmatpush.msra.mxu0 0.0
    %3932 = vmatpush.msra.mxu0 0.0
    %3933 = vmatpush.msra.mxu0 0.0
    %3934 = vmatpush.msra.mxu0 0.0
    %3935 = vmatpush.msra.mxu0 0.0
    %3936 = vmatpush.msra.mxu0 %v3670
    %3937 = vmatmul.f32.gmra.mxu0 %v269
    %v3938 = vpop.f32.mrf.mxu0
    %v3939 = vadd.f32 0.0, %v3938
    %3940 = vmatmul.f32.gmra.mxu0 %v272
    %v3941 = vpop.f32.mrf.mxu0
    %v3942 = vadd.f32 0.0, %v3941
    %3943 = vmatmul.f32.gmra.mxu0 %v275
    %v3944 = vpop.f32.mrf.mxu0
    %v3945 = vadd.f32 0.0, %v3944
    %3946 = vmatmul.f32.gmra.mxu0 %v278
    %v3947 = vpop.f32.mrf.mxu0
    %v3948 = vadd.f32 0.0, %v3947
    %3949 = vmatmul.f32.gmra.mxu0 %v281
    %v3950 = vpop.f32.mrf.mxu0
    %v3951 = vadd.f32 0.0, %v3950
    %3952 = vmatmul.f32.gmra.mxu0 %v284
    %v3953 = vpop.f32.mrf.mxu0
    %v3954 = vadd.f32 0.0, %v3953
    %3955 = vmatmul.f32.gmra.mxu0 %v287
    %v3956 = vpop.f32.mrf.mxu0
    %v3957 = vadd.f32 0.0, %v3956
    %3958 = vmatmul.f32.gmra.mxu0 %v290
    %v3959 = vpop.f32.mrf.mxu0
    %v3960 = vadd.f32 0.0, %v3959
    %3961 = vdwg.mxu0
    %3962 = vmatpush.msra.mxu0 0.0
    %3963 = vmatpush.msra.mxu0 0.0
    %3964 = vmatpush.msra.mxu0 0.0
    %3965 = vmatpush.msra.mxu0 0.0
    %3966 = vmatpush.msra.mxu0 0.0
    %3967 = vmatpush.msra.mxu0 0.0
    %3968 = vmatpush.msra.mxu0 0.0
    %3969 = vmatpush.msra.mxu0 0.0
    %3970 = vmatpush.msra.mxu0 0.0
    %3971 = vmatpush.msra.mxu0 0.0
    %3972 = vmatpush.msra.mxu0 0.0
    %3973 = vmatpush.msra.mxu0 0.0
    %3974 = vmatpush.msra.mxu0 0.0
    %3975 = vmatpush.msra.mxu0 0.0
    %3976 = vmatpush.msra.mxu0 0.0
    %3977 = vmatpush.msra.mxu0 %v3673
    %3978 = vmatmul.f32.gmra.mxu0 %v269
    %v3979 = vpop.f32.mrf.mxu0
    %v3980 = vadd.f32 0.0, %v3979
    %3981 = vmatmul.f32.gmra.mxu0 %v272
    %v3982 = vpop.f32.mrf.mxu0
    %v3983 = vadd.f32 0.0, %v3982
    %3984 = vmatmul.f32.gmra.mxu0 %v275
    %v3985 = vpop.f32.mrf.mxu0
    %v3986 = vadd.f32 0.0, %v3985
    %3987 = vmatmul.f32.gmra.mxu0 %v278
    %v3988 = vpop.f32.mrf.mxu0
    %v3989 = vadd.f32 0.0, %v3988
    %3990 = vmatmul.f32.gmra.mxu0 %v281
    %v3991 = vpop.f32.mrf.mxu0
    %v3992 = vadd.f32 0.0, %v3991
    %3993 = vmatmul.f32.gmra.mxu0 %v284
    %v3994 = vpop.f32.mrf.mxu0
    %v3995 = vadd.f32 0.0, %v3994
    %3996 = vmatmul.f32.gmra.mxu0 %v287
    %v3997 = vpop.f32.mrf.mxu0
    %v3998 = vadd.f32 0.0, %v3997
    %3999 = vmatmul.f32.gmra.mxu0 %v290
    %v4000 = vpop.f32.mrf.mxu0
    %v4001 = vadd.f32 0.0, %v4000
    %4002 = vdwg.mxu0
    %v4003 = vmul.f32 %v2912, %v3693
    %v4004 = vmul.f32 %v2913, %v3734
    %v4005 = vmul.f32 %v2914, %v3775
    %v4006 = vmul.f32 %v2915, %v3816
    %v4007 = vmul.f32 %v2916, %v3857
    %v4008 = vmul.f32 %v2917, %v3898
    %v4009 = vmul.f32 %v2918, %v3939
    %v4010 = vmul.f32 %v2919, %v3980
    %v4011 = vmul.f32 %v2920, %v3696
    %v4012 = vmul.f32 %v2921, %v3737
    %v4013 = vmul.f32 %v2922, %v3778
    %v4014 = vmul.f32 %v2923, %v3819
    %v4015 = vmul.f32 %v2924, %v3860
    %v4016 = vmul.f32 %v2925, %v3901
    %v4017 = vmul.f32 %v2926, %v3942
    %v4018 = vmul.f32 %v2927, %v3983
    %v4019 = vmul.f32 %v2928, %v3699
    %v4020 = vmul.f32 %v2929, %v3740
    %v4021 = vmul.f32 %v2930, %v3781
    %v4022 = vmul.f32 %v2931, %v3822
    %v4023 = vmul.f32 %v2932, %v3863
    %v4024 = vmul.f32 %v2933, %v3904
    %v4025 = vmul.f32 %v2934, %v3945
    %v4026 = vmul.f32 %v2935, %v3986
    %v4027 = vmul.f32 %v2936, %v3702
    %v4028 = vmul.f32 %v2937, %v3743
    %v4029 = vmul.f32 %v2938, %v3784
    %v4030 = vmul.f32 %v2939, %v3825
    %v4031 = vmul.f32 %v2940, %v3866
    %v4032 = vmul.f32 %v2941, %v3907
    %v4033 = vmul.f32 %v2942, %v3948
    %v4034 = vmul.f32 %v2943, %v3989
    %v4035 = vmul.f32 %v2944, %v3705
    %v4036 = vmul.f32 %v2945, %v3746
    %v4037 = vmul.f32 %v2946, %v3787
    %v4038 = vmul.f32 %v2947, %v3828
    %v4039 = vmul.f32 %v2948, %v3869
    %v4040 = vmul.f32 %v2949, %v3910
    %v4041 = vmul.f32 %v2950, %v3951
    %v4042 = vmul.f32 %v2951, %v3992
    %v4043 = vmul.f32 %v2952, %v3708
    %v4044 = vmul.f32 %v2953, %v3749
    %v4045 = vmul.f32 %v2954, %v3790
    %v4046 = vmul.f32 %v2955, %v3831
    %v4047 = vmul.f32 %v2956, %v3872
    %v4048 = vmul.f32 %v2957, %v3913
    %v4049 = vmul.f32 %v2958, %v3954
    %v4050 = vmul.f32 %v2959, %v3995
    %v4051 = vmul.f32 %v2960, %v3711
    %v4052 = vmul.f32 %v2961, %v3752
    %v4053 = vmul.f32 %v2962, %v3793
    %v4054 = vmul.f32 %v2963, %v3834
    %v4055 = vmul.f32 %v2964, %v3875
    %v4056 = vmul.f32 %v2965, %v3916
    %v4057 = vmul.f32 %v2966, %v3957
    %v4058 = vmul.f32 %v2967, %v3998
    %v4059 = vmul.f32 %v2968, %v3714
    %v4060 = vmul.f32 %v2969, %v3755
    %v4061 = vmul.f32 %v2970, %v3796
    %v4062 = vmul.f32 %v2971, %v3837
    %v4063 = vmul.f32 %v2972, %v3878
    %v4064 = vmul.f32 %v2973, %v3919
    %v4065 = vmul.f32 %v2974, %v3960
    %v4066 = vmul.f32 %v2975, %v4001
    %v4067 = vperm.slane %v1420, 2
    %v4068 = vperm.slane %v1420, 6
    %v4069 = vperm.slane %v1421, 2
    %v4070 = vperm.slane %v1421, 6
    %v4071 = vperm.slane %v1422, 2
    %v4072 = vperm.slane %v1422, 6
    %v4073 = vperm.slane %v1423, 2
    %v4074 = vperm.slane %v1423, 6
    %v4083 = vperm.slane %v4067, 2
    %v4084 = vperm.slane %v4068, 2
    %v4085 = vperm.slane %v4069, 2
    %v4086 = vperm.slane %v4070, 2
    %v4087 = vperm.slane %v4071, 2
    %v4088 = vperm.slane %v4072, 2
    %v4089 = vperm.slane %v4073, 2
    %v4090 = vperm.slane %v4074, 2
    %v4091 = vadd.f32 %v4003, %v4083
    %v4092 = vadd.f32 %v4004, %v4084
    %v4093 = vadd.f32 %v4005, %v4085
    %v4094 = vadd.f32 %v4006, %v4086
    %v4095 = vadd.f32 %v4007, %v4087
    %v4096 = vadd.f32 %v4008, %v4088
    %v4097 = vadd.f32 %v4009, %v4089
    %v4098 = vadd.f32 %v4010, %v4090
    %v4099 = vadd.f32 %v4011, %v4083
    %v4100 = vadd.f32 %v4012, %v4084
    %v4101 = vadd.f32 %v4013, %v4085
    %v4102 = vadd.f32 %v4014, %v4086
    %v4103 = vadd.f32 %v4015, %v4087
    %v4104 = vadd.f32 %v4016, %v4088
    %v4105 = vadd.f32 %v4017, %v4089
    %v4106 = vadd.f32 %v4018, %v4090
    %v4107 = vadd.f32 %v4019, %v4083
    %v4108 = vadd.f32 %v4020, %v4084
    %v4109 = vadd.f32 %v4021, %v4085
    %v4110 = vadd.f32 %v4022, %v4086
    %v4111 = vadd.f32 %v4023, %v4087
    %v4112 = vadd.f32 %v4024, %v4088
    %v4113 = vadd.f32 %v4025, %v4089
    %v4114 = vadd.f32 %v4026, %v4090
    %v4115 = vadd.f32 %v4027, %v4083
    %v4116 = vadd.f32 %v4028, %v4084
    %v4117 = vadd.f32 %v4029, %v4085
    %v4118 = vadd.f32 %v4030, %v4086
    %v4119 = vadd.f32 %v4031, %v4087
    %v4120 = vadd.f32 %v4032, %v4088
    %v4121 = vadd.f32 %v4033, %v4089
    %v4122 = vadd.f32 %v4034, %v4090
    %v4123 = vadd.f32 %v4035, %v4083
    %v4124 = vadd.f32 %v4036, %v4084
    %v4125 = vadd.f32 %v4037, %v4085
    %v4126 = vadd.f32 %v4038, %v4086
    %v4127 = vadd.f32 %v4039, %v4087
    %v4128 = vadd.f32 %v4040, %v4088
    %v4129 = vadd.f32 %v4041, %v4089
    %v4130 = vadd.f32 %v4042, %v4090
    %v4131 = vadd.f32 %v4043, %v4083
    %v4132 = vadd.f32 %v4044, %v4084
    %v4133 = vadd.f32 %v4045, %v4085
    %v4134 = vadd.f32 %v4046, %v4086
    %v4135 = vadd.f32 %v4047, %v4087
    %v4136 = vadd.f32 %v4048, %v4088
    %v4137 = vadd.f32 %v4049, %v4089
    %v4138 = vadd.f32 %v4050, %v4090
    %v4139 = vadd.f32 %v4051, %v4083
    %v4140 = vadd.f32 %v4052, %v4084
    %v4141 = vadd.f32 %v4053, %v4085
    %v4142 = vadd.f32 %v4054, %v4086
    %v4143 = vadd.f32 %v4055, %v4087
    %v4144 = vadd.f32 %v4056, %v4088
    %v4145 = vadd.f32 %v4057, %v4089
    %v4146 = vadd.f32 %v4058, %v4090
    %v4147 = vadd.f32 %v4059, %v4083
    %v4148 = vadd.f32 %v4060, %v4084
    %v4149 = vadd.f32 %v4061, %v4085
    %v4150 = vadd.f32 %v4062, %v4086
    %v4151 = vadd.f32 %v4063, %v4087
    %v4152 = vadd.f32 %v4064, %v4088
    %v4153 = vadd.f32 %v4065, %v4089
    %v4154 = vadd.f32 %v4066, %v4090
    %v4155 = vmax.f32 %v4091, 0.0
    %v4156 = vmax.f32 %v4092, 0.0
    %v4157 = vmax.f32 %v4093, 0.0
    %v4158 = vmax.f32 %v4094, 0.0
    %v4159 = vmax.f32 %v4095, 0.0
    %v4160 = vmax.f32 %v4096, 0.0
    %v4161 = vmax.f32 %v4097, 0.0
    %v4162 = vmax.f32 %v4098, 0.0
    %v4163 = vmax.f32 %v4099, 0.0
    %v4164 = vmax.f32 %v4100, 0.0
    %v4165 = vmax.f32 %v4101, 0.0
    %v4166 = vmax.f32 %v4102, 0.0
    %v4167 = vmax.f32 %v4103, 0.0
    %v4168 = vmax.f32 %v4104, 0.0
    %v4169 = vmax.f32 %v4105, 0.0
    %v4170 = vmax.f32 %v4106, 0.0
    %v4171 = vmax.f32 %v4107, 0.0
    %v4172 = vmax.f32 %v4108, 0.0
    %v4173 = vmax.f32 %v4109, 0.0
    %v4174 = vmax.f32 %v4110, 0.0
    %v4175 = vmax.f32 %v4111, 0.0
    %v4176 = vmax.f32 %v4112, 0.0
    %v4177 = vmax.f32 %v4113, 0.0
    %v4178 = vmax.f32 %v4114, 0.0
    %v4179 = vmax.f32 %v4115, 0.0
    %v4180 = vmax.f32 %v4116, 0.0
    %v4181 = vmax.f32 %v4117, 0.0
    %v4182 = vmax.f32 %v4118, 0.0
    %v4183 = vmax.f32 %v4119, 0.0
    %v4184 = vmax.f32 %v4120, 0.0
    %v4185 = vmax.f32 %v4121, 0.0
    %v4186 = vmax.f32 %v4122, 0.0
    %v4187 = vmax.f32 %v4123, 0.0
    %v4188 = vmax.f32 %v4124, 0.0
    %v4189 = vmax.f32 %v4125, 0.0
    %v4190 = vmax.f32 %v4126, 0.0
    %v4191 = vmax.f32 %v4127, 0.0
    %v4192 = vmax.f32 %v4128, 0.0
    %v4193 = vmax.f32 %v4129, 0.0
    %v4194 = vmax.f32 %v4130, 0.0
    %v4195 = vmax.f32 %v4131, 0.0
    %v4196 = vmax.f32 %v4132, 0.0
    %v4197 = vmax.f32 %v4133, 0.0
    %v4198 = vmax.f32 %v4134, 0.0
    %v4199 = vmax.f32 %v4135, 0.0
    %v4200 = vmax.f32 %v4136, 0.0
    %v4201 = vmax.f32 %v4137, 0.0
    %v4202 = vmax.f32 %v4138, 0.0
    %v4203 = vmax.f32 %v4139, 0.0
    %v4204 = vmax.f32 %v4140, 0.0
    %v4205 = vmax.f32 %v4141, 0.0
    %v4206 = vmax.f32 %v4142, 0.0
    %v4207 = vmax.f32 %v4143, 0.0
    %v4208 = vmax.f32 %v4144, 0.0
    %v4209 = vmax.f32 %v4145, 0.0
    %v4210 = vmax.f32 %v4146, 0.0
    %v4211 = vmax.f32 %v4147, 0.0
    %v4212 = vmax.f32 %v4148, 0.0
    %v4213 = vmax.f32 %v4149, 0.0
    %v4214 = vmax.f32 %v4150, 0.0
    %v4215 = vmax.f32 %v4151, 0.0
    %v4216 = vmax.f32 %v4152, 0.0
    %v4217 = vmax.f32 %v4153, 0.0
    %v4218 = vmax.f32 %v4154, 0.0
    %v4219 = vpack.c.bf16 %v4156, %v4155
    %v4220 = vpack.c.bf16 %v4158, %v4157
    %v4221 = vpack.c.bf16 %v4160, %v4159
    %v4222 = vpack.c.bf16 %v4162, %v4161
    %v4223 = vpack.c.bf16 %v4164, %v4163
    %v4224 = vpack.c.bf16 %v4166, %v4165
    %v4225 = vpack.c.bf16 %v4168, %v4167
    %v4226 = vpack.c.bf16 %v4170, %v4169
    %v4227 = vpack.c.bf16 %v4172, %v4171
    %v4228 = vpack.c.bf16 %v4174, %v4173
    %v4229 = vpack.c.bf16 %v4176, %v4175
    %v4230 = vpack.c.bf16 %v4178, %v4177
    %v4231 = vpack.c.bf16 %v4180, %v4179
    %v4232 = vpack.c.bf16 %v4182, %v4181
    %v4233 = vpack.c.bf16 %v4184, %v4183
    %v4234 = vpack.c.bf16 %v4186, %v4185
    %v4235 = vpack.c.bf16 %v4188, %v4187
    %v4236 = vpack.c.bf16 %v4190, %v4189
    %v4237 = vpack.c.bf16 %v4192, %v4191
    %v4238 = vpack.c.bf16 %v4194, %v4193
    %v4239 = vpack.c.bf16 %v4196, %v4195
    %v4240 = vpack.c.bf16 %v4198, %v4197
    %v4241 = vpack.c.bf16 %v4200, %v4199
    %v4242 = vpack.c.bf16 %v4202, %v4201
    %v4243 = vpack.c.bf16 %v4204, %v4203
    %v4244 = vpack.c.bf16 %v4206, %v4205
    %v4245 = vpack.c.bf16 %v4208, %v4207
    %v4246 = vpack.c.bf16 %v4210, %v4209
    %v4247 = vpack.c.bf16 %v4212, %v4211
    %v4248 = vpack.c.bf16 %v4214, %v4213
    %v4249 = vpack.c.bf16 %v4216, %v4215
    %v4250 = vpack.c.bf16 %v4218, %v4217
    %v4251 = vunpack.c.l.bf16 %v4219
    %v4252 = vunpack.c.h.bf16 %v4219
    %v4253 = vunpack.c.l.bf16 %v4220
    %v4254 = vunpack.c.h.bf16 %v4220
    %v4255 = vunpack.c.l.bf16 %v4221
    %v4256 = vunpack.c.h.bf16 %v4221
    %v4257 = vunpack.c.l.bf16 %v4222
    %v4258 = vunpack.c.h.bf16 %v4222
    %v4259 = vunpack.c.l.bf16 %v4223
    %v4260 = vunpack.c.h.bf16 %v4223
    %v4261 = vunpack.c.l.bf16 %v4224
    %v4262 = vunpack.c.h.bf16 %v4224
    %v4263 = vunpack.c.l.bf16 %v4225
    %v4264 = vunpack.c.h.bf16 %v4225
    %v4265 = vunpack.c.l.bf16 %v4226
    %v4266 = vunpack.c.h.bf16 %v4226
    %v4267 = vunpack.c.l.bf16 %v4235
    %v4268 = vunpack.c.h.bf16 %v4235
    %v4269 = vunpack.c.l.bf16 %v4236
    %v4270 = vunpack.c.h.bf16 %v4236
    %v4271 = vunpack.c.l.bf16 %v4237
    %v4272 = vunpack.c.h.bf16 %v4237
    %v4273 = vunpack.c.l.bf16 %v4238
    %v4274 = vunpack.c.h.bf16 %v4238
    %v4275 = vunpack.c.l.bf16 %v4239
    %v4276 = vunpack.c.h.bf16 %v4239
    %v4277 = vunpack.c.l.bf16 %v4240
    %v4278 = vunpack.c.h.bf16 %v4240
    %v4279 = vunpack.c.l.bf16 %v4241
    %v4280 = vunpack.c.h.bf16 %v4241
    %v4281 = vunpack.c.l.bf16 %v4242
    %v4282 = vunpack.c.h.bf16 %v4242
    %v4283 = vmax.f32 %v4251, %v4259
    %v4284 = vrot.slane %v4283, 4
    %v4285 = vmax.f32 %v4283, %v4284
    %v4286 = vrot.slane %v4285, 2
    %v4287 = vmax.f32 %v4285, %v4286
    %v4288 = vrot.slane %v4287, 1
    %v4289 = vmax.f32 %v4287, %v4288
    %v4290 = vmax.f32 %v4252, %v4260
    %v4291 = vrot.slane %v4290, 4
    %v4292 = vmax.f32 %v4290, %v4291
    %v4293 = vrot.slane %v4292, 2
    %v4294 = vmax.f32 %v4292, %v4293
    %v4295 = vrot.slane %v4294, 1
    %v4296 = vmax.f32 %v4294, %v4295
    %v4297 = vmax.f32 %v4253, %v4261
    %v4298 = vrot.slane %v4297, 4
    %v4299 = vmax.f32 %v4297, %v4298
    %v4300 = vrot.slane %v4299, 2
    %v4301 = vmax.f32 %v4299, %v4300
    %v4302 = vrot.slane %v4301, 1
    %v4303 = vmax.f32 %v4301, %v4302
    %v4304 = vmax.f32 %v4254, %v4262
    %v4305 = vrot.slane %v4304, 4
    %v4306 = vmax.f32 %v4304, %v4305
    %v4307 = vrot.slane %v4306, 2
    %v4308 = vmax.f32 %v4306, %v4307
    %v4309 = vrot.slane %v4308, 1
    %v4310 = vmax.f32 %v4308, %v4309
    %v4311 = vmax.f32 %v4255, %v4263
    %v4312 = vrot.slane %v4311, 4
    %v4313 = vmax.f32 %v4311, %v4312
    %v4314 = vrot.slane %v4313, 2
    %v4315 = vmax.f32 %v4313, %v4314
    %v4316 = vrot.slane %v4315, 1
    %v4317 = vmax.f32 %v4315, %v4316
    %v4318 = vmax.f32 %v4256, %v4264
    %v4319 = vrot.slane %v4318, 4
    %v4320 = vmax.f32 %v4318, %v4319
    %v4321 = vrot.slane %v4320, 2
    %v4322 = vmax.f32 %v4320, %v4321
    %v4323 = vrot.slane %v4322, 1
    %v4324 = vmax.f32 %v4322, %v4323
    %v4325 = vmax.f32 %v4257, %v4265
    %v4326 = vrot.slane %v4325, 4
    %v4327 = vmax.f32 %v4325, %v4326
    %v4328 = vrot.slane %v4327, 2
    %v4329 = vmax.f32 %v4327, %v4328
    %v4330 = vrot.slane %v4329, 1
    %v4331 = vmax.f32 %v4329, %v4330
    %v4332 = vmax.f32 %v4258, %v4266
    %v4333 = vrot.slane %v4332, 4
    %v4334 = vmax.f32 %v4332, %v4333
    %v4335 = vrot.slane %v4334, 2
    %v4336 = vmax.f32 %v4334, %v4335
    %v4337 = vrot.slane %v4336, 1
    %v4338 = vmax.f32 %v4336, %v4337
    %v4339 = vmax.f32 %v4267, %v4275
    %v4340 = vrot.slane %v4339, 4
    %v4341 = vmax.f32 %v4339, %v4340
    %v4342 = vrot.slane %v4341, 2
    %v4343 = vmax.f32 %v4341, %v4342
    %v4344 = vrot.slane %v4343, 1
    %v4345 = vmax.f32 %v4343, %v4344
    %v4346 = vmax.f32 %v4268, %v4276
    %v4347 = vrot.slane %v4346, 4
    %v4348 = vmax.f32 %v4346, %v4347
    %v4349 = vrot.slane %v4348, 2
    %v4350 = vmax.f32 %v4348, %v4349
    %v4351 = vrot.slane %v4350, 1
    %v4352 = vmax.f32 %v4350, %v4351
    %v4353 = vmax.f32 %v4269, %v4277
    %v4354 = vrot.slane %v4353, 4
    %v4355 = vmax.f32 %v4353, %v4354
    %v4356 = vrot.slane %v4355, 2
    %v4357 = vmax.f32 %v4355, %v4356
    %v4358 = vrot.slane %v4357, 1
    %v4359 = vmax.f32 %v4357, %v4358
    %v4360 = vmax.f32 %v4270, %v4278
    %v4361 = vrot.slane %v4360, 4
    %v4362 = vmax.f32 %v4360, %v4361
    %v4363 = vrot.slane %v4362, 2
    %v4364 = vmax.f32 %v4362, %v4363
    %v4365 = vrot.slane %v4364, 1
    %v4366 = vmax.f32 %v4364, %v4365
    %v4367 = vmax.f32 %v4271, %v4279
    %v4368 = vrot.slane %v4367, 4
    %v4369 = vmax.f32 %v4367, %v4368
    %v4370 = vrot.slane %v4369, 2
    %v4371 = vmax.f32 %v4369, %v4370
    %v4372 = vrot.slane %v4371, 1
    %v4373 = vmax.f32 %v4371, %v4372
    %v4374 = vmax.f32 %v4272, %v4280
    %v4375 = vrot.slane %v4374, 4
    %v4376 = vmax.f32 %v4374, %v4375
    %v4377 = vrot.slane %v4376, 2
    %v4378 = vmax.f32 %v4376, %v4377
    %v4379 = vrot.slane %v4378, 1
    %v4380 = vmax.f32 %v4378, %v4379
    %v4381 = vmax.f32 %v4273, %v4281
    %v4382 = vrot.slane %v4381, 4
    %v4383 = vmax.f32 %v4381, %v4382
    %v4384 = vrot.slane %v4383, 2
    %v4385 = vmax.f32 %v4383, %v4384
    %v4386 = vrot.slane %v4385, 1
    %v4387 = vmax.f32 %v4385, %v4386
    %v4388 = vmax.f32 %v4274, %v4282
    %v4389 = vrot.slane %v4388, 4
    %v4390 = vmax.f32 %v4388, %v4389
    %v4391 = vrot.slane %v4390, 2
    %v4392 = vmax.f32 %v4390, %v4391
    %v4393 = vrot.slane %v4392, 1
    %v4394 = vmax.f32 %v4392, %v4393
    %v4395 = vmax.f32 %v4289, %v4345
    %v4396 = vmax.f32 %v4296, %v4352
    %v4397 = vmax.f32 %v4303, %v4359
    %v4398 = vmax.f32 %v4310, %v4366
    %v4399 = vmax.f32 %v4317, %v4373
    %v4400 = vmax.f32 %v4324, %v4380
    %v4401 = vmax.f32 %v4331, %v4387
    %v4402 = vmax.f32 %v4338, %v4394
    %v4403 = vunpack.c.l.bf16 %v4227
    %v4404 = vunpack.c.h.bf16 %v4227
    %v4405 = vunpack.c.l.bf16 %v4228
    %v4406 = vunpack.c.h.bf16 %v4228
    %v4407 = vunpack.c.l.bf16 %v4229
    %v4408 = vunpack.c.h.bf16 %v4229
    %v4409 = vunpack.c.l.bf16 %v4230
    %v4410 = vunpack.c.h.bf16 %v4230
    %v4411 = vunpack.c.l.bf16 %v4231
    %v4412 = vunpack.c.h.bf16 %v4231
    %v4413 = vunpack.c.l.bf16 %v4232
    %v4414 = vunpack.c.h.bf16 %v4232
    %v4415 = vunpack.c.l.bf16 %v4233
    %v4416 = vunpack.c.h.bf16 %v4233
    %v4417 = vunpack.c.l.bf16 %v4234
    %v4418 = vunpack.c.h.bf16 %v4234
    %v4419 = vunpack.c.l.bf16 %v4243
    %v4420 = vunpack.c.h.bf16 %v4243
    %v4421 = vunpack.c.l.bf16 %v4244
    %v4422 = vunpack.c.h.bf16 %v4244
    %v4423 = vunpack.c.l.bf16 %v4245
    %v4424 = vunpack.c.h.bf16 %v4245
    %v4425 = vunpack.c.l.bf16 %v4246
    %v4426 = vunpack.c.h.bf16 %v4246
    %v4427 = vunpack.c.l.bf16 %v4247
    %v4428 = vunpack.c.h.bf16 %v4247
    %v4429 = vunpack.c.l.bf16 %v4248
    %v4430 = vunpack.c.h.bf16 %v4248
    %v4431 = vunpack.c.l.bf16 %v4249
    %v4432 = vunpack.c.h.bf16 %v4249
    %v4433 = vunpack.c.l.bf16 %v4250
    %v4434 = vunpack.c.h.bf16 %v4250
    %v4435 = vmax.f32 %v4403, %v4411
    %v4436 = vrot.slane %v4435, 4
    %v4437 = vmax.f32 %v4435, %v4436
    %v4438 = vrot.slane %v4437, 2
    %v4439 = vmax.f32 %v4437, %v4438
    %v4440 = vrot.slane %v4439, 1
    %v4441 = vmax.f32 %v4439, %v4440
    %v4442 = vmax.f32 %v4404, %v4412
    %v4443 = vrot.slane %v4442, 4
    %v4444 = vmax.f32 %v4442, %v4443
    %v4445 = vrot.slane %v4444, 2
    %v4446 = vmax.f32 %v4444, %v4445
    %v4447 = vrot.slane %v4446, 1
    %v4448 = vmax.f32 %v4446, %v4447
    %v4449 = vmax.f32 %v4405, %v4413
    %v4450 = vrot.slane %v4449, 4
    %v4451 = vmax.f32 %v4449, %v4450
    %v4452 = vrot.slane %v4451, 2
    %v4453 = vmax.f32 %v4451, %v4452
    %v4454 = vrot.slane %v4453, 1
    %v4455 = vmax.f32 %v4453, %v4454
    %v4456 = vmax.f32 %v4406, %v4414
    %v4457 = vrot.slane %v4456, 4
    %v4458 = vmax.f32 %v4456, %v4457
    %v4459 = vrot.slane %v4458, 2
    %v4460 = vmax.f32 %v4458, %v4459
    %v4461 = vrot.slane %v4460, 1
    %v4462 = vmax.f32 %v4460, %v4461
    %v4463 = vmax.f32 %v4407, %v4415
    %v4464 = vrot.slane %v4463, 4
    %v4465 = vmax.f32 %v4463, %v4464
    %v4466 = vrot.slane %v4465, 2
    %v4467 = vmax.f32 %v4465, %v4466
    %v4468 = vrot.slane %v4467, 1
    %v4469 = vmax.f32 %v4467, %v4468
    %v4470 = vmax.f32 %v4408, %v4416
    %v4471 = vrot.slane %v4470, 4
    %v4472 = vmax.f32 %v4470, %v4471
    %v4473 = vrot.slane %v4472, 2
    %v4474 = vmax.f32 %v4472, %v4473
    %v4475 = vrot.slane %v4474, 1
    %v4476 = vmax.f32 %v4474, %v4475
    %v4477 = vmax.f32 %v4409, %v4417
    %v4478 = vrot.slane %v4477, 4
    %v4479 = vmax.f32 %v4477, %v4478
    %v4480 = vrot.slane %v4479, 2
    %v4481 = vmax.f32 %v4479, %v4480
    %v4482 = vrot.slane %v4481, 1
    %v4483 = vmax.f32 %v4481, %v4482
    %v4484 = vmax.f32 %v4410, %v4418
    %v4485 = vrot.slane %v4484, 4
    %v4486 = vmax.f32 %v4484, %v4485
    %v4487 = vrot.slane %v4486, 2
    %v4488 = vmax.f32 %v4486, %v4487
    %v4489 = vrot.slane %v4488, 1
    %v4490 = vmax.f32 %v4488, %v4489
    %v4491 = vmax.f32 %v4419, %v4427
    %v4492 = vrot.slane %v4491, 4
    %v4493 = vmax.f32 %v4491, %v4492
    %v4494 = vrot.slane %v4493, 2
    %v4495 = vmax.f32 %v4493, %v4494
    %v4496 = vrot.slane %v4495, 1
    %v4497 = vmax.f32 %v4495, %v4496
    %v4498 = vmax.f32 %v4420, %v4428
    %v4499 = vrot.slane %v4498, 4
    %v4500 = vmax.f32 %v4498, %v4499
    %v4501 = vrot.slane %v4500, 2
    %v4502 = vmax.f32 %v4500, %v4501
    %v4503 = vrot.slane %v4502, 1
    %v4504 = vmax.f32 %v4502, %v4503
    %v4505 = vmax.f32 %v4421, %v4429
    %v4506 = vrot.slane %v4505, 4
    %v4507 = vmax.f32 %v4505, %v4506
    %v4508 = vrot.slane %v4507, 2
    %v4509 = vmax.f32 %v4507, %v4508
    %v4510 = vrot.slane %v4509, 1
    %v4511 = vmax.f32 %v4509, %v4510
    %v4512 = vmax.f32 %v4422, %v4430
    %v4513 = vrot.slane %v4512, 4
    %v4514 = vmax.f32 %v4512, %v4513
    %v4515 = vrot.slane %v4514, 2
    %v4516 = vmax.f32 %v4514, %v4515
    %v4517 = vrot.slane %v4516, 1
    %v4518 = vmax.f32 %v4516, %v4517
    %v4519 = vmax.f32 %v4423, %v4431
    %v4520 = vrot.slane %v4519, 4
    %v4521 = vmax.f32 %v4519, %v4520
    %v4522 = vrot.slane %v4521, 2
    %v4523 = vmax.f32 %v4521, %v4522
    %v4524 = vrot.slane %v4523, 1
    %v4525 = vmax.f32 %v4523, %v4524
    %v4526 = vmax.f32 %v4424, %v4432
    %v4527 = vrot.slane %v4526, 4
    %v4528 = vmax.f32 %v4526, %v4527
    %v4529 = vrot.slane %v4528, 2
    %v4530 = vmax.f32 %v4528, %v4529
    %v4531 = vrot.slane %v4530, 1
    %v4532 = vmax.f32 %v4530, %v4531
    %v4533 = vmax.f32 %v4425, %v4433
    %v4534 = vrot.slane %v4533, 4
    %v4535 = vmax.f32 %v4533, %v4534
    %v4536 = vrot.slane %v4535, 2
    %v4537 = vmax.f32 %v4535, %v4536
    %v4538 = vrot.slane %v4537, 1
    %v4539 = vmax.f32 %v4537, %v4538
    %v4540 = vmax.f32 %v4426, %v4434
    %v4541 = vrot.slane %v4540, 4
    %v4542 = vmax.f32 %v4540, %v4541
    %v4543 = vrot.slane %v4542, 2
    %v4544 = vmax.f32 %v4542, %v4543
    %v4545 = vrot.slane %v4544, 1
    %v4546 = vmax.f32 %v4544, %v4545
    %v4547 = vmax.f32 %v4441, %v4497
    %v4548 = vmax.f32 %v4448, %v4504
    %v4549 = vmax.f32 %v4455, %v4511
    %v4550 = vmax.f32 %v4462, %v4518
    %v4551 = vmax.f32 %v4469, %v4525
    %v4552 = vmax.f32 %v4476, %v4532
    %v4553 = vmax.f32 %v4483, %v4539
    %v4554 = vmax.f32 %v4490, %v4546
    %vm4555 = vcmask 1040384
    %v4556 = vsel %vm4555, %v4395, %v4547
    %v4557 = vsel %vm4555, %v4396, %v4548
    %v4558 = vsel %vm4555, %v4397, %v4549
    %v4559 = vsel %vm4555, %v4398, %v4550
    %v4560 = vsel %vm4555, %v4399, %v4551
    %v4561 = vsel %vm4555, %v4400, %v4552
    %v4562 = vsel %vm4555, %v4401, %v4553
    %v4563 = vsel %vm4555, %v4402, %v4554
    %v4572 = vrot.slane %v4557, 6
    %v4573 = vrot.slane %v4558, 4
    %v4574 = vrot.slane %v4559, 2
    %v4575 = vrot.slane %v4561, 6
    %v4576 = vrot.slane %v4562, 4
    %v4577 = vrot.slane %v4563, 2
    %v4578 = vsel %vm292, %v4556, %v4572
    %vm4579 = vcmask 1045508
    %v4580 = vsel %vm4579, %v4573, %v4574
    %vm4581 = vcmask 1043456
    %v4582 = vsel %vm4581, %v4578, %v4580
    %v4583 = vsel %vm292, %v4560, %v4575
    %v4584 = vsel %vm4579, %v4576, %v4577
    %v4585 = vsel %vm4581, %v4583, %v4584
    %4588 = vst [vmem:[%s17] sm:$0xff] %v4582
    %4589 = vst [vmem:[%s17 + $0x8] sm:$0xff] %v4585
    // Predicated region
    $region74: #{parameter_prediction_net.2} parent=1 // pred_check
      _
    $region75: #{parameter_prediction_net.2} parent=1 // pred_check_branch
      %4591 = sbr.rel (0) target = $region77
    $region76: #{parameter_prediction_net.2} parent=1 // pred_region
      _
    $region77: #{parameter_prediction_net.2} parent=1 // pred_fallthru
      _
    // Predicated region
    $region78: #{parameter_prediction_net.2} parent=1 // pred_check
      _
    $region79: #{parameter_prediction_net.2} parent=1 // pred_check_branch
      %4593 = sbr.rel (0) target = $region81
    $region80: #{parameter_prediction_net.2} parent=1 // pred_region
      _
    $region81: #{parameter_prediction_net.2} parent=1 // pred_fallthru
      _
    %4594 = vsyncpa [#allocation4], 1

</llo_original>
